<compile_context>
chip_gen: v7x
topology: tpu7x:2x2x1
jax: 0.10.0
libtpu: 0.0.40
codegen_flags: <defaults>
</compile_context>

<pallas_src>
import math
import numpy as np

import jax
import jax.numpy as jnp
from jax import lax
from jax.experimental import pallas as pl
from jax.experimental.pallas import tpu as pltpu

CPAD = 16          # unified padded channel width (>= every real channel count here)
HALO = 128         # lane halo on each side of the conv-source buffers (>= W+1, aligned)

# tap order is (kh, kw)-major: t = kh*3 + kw, (dy, dx) = (kh-1, kw-1)
_TAPS = [(-1, -1), (-1, 0), (-1, 1),
         (0, -1),  (0, 0),  (0, 1),
         (1, -1),  (1, 0),  (1, 1)]


# --------------------------------------------------------------------------- #
# Static configuration                                                        #
# --------------------------------------------------------------------------- #
def build_config(batch, in_ch, height, width, growth=4, depth=16,
                 reduction=0.5, n_classes=10):
    n_dense = ((depth - 4) // 3) // 2                   # bottleneck=True
    assert height % 4 == 0 and width % 4 == 0
    stages = []
    H, W = height, width
    for _ in range(3):
        assert W + 1 <= HALO
        stages.append(dict(H=H, W=W, M=batch * H * W))
        H, W = H // 2, W // 2

    # channel bookkeeping -- only to verify CPAD is wide enough
    nC = 2 * growth
    widths = [nC, 4 * growth]
    for s in range(3):
        nC += n_dense * growth
        widths.append(nC)
        if s < 2:
            nC = int(math.floor(nC * reduction))
            widths.append(nC)
    assert max(widths) <= CPAD, f"CPAD={CPAD} too small for channel widths {widths}"

    return dict(batch=batch, in_ch=in_ch, growth=growth, n_dense=n_dense,
                reduction=reduction, n_classes=n_classes, stages=stages,
                n_channels=nC)


# --------------------------------------------------------------------------- #
# Host-precomputed constants (static functions of N, H, W)                    #
# --------------------------------------------------------------------------- #
def _tap_masks(N, H, W):
    """(9, N*H*W) f32: 1 where output pixel m under tap (dy, dx) reads an
    in-bounds pixel of the SAME image, else 0 (kills row/image wraparound)."""
    M = N * H * W
    m = np.arange(M)
    h = (m // W) % H
    w = m % W
    out = np.zeros((9, M), np.float32)
    for t, (dy, dx) in enumerate(_TAPS):
        ok = (h + dy >= 0) & (h + dy < H) & (w + dx >= 0) & (w + dx < W)
        out[t] = ok.astype(np.float32)
    return out


def _pool_matrix(N, H, W):
    """(N*H*W, N*(H/2)*(W/2)) right-multiply matrix for the 2x2 average pool."""
    Ho, Wo = H // 2, W // 2
    Mi, Mo = N * H * W, N * Ho * Wo
    mi = np.arange(Mi)
    ni = mi // (H * W)
    hi = (mi // W) % H
    wi = mi % W
    mo = ni * (Ho * Wo) + (hi // 2) * Wo + (wi // 2)
    P = np.zeros((Mi, Mo), np.float32)
    P[mi, mo] = 0.25
    return P


def _gap_matrix(N, H, W):
    """(N*H*W, N) right-multiply matrix for global average pooling."""
    M = N * H * W
    G = np.zeros((M, N), np.float32)
    G[np.arange(M), np.arange(M) // (H * W)] = 1.0 / (H * W)
    return G


# --------------------------------------------------------------------------- #
# Parameter construction (mirrors DenseNet.__init__, packed + padded to CPAD) #
# --------------------------------------------------------------------------- #
def init_params(key, cfg):
    growth, n_dense = cfg["growth"], cfg["n_dense"]
    reduction, n_classes = cfg["reduction"], cfg["n_classes"]
    in_ch = cfg["in_ch"]
    keys = iter(jax.random.split(key, 64))
    ch = np.arange(CPAD)

    w3_list, w1_list = [], []
    n_bn = 0

    def conv3x3_w(cin, cout, row_off):
        # fused channel-major layout: rows = padded output channels placed at
        # `row_off` (so torch.cat becomes an add), cols = tap-major (t, cin).
        std = math.sqrt(2.0 / (9 * cout))               # PyTorch: sqrt(2/(k*k*cout))
        w = std * jax.random.normal(next(keys), (CPAD, 9, CPAD), jnp.float32)
        w = w * jnp.asarray((ch >= row_off) & (ch < row_off + cout),
                            jnp.float32)[:, None, None]
        w = w * jnp.asarray(ch < cin, jnp.float32)[None, None, :]
        w3_list.append(w.reshape(CPAD, 9 * CPAD))

    def conv1x1_w(cin, cout):
        std = math.sqrt(2.0 / cout)
        w = std * jax.random.normal(next(keys), (CPAD, CPAD), jnp.float32)
        w = w * jnp.asarray(ch < cout, jnp.float32)[:, None]
        w = w * jnp.asarray(ch < cin, jnp.float32)[None, :]
        w1_list.append(w)

    def bn():
        nonlocal n_bn
        n_bn += 1

    nC = 2 * growth
    conv3x3_w(in_ch, nC, 0)                             # stem conv1

    for s in range(3):
        for _ in range(n_dense):                        # Bottleneck layers
            inter = 4 * growth
            bn(); conv1x1_w(nC, inter)                  # bn1, conv1 (1x1)
            bn(); conv3x3_w(inter, growth, nC)          # bn2, conv2 (3x3) -> new rows
            nC += growth
        if s < 2:                                       # transition
            n_out = int(math.floor(nC * reduction))
            bn(); conv1x1_w(nC, n_out)
            nC = n_out
    bn()                                                # final bn1

    bn_g = jnp.ones((CPAD, n_bn), jnp.float32)          # BatchNorm2d weight -> 1
    bn_b = jnp.zeros((CPAD, n_bn), jnp.float32)         # BatchNorm2d bias   -> 0

    bound = 1.0 / math.sqrt(nC)
    fc = jax.random.uniform(next(keys), (n_classes, nC), jnp.float32, -bound, bound)
    fc_wt = jnp.zeros((n_classes, CPAD), jnp.float32).at[:, :nC].set(fc)
    fc_b = jnp.zeros((n_classes, 1), jnp.float32)       # fc bias zeroed in __init__

    return dict(w3=jnp.stack(w3_list), w1=jnp.stack(w1_list),
                bn_g=bn_g, bn_b=bn_b, fc_wt=fc_wt, fc_b=fc_b)


# --------------------------------------------------------------------------- #
# Fused forward pass                                                          #
# --------------------------------------------------------------------------- #
def make_forward(cfg):
    N = cfg["batch"]
    in_ch = cfg["in_ch"]
    n_dense = cfg["n_dense"]
    n_classes = cfg["n_classes"]
    stages = cfg["stages"]
    M0 = stages[0]["M"]

    # ---- host-precomputed constants ----
    tap_masks_np = np.zeros((3, 9, M0), np.float32)
    for s, st in enumerate(stages):
        tap_masks_np[s, :, :st["M"]] = _tap_masks(N, st["H"], st["W"])
    tap_masks = jnp.asarray(tap_masks_np)
    pool0 = jnp.asarray(_pool_matrix(N, stages[0]["H"], stages[0]["W"]))
    pool1 = jnp.asarray(_pool_matrix(N, stages[1]["H"], stages[1]["W"]))
    gap = jnp.asarray(_gap_matrix(N, stages[2]["H"], stages[2]["W"]))

    def kernel(x_ref, w3_ref, w1_ref, bng_ref, bnb_ref, fcw_ref, fcb_ref,
               masks_ref, pool0_ref, pool1_ref, gap_ref,
               out_ref,
               act0, act1, act2, pad0, pad1, pad2, shift_ref):
        acts = (act0, act1, act2)
        pads = (pad0, pad1, pad2)
        pools = (pool0_ref, pool1_ref)
        ctr = {"bn": 0, "w1": 0, "w3": 0}               # trace-time parameter cursors

        # Zero ONLY the halo regions of the conv-source buffers; interiors are
        # overwritten before every use.  Right halo start is kept 128-aligned.
        for s in range(3):
            M = stages[s]["M"]
            pads[s][:, 0:HALO] = jnp.zeros((CPAD, HALO), jnp.float32)
            tail = HALO + (M // HALO) * HALO
            zw = M + 2 * HALO - tail
            pads[s][:, tail:tail + zw] = jnp.zeros((CPAD, zw), jnp.float32)

        def bn_relu(x, M):
            # Training-mode BatchNorm (batch stats, biased variance, eps=1e-5)
            # fused with ReLU.  Single pass: var = E[x^2] - E[x]^2; affine folded
            # into one scale/shift.  Channels live on sublanes, so the sums are
            # dense cross-lane reductions.
            i = ctr["bn"]; ctr["bn"] += 1
            g = bng_ref[:, i:i + 1]                     # (CPAD, 1)
            b = bnb_ref[:, i:i + 1]
            s1 = jnp.sum(x, axis=1, keepdims=True)
            s2 = jnp.sum(x * x, axis=1, keepdims=True)
            mu = s1 * (1.0 / M)
            var = s2 * (1.0 / M) - mu * mu
            scale = g * lax.rsqrt(var + 1e-5)
            shift = b - mu * scale
            return jnp.maximum(x * scale + shift, 0.0)

        def conv1x1(x):
            i = ctr["w1"]; ctr["w1"] += 1
            return jnp.dot(w1_ref[i], x, preferred_element_type=jnp.float32)

        def conv3x3(h, s):
            # 3x3 / pad=1 conv as ONE K=9*CPAD matmul: stage the 9 shifted slabs
            # of the zero-haloed source contiguously in `shift_ref`, multiplied
            # by the host-precomputed per-tap boundary masks, then contract
            # against the (CPAD, 144) weight (accumulation stays in the MXU).
            st = stages[s]
            W, M = st["W"], st["M"]
            i = ctr["w3"]; ctr["w3"] += 1
            src_buf = pads[s]
            src_buf[:, HALO:HALO + M] = h               # aligned interior store
            mk = masks_ref[s]                           # (9, M0) tap masks
            for t, (dy, dx) in enumerate(_TAPS):
                off = dy * W + dx
                slab = src_buf[:, HALO + off:HALO + off + M]
                if off != 0:
                    slab = slab * mk[t:t + 1, :M]
                shift_ref[t * CPAD:(t + 1) * CPAD, 0:M] = slab
            return jnp.dot(w3_ref[i], shift_ref[:, 0:M],
                           preferred_element_type=jnp.float32)

        # ---- stem: 3x3 conv (pad=1, no bias).  Dropout2d(p=0) is identity. ----
        acts[0][...] = conv3x3(x_ref[...], 0)

        for s in range(3):
            M = stages[s]["M"]
            act = acts[s]

            # ---- dense stage: n_dense Bottleneck layers ----
            for _ in range(n_dense):
                x = act[...]
                h = bn_relu(x, M)
                h = conv1x1(h)                          # 1x1 conv -> interChannels
                h = bn_relu(h, M)
                # conv2 (3x3): its weight rows already sit at this layer's channel
                # offset, so torch.cat((x, out), 1) is a copy-free add.
                act[...] = x + conv3x3(h, s)

            if s < 2:
                # ---- transition: BN + ReLU + 1x1 conv + 2x2 average pool ----
                y = conv1x1(bn_relu(act[...], M))
                acts[s + 1][...] = jnp.dot(y, pools[s][...],
                                           preferred_element_type=jnp.float32)

        # ---- head: BN + ReLU + global average pool + FC ----
        M2 = stages[2]["M"]
        hh = bn_relu(acts[2][...], M2)
        pooled = jnp.dot(hh, gap_ref[...], preferred_element_type=jnp.float32)   # (CPAD, N)
        out_ref[...] = (jnp.dot(fcw_ref[...], pooled,
                                preferred_element_type=jnp.float32)
                        + fcb_ref[...])                                           # (nClasses, N)

    scratch_shapes = (
        [pltpu.VMEM((CPAD, st["M"]), jnp.float32) for st in stages] +             # activations
        [pltpu.VMEM((CPAD, st["M"] + 2 * HALO), jnp.float32) for st in stages] +  # halo'd conv src
        [pltpu.VMEM((9 * CPAD, M0), jnp.float32)]                                 # fused-tap staging
    )

    @jax.jit
    def forward(params, x_nchw):
        # NCHW -> channel-major (CPAD, N*H*W): the big axis goes on lanes.
        x = jnp.transpose(x_nchw.astype(jnp.float32), (1, 0, 2, 3)).reshape(in_ch, M0)
        x = jnp.pad(x, ((0, CPAD - in_ch), (0, 0)))
        args = [x, params["w3"], params["w1"], params["bn_g"], params["bn_b"],
                params["fc_wt"], params["fc_b"], tap_masks, pool0, pool1, gap]
        logits_t = pl.pallas_call(
            kernel,
            out_shape=jax.ShapeDtypeStruct((n_classes, N), jnp.float32),
            grid=(1,),
            in_specs=[pl.BlockSpec(a.shape, lambda i, nd=a.ndim: (0,) * nd)
                      for a in args],
            out_specs=pl.BlockSpec((n_classes, N), lambda i: (0, 0)),
            scratch_shapes=scratch_shapes,
            compiler_params=pltpu.CompilerParams(
                dimension_semantics=("arbitrary",)),
        )(*args)
        return logits_t.T                               # (N, nClasses)

    return forward


# --------------------------------------------------------------------------- #
if __name__ == "__main__":
    key = jax.random.PRNGKey(0)
    k_params, k_input = jax.random.split(key)

    cfg = build_config(batch=2, in_ch=1, height=16, width=16,
                       growth=4, depth=16, reduction=0.5, n_classes=10)
    params = init_params(k_params, cfg)
    forward = make_forward(cfg)

    # small shapes consistent with the module: batch=2, 1 channel, 16x16 spatial
    x = jax.random.normal(k_input, (2, 1, 16, 16), dtype=jnp.float32)

    out = jax.block_until_ready(forward(params, x))

    assert out.shape == (2, 10), out.shape
    assert bool(jnp.all(jnp.isfinite(out)))
    print("KERNEL_OK")
</pallas_src>

<mosaic_0001>
module attributes {stable_mosaic.version = 11 : i64} {
  func.func @kernel(%arg0: i32, %arg1: memref<16x512xf32, #tpu.memory_space<vmem>>, %arg2: memref<7x16x144xf32, #tpu.memory_space<vmem>>, %arg3: memref<8x16x16xf32, #tpu.memory_space<vmem>>, %arg4: memref<16x15xf32, #tpu.memory_space<vmem>>, %arg5: memref<16x15xf32, #tpu.memory_space<vmem>>, %arg6: memref<10x16xf32, #tpu.memory_space<vmem>>, %arg7: memref<10x1xf32, #tpu.memory_space<vmem>>, %arg8: memref<3x9x512xf32, #tpu.memory_space<vmem>>, %arg9: memref<512x128xf32, #tpu.memory_space<vmem>>, %arg10: memref<128x32xf32, #tpu.memory_space<vmem>>, %arg11: memref<32x2xf32, #tpu.memory_space<vmem>>, %arg12: memref<10x2xf32, #tpu.memory_space<vmem>>, %arg13: memref<16x512xf32, #tpu.memory_space<vmem>>, %arg14: memref<16x128xf32, #tpu.memory_space<vmem>>, %arg15: memref<16x32xf32, #tpu.memory_space<vmem>>, %arg16: memref<16x768xf32, #tpu.memory_space<vmem>>, %arg17: memref<16x384xf32, #tpu.memory_space<vmem>>, %arg18: memref<16x288xf32, #tpu.memory_space<vmem>>, %arg19: memref<144x512xf32, #tpu.memory_space<vmem>>) attributes {dimension_semantics = [#tpu.dimension_semantics<arbitrary>], iteration_bounds = array<i64: 1>, scalar_prefetch = 0 : i64, scratch_operands = 7 : i64, tpu.core_type = #tpu.core_type<tc>, window_params = [{pipeline_mode = #tpu.pipeline_mode<synchronous>, transform_indices = @transform_0, window_bounds = array<i64: 16, 512>}, {pipeline_mode = #tpu.pipeline_mode<synchronous>, transform_indices = @transform_1, window_bounds = array<i64: 7, 16, 144>}, {pipeline_mode = #tpu.pipeline_mode<synchronous>, transform_indices = @transform_2, window_bounds = array<i64: 8, 16, 16>}, {pipeline_mode = #tpu.pipeline_mode<synchronous>, transform_indices = @transform_3, window_bounds = array<i64: 16, 15>}, {pipeline_mode = #tpu.pipeline_mode<synchronous>, transform_indices = @transform_4, window_bounds = array<i64: 16, 15>}, {pipeline_mode = #tpu.pipeline_mode<synchronous>, transform_indices = @transform_5, window_bounds = array<i64: 10, 16>}, {pipeline_mode = #tpu.pipeline_mode<synchronous>, transform_indices = @transform_6, window_bounds = array<i64: 10, 1>}, {pipeline_mode = #tpu.pipeline_mode<synchronous>, transform_indices = @transform_7, window_bounds = array<i64: 3, 9, 512>}, {pipeline_mode = #tpu.pipeline_mode<synchronous>, transform_indices = @transform_8, window_bounds = array<i64: 512, 128>}, {pipeline_mode = #tpu.pipeline_mode<synchronous>, transform_indices = @transform_9, window_bounds = array<i64: 128, 32>}, {pipeline_mode = #tpu.pipeline_mode<synchronous>, transform_indices = @transform_10, window_bounds = array<i64: 32, 2>}, {pipeline_mode = #tpu.pipeline_mode<synchronous>, transform_indices = @transform_11, window_bounds = array<i64: 10, 2>}]} {
    %cst = arith.constant 0.000000e+00 : f32
    %0 = vector.broadcast %cst : f32 to vector<16x128xf32>
    %c0 = arith.constant 0 : index
    %c0_0 = arith.constant 0 : index
    %1 = vector.load %arg16[%c0, %c0_0] : memref<16x768xf32, #tpu.memory_space<vmem>>, vector<16x128xf32>
    tpu.vector_store %arg16[%c0, %c0_0], %0 {strides = array<i32>} : memref<16x768xf32, #tpu.memory_space<vmem>>, vector<16x128xf32>,
    %cst_1 = arith.constant 0.000000e+00 : f32
    %2 = vector.broadcast %cst_1 : f32 to vector<16x128xf32>
    %c0_2 = arith.constant 0 : index
    %c640 = arith.constant 640 : index
    %3 = vector.load %arg16[%c0_2, %c640] : memref<16x768xf32, #tpu.memory_space<vmem>>, vector<16x128xf32>
    tpu.vector_store %arg16[%c0_2, %c640], %2 {strides = array<i32>} : memref<16x768xf32, #tpu.memory_space<vmem>>, vector<16x128xf32>,
    %cst_3 = arith.constant 0.000000e+00 : f32
    %4 = vector.broadcast %cst_3 : f32 to vector<16x128xf32>
    %c0_4 = arith.constant 0 : index
    %c0_5 = arith.constant 0 : index
    %5 = vector.load %arg17[%c0_4, %c0_5] : memref<16x384xf32, #tpu.memory_space<vmem>>, vector<16x128xf32>
    tpu.vector_store %arg17[%c0_4, %c0_5], %4 {strides = array<i32>} : memref<16x384xf32, #tpu.memory_space<vmem>>, vector<16x128xf32>,
    %cst_6 = arith.constant 0.000000e+00 : f32
    %6 = vector.broadcast %cst_6 : f32 to vector<16x128xf32>
    %c0_7 = arith.constant 0 : index
    %c256 = arith.constant 256 : index
    %7 = vector.load %arg17[%c0_7, %c256] : memref<16x384xf32, #tpu.memory_space<vmem>>, vector<16x128xf32>
    tpu.vector_store %arg17[%c0_7, %c256], %6 {strides = array<i32>} : memref<16x384xf32, #tpu.memory_space<vmem>>, vector<16x128xf32>,
    %cst_8 = arith.constant 0.000000e+00 : f32
    %8 = vector.broadcast %cst_8 : f32 to vector<16x128xf32>
    %c0_9 = arith.constant 0 : index
    %c0_10 = arith.constant 0 : index
    %9 = vector.load %arg18[%c0_9, %c0_10] : memref<16x288xf32, #tpu.memory_space<vmem>>, vector<16x128xf32>
    tpu.vector_store %arg18[%c0_9, %c0_10], %8 {strides = array<i32>} : memref<16x288xf32, #tpu.memory_space<vmem>>, vector<16x128xf32>,
    %cst_11 = arith.constant 0.000000e+00 : f32
    %10 = vector.broadcast %cst_11 : f32 to vector<16x160xf32>
    %c0_12 = arith.constant 0 : index
    %c128 = arith.constant 128 : index
    %11 = vector.load %arg18[%c0_12, %c128] : memref<16x288xf32, #tpu.memory_space<vmem>>, vector<16x160xf32>
    tpu.vector_store %arg18[%c0_12, %c128], %10 {strides = array<i32>} : memref<16x288xf32, #tpu.memory_space<vmem>>, vector<16x160xf32>,
    %c0_13 = arith.constant 0 : index
    %c0_14 = arith.constant 0 : index
    %12 = vector.load %arg1[%c0_13, %c0_14] : memref<16x512xf32, #tpu.memory_space<vmem>>, vector<16x512xf32>
    %c0_15 = arith.constant 0 : index
    %c128_16 = arith.constant 128 : index
    %13 = vector.load %arg16[%c0_15, %c128_16] : memref<16x768xf32, #tpu.memory_space<vmem>>, vector<16x512xf32>
    tpu.vector_store %arg16[%c0_15, %c128_16], %12 {strides = array<i32>} : memref<16x768xf32, #tpu.memory_space<vmem>>, vector<16x512xf32>,
    %c0_17 = arith.constant 0 : index
    %c0_18 = arith.constant 0 : index
    %c0_19 = arith.constant 0 : index
    %14 = vector.load %arg8[%c0_17, %c0_18, %c0_19] : memref<3x9x512xf32, #tpu.memory_space<vmem>>, vector<1x9x512xf32>
    %15 = vector.shape_cast %14 : vector<1x9x512xf32> to vector<9x512xf32>
    %c0_20 = arith.constant 0 : index
    %c111 = arith.constant 111 : index
    %16 = vector.load %arg16[%c0_20, %c111] : memref<16x768xf32, #tpu.memory_space<vmem>>, vector<16x512xf32>
    %17 = vector.extract_strided_slice %15 {offsets = [0, 0], sizes = [1, 512], strides = [1, 1]} : vector<9x512xf32> to vector<1x512xf32>
    %18 = vector.broadcast %17 : vector<1x512xf32> to vector<16x512xf32>
    %19 = arith.mulf %16, %18 : vector<16x512xf32>
    %c0_21 = arith.constant 0 : index
    %c0_22 = arith.constant 0 : index
    %20 = vector.load %arg19[%c0_21, %c0_22] : memref<144x512xf32, #tpu.memory_space<vmem>>, vector<16x512xf32>
    tpu.vector_store %arg19[%c0_21, %c0_22], %19 {strides = array<i32>} : memref<144x512xf32, #tpu.memory_space<vmem>>, vector<16x512xf32>,
    %c0_23 = arith.constant 0 : index
    %c112 = arith.constant 112 : index
    %21 = vector.load %arg16[%c0_23, %c112] : memref<16x768xf32, #tpu.memory_space<vmem>>, vector<16x512xf32>
    %22 = vector.extract_strided_slice %15 {offsets = [1, 0], sizes = [1, 512], strides = [1, 1]} : vector<9x512xf32> to vector<1x512xf32>
    %23 = vector.broadcast %22 : vector<1x512xf32> to vector<16x512xf32>
    %24 = arith.mulf %21, %23 : vector<16x512xf32>
    %c16 = arith.constant 16 : index
    %c0_24 = arith.constant 0 : index
    %25 = vector.load %arg19[%c16, %c0_24] : memref<144x512xf32, #tpu.memory_space<vmem>>, vector<16x512xf32>
    tpu.vector_store %arg19[%c16, %c0_24], %24 {strides = array<i32>} : memref<144x512xf32, #tpu.memory_space<vmem>>, vector<16x512xf32>,
    %c0_25 = arith.constant 0 : index
    %c113 = arith.constant 113 : index
    %26 = vector.load %arg16[%c0_25, %c113] : memref<16x768xf32, #tpu.memory_space<vmem>>, vector<16x512xf32>
    %27 = vector.extract_strided_slice %15 {offsets = [2, 0], sizes = [1, 512], strides = [1, 1]} : vector<9x512xf32> to vector<1x512xf32>
    %28 = vector.broadcast %27 : vector<1x512xf32> to vector<16x512xf32>
    %29 = arith.mulf %26, %28 : vector<16x512xf32>
    %c32 = arith.constant 32 : index
    %c0_26 = arith.constant 0 : index
    %30 = vector.load %arg19[%c32, %c0_26] : memref<144x512xf32, #tpu.memory_space<vmem>>, vector<16x512xf32>
    tpu.vector_store %arg19[%c32, %c0_26], %29 {strides = array<i32>} : memref<144x512xf32, #tpu.memory_space<vmem>>, vector<16x512xf32>,
    %c0_27 = arith.constant 0 : index
    %c127 = arith.constant 127 : index
    %31 = vector.load %arg16[%c0_27, %c127] : memref<16x768xf32, #tpu.memory_space<vmem>>, vector<16x512xf32>
    %32 = vector.extract_strided_slice %15 {offsets = [3, 0], sizes = [1, 512], strides = [1, 1]} : vector<9x512xf32> to vector<1x512xf32>
    %33 = vector.broadcast %32 : vector<1x512xf32> to vector<16x512xf32>
    %34 = arith.mulf %31, %33 : vector<16x512xf32>
    %c48 = arith.constant 48 : index
    %c0_28 = arith.constant 0 : index
    %35 = vector.load %arg19[%c48, %c0_28] : memref<144x512xf32, #tpu.memory_space<vmem>>, vector<16x512xf32>
    tpu.vector_store %arg19[%c48, %c0_28], %34 {strides = array<i32>} : memref<144x512xf32, #tpu.memory_space<vmem>>, vector<16x512xf32>,
    %c0_29 = arith.constant 0 : index
    %c128_30 = arith.constant 128 : index
    %36 = vector.load %arg16[%c0_29, %c128_30] : memref<16x768xf32, #tpu.memory_space<vmem>>, vector<16x512xf32>
    %c64 = arith.constant 64 : index
    %c0_31 = arith.constant 0 : index
    %37 = vector.load %arg19[%c64, %c0_31] : memref<144x512xf32, #tpu.memory_space<vmem>>, vector<16x512xf32>
    tpu.vector_store %arg19[%c64, %c0_31], %36 {strides = array<i32>} : memref<144x512xf32, #tpu.memory_space<vmem>>, vector<16x512xf32>,
    %c0_32 = arith.constant 0 : index
    %c129 = arith.constant 129 : index
    %38 = vector.load %arg16[%c0_32, %c129] : memref<16x768xf32, #tpu.memory_space<vmem>>, vector<16x512xf32>
    %39 = vector.extract_strided_slice %15 {offsets = [5, 0], sizes = [1, 512], strides = [1, 1]} : vector<9x512xf32> to vector<1x512xf32>
    %40 = vector.broadcast %39 : vector<1x512xf32> to vector<16x512xf32>
    %41 = arith.mulf %38, %40 : vector<16x512xf32>
    %c80 = arith.constant 80 : index
    %c0_33 = arith.constant 0 : index
    %42 = vector.load %arg19[%c80, %c0_33] : memref<144x512xf32, #tpu.memory_space<vmem>>, vector<16x512xf32>
    tpu.vector_store %arg19[%c80, %c0_33], %41 {strides = array<i32>} : memref<144x512xf32, #tpu.memory_space<vmem>>, vector<16x512xf32>,
    %c0_34 = arith.constant 0 : index
    %c143 = arith.constant 143 : index
    %43 = vector.load %arg16[%c0_34, %c143] : memref<16x768xf32, #tpu.memory_space<vmem>>, vector<16x512xf32>
    %44 = vector.extract_strided_slice %15 {offsets = [6, 0], sizes = [1, 512], strides = [1, 1]} : vector<9x512xf32> to vector<1x512xf32>
    %45 = vector.broadcast %44 : vector<1x512xf32> to vector<16x512xf32>
    %46 = arith.mulf %43, %45 : vector<16x512xf32>
    %c96 = arith.constant 96 : index
    %c0_35 = arith.constant 0 : index
    %47 = vector.load %arg19[%c96, %c0_35] : memref<144x512xf32, #tpu.memory_space<vmem>>, vector<16x512xf32>
    tpu.vector_store %arg19[%c96, %c0_35], %46 {strides = array<i32>} : memref<144x512xf32, #tpu.memory_space<vmem>>, vector<16x512xf32>,
    %c0_36 = arith.constant 0 : index
    %c144 = arith.constant 144 : index
    %48 = vector.load %arg16[%c0_36, %c144] : memref<16x768xf32, #tpu.memory_space<vmem>>, vector<16x512xf32>
    %49 = vector.extract_strided_slice %15 {offsets = [7, 0], sizes = [1, 512], strides = [1, 1]} : vector<9x512xf32> to vector<1x512xf32>
    %50 = vector.broadcast %49 : vector<1x512xf32> to vector<16x512xf32>
    %51 = arith.mulf %48, %50 : vector<16x512xf32>
    %c112_37 = arith.constant 112 : index
    %c0_38 = arith.constant 0 : index
    %52 = vector.load %arg19[%c112_37, %c0_38] : memref<144x512xf32, #tpu.memory_space<vmem>>, vector<16x512xf32>
    tpu.vector_store %arg19[%c112_37, %c0_38], %51 {strides = array<i32>} : memref<144x512xf32, #tpu.memory_space<vmem>>, vector<16x512xf32>,
    %c0_39 = arith.constant 0 : index
    %c145 = arith.constant 145 : index
    %53 = vector.load %arg16[%c0_39, %c145] : memref<16x768xf32, #tpu.memory_space<vmem>>, vector<16x512xf32>
    %54 = vector.extract_strided_slice %15 {offsets = [8, 0], sizes = [1, 512], strides = [1, 1]} : vector<9x512xf32> to vector<1x512xf32>
    %55 = vector.broadcast %54 : vector<1x512xf32> to vector<16x512xf32>
    %56 = arith.mulf %53, %55 : vector<16x512xf32>
    %c128_40 = arith.constant 128 : index
    %c0_41 = arith.constant 0 : index
    %57 = vector.load %arg19[%c128_40, %c0_41] : memref<144x512xf32, #tpu.memory_space<vmem>>, vector<16x512xf32>
    tpu.vector_store %arg19[%c128_40, %c0_41], %56 {strides = array<i32>} : memref<144x512xf32, #tpu.memory_space<vmem>>, vector<16x512xf32>,
    %c0_42 = arith.constant 0 : index
    %c0_43 = arith.constant 0 : index
    %c0_44 = arith.constant 0 : index
    %58 = vector.load %arg2[%c0_42, %c0_43, %c0_44] : memref<7x16x144xf32, #tpu.memory_space<vmem>>, vector<1x16x144xf32>
    %59 = vector.shape_cast %58 : vector<1x16x144xf32> to vector<16x144xf32>
    %c0_45 = arith.constant 0 : index
    %c0_46 = arith.constant 0 : index
    %60 = vector.load %arg19[%c0_45, %c0_46] : memref<144x512xf32, #tpu.memory_space<vmem>>, vector<144x512xf32>
    %cst_47 = arith.constant dense<0.000000e+00> : vector<16x512xf32>
    %61 = tpu.matmul %59, %60, %cst_47 {dimension_numbers = #tpu.dot_dimension_numbers<[1], [0], [0], [1], [0, 0, 1, 1], [], []>} : vector<16x144xf32>, vector<144x512xf32>, vector<16x512xf32> -> vector<16x512xf32>
    %c0_48 = arith.constant 0 : index
    %c0_49 = arith.constant 0 : index
    %62 = vector.load %arg13[%c0_48, %c0_49] : memref<16x512xf32, #tpu.memory_space<vmem>>, vector<16x512xf32>
    tpu.vector_store %arg13[%c0_48, %c0_49], %61 {strides = array<i32>} : memref<16x512xf32, #tpu.memory_space<vmem>>, vector<16x512xf32>,
    %c0_50 = arith.constant 0 : index
    %c0_51 = arith.constant 0 : index
    %63 = vector.load %arg13[%c0_50, %c0_51] : memref<16x512xf32, #tpu.memory_space<vmem>>, vector<16x512xf32>
    %c0_52 = arith.constant 0 : index
    %c0_53 = arith.constant 0 : index
    %64 = vector.load %arg4[%c0_52, %c0_53] : memref<16x15xf32, #tpu.memory_space<vmem>>, vector<16x1xf32>
    %c0_54 = arith.constant 0 : index
    %c0_55 = arith.constant 0 : index
    %65 = vector.load %arg5[%c0_54, %c0_55] : memref<16x15xf32, #tpu.memory_space<vmem>>, vector<16x1xf32>
    %cst_56 = arith.constant dense<0.000000e+00> : vector<16xf32>
    %66 = vector.multi_reduction <add>, %63, %cst_56 [1] : vector<16x512xf32> to vector<16xf32>
    %67 = vector.shape_cast %66 : vector<16xf32> to vector<16x1xf32>
    %68 = arith.mulf %63, %63 : vector<16x512xf32>
    %cst_57 = arith.constant dense<0.000000e+00> : vector<16xf32>
    %69 = vector.multi_reduction <add>, %68, %cst_57 [1] : vector<16x512xf32> to vector<16xf32>
    %70 = vector.shape_cast %69 : vector<16xf32> to vector<16x1xf32>
    %cst_58 = arith.constant 0.001953125 : f32
    %71 = vector.broadcast %cst_58 : f32 to vector<16x1xf32>
    %72 = arith.mulf %67, %71 : vector<16x1xf32>
    %cst_59 = arith.constant 0.001953125 : f32
    %73 = vector.broadcast %cst_59 : f32 to vector<16x1xf32>
    %74 = arith.mulf %70, %73 : vector<16x1xf32>
    %75 = arith.mulf %72, %72 : vector<16x1xf32>
    %76 = arith.subf %74, %75 : vector<16x1xf32>
    %cst_60 = arith.constant 9.99999974E-6 : f32
    %77 = vector.broadcast %cst_60 : f32 to vector<16x1xf32>
    %78 = arith.addf %76, %77 : vector<16x1xf32>
    %79 = math.rsqrt %78 : vector<16x1xf32>
    %80 = arith.mulf %64, %79 : vector<16x1xf32>
    %81 = arith.mulf %72, %80 : vector<16x1xf32>
    %82 = arith.subf %65, %81 : vector<16x1xf32>
    %83 = vector.broadcast %80 : vector<16x1xf32> to vector<16x512xf32>
    %84 = arith.mulf %63, %83 : vector<16x512xf32>
    %85 = vector.broadcast %82 : vector<16x1xf32> to vector<16x512xf32>
    %86 = arith.addf %84, %85 : vector<16x512xf32>
    %cst_61 = arith.constant 0.000000e+00 : f32
    %87 = vector.broadcast %cst_61 : f32 to vector<16x512xf32>
    %88 = arith.maximumf %86, %87 : vector<16x512xf32>
    %c0_62 = arith.constant 0 : index
    %c0_63 = arith.constant 0 : index
    %c0_64 = arith.constant 0 : index
    %89 = vector.load %arg3[%c0_62, %c0_63, %c0_64] : memref<8x16x16xf32, #tpu.memory_space<vmem>>, vector<1x16x16xf32>
    %90 = vector.shape_cast %89 : vector<1x16x16xf32> to vector<16x16xf32>
    %cst_65 = arith.constant dense<0.000000e+00> : vector<16x512xf32>
    %91 = tpu.matmul %90, %88, %cst_65 {dimension_numbers = #tpu.dot_dimension_numbers<[1], [0], [0], [1], [0, 0, 1, 1], [], []>} : vector<16x16xf32>, vector<16x512xf32>, vector<16x512xf32> -> vector<16x512xf32>
    %c0_66 = arith.constant 0 : index
    %c1 = arith.constant 1 : index
    %92 = vector.load %arg4[%c0_66, %c1] : memref<16x15xf32, #tpu.memory_space<vmem>>, vector<16x1xf32>
    %c0_67 = arith.constant 0 : index
    %c1_68 = arith.constant 1 : index
    %93 = vector.load %arg5[%c0_67, %c1_68] : memref<16x15xf32, #tpu.memory_space<vmem>>, vector<16x1xf32>
    %cst_69 = arith.constant dense<0.000000e+00> : vector<16xf32>
    %94 = vector.multi_reduction <add>, %91, %cst_69 [1] : vector<16x512xf32> to vector<16xf32>
    %95 = vector.shape_cast %94 : vector<16xf32> to vector<16x1xf32>
    %96 = arith.mulf %91, %91 : vector<16x512xf32>
    %cst_70 = arith.constant dense<0.000000e+00> : vector<16xf32>
    %97 = vector.multi_reduction <add>, %96, %cst_70 [1] : vector<16x512xf32> to vector<16xf32>
    %98 = vector.shape_cast %97 : vector<16xf32> to vector<16x1xf32>
    %cst_71 = arith.constant 0.001953125 : f32
    %99 = vector.broadcast %cst_71 : f32 to vector<16x1xf32>
    %100 = arith.mulf %95, %99 : vector<16x1xf32>
    %cst_72 = arith.constant 0.001953125 : f32
    %101 = vector.broadcast %cst_72 : f32 to vector<16x1xf32>
    %102 = arith.mulf %98, %101 : vector<16x1xf32>
    %103 = arith.mulf %100, %100 : vector<16x1xf32>
    %104 = arith.subf %102, %103 : vector<16x1xf32>
    %cst_73 = arith.constant 9.99999974E-6 : f32
    %105 = vector.broadcast %cst_73 : f32 to vector<16x1xf32>
    %106 = arith.addf %104, %105 : vector<16x1xf32>
    %107 = math.rsqrt %106 : vector<16x1xf32>
    %108 = arith.mulf %92, %107 : vector<16x1xf32>
    %109 = arith.mulf %100, %108 : vector<16x1xf32>
    %110 = arith.subf %93, %109 : vector<16x1xf32>
    %111 = vector.broadcast %108 : vector<16x1xf32> to vector<16x512xf32>
    %112 = arith.mulf %91, %111 : vector<16x512xf32>
    %113 = vector.broadcast %110 : vector<16x1xf32> to vector<16x512xf32>
    %114 = arith.addf %112, %113 : vector<16x512xf32>
    %cst_74 = arith.constant 0.000000e+00 : f32
    %115 = vector.broadcast %cst_74 : f32 to vector<16x512xf32>
    %116 = arith.maximumf %114, %115 : vector<16x512xf32>
    %c0_75 = arith.constant 0 : index
    %c128_76 = arith.constant 128 : index
    %117 = vector.load %arg16[%c0_75, %c128_76] : memref<16x768xf32, #tpu.memory_space<vmem>>, vector<16x512xf32>
    tpu.vector_store %arg16[%c0_75, %c128_76], %116 {strides = array<i32>} : memref<16x768xf32, #tpu.memory_space<vmem>>, vector<16x512xf32>,
    %c0_77 = arith.constant 0 : index
    %c0_78 = arith.constant 0 : index
    %c0_79 = arith.constant 0 : index
    %118 = vector.load %arg8[%c0_77, %c0_78, %c0_79] : memref<3x9x512xf32, #tpu.memory_space<vmem>>, vector<1x9x512xf32>
    %119 = vector.shape_cast %118 : vector<1x9x512xf32> to vector<9x512xf32>
    %c0_80 = arith.constant 0 : index
    %c111_81 = arith.constant 111 : index
    %120 = vector.load %arg16[%c0_80, %c111_81] : memref<16x768xf32, #tpu.memory_space<vmem>>, vector<16x512xf32>
    %121 = vector.extract_strided_slice %119 {offsets = [0, 0], sizes = [1, 512], strides = [1, 1]} : vector<9x512xf32> to vector<1x512xf32>
    %122 = vector.broadcast %121 : vector<1x512xf32> to vector<16x512xf32>
    %123 = arith.mulf %120, %122 : vector<16x512xf32>
    %c0_82 = arith.constant 0 : index
    %c0_83 = arith.constant 0 : index
    %124 = vector.load %arg19[%c0_82, %c0_83] : memref<144x512xf32, #tpu.memory_space<vmem>>, vector<16x512xf32>
    tpu.vector_store %arg19[%c0_82, %c0_83], %123 {strides = array<i32>} : memref<144x512xf32, #tpu.memory_space<vmem>>, vector<16x512xf32>,
    %c0_84 = arith.constant 0 : index
    %c112_85 = arith.constant 112 : index
    %125 = vector.load %arg16[%c0_84, %c112_85] : memref<16x768xf32, #tpu.memory_space<vmem>>, vector<16x512xf32>
    %126 = vector.extract_strided_slice %119 {offsets = [1, 0], sizes = [1, 512], strides = [1, 1]} : vector<9x512xf32> to vector<1x512xf32>
    %127 = vector.broadcast %126 : vector<1x512xf32> to vector<16x512xf32>
    %128 = arith.mulf %125, %127 : vector<16x512xf32>
    %c16_86 = arith.constant 16 : index
    %c0_87 = arith.constant 0 : index
    %129 = vector.load %arg19[%c16_86, %c0_87] : memref<144x512xf32, #tpu.memory_space<vmem>>, vector<16x512xf32>
    tpu.vector_store %arg19[%c16_86, %c0_87], %128 {strides = array<i32>} : memref<144x512xf32, #tpu.memory_space<vmem>>, vector<16x512xf32>,
    %c0_88 = arith.constant 0 : index
    %c113_89 = arith.constant 113 : index
    %130 = vector.load %arg16[%c0_88, %c113_89] : memref<16x768xf32, #tpu.memory_space<vmem>>, vector<16x512xf32>
    %131 = vector.extract_strided_slice %119 {offsets = [2, 0], sizes = [1, 512], strides = [1, 1]} : vector<9x512xf32> to vector<1x512xf32>
    %132 = vector.broadcast %131 : vector<1x512xf32> to vector<16x512xf32>
    %133 = arith.mulf %130, %132 : vector<16x512xf32>
    %c32_90 = arith.constant 32 : index
    %c0_91 = arith.constant 0 : index
    %134 = vector.load %arg19[%c32_90, %c0_91] : memref<144x512xf32, #tpu.memory_space<vmem>>, vector<16x512xf32>
    tpu.vector_store %arg19[%c32_90, %c0_91], %133 {strides = array<i32>} : memref<144x512xf32, #tpu.memory_space<vmem>>, vector<16x512xf32>,
    %c0_92 = arith.constant 0 : index
    %c127_93 = arith.constant 127 : index
    %135 = vector.load %arg16[%c0_92, %c127_93] : memref<16x768xf32, #tpu.memory_space<vmem>>, vector<16x512xf32>
    %136 = vector.extract_strided_slice %119 {offsets = [3, 0], sizes = [1, 512], strides = [1, 1]} : vector<9x512xf32> to vector<1x512xf32>
    %137 = vector.broadcast %136 : vector<1x512xf32> to vector<16x512xf32>
    %138 = arith.mulf %135, %137 : vector<16x512xf32>
    %c48_94 = arith.constant 48 : index
    %c0_95 = arith.constant 0 : index
    %139 = vector.load %arg19[%c48_94, %c0_95] : memref<144x512xf32, #tpu.memory_space<vmem>>, vector<16x512xf32>
    tpu.vector_store %arg19[%c48_94, %c0_95], %138 {strides = array<i32>} : memref<144x512xf32, #tpu.memory_space<vmem>>, vector<16x512xf32>,
    %c0_96 = arith.constant 0 : index
    %c128_97 = arith.constant 128 : index
    %140 = vector.load %arg16[%c0_96, %c128_97] : memref<16x768xf32, #tpu.memory_space<vmem>>, vector<16x512xf32>
    %c64_98 = arith.constant 64 : index
    %c0_99 = arith.constant 0 : index
    %141 = vector.load %arg19[%c64_98, %c0_99] : memref<144x512xf32, #tpu.memory_space<vmem>>, vector<16x512xf32>
    tpu.vector_store %arg19[%c64_98, %c0_99], %140 {strides = array<i32>} : memref<144x512xf32, #tpu.memory_space<vmem>>, vector<16x512xf32>,
    %c0_100 = arith.constant 0 : index
    %c129_101 = arith.constant 129 : index
    %142 = vector.load %arg16[%c0_100, %c129_101] : memref<16x768xf32, #tpu.memory_space<vmem>>, vector<16x512xf32>
    %143 = vector.extract_strided_slice %119 {offsets = [5, 0], sizes = [1, 512], strides = [1, 1]} : vector<9x512xf32> to vector<1x512xf32>
    %144 = vector.broadcast %143 : vector<1x512xf32> to vector<16x512xf32>
    %145 = arith.mulf %142, %144 : vector<16x512xf32>
    %c80_102 = arith.constant 80 : index
    %c0_103 = arith.constant 0 : index
    %146 = vector.load %arg19[%c80_102, %c0_103] : memref<144x512xf32, #tpu.memory_space<vmem>>, vector<16x512xf32>
    tpu.vector_store %arg19[%c80_102, %c0_103], %145 {strides = array<i32>} : memref<144x512xf32, #tpu.memory_space<vmem>>, vector<16x512xf32>,
    %c0_104 = arith.constant 0 : index
    %c143_105 = arith.constant 143 : index
    %147 = vector.load %arg16[%c0_104, %c143_105] : memref<16x768xf32, #tpu.memory_space<vmem>>, vector<16x512xf32>
    %148 = vector.extract_strided_slice %119 {offsets = [6, 0], sizes = [1, 512], strides = [1, 1]} : vector<9x512xf32> to vector<1x512xf32>
    %149 = vector.broadcast %148 : vector<1x512xf32> to vector<16x512xf32>
    %150 = arith.mulf %147, %149 : vector<16x512xf32>
    %c96_106 = arith.constant 96 : index
    %c0_107 = arith.constant 0 : index
    %151 = vector.load %arg19[%c96_106, %c0_107] : memref<144x512xf32, #tpu.memory_space<vmem>>, vector<16x512xf32>
    tpu.vector_store %arg19[%c96_106, %c0_107], %150 {strides = array<i32>} : memref<144x512xf32, #tpu.memory_space<vmem>>, vector<16x512xf32>,
    %c0_108 = arith.constant 0 : index
    %c144_109 = arith.constant 144 : index
    %152 = vector.load %arg16[%c0_108, %c144_109] : memref<16x768xf32, #tpu.memory_space<vmem>>, vector<16x512xf32>
    %153 = vector.extract_strided_slice %119 {offsets = [7, 0], sizes = [1, 512], strides = [1, 1]} : vector<9x512xf32> to vector<1x512xf32>
    %154 = vector.broadcast %153 : vector<1x512xf32> to vector<16x512xf32>
    %155 = arith.mulf %152, %154 : vector<16x512xf32>
    %c112_110 = arith.constant 112 : index
    %c0_111 = arith.constant 0 : index
    %156 = vector.load %arg19[%c112_110, %c0_111] : memref<144x512xf32, #tpu.memory_space<vmem>>, vector<16x512xf32>
    tpu.vector_store %arg19[%c112_110, %c0_111], %155 {strides = array<i32>} : memref<144x512xf32, #tpu.memory_space<vmem>>, vector<16x512xf32>,
    %c0_112 = arith.constant 0 : index
    %c145_113 = arith.constant 145 : index
    %157 = vector.load %arg16[%c0_112, %c145_113] : memref<16x768xf32, #tpu.memory_space<vmem>>, vector<16x512xf32>
    %158 = vector.extract_strided_slice %119 {offsets = [8, 0], sizes = [1, 512], strides = [1, 1]} : vector<9x512xf32> to vector<1x512xf32>
    %159 = vector.broadcast %158 : vector<1x512xf32> to vector<16x512xf32>
    %160 = arith.mulf %157, %159 : vector<16x512xf32>
    %c128_114 = arith.constant 128 : index
    %c0_115 = arith.constant 0 : index
    %161 = vector.load %arg19[%c128_114, %c0_115] : memref<144x512xf32, #tpu.memory_space<vmem>>, vector<16x512xf32>
    tpu.vector_store %arg19[%c128_114, %c0_115], %160 {strides = array<i32>} : memref<144x512xf32, #tpu.memory_space<vmem>>, vector<16x512xf32>,
    %c1_116 = arith.constant 1 : index
    %c0_117 = arith.constant 0 : index
    %c0_118 = arith.constant 0 : index
    %162 = vector.load %arg2[%c1_116, %c0_117, %c0_118] : memref<7x16x144xf32, #tpu.memory_space<vmem>>, vector<1x16x144xf32>
    %163 = vector.shape_cast %162 : vector<1x16x144xf32> to vector<16x144xf32>
    %c0_119 = arith.constant 0 : index
    %c0_120 = arith.constant 0 : index
    %164 = vector.load %arg19[%c0_119, %c0_120] : memref<144x512xf32, #tpu.memory_space<vmem>>, vector<144x512xf32>
    %cst_121 = arith.constant dense<0.000000e+00> : vector<16x512xf32>
    %165 = tpu.matmul %163, %164, %cst_121 {dimension_numbers = #tpu.dot_dimension_numbers<[1], [0], [0], [1], [0, 0, 1, 1], [], []>} : vector<16x144xf32>, vector<144x512xf32>, vector<16x512xf32> -> vector<16x512xf32>
    %166 = arith.addf %63, %165 : vector<16x512xf32>
    %c0_122 = arith.constant 0 : index
    %c0_123 = arith.constant 0 : index
    %167 = vector.load %arg13[%c0_122, %c0_123] : memref<16x512xf32, #tpu.memory_space<vmem>>, vector<16x512xf32>
    tpu.vector_store %arg13[%c0_122, %c0_123], %166 {strides = array<i32>} : memref<16x512xf32, #tpu.memory_space<vmem>>, vector<16x512xf32>,
    %c0_124 = arith.constant 0 : index
    %c0_125 = arith.constant 0 : index
    %168 = vector.load %arg13[%c0_124, %c0_125] : memref<16x512xf32, #tpu.memory_space<vmem>>, vector<16x512xf32>
    %c0_126 = arith.constant 0 : index
    %c2 = arith.constant 2 : index
    %169 = vector.load %arg4[%c0_126, %c2] : memref<16x15xf32, #tpu.memory_space<vmem>>, vector<16x1xf32>
    %c0_127 = arith.constant 0 : index
    %c2_128 = arith.constant 2 : index
    %170 = vector.load %arg5[%c0_127, %c2_128] : memref<16x15xf32, #tpu.memory_space<vmem>>, vector<16x1xf32>
    %cst_129 = arith.constant dense<0.000000e+00> : vector<16xf32>
    %171 = vector.multi_reduction <add>, %168, %cst_129 [1] : vector<16x512xf32> to vector<16xf32>
    %172 = vector.shape_cast %171 : vector<16xf32> to vector<16x1xf32>
    %173 = arith.mulf %168, %168 : vector<16x512xf32>
    %cst_130 = arith.constant dense<0.000000e+00> : vector<16xf32>
    %174 = vector.multi_reduction <add>, %173, %cst_130 [1] : vector<16x512xf32> to vector<16xf32>
    %175 = vector.shape_cast %174 : vector<16xf32> to vector<16x1xf32>
    %cst_131 = arith.constant 0.001953125 : f32
    %176 = vector.broadcast %cst_131 : f32 to vector<16x1xf32>
    %177 = arith.mulf %172, %176 : vector<16x1xf32>
    %cst_132 = arith.constant 0.001953125 : f32
    %178 = vector.broadcast %cst_132 : f32 to vector<16x1xf32>
    %179 = arith.mulf %175, %178 : vector<16x1xf32>
    %180 = arith.mulf %177, %177 : vector<16x1xf32>
    %181 = arith.subf %179, %180 : vector<16x1xf32>
    %cst_133 = arith.constant 9.99999974E-6 : f32
    %182 = vector.broadcast %cst_133 : f32 to vector<16x1xf32>
    %183 = arith.addf %181, %182 : vector<16x1xf32>
    %184 = math.rsqrt %183 : vector<16x1xf32>
    %185 = arith.mulf %169, %184 : vector<16x1xf32>
    %186 = arith.mulf %177, %185 : vector<16x1xf32>
    %187 = arith.subf %170, %186 : vector<16x1xf32>
    %188 = vector.broadcast %185 : vector<16x1xf32> to vector<16x512xf32>
    %189 = arith.mulf %168, %188 : vector<16x512xf32>
    %190 = vector.broadcast %187 : vector<16x1xf32> to vector<16x512xf32>
    %191 = arith.addf %189, %190 : vector<16x512xf32>
    %cst_134 = arith.constant 0.000000e+00 : f32
    %192 = vector.broadcast %cst_134 : f32 to vector<16x512xf32>
    %193 = arith.maximumf %191, %192 : vector<16x512xf32>
    %c1_135 = arith.constant 1 : index
    %c0_136 = arith.constant 0 : index
    %c0_137 = arith.constant 0 : index
    %194 = vector.load %arg3[%c1_135, %c0_136, %c0_137] : memref<8x16x16xf32, #tpu.memory_space<vmem>>, vector<1x16x16xf32>
    %195 = vector.shape_cast %194 : vector<1x16x16xf32> to vector<16x16xf32>
    %cst_138 = arith.constant dense<0.000000e+00> : vector<16x512xf32>
    %196 = tpu.matmul %195, %193, %cst_138 {dimension_numbers = #tpu.dot_dimension_numbers<[1], [0], [0], [1], [0, 0, 1, 1], [], []>} : vector<16x16xf32>, vector<16x512xf32>, vector<16x512xf32> -> vector<16x512xf32>
    %c0_139 = arith.constant 0 : index
    %c3 = arith.constant 3 : index
    %197 = vector.load %arg4[%c0_139, %c3] : memref<16x15xf32, #tpu.memory_space<vmem>>, vector<16x1xf32>
    %c0_140 = arith.constant 0 : index
    %c3_141 = arith.constant 3 : index
    %198 = vector.load %arg5[%c0_140, %c3_141] : memref<16x15xf32, #tpu.memory_space<vmem>>, vector<16x1xf32>
    %cst_142 = arith.constant dense<0.000000e+00> : vector<16xf32>
    %199 = vector.multi_reduction <add>, %196, %cst_142 [1] : vector<16x512xf32> to vector<16xf32>
    %200 = vector.shape_cast %199 : vector<16xf32> to vector<16x1xf32>
    %201 = arith.mulf %196, %196 : vector<16x512xf32>
    %cst_143 = arith.constant dense<0.000000e+00> : vector<16xf32>
    %202 = vector.multi_reduction <add>, %201, %cst_143 [1] : vector<16x512xf32> to vector<16xf32>
    %203 = vector.shape_cast %202 : vector<16xf32> to vector<16x1xf32>
    %cst_144 = arith.constant 0.001953125 : f32
    %204 = vector.broadcast %cst_144 : f32 to vector<16x1xf32>
    %205 = arith.mulf %200, %204 : vector<16x1xf32>
    %cst_145 = arith.constant 0.001953125 : f32
    %206 = vector.broadcast %cst_145 : f32 to vector<16x1xf32>
    %207 = arith.mulf %203, %206 : vector<16x1xf32>
    %208 = arith.mulf %205, %205 : vector<16x1xf32>
    %209 = arith.subf %207, %208 : vector<16x1xf32>
    %cst_146 = arith.constant 9.99999974E-6 : f32
    %210 = vector.broadcast %cst_146 : f32 to vector<16x1xf32>
    %211 = arith.addf %209, %210 : vector<16x1xf32>
    %212 = math.rsqrt %211 : vector<16x1xf32>
    %213 = arith.mulf %197, %212 : vector<16x1xf32>
    %214 = arith.mulf %205, %213 : vector<16x1xf32>
    %215 = arith.subf %198, %214 : vector<16x1xf32>
    %216 = vector.broadcast %213 : vector<16x1xf32> to vector<16x512xf32>
    %217 = arith.mulf %196, %216 : vector<16x512xf32>
    %218 = vector.broadcast %215 : vector<16x1xf32> to vector<16x512xf32>
    %219 = arith.addf %217, %218 : vector<16x512xf32>
    %cst_147 = arith.constant 0.000000e+00 : f32
    %220 = vector.broadcast %cst_147 : f32 to vector<16x512xf32>
    %221 = arith.maximumf %219, %220 : vector<16x512xf32>
    %c0_148 = arith.constant 0 : index
    %c128_149 = arith.constant 128 : index
    %222 = vector.load %arg16[%c0_148, %c128_149] : memref<16x768xf32, #tpu.memory_space<vmem>>, vector<16x512xf32>
    tpu.vector_store %arg16[%c0_148, %c128_149], %221 {strides = array<i32>} : memref<16x768xf32, #tpu.memory_space<vmem>>, vector<16x512xf32>,
    %c0_150 = arith.constant 0 : index
    %c0_151 = arith.constant 0 : index
    %c0_152 = arith.constant 0 : index
    %223 = vector.load %arg8[%c0_150, %c0_151, %c0_152] : memref<3x9x512xf32, #tpu.memory_space<vmem>>, vector<1x9x512xf32>
    %224 = vector.shape_cast %223 : vector<1x9x512xf32> to vector<9x512xf32>
    %c0_153 = arith.constant 0 : index
    %c111_154 = arith.constant 111 : index
    %225 = vector.load %arg16[%c0_153, %c111_154] : memref<16x768xf32, #tpu.memory_space<vmem>>, vector<16x512xf32>
    %226 = vector.extract_strided_slice %224 {offsets = [0, 0], sizes = [1, 512], strides = [1, 1]} : vector<9x512xf32> to vector<1x512xf32>
    %227 = vector.broadcast %226 : vector<1x512xf32> to vector<16x512xf32>
    %228 = arith.mulf %225, %227 : vector<16x512xf32>
    %c0_155 = arith.constant 0 : index
    %c0_156 = arith.constant 0 : index
    %229 = vector.load %arg19[%c0_155, %c0_156] : memref<144x512xf32, #tpu.memory_space<vmem>>, vector<16x512xf32>
    tpu.vector_store %arg19[%c0_155, %c0_156], %228 {strides = array<i32>} : memref<144x512xf32, #tpu.memory_space<vmem>>, vector<16x512xf32>,
    %c0_157 = arith.constant 0 : index
    %c112_158 = arith.constant 112 : index
    %230 = vector.load %arg16[%c0_157, %c112_158] : memref<16x768xf32, #tpu.memory_space<vmem>>, vector<16x512xf32>
    %231 = vector.extract_strided_slice %224 {offsets = [1, 0], sizes = [1, 512], strides = [1, 1]} : vector<9x512xf32> to vector<1x512xf32>
    %232 = vector.broadcast %231 : vector<1x512xf32> to vector<16x512xf32>
    %233 = arith.mulf %230, %232 : vector<16x512xf32>
    %c16_159 = arith.constant 16 : index
    %c0_160 = arith.constant 0 : index
    %234 = vector.load %arg19[%c16_159, %c0_160] : memref<144x512xf32, #tpu.memory_space<vmem>>, vector<16x512xf32>
    tpu.vector_store %arg19[%c16_159, %c0_160], %233 {strides = array<i32>} : memref<144x512xf32, #tpu.memory_space<vmem>>, vector<16x512xf32>,
    %c0_161 = arith.constant 0 : index
    %c113_162 = arith.constant 113 : index
    %235 = vector.load %arg16[%c0_161, %c113_162] : memref<16x768xf32, #tpu.memory_space<vmem>>, vector<16x512xf32>
    %236 = vector.extract_strided_slice %224 {offsets = [2, 0], sizes = [1, 512], strides = [1, 1]} : vector<9x512xf32> to vector<1x512xf32>
    %237 = vector.broadcast %236 : vector<1x512xf32> to vector<16x512xf32>
    %238 = arith.mulf %235, %237 : vector<16x512xf32>
    %c32_163 = arith.constant 32 : index
    %c0_164 = arith.constant 0 : index
    %239 = vector.load %arg19[%c32_163, %c0_164] : memref<144x512xf32, #tpu.memory_space<vmem>>, vector<16x512xf32>
    tpu.vector_store %arg19[%c32_163, %c0_164], %238 {strides = array<i32>} : memref<144x512xf32, #tpu.memory_space<vmem>>, vector<16x512xf32>,
    %c0_165 = arith.constant 0 : index
    %c127_166 = arith.constant 127 : index
    %240 = vector.load %arg16[%c0_165, %c127_166] : memref<16x768xf32, #tpu.memory_space<vmem>>, vector<16x512xf32>
    %241 = vector.extract_strided_slice %224 {offsets = [3, 0], sizes = [1, 512], strides = [1, 1]} : vector<9x512xf32> to vector<1x512xf32>
    %242 = vector.broadcast %241 : vector<1x512xf32> to vector<16x512xf32>
    %243 = arith.mulf %240, %242 : vector<16x512xf32>
    %c48_167 = arith.constant 48 : index
    %c0_168 = arith.constant 0 : index
    %244 = vector.load %arg19[%c48_167, %c0_168] : memref<144x512xf32, #tpu.memory_space<vmem>>, vector<16x512xf32>
    tpu.vector_store %arg19[%c48_167, %c0_168], %243 {strides = array<i32>} : memref<144x512xf32, #tpu.memory_space<vmem>>, vector<16x512xf32>,
    %c0_169 = arith.constant 0 : index
    %c128_170 = arith.constant 128 : index
    %245 = vector.load %arg16[%c0_169, %c128_170] : memref<16x768xf32, #tpu.memory_space<vmem>>, vector<16x512xf32>
    %c64_171 = arith.constant 64 : index
    %c0_172 = arith.constant 0 : index
    %246 = vector.load %arg19[%c64_171, %c0_172] : memref<144x512xf32, #tpu.memory_space<vmem>>, vector<16x512xf32>
    tpu.vector_store %arg19[%c64_171, %c0_172], %245 {strides = array<i32>} : memref<144x512xf32, #tpu.memory_space<vmem>>, vector<16x512xf32>,
    %c0_173 = arith.constant 0 : index
    %c129_174 = arith.constant 129 : index
    %247 = vector.load %arg16[%c0_173, %c129_174] : memref<16x768xf32, #tpu.memory_space<vmem>>, vector<16x512xf32>
    %248 = vector.extract_strided_slice %224 {offsets = [5, 0], sizes = [1, 512], strides = [1, 1]} : vector<9x512xf32> to vector<1x512xf32>
    %249 = vector.broadcast %248 : vector<1x512xf32> to vector<16x512xf32>
    %250 = arith.mulf %247, %249 : vector<16x512xf32>
    %c80_175 = arith.constant 80 : index
    %c0_176 = arith.constant 0 : index
    %251 = vector.load %arg19[%c80_175, %c0_176] : memref<144x512xf32, #tpu.memory_space<vmem>>, vector<16x512xf32>
    tpu.vector_store %arg19[%c80_175, %c0_176], %250 {strides = array<i32>} : memref<144x512xf32, #tpu.memory_space<vmem>>, vector<16x512xf32>,
    %c0_177 = arith.constant 0 : index
    %c143_178 = arith.constant 143 : index
    %252 = vector.load %arg16[%c0_177, %c143_178] : memref<16x768xf32, #tpu.memory_space<vmem>>, vector<16x512xf32>
    %253 = vector.extract_strided_slice %224 {offsets = [6, 0], sizes = [1, 512], strides = [1, 1]} : vector<9x512xf32> to vector<1x512xf32>
    %254 = vector.broadcast %253 : vector<1x512xf32> to vector<16x512xf32>
    %255 = arith.mulf %252, %254 : vector<16x512xf32>
    %c96_179 = arith.constant 96 : index
    %c0_180 = arith.constant 0 : index
    %256 = vector.load %arg19[%c96_179, %c0_180] : memref<144x512xf32, #tpu.memory_space<vmem>>, vector<16x512xf32>
    tpu.vector_store %arg19[%c96_179, %c0_180], %255 {strides = array<i32>} : memref<144x512xf32, #tpu.memory_space<vmem>>, vector<16x512xf32>,
    %c0_181 = arith.constant 0 : index
    %c144_182 = arith.constant 144 : index
    %257 = vector.load %arg16[%c0_181, %c144_182] : memref<16x768xf32, #tpu.memory_space<vmem>>, vector<16x512xf32>
    %258 = vector.extract_strided_slice %224 {offsets = [7, 0], sizes = [1, 512], strides = [1, 1]} : vector<9x512xf32> to vector<1x512xf32>
    %259 = vector.broadcast %258 : vector<1x512xf32> to vector<16x512xf32>
    %260 = arith.mulf %257, %259 : vector<16x512xf32>
    %c112_183 = arith.constant 112 : index
    %c0_184 = arith.constant 0 : index
    %261 = vector.load %arg19[%c112_183, %c0_184] : memref<144x512xf32, #tpu.memory_space<vmem>>, vector<16x512xf32>
    tpu.vector_store %arg19[%c112_183, %c0_184], %260 {strides = array<i32>} : memref<144x512xf32, #tpu.memory_space<vmem>>, vector<16x512xf32>,
    %c0_185 = arith.constant 0 : index
    %c145_186 = arith.constant 145 : index
    %262 = vector.load %arg16[%c0_185, %c145_186] : memref<16x768xf32, #tpu.memory_space<vmem>>, vector<16x512xf32>
    %263 = vector.extract_strided_slice %224 {offsets = [8, 0], sizes = [1, 512], strides = [1, 1]} : vector<9x512xf32> to vector<1x512xf32>
    %264 = vector.broadcast %263 : vector<1x512xf32> to vector<16x512xf32>
    %265 = arith.mulf %262, %264 : vector<16x512xf32>
    %c128_187 = arith.constant 128 : index
    %c0_188 = arith.constant 0 : index
    %266 = vector.load %arg19[%c128_187, %c0_188] : memref<144x512xf32, #tpu.memory_space<vmem>>, vector<16x512xf32>
    tpu.vector_store %arg19[%c128_187, %c0_188], %265 {strides = array<i32>} : memref<144x512xf32, #tpu.memory_space<vmem>>, vector<16x512xf32>,
    %c2_189 = arith.constant 2 : index
    %c0_190 = arith.constant 0 : index
    %c0_191 = arith.constant 0 : index
    %267 = vector.load %arg2[%c2_189, %c0_190, %c0_191] : memref<7x16x144xf32, #tpu.memory_space<vmem>>, vector<1x16x144xf32>
    %268 = vector.shape_cast %267 : vector<1x16x144xf32> to vector<16x144xf32>
    %c0_192 = arith.constant 0 : index
    %c0_193 = arith.constant 0 : index
    %269 = vector.load %arg19[%c0_192, %c0_193] : memref<144x512xf32, #tpu.memory_space<vmem>>, vector<144x512xf32>
    %cst_194 = arith.constant dense<0.000000e+00> : vector<16x512xf32>
    %270 = tpu.matmul %268, %269, %cst_194 {dimension_numbers = #tpu.dot_dimension_numbers<[1], [0], [0], [1], [0, 0, 1, 1], [], []>} : vector<16x144xf32>, vector<144x512xf32>, vector<16x512xf32> -> vector<16x512xf32>
    %271 = arith.addf %168, %270 : vector<16x512xf32>
    %c0_195 = arith.constant 0 : index
    %c0_196 = arith.constant 0 : index
    %272 = vector.load %arg13[%c0_195, %c0_196] : memref<16x512xf32, #tpu.memory_space<vmem>>, vector<16x512xf32>
    tpu.vector_store %arg13[%c0_195, %c0_196], %271 {strides = array<i32>} : memref<16x512xf32, #tpu.memory_space<vmem>>, vector<16x512xf32>,
    %c0_197 = arith.constant 0 : index
    %c0_198 = arith.constant 0 : index
    %273 = vector.load %arg13[%c0_197, %c0_198] : memref<16x512xf32, #tpu.memory_space<vmem>>, vector<16x512xf32>
    %c0_199 = arith.constant 0 : index
    %c4 = arith.constant 4 : index
    %274 = vector.load %arg4[%c0_199, %c4] : memref<16x15xf32, #tpu.memory_space<vmem>>, vector<16x1xf32>
    %c0_200 = arith.constant 0 : index
    %c4_201 = arith.constant 4 : index
    %275 = vector.load %arg5[%c0_200, %c4_201] : memref<16x15xf32, #tpu.memory_space<vmem>>, vector<16x1xf32>
    %cst_202 = arith.constant dense<0.000000e+00> : vector<16xf32>
    %276 = vector.multi_reduction <add>, %273, %cst_202 [1] : vector<16x512xf32> to vector<16xf32>
    %277 = vector.shape_cast %276 : vector<16xf32> to vector<16x1xf32>
    %278 = arith.mulf %273, %273 : vector<16x512xf32>
    %cst_203 = arith.constant dense<0.000000e+00> : vector<16xf32>
    %279 = vector.multi_reduction <add>, %278, %cst_203 [1] : vector<16x512xf32> to vector<16xf32>
    %280 = vector.shape_cast %279 : vector<16xf32> to vector<16x1xf32>
    %cst_204 = arith.constant 0.001953125 : f32
    %281 = vector.broadcast %cst_204 : f32 to vector<16x1xf32>
    %282 = arith.mulf %277, %281 : vector<16x1xf32>
    %cst_205 = arith.constant 0.001953125 : f32
    %283 = vector.broadcast %cst_205 : f32 to vector<16x1xf32>
    %284 = arith.mulf %280, %283 : vector<16x1xf32>
    %285 = arith.mulf %282, %282 : vector<16x1xf32>
    %286 = arith.subf %284, %285 : vector<16x1xf32>
    %cst_206 = arith.constant 9.99999974E-6 : f32
    %287 = vector.broadcast %cst_206 : f32 to vector<16x1xf32>
    %288 = arith.addf %286, %287 : vector<16x1xf32>
    %289 = math.rsqrt %288 : vector<16x1xf32>
    %290 = arith.mulf %274, %289 : vector<16x1xf32>
    %291 = arith.mulf %282, %290 : vector<16x1xf32>
    %292 = arith.subf %275, %291 : vector<16x1xf32>
    %293 = vector.broadcast %290 : vector<16x1xf32> to vector<16x512xf32>
    %294 = arith.mulf %273, %293 : vector<16x512xf32>
    %295 = vector.broadcast %292 : vector<16x1xf32> to vector<16x512xf32>
    %296 = arith.addf %294, %295 : vector<16x512xf32>
    %cst_207 = arith.constant 0.000000e+00 : f32
    %297 = vector.broadcast %cst_207 : f32 to vector<16x512xf32>
    %298 = arith.maximumf %296, %297 : vector<16x512xf32>
    %c2_208 = arith.constant 2 : index
    %c0_209 = arith.constant 0 : index
    %c0_210 = arith.constant 0 : index
    %299 = vector.load %arg3[%c2_208, %c0_209, %c0_210] : memref<8x16x16xf32, #tpu.memory_space<vmem>>, vector<1x16x16xf32>
    %300 = vector.shape_cast %299 : vector<1x16x16xf32> to vector<16x16xf32>
    %cst_211 = arith.constant dense<0.000000e+00> : vector<16x512xf32>
    %301 = tpu.matmul %300, %298, %cst_211 {dimension_numbers = #tpu.dot_dimension_numbers<[1], [0], [0], [1], [0, 0, 1, 1], [], []>} : vector<16x16xf32>, vector<16x512xf32>, vector<16x512xf32> -> vector<16x512xf32>
    %c0_212 = arith.constant 0 : index
    %c0_213 = arith.constant 0 : index
    %302 = vector.load %arg9[%c0_212, %c0_213] : memref<512x128xf32, #tpu.memory_space<vmem>>, vector<512x128xf32>
    %cst_214 = arith.constant dense<0.000000e+00> : vector<16x128xf32>
    %303 = tpu.matmul %301, %302, %cst_214 {dimension_numbers = #tpu.dot_dimension_numbers<[1], [0], [0], [1], [0, 0, 1, 1], [], []>} : vector<16x512xf32>, vector<512x128xf32>, vector<16x128xf32> -> vector<16x128xf32>
    %c0_215 = arith.constant 0 : index
    %c0_216 = arith.constant 0 : index
    %304 = vector.load %arg14[%c0_215, %c0_216] : memref<16x128xf32, #tpu.memory_space<vmem>>, vector<16x128xf32>
    tpu.vector_store %arg14[%c0_215, %c0_216], %303 {strides = array<i32>} : memref<16x128xf32, #tpu.memory_space<vmem>>, vector<16x128xf32>,
    %c0_217 = arith.constant 0 : index
    %c0_218 = arith.constant 0 : index
    %305 = vector.load %arg14[%c0_217, %c0_218] : memref<16x128xf32, #tpu.memory_space<vmem>>, vector<16x128xf32>
    %c0_219 = arith.constant 0 : index
    %c5 = arith.constant 5 : index
    %306 = vector.load %arg4[%c0_219, %c5] : memref<16x15xf32, #tpu.memory_space<vmem>>, vector<16x1xf32>
    %c0_220 = arith.constant 0 : index
    %c5_221 = arith.constant 5 : index
    %307 = vector.load %arg5[%c0_220, %c5_221] : memref<16x15xf32, #tpu.memory_space<vmem>>, vector<16x1xf32>
    %cst_222 = arith.constant dense<0.000000e+00> : vector<16xf32>
    %308 = vector.multi_reduction <add>, %305, %cst_222 [1] : vector<16x128xf32> to vector<16xf32>
    %309 = vector.shape_cast %308 : vector<16xf32> to vector<16x1xf32>
    %310 = arith.mulf %305, %305 : vector<16x128xf32>
    %cst_223 = arith.constant dense<0.000000e+00> : vector<16xf32>
    %311 = vector.multi_reduction <add>, %310, %cst_223 [1] : vector<16x128xf32> to vector<16xf32>
    %312 = vector.shape_cast %311 : vector<16xf32> to vector<16x1xf32>
    %cst_224 = arith.constant 7.812500e-03 : f32
    %313 = vector.broadcast %cst_224 : f32 to vector<16x1xf32>
    %314 = arith.mulf %309, %313 : vector<16x1xf32>
    %cst_225 = arith.constant 7.812500e-03 : f32
    %315 = vector.broadcast %cst_225 : f32 to vector<16x1xf32>
    %316 = arith.mulf %312, %315 : vector<16x1xf32>
    %317 = arith.mulf %314, %314 : vector<16x1xf32>
    %318 = arith.subf %316, %317 : vector<16x1xf32>
    %cst_226 = arith.constant 9.99999974E-6 : f32
    %319 = vector.broadcast %cst_226 : f32 to vector<16x1xf32>
    %320 = arith.addf %318, %319 : vector<16x1xf32>
    %321 = math.rsqrt %320 : vector<16x1xf32>
    %322 = arith.mulf %306, %321 : vector<16x1xf32>
    %323 = arith.mulf %314, %322 : vector<16x1xf32>
    %324 = arith.subf %307, %323 : vector<16x1xf32>
    %325 = vector.broadcast %322 : vector<16x1xf32> to vector<16x128xf32>
    %326 = arith.mulf %305, %325 : vector<16x128xf32>
    %327 = vector.broadcast %324 : vector<16x1xf32> to vector<16x128xf32>
    %328 = arith.addf %326, %327 : vector<16x128xf32>
    %cst_227 = arith.constant 0.000000e+00 : f32
    %329 = vector.broadcast %cst_227 : f32 to vector<16x128xf32>
    %330 = arith.maximumf %328, %329 : vector<16x128xf32>
    %c3_228 = arith.constant 3 : index
    %c0_229 = arith.constant 0 : index
    %c0_230 = arith.constant 0 : index
    %331 = vector.load %arg3[%c3_228, %c0_229, %c0_230] : memref<8x16x16xf32, #tpu.memory_space<vmem>>, vector<1x16x16xf32>
    %332 = vector.shape_cast %331 : vector<1x16x16xf32> to vector<16x16xf32>
    %cst_231 = arith.constant dense<0.000000e+00> : vector<16x128xf32>
    %333 = tpu.matmul %332, %330, %cst_231 {dimension_numbers = #tpu.dot_dimension_numbers<[1], [0], [0], [1], [0, 0, 1, 1], [], []>} : vector<16x16xf32>, vector<16x128xf32>, vector<16x128xf32> -> vector<16x128xf32>
    %c0_232 = arith.constant 0 : index
    %c6 = arith.constant 6 : index
    %334 = vector.load %arg4[%c0_232, %c6] : memref<16x15xf32, #tpu.memory_space<vmem>>, vector<16x1xf32>
    %c0_233 = arith.constant 0 : index
    %c6_234 = arith.constant 6 : index
    %335 = vector.load %arg5[%c0_233, %c6_234] : memref<16x15xf32, #tpu.memory_space<vmem>>, vector<16x1xf32>
    %cst_235 = arith.constant dense<0.000000e+00> : vector<16xf32>
    %336 = vector.multi_reduction <add>, %333, %cst_235 [1] : vector<16x128xf32> to vector<16xf32>
    %337 = vector.shape_cast %336 : vector<16xf32> to vector<16x1xf32>
    %338 = arith.mulf %333, %333 : vector<16x128xf32>
    %cst_236 = arith.constant dense<0.000000e+00> : vector<16xf32>
    %339 = vector.multi_reduction <add>, %338, %cst_236 [1] : vector<16x128xf32> to vector<16xf32>
    %340 = vector.shape_cast %339 : vector<16xf32> to vector<16x1xf32>
    %cst_237 = arith.constant 7.812500e-03 : f32
    %341 = vector.broadcast %cst_237 : f32 to vector<16x1xf32>
    %342 = arith.mulf %337, %341 : vector<16x1xf32>
    %cst_238 = arith.constant 7.812500e-03 : f32
    %343 = vector.broadcast %cst_238 : f32 to vector<16x1xf32>
    %344 = arith.mulf %340, %343 : vector<16x1xf32>
    %345 = arith.mulf %342, %342 : vector<16x1xf32>
    %346 = arith.subf %344, %345 : vector<16x1xf32>
    %cst_239 = arith.constant 9.99999974E-6 : f32
    %347 = vector.broadcast %cst_239 : f32 to vector<16x1xf32>
    %348 = arith.addf %346, %347 : vector<16x1xf32>
    %349 = math.rsqrt %348 : vector<16x1xf32>
    %350 = arith.mulf %334, %349 : vector<16x1xf32>
    %351 = arith.mulf %342, %350 : vector<16x1xf32>
    %352 = arith.subf %335, %351 : vector<16x1xf32>
    %353 = vector.broadcast %350 : vector<16x1xf32> to vector<16x128xf32>
    %354 = arith.mulf %333, %353 : vector<16x128xf32>
    %355 = vector.broadcast %352 : vector<16x1xf32> to vector<16x128xf32>
    %356 = arith.addf %354, %355 : vector<16x128xf32>
    %cst_240 = arith.constant 0.000000e+00 : f32
    %357 = vector.broadcast %cst_240 : f32 to vector<16x128xf32>
    %358 = arith.maximumf %356, %357 : vector<16x128xf32>
    %c0_241 = arith.constant 0 : index
    %c128_242 = arith.constant 128 : index
    %359 = vector.load %arg17[%c0_241, %c128_242] : memref<16x384xf32, #tpu.memory_space<vmem>>, vector<16x128xf32>
    tpu.vector_store %arg17[%c0_241, %c128_242], %358 {strides = array<i32>} : memref<16x384xf32, #tpu.memory_space<vmem>>, vector<16x128xf32>,
    %c1_243 = arith.constant 1 : index
    %c0_244 = arith.constant 0 : index
    %c0_245 = arith.constant 0 : index
    %360 = vector.load %arg8[%c1_243, %c0_244, %c0_245] : memref<3x9x512xf32, #tpu.memory_space<vmem>>, vector<1x9x512xf32>
    %361 = vector.shape_cast %360 : vector<1x9x512xf32> to vector<9x512xf32>
    %c0_246 = arith.constant 0 : index
    %c119 = arith.constant 119 : index
    %362 = vector.load %arg17[%c0_246, %c119] : memref<16x384xf32, #tpu.memory_space<vmem>>, vector<16x128xf32>
    %363 = vector.extract_strided_slice %361 {offsets = [0, 0], sizes = [1, 128], strides = [1, 1]} : vector<9x512xf32> to vector<1x128xf32>
    %364 = vector.broadcast %363 : vector<1x128xf32> to vector<16x128xf32>
    %365 = arith.mulf %362, %364 : vector<16x128xf32>
    %c0_247 = arith.constant 0 : index
    %c0_248 = arith.constant 0 : index
    %366 = vector.load %arg19[%c0_247, %c0_248] : memref<144x512xf32, #tpu.memory_space<vmem>>, vector<16x128xf32>
    tpu.vector_store %arg19[%c0_247, %c0_248], %365 {strides = array<i32>} : memref<144x512xf32, #tpu.memory_space<vmem>>, vector<16x128xf32>,
    %c0_249 = arith.constant 0 : index
    %c120 = arith.constant 120 : index
    %367 = vector.load %arg17[%c0_249, %c120] : memref<16x384xf32, #tpu.memory_space<vmem>>, vector<16x128xf32>
    %368 = vector.extract_strided_slice %361 {offsets = [1, 0], sizes = [1, 128], strides = [1, 1]} : vector<9x512xf32> to vector<1x128xf32>
    %369 = vector.broadcast %368 : vector<1x128xf32> to vector<16x128xf32>
    %370 = arith.mulf %367, %369 : vector<16x128xf32>
    %c16_250 = arith.constant 16 : index
    %c0_251 = arith.constant 0 : index
    %371 = vector.load %arg19[%c16_250, %c0_251] : memref<144x512xf32, #tpu.memory_space<vmem>>, vector<16x128xf32>
    tpu.vector_store %arg19[%c16_250, %c0_251], %370 {strides = array<i32>} : memref<144x512xf32, #tpu.memory_space<vmem>>, vector<16x128xf32>,
    %c0_252 = arith.constant 0 : index
    %c121 = arith.constant 121 : index
    %372 = vector.load %arg17[%c0_252, %c121] : memref<16x384xf32, #tpu.memory_space<vmem>>, vector<16x128xf32>
    %373 = vector.extract_strided_slice %361 {offsets = [2, 0], sizes = [1, 128], strides = [1, 1]} : vector<9x512xf32> to vector<1x128xf32>
    %374 = vector.broadcast %373 : vector<1x128xf32> to vector<16x128xf32>
    %375 = arith.mulf %372, %374 : vector<16x128xf32>
    %c32_253 = arith.constant 32 : index
    %c0_254 = arith.constant 0 : index
    %376 = vector.load %arg19[%c32_253, %c0_254] : memref<144x512xf32, #tpu.memory_space<vmem>>, vector<16x128xf32>
    tpu.vector_store %arg19[%c32_253, %c0_254], %375 {strides = array<i32>} : memref<144x512xf32, #tpu.memory_space<vmem>>, vector<16x128xf32>,
    %c0_255 = arith.constant 0 : index
    %c127_256 = arith.constant 127 : index
    %377 = vector.load %arg17[%c0_255, %c127_256] : memref<16x384xf32, #tpu.memory_space<vmem>>, vector<16x128xf32>
    %378 = vector.extract_strided_slice %361 {offsets = [3, 0], sizes = [1, 128], strides = [1, 1]} : vector<9x512xf32> to vector<1x128xf32>
    %379 = vector.broadcast %378 : vector<1x128xf32> to vector<16x128xf32>
    %380 = arith.mulf %377, %379 : vector<16x128xf32>
    %c48_257 = arith.constant 48 : index
    %c0_258 = arith.constant 0 : index
    %381 = vector.load %arg19[%c48_257, %c0_258] : memref<144x512xf32, #tpu.memory_space<vmem>>, vector<16x128xf32>
    tpu.vector_store %arg19[%c48_257, %c0_258], %380 {strides = array<i32>} : memref<144x512xf32, #tpu.memory_space<vmem>>, vector<16x128xf32>,
    %c0_259 = arith.constant 0 : index
    %c128_260 = arith.constant 128 : index
    %382 = vector.load %arg17[%c0_259, %c128_260] : memref<16x384xf32, #tpu.memory_space<vmem>>, vector<16x128xf32>
    %c64_261 = arith.constant 64 : index
    %c0_262 = arith.constant 0 : index
    %383 = vector.load %arg19[%c64_261, %c0_262] : memref<144x512xf32, #tpu.memory_space<vmem>>, vector<16x128xf32>
    tpu.vector_store %arg19[%c64_261, %c0_262], %382 {strides = array<i32>} : memref<144x512xf32, #tpu.memory_space<vmem>>, vector<16x128xf32>,
    %c0_263 = arith.constant 0 : index
    %c129_264 = arith.constant 129 : index
    %384 = vector.load %arg17[%c0_263, %c129_264] : memref<16x384xf32, #tpu.memory_space<vmem>>, vector<16x128xf32>
    %385 = vector.extract_strided_slice %361 {offsets = [5, 0], sizes = [1, 128], strides = [1, 1]} : vector<9x512xf32> to vector<1x128xf32>
    %386 = vector.broadcast %385 : vector<1x128xf32> to vector<16x128xf32>
    %387 = arith.mulf %384, %386 : vector<16x128xf32>
    %c80_265 = arith.constant 80 : index
    %c0_266 = arith.constant 0 : index
    %388 = vector.load %arg19[%c80_265, %c0_266] : memref<144x512xf32, #tpu.memory_space<vmem>>, vector<16x128xf32>
    tpu.vector_store %arg19[%c80_265, %c0_266], %387 {strides = array<i32>} : memref<144x512xf32, #tpu.memory_space<vmem>>, vector<16x128xf32>,
    %c0_267 = arith.constant 0 : index
    %c135 = arith.constant 135 : index
    %389 = vector.load %arg17[%c0_267, %c135] : memref<16x384xf32, #tpu.memory_space<vmem>>, vector<16x128xf32>
    %390 = vector.extract_strided_slice %361 {offsets = [6, 0], sizes = [1, 128], strides = [1, 1]} : vector<9x512xf32> to vector<1x128xf32>
    %391 = vector.broadcast %390 : vector<1x128xf32> to vector<16x128xf32>
    %392 = arith.mulf %389, %391 : vector<16x128xf32>
    %c96_268 = arith.constant 96 : index
    %c0_269 = arith.constant 0 : index
    %393 = vector.load %arg19[%c96_268, %c0_269] : memref<144x512xf32, #tpu.memory_space<vmem>>, vector<16x128xf32>
    tpu.vector_store %arg19[%c96_268, %c0_269], %392 {strides = array<i32>} : memref<144x512xf32, #tpu.memory_space<vmem>>, vector<16x128xf32>,
    %c0_270 = arith.constant 0 : index
    %c136 = arith.constant 136 : index
    %394 = vector.load %arg17[%c0_270, %c136] : memref<16x384xf32, #tpu.memory_space<vmem>>, vector<16x128xf32>
    %395 = vector.extract_strided_slice %361 {offsets = [7, 0], sizes = [1, 128], strides = [1, 1]} : vector<9x512xf32> to vector<1x128xf32>
    %396 = vector.broadcast %395 : vector<1x128xf32> to vector<16x128xf32>
    %397 = arith.mulf %394, %396 : vector<16x128xf32>
    %c112_271 = arith.constant 112 : index
    %c0_272 = arith.constant 0 : index
    %398 = vector.load %arg19[%c112_271, %c0_272] : memref<144x512xf32, #tpu.memory_space<vmem>>, vector<16x128xf32>
    tpu.vector_store %arg19[%c112_271, %c0_272], %397 {strides = array<i32>} : memref<144x512xf32, #tpu.memory_space<vmem>>, vector<16x128xf32>,
    %c0_273 = arith.constant 0 : index
    %c137 = arith.constant 137 : index
    %399 = vector.load %arg17[%c0_273, %c137] : memref<16x384xf32, #tpu.memory_space<vmem>>, vector<16x128xf32>
    %400 = vector.extract_strided_slice %361 {offsets = [8, 0], sizes = [1, 128], strides = [1, 1]} : vector<9x512xf32> to vector<1x128xf32>
    %401 = vector.broadcast %400 : vector<1x128xf32> to vector<16x128xf32>
    %402 = arith.mulf %399, %401 : vector<16x128xf32>
    %c128_274 = arith.constant 128 : index
    %c0_275 = arith.constant 0 : index
    %403 = vector.load %arg19[%c128_274, %c0_275] : memref<144x512xf32, #tpu.memory_space<vmem>>, vector<16x128xf32>
    tpu.vector_store %arg19[%c128_274, %c0_275], %402 {strides = array<i32>} : memref<144x512xf32, #tpu.memory_space<vmem>>, vector<16x128xf32>,
    %c3_276 = arith.constant 3 : index
    %c0_277 = arith.constant 0 : index
    %c0_278 = arith.constant 0 : index
    %404 = vector.load %arg2[%c3_276, %c0_277, %c0_278] : memref<7x16x144xf32, #tpu.memory_space<vmem>>, vector<1x16x144xf32>
    %405 = vector.shape_cast %404 : vector<1x16x144xf32> to vector<16x144xf32>
    %c0_279 = arith.constant 0 : index
    %c0_280 = arith.constant 0 : index
    %406 = vector.load %arg19[%c0_279, %c0_280] : memref<144x512xf32, #tpu.memory_space<vmem>>, vector<144x128xf32>
    %cst_281 = arith.constant dense<0.000000e+00> : vector<16x128xf32>
    %407 = tpu.matmul %405, %406, %cst_281 {dimension_numbers = #tpu.dot_dimension_numbers<[1], [0], [0], [1], [0, 0, 1, 1], [], []>} : vector<16x144xf32>, vector<144x128xf32>, vector<16x128xf32> -> vector<16x128xf32>
    %408 = arith.addf %305, %407 : vector<16x128xf32>
    %c0_282 = arith.constant 0 : index
    %c0_283 = arith.constant 0 : index
    %409 = vector.load %arg14[%c0_282, %c0_283] : memref<16x128xf32, #tpu.memory_space<vmem>>, vector<16x128xf32>
    tpu.vector_store %arg14[%c0_282, %c0_283], %408 {strides = array<i32>} : memref<16x128xf32, #tpu.memory_space<vmem>>, vector<16x128xf32>,
    %c0_284 = arith.constant 0 : index
    %c0_285 = arith.constant 0 : index
    %410 = vector.load %arg14[%c0_284, %c0_285] : memref<16x128xf32, #tpu.memory_space<vmem>>, vector<16x128xf32>
    %c0_286 = arith.constant 0 : index
    %c7 = arith.constant 7 : index
    %411 = vector.load %arg4[%c0_286, %c7] : memref<16x15xf32, #tpu.memory_space<vmem>>, vector<16x1xf32>
    %c0_287 = arith.constant 0 : index
    %c7_288 = arith.constant 7 : index
    %412 = vector.load %arg5[%c0_287, %c7_288] : memref<16x15xf32, #tpu.memory_space<vmem>>, vector<16x1xf32>
    %cst_289 = arith.constant dense<0.000000e+00> : vector<16xf32>
    %413 = vector.multi_reduction <add>, %410, %cst_289 [1] : vector<16x128xf32> to vector<16xf32>
    %414 = vector.shape_cast %413 : vector<16xf32> to vector<16x1xf32>
    %415 = arith.mulf %410, %410 : vector<16x128xf32>
    %cst_290 = arith.constant dense<0.000000e+00> : vector<16xf32>
    %416 = vector.multi_reduction <add>, %415, %cst_290 [1] : vector<16x128xf32> to vector<16xf32>
    %417 = vector.shape_cast %416 : vector<16xf32> to vector<16x1xf32>
    %cst_291 = arith.constant 7.812500e-03 : f32
    %418 = vector.broadcast %cst_291 : f32 to vector<16x1xf32>
    %419 = arith.mulf %414, %418 : vector<16x1xf32>
    %cst_292 = arith.constant 7.812500e-03 : f32
    %420 = vector.broadcast %cst_292 : f32 to vector<16x1xf32>
    %421 = arith.mulf %417, %420 : vector<16x1xf32>
    %422 = arith.mulf %419, %419 : vector<16x1xf32>
    %423 = arith.subf %421, %422 : vector<16x1xf32>
    %cst_293 = arith.constant 9.99999974E-6 : f32
    %424 = vector.broadcast %cst_293 : f32 to vector<16x1xf32>
    %425 = arith.addf %423, %424 : vector<16x1xf32>
    %426 = math.rsqrt %425 : vector<16x1xf32>
    %427 = arith.mulf %411, %426 : vector<16x1xf32>
    %428 = arith.mulf %419, %427 : vector<16x1xf32>
    %429 = arith.subf %412, %428 : vector<16x1xf32>
    %430 = vector.broadcast %427 : vector<16x1xf32> to vector<16x128xf32>
    %431 = arith.mulf %410, %430 : vector<16x128xf32>
    %432 = vector.broadcast %429 : vector<16x1xf32> to vector<16x128xf32>
    %433 = arith.addf %431, %432 : vector<16x128xf32>
    %cst_294 = arith.constant 0.000000e+00 : f32
    %434 = vector.broadcast %cst_294 : f32 to vector<16x128xf32>
    %435 = arith.maximumf %433, %434 : vector<16x128xf32>
    %c4_295 = arith.constant 4 : index
    %c0_296 = arith.constant 0 : index
    %c0_297 = arith.constant 0 : index
    %436 = vector.load %arg3[%c4_295, %c0_296, %c0_297] : memref<8x16x16xf32, #tpu.memory_space<vmem>>, vector<1x16x16xf32>
    %437 = vector.shape_cast %436 : vector<1x16x16xf32> to vector<16x16xf32>
    %cst_298 = arith.constant dense<0.000000e+00> : vector<16x128xf32>
    %438 = tpu.matmul %437, %435, %cst_298 {dimension_numbers = #tpu.dot_dimension_numbers<[1], [0], [0], [1], [0, 0, 1, 1], [], []>} : vector<16x16xf32>, vector<16x128xf32>, vector<16x128xf32> -> vector<16x128xf32>
    %c0_299 = arith.constant 0 : index
    %c8 = arith.constant 8 : index
    %439 = vector.load %arg4[%c0_299, %c8] : memref<16x15xf32, #tpu.memory_space<vmem>>, vector<16x1xf32>
    %c0_300 = arith.constant 0 : index
    %c8_301 = arith.constant 8 : index
    %440 = vector.load %arg5[%c0_300, %c8_301] : memref<16x15xf32, #tpu.memory_space<vmem>>, vector<16x1xf32>
    %cst_302 = arith.constant dense<0.000000e+00> : vector<16xf32>
    %441 = vector.multi_reduction <add>, %438, %cst_302 [1] : vector<16x128xf32> to vector<16xf32>
    %442 = vector.shape_cast %441 : vector<16xf32> to vector<16x1xf32>
    %443 = arith.mulf %438, %438 : vector<16x128xf32>
    %cst_303 = arith.constant dense<0.000000e+00> : vector<16xf32>
    %444 = vector.multi_reduction <add>, %443, %cst_303 [1] : vector<16x128xf32> to vector<16xf32>
    %445 = vector.shape_cast %444 : vector<16xf32> to vector<16x1xf32>
    %cst_304 = arith.constant 7.812500e-03 : f32
    %446 = vector.broadcast %cst_304 : f32 to vector<16x1xf32>
    %447 = arith.mulf %442, %446 : vector<16x1xf32>
    %cst_305 = arith.constant 7.812500e-03 : f32
    %448 = vector.broadcast %cst_305 : f32 to vector<16x1xf32>
    %449 = arith.mulf %445, %448 : vector<16x1xf32>
    %450 = arith.mulf %447, %447 : vector<16x1xf32>
    %451 = arith.subf %449, %450 : vector<16x1xf32>
    %cst_306 = arith.constant 9.99999974E-6 : f32
    %452 = vector.broadcast %cst_306 : f32 to vector<16x1xf32>
    %453 = arith.addf %451, %452 : vector<16x1xf32>
    %454 = math.rsqrt %453 : vector<16x1xf32>
    %455 = arith.mulf %439, %454 : vector<16x1xf32>
    %456 = arith.mulf %447, %455 : vector<16x1xf32>
    %457 = arith.subf %440, %456 : vector<16x1xf32>
    %458 = vector.broadcast %455 : vector<16x1xf32> to vector<16x128xf32>
    %459 = arith.mulf %438, %458 : vector<16x128xf32>
    %460 = vector.broadcast %457 : vector<16x1xf32> to vector<16x128xf32>
    %461 = arith.addf %459, %460 : vector<16x128xf32>
    %cst_307 = arith.constant 0.000000e+00 : f32
    %462 = vector.broadcast %cst_307 : f32 to vector<16x128xf32>
    %463 = arith.maximumf %461, %462 : vector<16x128xf32>
    %c0_308 = arith.constant 0 : index
    %c128_309 = arith.constant 128 : index
    %464 = vector.load %arg17[%c0_308, %c128_309] : memref<16x384xf32, #tpu.memory_space<vmem>>, vector<16x128xf32>
    tpu.vector_store %arg17[%c0_308, %c128_309], %463 {strides = array<i32>} : memref<16x384xf32, #tpu.memory_space<vmem>>, vector<16x128xf32>,
    %c1_310 = arith.constant 1 : index
    %c0_311 = arith.constant 0 : index
    %c0_312 = arith.constant 0 : index
    %465 = vector.load %arg8[%c1_310, %c0_311, %c0_312] : memref<3x9x512xf32, #tpu.memory_space<vmem>>, vector<1x9x512xf32>
    %466 = vector.shape_cast %465 : vector<1x9x512xf32> to vector<9x512xf32>
    %c0_313 = arith.constant 0 : index
    %c119_314 = arith.constant 119 : index
    %467 = vector.load %arg17[%c0_313, %c119_314] : memref<16x384xf32, #tpu.memory_space<vmem>>, vector<16x128xf32>
    %468 = vector.extract_strided_slice %466 {offsets = [0, 0], sizes = [1, 128], strides = [1, 1]} : vector<9x512xf32> to vector<1x128xf32>
    %469 = vector.broadcast %468 : vector<1x128xf32> to vector<16x128xf32>
    %470 = arith.mulf %467, %469 : vector<16x128xf32>
    %c0_315 = arith.constant 0 : index
    %c0_316 = arith.constant 0 : index
    %471 = vector.load %arg19[%c0_315, %c0_316] : memref<144x512xf32, #tpu.memory_space<vmem>>, vector<16x128xf32>
    tpu.vector_store %arg19[%c0_315, %c0_316], %470 {strides = array<i32>} : memref<144x512xf32, #tpu.memory_space<vmem>>, vector<16x128xf32>,
    %c0_317 = arith.constant 0 : index
    %c120_318 = arith.constant 120 : index
    %472 = vector.load %arg17[%c0_317, %c120_318] : memref<16x384xf32, #tpu.memory_space<vmem>>, vector<16x128xf32>
    %473 = vector.extract_strided_slice %466 {offsets = [1, 0], sizes = [1, 128], strides = [1, 1]} : vector<9x512xf32> to vector<1x128xf32>
    %474 = vector.broadcast %473 : vector<1x128xf32> to vector<16x128xf32>
    %475 = arith.mulf %472, %474 : vector<16x128xf32>
    %c16_319 = arith.constant 16 : index
    %c0_320 = arith.constant 0 : index
    %476 = vector.load %arg19[%c16_319, %c0_320] : memref<144x512xf32, #tpu.memory_space<vmem>>, vector<16x128xf32>
    tpu.vector_store %arg19[%c16_319, %c0_320], %475 {strides = array<i32>} : memref<144x512xf32, #tpu.memory_space<vmem>>, vector<16x128xf32>,
    %c0_321 = arith.constant 0 : index
    %c121_322 = arith.constant 121 : index
    %477 = vector.load %arg17[%c0_321, %c121_322] : memref<16x384xf32, #tpu.memory_space<vmem>>, vector<16x128xf32>
    %478 = vector.extract_strided_slice %466 {offsets = [2, 0], sizes = [1, 128], strides = [1, 1]} : vector<9x512xf32> to vector<1x128xf32>
    %479 = vector.broadcast %478 : vector<1x128xf32> to vector<16x128xf32>
    %480 = arith.mulf %477, %479 : vector<16x128xf32>
    %c32_323 = arith.constant 32 : index
    %c0_324 = arith.constant 0 : index
    %481 = vector.load %arg19[%c32_323, %c0_324] : memref<144x512xf32, #tpu.memory_space<vmem>>, vector<16x128xf32>
    tpu.vector_store %arg19[%c32_323, %c0_324], %480 {strides = array<i32>} : memref<144x512xf32, #tpu.memory_space<vmem>>, vector<16x128xf32>,
    %c0_325 = arith.constant 0 : index
    %c127_326 = arith.constant 127 : index
    %482 = vector.load %arg17[%c0_325, %c127_326] : memref<16x384xf32, #tpu.memory_space<vmem>>, vector<16x128xf32>
    %483 = vector.extract_strided_slice %466 {offsets = [3, 0], sizes = [1, 128], strides = [1, 1]} : vector<9x512xf32> to vector<1x128xf32>
    %484 = vector.broadcast %483 : vector<1x128xf32> to vector<16x128xf32>
    %485 = arith.mulf %482, %484 : vector<16x128xf32>
    %c48_327 = arith.constant 48 : index
    %c0_328 = arith.constant 0 : index
    %486 = vector.load %arg19[%c48_327, %c0_328] : memref<144x512xf32, #tpu.memory_space<vmem>>, vector<16x128xf32>
    tpu.vector_store %arg19[%c48_327, %c0_328], %485 {strides = array<i32>} : memref<144x512xf32, #tpu.memory_space<vmem>>, vector<16x128xf32>,
    %c0_329 = arith.constant 0 : index
    %c128_330 = arith.constant 128 : index
    %487 = vector.load %arg17[%c0_329, %c128_330] : memref<16x384xf32, #tpu.memory_space<vmem>>, vector<16x128xf32>
    %c64_331 = arith.constant 64 : index
    %c0_332 = arith.constant 0 : index
    %488 = vector.load %arg19[%c64_331, %c0_332] : memref<144x512xf32, #tpu.memory_space<vmem>>, vector<16x128xf32>
    tpu.vector_store %arg19[%c64_331, %c0_332], %487 {strides = array<i32>} : memref<144x512xf32, #tpu.memory_space<vmem>>, vector<16x128xf32>,
    %c0_333 = arith.constant 0 : index
    %c129_334 = arith.constant 129 : index
    %489 = vector.load %arg17[%c0_333, %c129_334] : memref<16x384xf32, #tpu.memory_space<vmem>>, vector<16x128xf32>
    %490 = vector.extract_strided_slice %466 {offsets = [5, 0], sizes = [1, 128], strides = [1, 1]} : vector<9x512xf32> to vector<1x128xf32>
    %491 = vector.broadcast %490 : vector<1x128xf32> to vector<16x128xf32>
    %492 = arith.mulf %489, %491 : vector<16x128xf32>
    %c80_335 = arith.constant 80 : index
    %c0_336 = arith.constant 0 : index
    %493 = vector.load %arg19[%c80_335, %c0_336] : memref<144x512xf32, #tpu.memory_space<vmem>>, vector<16x128xf32>
    tpu.vector_store %arg19[%c80_335, %c0_336], %492 {strides = array<i32>} : memref<144x512xf32, #tpu.memory_space<vmem>>, vector<16x128xf32>,
    %c0_337 = arith.constant 0 : index
    %c135_338 = arith.constant 135 : index
    %494 = vector.load %arg17[%c0_337, %c135_338] : memref<16x384xf32, #tpu.memory_space<vmem>>, vector<16x128xf32>
    %495 = vector.extract_strided_slice %466 {offsets = [6, 0], sizes = [1, 128], strides = [1, 1]} : vector<9x512xf32> to vector<1x128xf32>
    %496 = vector.broadcast %495 : vector<1x128xf32> to vector<16x128xf32>
    %497 = arith.mulf %494, %496 : vector<16x128xf32>
    %c96_339 = arith.constant 96 : index
    %c0_340 = arith.constant 0 : index
    %498 = vector.load %arg19[%c96_339, %c0_340] : memref<144x512xf32, #tpu.memory_space<vmem>>, vector<16x128xf32>
    tpu.vector_store %arg19[%c96_339, %c0_340], %497 {strides = array<i32>} : memref<144x512xf32, #tpu.memory_space<vmem>>, vector<16x128xf32>,
    %c0_341 = arith.constant 0 : index
    %c136_342 = arith.constant 136 : index
    %499 = vector.load %arg17[%c0_341, %c136_342] : memref<16x384xf32, #tpu.memory_space<vmem>>, vector<16x128xf32>
    %500 = vector.extract_strided_slice %466 {offsets = [7, 0], sizes = [1, 128], strides = [1, 1]} : vector<9x512xf32> to vector<1x128xf32>
    %501 = vector.broadcast %500 : vector<1x128xf32> to vector<16x128xf32>
    %502 = arith.mulf %499, %501 : vector<16x128xf32>
    %c112_343 = arith.constant 112 : index
    %c0_344 = arith.constant 0 : index
    %503 = vector.load %arg19[%c112_343, %c0_344] : memref<144x512xf32, #tpu.memory_space<vmem>>, vector<16x128xf32>
    tpu.vector_store %arg19[%c112_343, %c0_344], %502 {strides = array<i32>} : memref<144x512xf32, #tpu.memory_space<vmem>>, vector<16x128xf32>,
    %c0_345 = arith.constant 0 : index
    %c137_346 = arith.constant 137 : index
    %504 = vector.load %arg17[%c0_345, %c137_346] : memref<16x384xf32, #tpu.memory_space<vmem>>, vector<16x128xf32>
    %505 = vector.extract_strided_slice %466 {offsets = [8, 0], sizes = [1, 128], strides = [1, 1]} : vector<9x512xf32> to vector<1x128xf32>
    %506 = vector.broadcast %505 : vector<1x128xf32> to vector<16x128xf32>
    %507 = arith.mulf %504, %506 : vector<16x128xf32>
    %c128_347 = arith.constant 128 : index
    %c0_348 = arith.constant 0 : index
    %508 = vector.load %arg19[%c128_347, %c0_348] : memref<144x512xf32, #tpu.memory_space<vmem>>, vector<16x128xf32>
    tpu.vector_store %arg19[%c128_347, %c0_348], %507 {strides = array<i32>} : memref<144x512xf32, #tpu.memory_space<vmem>>, vector<16x128xf32>,
    %c4_349 = arith.constant 4 : index
    %c0_350 = arith.constant 0 : index
    %c0_351 = arith.constant 0 : index
    %509 = vector.load %arg2[%c4_349, %c0_350, %c0_351] : memref<7x16x144xf32, #tpu.memory_space<vmem>>, vector<1x16x144xf32>
    %510 = vector.shape_cast %509 : vector<1x16x144xf32> to vector<16x144xf32>
    %c0_352 = arith.constant 0 : index
    %c0_353 = arith.constant 0 : index
    %511 = vector.load %arg19[%c0_352, %c0_353] : memref<144x512xf32, #tpu.memory_space<vmem>>, vector<144x128xf32>
    %cst_354 = arith.constant dense<0.000000e+00> : vector<16x128xf32>
    %512 = tpu.matmul %510, %511, %cst_354 {dimension_numbers = #tpu.dot_dimension_numbers<[1], [0], [0], [1], [0, 0, 1, 1], [], []>} : vector<16x144xf32>, vector<144x128xf32>, vector<16x128xf32> -> vector<16x128xf32>
    %513 = arith.addf %410, %512 : vector<16x128xf32>
    %c0_355 = arith.constant 0 : index
    %c0_356 = arith.constant 0 : index
    %514 = vector.load %arg14[%c0_355, %c0_356] : memref<16x128xf32, #tpu.memory_space<vmem>>, vector<16x128xf32>
    tpu.vector_store %arg14[%c0_355, %c0_356], %513 {strides = array<i32>} : memref<16x128xf32, #tpu.memory_space<vmem>>, vector<16x128xf32>,
    %c0_357 = arith.constant 0 : index
    %c0_358 = arith.constant 0 : index
    %515 = vector.load %arg14[%c0_357, %c0_358] : memref<16x128xf32, #tpu.memory_space<vmem>>, vector<16x128xf32>
    %c0_359 = arith.constant 0 : index
    %c9 = arith.constant 9 : index
    %516 = vector.load %arg4[%c0_359, %c9] : memref<16x15xf32, #tpu.memory_space<vmem>>, vector<16x1xf32>
    %c0_360 = arith.constant 0 : index
    %c9_361 = arith.constant 9 : index
    %517 = vector.load %arg5[%c0_360, %c9_361] : memref<16x15xf32, #tpu.memory_space<vmem>>, vector<16x1xf32>
    %cst_362 = arith.constant dense<0.000000e+00> : vector<16xf32>
    %518 = vector.multi_reduction <add>, %515, %cst_362 [1] : vector<16x128xf32> to vector<16xf32>
    %519 = vector.shape_cast %518 : vector<16xf32> to vector<16x1xf32>
    %520 = arith.mulf %515, %515 : vector<16x128xf32>
    %cst_363 = arith.constant dense<0.000000e+00> : vector<16xf32>
    %521 = vector.multi_reduction <add>, %520, %cst_363 [1] : vector<16x128xf32> to vector<16xf32>
    %522 = vector.shape_cast %521 : vector<16xf32> to vector<16x1xf32>
    %cst_364 = arith.constant 7.812500e-03 : f32
    %523 = vector.broadcast %cst_364 : f32 to vector<16x1xf32>
    %524 = arith.mulf %519, %523 : vector<16x1xf32>
    %cst_365 = arith.constant 7.812500e-03 : f32
    %525 = vector.broadcast %cst_365 : f32 to vector<16x1xf32>
    %526 = arith.mulf %522, %525 : vector<16x1xf32>
    %527 = arith.mulf %524, %524 : vector<16x1xf32>
    %528 = arith.subf %526, %527 : vector<16x1xf32>
    %cst_366 = arith.constant 9.99999974E-6 : f32
    %529 = vector.broadcast %cst_366 : f32 to vector<16x1xf32>
    %530 = arith.addf %528, %529 : vector<16x1xf32>
    %531 = math.rsqrt %530 : vector<16x1xf32>
    %532 = arith.mulf %516, %531 : vector<16x1xf32>
    %533 = arith.mulf %524, %532 : vector<16x1xf32>
    %534 = arith.subf %517, %533 : vector<16x1xf32>
    %535 = vector.broadcast %532 : vector<16x1xf32> to vector<16x128xf32>
    %536 = arith.mulf %515, %535 : vector<16x128xf32>
    %537 = vector.broadcast %534 : vector<16x1xf32> to vector<16x128xf32>
    %538 = arith.addf %536, %537 : vector<16x128xf32>
    %cst_367 = arith.constant 0.000000e+00 : f32
    %539 = vector.broadcast %cst_367 : f32 to vector<16x128xf32>
    %540 = arith.maximumf %538, %539 : vector<16x128xf32>
    %c5_368 = arith.constant 5 : index
    %c0_369 = arith.constant 0 : index
    %c0_370 = arith.constant 0 : index
    %541 = vector.load %arg3[%c5_368, %c0_369, %c0_370] : memref<8x16x16xf32, #tpu.memory_space<vmem>>, vector<1x16x16xf32>
    %542 = vector.shape_cast %541 : vector<1x16x16xf32> to vector<16x16xf32>
    %cst_371 = arith.constant dense<0.000000e+00> : vector<16x128xf32>
    %543 = tpu.matmul %542, %540, %cst_371 {dimension_numbers = #tpu.dot_dimension_numbers<[1], [0], [0], [1], [0, 0, 1, 1], [], []>} : vector<16x16xf32>, vector<16x128xf32>, vector<16x128xf32> -> vector<16x128xf32>
    %c0_372 = arith.constant 0 : index
    %c0_373 = arith.constant 0 : index
    %544 = vector.load %arg10[%c0_372, %c0_373] : memref<128x32xf32, #tpu.memory_space<vmem>>, vector<128x32xf32>
    %cst_374 = arith.constant dense<0.000000e+00> : vector<16x32xf32>
    %545 = tpu.matmul %543, %544, %cst_374 {dimension_numbers = #tpu.dot_dimension_numbers<[1], [0], [0], [1], [0, 0, 1, 1], [], []>} : vector<16x128xf32>, vector<128x32xf32>, vector<16x32xf32> -> vector<16x32xf32>
    %c0_375 = arith.constant 0 : index
    %c0_376 = arith.constant 0 : index
    %546 = vector.load %arg15[%c0_375, %c0_376] : memref<16x32xf32, #tpu.memory_space<vmem>>, vector<16x32xf32>
    tpu.vector_store %arg15[%c0_375, %c0_376], %545 {strides = array<i32>} : memref<16x32xf32, #tpu.memory_space<vmem>>, vector<16x32xf32>,
    %c0_377 = arith.constant 0 : index
    %c0_378 = arith.constant 0 : index
    %547 = vector.load %arg15[%c0_377, %c0_378] : memref<16x32xf32, #tpu.memory_space<vmem>>, vector<16x32xf32>
    %c0_379 = arith.constant 0 : index
    %c10 = arith.constant 10 : index
    %548 = vector.load %arg4[%c0_379, %c10] : memref<16x15xf32, #tpu.memory_space<vmem>>, vector<16x1xf32>
    %c0_380 = arith.constant 0 : index
    %c10_381 = arith.constant 10 : index
    %549 = vector.load %arg5[%c0_380, %c10_381] : memref<16x15xf32, #tpu.memory_space<vmem>>, vector<16x1xf32>
    %cst_382 = arith.constant dense<0.000000e+00> : vector<16xf32>
    %550 = vector.multi_reduction <add>, %547, %cst_382 [1] : vector<16x32xf32> to vector<16xf32>
    %551 = vector.shape_cast %550 : vector<16xf32> to vector<16x1xf32>
    %552 = arith.mulf %547, %547 : vector<16x32xf32>
    %cst_383 = arith.constant dense<0.000000e+00> : vector<16xf32>
    %553 = vector.multi_reduction <add>, %552, %cst_383 [1] : vector<16x32xf32> to vector<16xf32>
    %554 = vector.shape_cast %553 : vector<16xf32> to vector<16x1xf32>
    %cst_384 = arith.constant 3.125000e-02 : f32
    %555 = vector.broadcast %cst_384 : f32 to vector<16x1xf32>
    %556 = arith.mulf %551, %555 : vector<16x1xf32>
    %cst_385 = arith.constant 3.125000e-02 : f32
    %557 = vector.broadcast %cst_385 : f32 to vector<16x1xf32>
    %558 = arith.mulf %554, %557 : vector<16x1xf32>
    %559 = arith.mulf %556, %556 : vector<16x1xf32>
    %560 = arith.subf %558, %559 : vector<16x1xf32>
    %cst_386 = arith.constant 9.99999974E-6 : f32
    %561 = vector.broadcast %cst_386 : f32 to vector<16x1xf32>
    %562 = arith.addf %560, %561 : vector<16x1xf32>
    %563 = math.rsqrt %562 : vector<16x1xf32>
    %564 = arith.mulf %548, %563 : vector<16x1xf32>
    %565 = arith.mulf %556, %564 : vector<16x1xf32>
    %566 = arith.subf %549, %565 : vector<16x1xf32>
    %567 = vector.broadcast %564 : vector<16x1xf32> to vector<16x32xf32>
    %568 = arith.mulf %547, %567 : vector<16x32xf32>
    %569 = vector.broadcast %566 : vector<16x1xf32> to vector<16x32xf32>
    %570 = arith.addf %568, %569 : vector<16x32xf32>
    %cst_387 = arith.constant 0.000000e+00 : f32
    %571 = vector.broadcast %cst_387 : f32 to vector<16x32xf32>
    %572 = arith.maximumf %570, %571 : vector<16x32xf32>
    %c6_388 = arith.constant 6 : index
    %c0_389 = arith.constant 0 : index
    %c0_390 = arith.constant 0 : index
    %573 = vector.load %arg3[%c6_388, %c0_389, %c0_390] : memref<8x16x16xf32, #tpu.memory_space<vmem>>, vector<1x16x16xf32>
    %574 = vector.shape_cast %573 : vector<1x16x16xf32> to vector<16x16xf32>
    %cst_391 = arith.constant dense<0.000000e+00> : vector<16x32xf32>
    %575 = tpu.matmul %574, %572, %cst_391 {dimension_numbers = #tpu.dot_dimension_numbers<[1], [0], [0], [1], [0, 0, 1, 1], [], []>} : vector<16x16xf32>, vector<16x32xf32>, vector<16x32xf32> -> vector<16x32xf32>
    %c0_392 = arith.constant 0 : index
    %c11 = arith.constant 11 : index
    %576 = vector.load %arg4[%c0_392, %c11] : memref<16x15xf32, #tpu.memory_space<vmem>>, vector<16x1xf32>
    %c0_393 = arith.constant 0 : index
    %c11_394 = arith.constant 11 : index
    %577 = vector.load %arg5[%c0_393, %c11_394] : memref<16x15xf32, #tpu.memory_space<vmem>>, vector<16x1xf32>
    %cst_395 = arith.constant dense<0.000000e+00> : vector<16xf32>
    %578 = vector.multi_reduction <add>, %575, %cst_395 [1] : vector<16x32xf32> to vector<16xf32>
    %579 = vector.shape_cast %578 : vector<16xf32> to vector<16x1xf32>
    %580 = arith.mulf %575, %575 : vector<16x32xf32>
    %cst_396 = arith.constant dense<0.000000e+00> : vector<16xf32>
    %581 = vector.multi_reduction <add>, %580, %cst_396 [1] : vector<16x32xf32> to vector<16xf32>
    %582 = vector.shape_cast %581 : vector<16xf32> to vector<16x1xf32>
    %cst_397 = arith.constant 3.125000e-02 : f32
    %583 = vector.broadcast %cst_397 : f32 to vector<16x1xf32>
    %584 = arith.mulf %579, %583 : vector<16x1xf32>
    %cst_398 = arith.constant 3.125000e-02 : f32
    %585 = vector.broadcast %cst_398 : f32 to vector<16x1xf32>
    %586 = arith.mulf %582, %585 : vector<16x1xf32>
    %587 = arith.mulf %584, %584 : vector<16x1xf32>
    %588 = arith.subf %586, %587 : vector<16x1xf32>
    %cst_399 = arith.constant 9.99999974E-6 : f32
    %589 = vector.broadcast %cst_399 : f32 to vector<16x1xf32>
    %590 = arith.addf %588, %589 : vector<16x1xf32>
    %591 = math.rsqrt %590 : vector<16x1xf32>
    %592 = arith.mulf %576, %591 : vector<16x1xf32>
    %593 = arith.mulf %584, %592 : vector<16x1xf32>
    %594 = arith.subf %577, %593 : vector<16x1xf32>
    %595 = vector.broadcast %592 : vector<16x1xf32> to vector<16x32xf32>
    %596 = arith.mulf %575, %595 : vector<16x32xf32>
    %597 = vector.broadcast %594 : vector<16x1xf32> to vector<16x32xf32>
    %598 = arith.addf %596, %597 : vector<16x32xf32>
    %cst_400 = arith.constant 0.000000e+00 : f32
    %599 = vector.broadcast %cst_400 : f32 to vector<16x32xf32>
    %600 = arith.maximumf %598, %599 : vector<16x32xf32>
    %c0_401 = arith.constant 0 : index
    %c128_402 = arith.constant 128 : index
    %601 = vector.load %arg18[%c0_401, %c128_402] : memref<16x288xf32, #tpu.memory_space<vmem>>, vector<16x32xf32>
    tpu.vector_store %arg18[%c0_401, %c128_402], %600 {strides = array<i32>} : memref<16x288xf32, #tpu.memory_space<vmem>>, vector<16x32xf32>,
    %c2_403 = arith.constant 2 : index
    %c0_404 = arith.constant 0 : index
    %c0_405 = arith.constant 0 : index
    %602 = vector.load %arg8[%c2_403, %c0_404, %c0_405] : memref<3x9x512xf32, #tpu.memory_space<vmem>>, vector<1x9x512xf32>
    %603 = vector.shape_cast %602 : vector<1x9x512xf32> to vector<9x512xf32>
    %c0_406 = arith.constant 0 : index
    %c123 = arith.constant 123 : index
    %604 = vector.load %arg18[%c0_406, %c123] : memref<16x288xf32, #tpu.memory_space<vmem>>, vector<16x32xf32>
    %605 = vector.extract_strided_slice %603 {offsets = [0, 0], sizes = [1, 32], strides = [1, 1]} : vector<9x512xf32> to vector<1x32xf32>
    %606 = vector.broadcast %605 : vector<1x32xf32> to vector<16x32xf32>
    %607 = arith.mulf %604, %606 : vector<16x32xf32>
    %c0_407 = arith.constant 0 : index
    %c0_408 = arith.constant 0 : index
    %608 = vector.load %arg19[%c0_407, %c0_408] : memref<144x512xf32, #tpu.memory_space<vmem>>, vector<16x32xf32>
    tpu.vector_store %arg19[%c0_407, %c0_408], %607 {strides = array<i32>} : memref<144x512xf32, #tpu.memory_space<vmem>>, vector<16x32xf32>,
    %c0_409 = arith.constant 0 : index
    %c124 = arith.constant 124 : index
    %609 = vector.load %arg18[%c0_409, %c124] : memref<16x288xf32, #tpu.memory_space<vmem>>, vector<16x32xf32>
    %610 = vector.extract_strided_slice %603 {offsets = [1, 0], sizes = [1, 32], strides = [1, 1]} : vector<9x512xf32> to vector<1x32xf32>
    %611 = vector.broadcast %610 : vector<1x32xf32> to vector<16x32xf32>
    %612 = arith.mulf %609, %611 : vector<16x32xf32>
    %c16_410 = arith.constant 16 : index
    %c0_411 = arith.constant 0 : index
    %613 = vector.load %arg19[%c16_410, %c0_411] : memref<144x512xf32, #tpu.memory_space<vmem>>, vector<16x32xf32>
    tpu.vector_store %arg19[%c16_410, %c0_411], %612 {strides = array<i32>} : memref<144x512xf32, #tpu.memory_space<vmem>>, vector<16x32xf32>,
    %c0_412 = arith.constant 0 : index
    %c125 = arith.constant 125 : index
    %614 = vector.load %arg18[%c0_412, %c125] : memref<16x288xf32, #tpu.memory_space<vmem>>, vector<16x32xf32>
    %615 = vector.extract_strided_slice %603 {offsets = [2, 0], sizes = [1, 32], strides = [1, 1]} : vector<9x512xf32> to vector<1x32xf32>
    %616 = vector.broadcast %615 : vector<1x32xf32> to vector<16x32xf32>
    %617 = arith.mulf %614, %616 : vector<16x32xf32>
    %c32_413 = arith.constant 32 : index
    %c0_414 = arith.constant 0 : index
    %618 = vector.load %arg19[%c32_413, %c0_414] : memref<144x512xf32, #tpu.memory_space<vmem>>, vector<16x32xf32>
    tpu.vector_store %arg19[%c32_413, %c0_414], %617 {strides = array<i32>} : memref<144x512xf32, #tpu.memory_space<vmem>>, vector<16x32xf32>,
    %c0_415 = arith.constant 0 : index
    %c127_416 = arith.constant 127 : index
    %619 = vector.load %arg18[%c0_415, %c127_416] : memref<16x288xf32, #tpu.memory_space<vmem>>, vector<16x32xf32>
    %620 = vector.extract_strided_slice %603 {offsets = [3, 0], sizes = [1, 32], strides = [1, 1]} : vector<9x512xf32> to vector<1x32xf32>
    %621 = vector.broadcast %620 : vector<1x32xf32> to vector<16x32xf32>
    %622 = arith.mulf %619, %621 : vector<16x32xf32>
    %c48_417 = arith.constant 48 : index
    %c0_418 = arith.constant 0 : index
    %623 = vector.load %arg19[%c48_417, %c0_418] : memref<144x512xf32, #tpu.memory_space<vmem>>, vector<16x32xf32>
    tpu.vector_store %arg19[%c48_417, %c0_418], %622 {strides = array<i32>} : memref<144x512xf32, #tpu.memory_space<vmem>>, vector<16x32xf32>,
    %c0_419 = arith.constant 0 : index
    %c128_420 = arith.constant 128 : index
    %624 = vector.load %arg18[%c0_419, %c128_420] : memref<16x288xf32, #tpu.memory_space<vmem>>, vector<16x32xf32>
    %c64_421 = arith.constant 64 : index
    %c0_422 = arith.constant 0 : index
    %625 = vector.load %arg19[%c64_421, %c0_422] : memref<144x512xf32, #tpu.memory_space<vmem>>, vector<16x32xf32>
    tpu.vector_store %arg19[%c64_421, %c0_422], %624 {strides = array<i32>} : memref<144x512xf32, #tpu.memory_space<vmem>>, vector<16x32xf32>,
    %c0_423 = arith.constant 0 : index
    %c129_424 = arith.constant 129 : index
    %626 = vector.load %arg18[%c0_423, %c129_424] : memref<16x288xf32, #tpu.memory_space<vmem>>, vector<16x32xf32>
    %627 = vector.extract_strided_slice %603 {offsets = [5, 0], sizes = [1, 32], strides = [1, 1]} : vector<9x512xf32> to vector<1x32xf32>
    %628 = vector.broadcast %627 : vector<1x32xf32> to vector<16x32xf32>
    %629 = arith.mulf %626, %628 : vector<16x32xf32>
    %c80_425 = arith.constant 80 : index
    %c0_426 = arith.constant 0 : index
    %630 = vector.load %arg19[%c80_425, %c0_426] : memref<144x512xf32, #tpu.memory_space<vmem>>, vector<16x32xf32>
    tpu.vector_store %arg19[%c80_425, %c0_426], %629 {strides = array<i32>} : memref<144x512xf32, #tpu.memory_space<vmem>>, vector<16x32xf32>,
    %c0_427 = arith.constant 0 : index
    %c131 = arith.constant 131 : index
    %631 = vector.load %arg18[%c0_427, %c131] : memref<16x288xf32, #tpu.memory_space<vmem>>, vector<16x32xf32>
    %632 = vector.extract_strided_slice %603 {offsets = [6, 0], sizes = [1, 32], strides = [1, 1]} : vector<9x512xf32> to vector<1x32xf32>
    %633 = vector.broadcast %632 : vector<1x32xf32> to vector<16x32xf32>
    %634 = arith.mulf %631, %633 : vector<16x32xf32>
    %c96_428 = arith.constant 96 : index
    %c0_429 = arith.constant 0 : index
    %635 = vector.load %arg19[%c96_428, %c0_429] : memref<144x512xf32, #tpu.memory_space<vmem>>, vector<16x32xf32>
    tpu.vector_store %arg19[%c96_428, %c0_429], %634 {strides = array<i32>} : memref<144x512xf32, #tpu.memory_space<vmem>>, vector<16x32xf32>,
    %c0_430 = arith.constant 0 : index
    %c132 = arith.constant 132 : index
    %636 = vector.load %arg18[%c0_430, %c132] : memref<16x288xf32, #tpu.memory_space<vmem>>, vector<16x32xf32>
    %637 = vector.extract_strided_slice %603 {offsets = [7, 0], sizes = [1, 32], strides = [1, 1]} : vector<9x512xf32> to vector<1x32xf32>
    %638 = vector.broadcast %637 : vector<1x32xf32> to vector<16x32xf32>
    %639 = arith.mulf %636, %638 : vector<16x32xf32>
    %c112_431 = arith.constant 112 : index
    %c0_432 = arith.constant 0 : index
    %640 = vector.load %arg19[%c112_431, %c0_432] : memref<144x512xf32, #tpu.memory_space<vmem>>, vector<16x32xf32>
    tpu.vector_store %arg19[%c112_431, %c0_432], %639 {strides = array<i32>} : memref<144x512xf32, #tpu.memory_space<vmem>>, vector<16x32xf32>,
    %c0_433 = arith.constant 0 : index
    %c133 = arith.constant 133 : index
    %641 = vector.load %arg18[%c0_433, %c133] : memref<16x288xf32, #tpu.memory_space<vmem>>, vector<16x32xf32>
    %642 = vector.extract_strided_slice %603 {offsets = [8, 0], sizes = [1, 32], strides = [1, 1]} : vector<9x512xf32> to vector<1x32xf32>
    %643 = vector.broadcast %642 : vector<1x32xf32> to vector<16x32xf32>
    %644 = arith.mulf %641, %643 : vector<16x32xf32>
    %c128_434 = arith.constant 128 : index
    %c0_435 = arith.constant 0 : index
    %645 = vector.load %arg19[%c128_434, %c0_435] : memref<144x512xf32, #tpu.memory_space<vmem>>, vector<16x32xf32>
    tpu.vector_store %arg19[%c128_434, %c0_435], %644 {strides = array<i32>} : memref<144x512xf32, #tpu.memory_space<vmem>>, vector<16x32xf32>,
    %c5_436 = arith.constant 5 : index
    %c0_437 = arith.constant 0 : index
    %c0_438 = arith.constant 0 : index
    %646 = vector.load %arg2[%c5_436, %c0_437, %c0_438] : memref<7x16x144xf32, #tpu.memory_space<vmem>>, vector<1x16x144xf32>
    %647 = vector.shape_cast %646 : vector<1x16x144xf32> to vector<16x144xf32>
    %c0_439 = arith.constant 0 : index
    %c0_440 = arith.constant 0 : index
    %648 = vector.load %arg19[%c0_439, %c0_440] : memref<144x512xf32, #tpu.memory_space<vmem>>, vector<144x32xf32>
    %cst_441 = arith.constant dense<0.000000e+00> : vector<16x32xf32>
    %649 = tpu.matmul %647, %648, %cst_441 {dimension_numbers = #tpu.dot_dimension_numbers<[1], [0], [0], [1], [0, 0, 1, 1], [], []>} : vector<16x144xf32>, vector<144x32xf32>, vector<16x32xf32> -> vector<16x32xf32>
    %650 = arith.addf %547, %649 : vector<16x32xf32>
    %c0_442 = arith.constant 0 : index
    %c0_443 = arith.constant 0 : index
    %651 = vector.load %arg15[%c0_442, %c0_443] : memref<16x32xf32, #tpu.memory_space<vmem>>, vector<16x32xf32>
    tpu.vector_store %arg15[%c0_442, %c0_443], %650 {strides = array<i32>} : memref<16x32xf32, #tpu.memory_space<vmem>>, vector<16x32xf32>,
    %c0_444 = arith.constant 0 : index
    %c0_445 = arith.constant 0 : index
    %652 = vector.load %arg15[%c0_444, %c0_445] : memref<16x32xf32, #tpu.memory_space<vmem>>, vector<16x32xf32>
    %c0_446 = arith.constant 0 : index
    %c12 = arith.constant 12 : index
    %653 = vector.load %arg4[%c0_446, %c12] : memref<16x15xf32, #tpu.memory_space<vmem>>, vector<16x1xf32>
    %c0_447 = arith.constant 0 : index
    %c12_448 = arith.constant 12 : index
    %654 = vector.load %arg5[%c0_447, %c12_448] : memref<16x15xf32, #tpu.memory_space<vmem>>, vector<16x1xf32>
    %cst_449 = arith.constant dense<0.000000e+00> : vector<16xf32>
    %655 = vector.multi_reduction <add>, %652, %cst_449 [1] : vector<16x32xf32> to vector<16xf32>
    %656 = vector.shape_cast %655 : vector<16xf32> to vector<16x1xf32>
    %657 = arith.mulf %652, %652 : vector<16x32xf32>
    %cst_450 = arith.constant dense<0.000000e+00> : vector<16xf32>
    %658 = vector.multi_reduction <add>, %657, %cst_450 [1] : vector<16x32xf32> to vector<16xf32>
    %659 = vector.shape_cast %658 : vector<16xf32> to vector<16x1xf32>
    %cst_451 = arith.constant 3.125000e-02 : f32
    %660 = vector.broadcast %cst_451 : f32 to vector<16x1xf32>
    %661 = arith.mulf %656, %660 : vector<16x1xf32>
    %cst_452 = arith.constant 3.125000e-02 : f32
    %662 = vector.broadcast %cst_452 : f32 to vector<16x1xf32>
    %663 = arith.mulf %659, %662 : vector<16x1xf32>
    %664 = arith.mulf %661, %661 : vector<16x1xf32>
    %665 = arith.subf %663, %664 : vector<16x1xf32>
    %cst_453 = arith.constant 9.99999974E-6 : f32
    %666 = vector.broadcast %cst_453 : f32 to vector<16x1xf32>
    %667 = arith.addf %665, %666 : vector<16x1xf32>
    %668 = math.rsqrt %667 : vector<16x1xf32>
    %669 = arith.mulf %653, %668 : vector<16x1xf32>
    %670 = arith.mulf %661, %669 : vector<16x1xf32>
    %671 = arith.subf %654, %670 : vector<16x1xf32>
    %672 = vector.broadcast %669 : vector<16x1xf32> to vector<16x32xf32>
    %673 = arith.mulf %652, %672 : vector<16x32xf32>
    %674 = vector.broadcast %671 : vector<16x1xf32> to vector<16x32xf32>
    %675 = arith.addf %673, %674 : vector<16x32xf32>
    %cst_454 = arith.constant 0.000000e+00 : f32
    %676 = vector.broadcast %cst_454 : f32 to vector<16x32xf32>
    %677 = arith.maximumf %675, %676 : vector<16x32xf32>
    %c7_455 = arith.constant 7 : index
    %c0_456 = arith.constant 0 : index
    %c0_457 = arith.constant 0 : index
    %678 = vector.load %arg3[%c7_455, %c0_456, %c0_457] : memref<8x16x16xf32, #tpu.memory_space<vmem>>, vector<1x16x16xf32>
    %679 = vector.shape_cast %678 : vector<1x16x16xf32> to vector<16x16xf32>
    %cst_458 = arith.constant dense<0.000000e+00> : vector<16x32xf32>
    %680 = tpu.matmul %679, %677, %cst_458 {dimension_numbers = #tpu.dot_dimension_numbers<[1], [0], [0], [1], [0, 0, 1, 1], [], []>} : vector<16x16xf32>, vector<16x32xf32>, vector<16x32xf32> -> vector<16x32xf32>
    %c0_459 = arith.constant 0 : index
    %c13 = arith.constant 13 : index
    %681 = vector.load %arg4[%c0_459, %c13] : memref<16x15xf32, #tpu.memory_space<vmem>>, vector<16x1xf32>
    %c0_460 = arith.constant 0 : index
    %c13_461 = arith.constant 13 : index
    %682 = vector.load %arg5[%c0_460, %c13_461] : memref<16x15xf32, #tpu.memory_space<vmem>>, vector<16x1xf32>
    %cst_462 = arith.constant dense<0.000000e+00> : vector<16xf32>
    %683 = vector.multi_reduction <add>, %680, %cst_462 [1] : vector<16x32xf32> to vector<16xf32>
    %684 = vector.shape_cast %683 : vector<16xf32> to vector<16x1xf32>
    %685 = arith.mulf %680, %680 : vector<16x32xf32>
    %cst_463 = arith.constant dense<0.000000e+00> : vector<16xf32>
    %686 = vector.multi_reduction <add>, %685, %cst_463 [1] : vector<16x32xf32> to vector<16xf32>
    %687 = vector.shape_cast %686 : vector<16xf32> to vector<16x1xf32>
    %cst_464 = arith.constant 3.125000e-02 : f32
    %688 = vector.broadcast %cst_464 : f32 to vector<16x1xf32>
    %689 = arith.mulf %684, %688 : vector<16x1xf32>
    %cst_465 = arith.constant 3.125000e-02 : f32
    %690 = vector.broadcast %cst_465 : f32 to vector<16x1xf32>
    %691 = arith.mulf %687, %690 : vector<16x1xf32>
    %692 = arith.mulf %689, %689 : vector<16x1xf32>
    %693 = arith.subf %691, %692 : vector<16x1xf32>
    %cst_466 = arith.constant 9.99999974E-6 : f32
    %694 = vector.broadcast %cst_466 : f32 to vector<16x1xf32>
    %695 = arith.addf %693, %694 : vector<16x1xf32>
    %696 = math.rsqrt %695 : vector<16x1xf32>
    %697 = arith.mulf %681, %696 : vector<16x1xf32>
    %698 = arith.mulf %689, %697 : vector<16x1xf32>
    %699 = arith.subf %682, %698 : vector<16x1xf32>
    %700 = vector.broadcast %697 : vector<16x1xf32> to vector<16x32xf32>
    %701 = arith.mulf %680, %700 : vector<16x32xf32>
    %702 = vector.broadcast %699 : vector<16x1xf32> to vector<16x32xf32>
    %703 = arith.addf %701, %702 : vector<16x32xf32>
    %cst_467 = arith.constant 0.000000e+00 : f32
    %704 = vector.broadcast %cst_467 : f32 to vector<16x32xf32>
    %705 = arith.maximumf %703, %704 : vector<16x32xf32>
    %c0_468 = arith.constant 0 : index
    %c128_469 = arith.constant 128 : index
    %706 = vector.load %arg18[%c0_468, %c128_469] : memref<16x288xf32, #tpu.memory_space<vmem>>, vector<16x32xf32>
    tpu.vector_store %arg18[%c0_468, %c128_469], %705 {strides = array<i32>} : memref<16x288xf32, #tpu.memory_space<vmem>>, vector<16x32xf32>,
    %c2_470 = arith.constant 2 : index
    %c0_471 = arith.constant 0 : index
    %c0_472 = arith.constant 0 : index
    %707 = vector.load %arg8[%c2_470, %c0_471, %c0_472] : memref<3x9x512xf32, #tpu.memory_space<vmem>>, vector<1x9x512xf32>
    %708 = vector.shape_cast %707 : vector<1x9x512xf32> to vector<9x512xf32>
    %c0_473 = arith.constant 0 : index
    %c123_474 = arith.constant 123 : index
    %709 = vector.load %arg18[%c0_473, %c123_474] : memref<16x288xf32, #tpu.memory_space<vmem>>, vector<16x32xf32>
    %710 = vector.extract_strided_slice %708 {offsets = [0, 0], sizes = [1, 32], strides = [1, 1]} : vector<9x512xf32> to vector<1x32xf32>
    %711 = vector.broadcast %710 : vector<1x32xf32> to vector<16x32xf32>
    %712 = arith.mulf %709, %711 : vector<16x32xf32>
    %c0_475 = arith.constant 0 : index
    %c0_476 = arith.constant 0 : index
    %713 = vector.load %arg19[%c0_475, %c0_476] : memref<144x512xf32, #tpu.memory_space<vmem>>, vector<16x32xf32>
    tpu.vector_store %arg19[%c0_475, %c0_476], %712 {strides = array<i32>} : memref<144x512xf32, #tpu.memory_space<vmem>>, vector<16x32xf32>,
    %c0_477 = arith.constant 0 : index
    %c124_478 = arith.constant 124 : index
    %714 = vector.load %arg18[%c0_477, %c124_478] : memref<16x288xf32, #tpu.memory_space<vmem>>, vector<16x32xf32>
    %715 = vector.extract_strided_slice %708 {offsets = [1, 0], sizes = [1, 32], strides = [1, 1]} : vector<9x512xf32> to vector<1x32xf32>
    %716 = vector.broadcast %715 : vector<1x32xf32> to vector<16x32xf32>
    %717 = arith.mulf %714, %716 : vector<16x32xf32>
    %c16_479 = arith.constant 16 : index
    %c0_480 = arith.constant 0 : index
    %718 = vector.load %arg19[%c16_479, %c0_480] : memref<144x512xf32, #tpu.memory_space<vmem>>, vector<16x32xf32>
    tpu.vector_store %arg19[%c16_479, %c0_480], %717 {strides = array<i32>} : memref<144x512xf32, #tpu.memory_space<vmem>>, vector<16x32xf32>,
    %c0_481 = arith.constant 0 : index
    %c125_482 = arith.constant 125 : index
    %719 = vector.load %arg18[%c0_481, %c125_482] : memref<16x288xf32, #tpu.memory_space<vmem>>, vector<16x32xf32>
    %720 = vector.extract_strided_slice %708 {offsets = [2, 0], sizes = [1, 32], strides = [1, 1]} : vector<9x512xf32> to vector<1x32xf32>
    %721 = vector.broadcast %720 : vector<1x32xf32> to vector<16x32xf32>
    %722 = arith.mulf %719, %721 : vector<16x32xf32>
    %c32_483 = arith.constant 32 : index
    %c0_484 = arith.constant 0 : index
    %723 = vector.load %arg19[%c32_483, %c0_484] : memref<144x512xf32, #tpu.memory_space<vmem>>, vector<16x32xf32>
    tpu.vector_store %arg19[%c32_483, %c0_484], %722 {strides = array<i32>} : memref<144x512xf32, #tpu.memory_space<vmem>>, vector<16x32xf32>,
    %c0_485 = arith.constant 0 : index
    %c127_486 = arith.constant 127 : index
    %724 = vector.load %arg18[%c0_485, %c127_486] : memref<16x288xf32, #tpu.memory_space<vmem>>, vector<16x32xf32>
    %725 = vector.extract_strided_slice %708 {offsets = [3, 0], sizes = [1, 32], strides = [1, 1]} : vector<9x512xf32> to vector<1x32xf32>
    %726 = vector.broadcast %725 : vector<1x32xf32> to vector<16x32xf32>
    %727 = arith.mulf %724, %726 : vector<16x32xf32>
    %c48_487 = arith.constant 48 : index
    %c0_488 = arith.constant 0 : index
    %728 = vector.load %arg19[%c48_487, %c0_488] : memref<144x512xf32, #tpu.memory_space<vmem>>, vector<16x32xf32>
    tpu.vector_store %arg19[%c48_487, %c0_488], %727 {strides = array<i32>} : memref<144x512xf32, #tpu.memory_space<vmem>>, vector<16x32xf32>,
    %c0_489 = arith.constant 0 : index
    %c128_490 = arith.constant 128 : index
    %729 = vector.load %arg18[%c0_489, %c128_490] : memref<16x288xf32, #tpu.memory_space<vmem>>, vector<16x32xf32>
    %c64_491 = arith.constant 64 : index
    %c0_492 = arith.constant 0 : index
    %730 = vector.load %arg19[%c64_491, %c0_492] : memref<144x512xf32, #tpu.memory_space<vmem>>, vector<16x32xf32>
    tpu.vector_store %arg19[%c64_491, %c0_492], %729 {strides = array<i32>} : memref<144x512xf32, #tpu.memory_space<vmem>>, vector<16x32xf32>,
    %c0_493 = arith.constant 0 : index
    %c129_494 = arith.constant 129 : index
    %731 = vector.load %arg18[%c0_493, %c129_494] : memref<16x288xf32, #tpu.memory_space<vmem>>, vector<16x32xf32>
    %732 = vector.extract_strided_slice %708 {offsets = [5, 0], sizes = [1, 32], strides = [1, 1]} : vector<9x512xf32> to vector<1x32xf32>
    %733 = vector.broadcast %732 : vector<1x32xf32> to vector<16x32xf32>
    %734 = arith.mulf %731, %733 : vector<16x32xf32>
    %c80_495 = arith.constant 80 : index
    %c0_496 = arith.constant 0 : index
    %735 = vector.load %arg19[%c80_495, %c0_496] : memref<144x512xf32, #tpu.memory_space<vmem>>, vector<16x32xf32>
    tpu.vector_store %arg19[%c80_495, %c0_496], %734 {strides = array<i32>} : memref<144x512xf32, #tpu.memory_space<vmem>>, vector<16x32xf32>,
    %c0_497 = arith.constant 0 : index
    %c131_498 = arith.constant 131 : index
    %736 = vector.load %arg18[%c0_497, %c131_498] : memref<16x288xf32, #tpu.memory_space<vmem>>, vector<16x32xf32>
    %737 = vector.extract_strided_slice %708 {offsets = [6, 0], sizes = [1, 32], strides = [1, 1]} : vector<9x512xf32> to vector<1x32xf32>
    %738 = vector.broadcast %737 : vector<1x32xf32> to vector<16x32xf32>
    %739 = arith.mulf %736, %738 : vector<16x32xf32>
    %c96_499 = arith.constant 96 : index
    %c0_500 = arith.constant 0 : index
    %740 = vector.load %arg19[%c96_499, %c0_500] : memref<144x512xf32, #tpu.memory_space<vmem>>, vector<16x32xf32>
    tpu.vector_store %arg19[%c96_499, %c0_500], %739 {strides = array<i32>} : memref<144x512xf32, #tpu.memory_space<vmem>>, vector<16x32xf32>,
    %c0_501 = arith.constant 0 : index
    %c132_502 = arith.constant 132 : index
    %741 = vector.load %arg18[%c0_501, %c132_502] : memref<16x288xf32, #tpu.memory_space<vmem>>, vector<16x32xf32>
    %742 = vector.extract_strided_slice %708 {offsets = [7, 0], sizes = [1, 32], strides = [1, 1]} : vector<9x512xf32> to vector<1x32xf32>
    %743 = vector.broadcast %742 : vector<1x32xf32> to vector<16x32xf32>
    %744 = arith.mulf %741, %743 : vector<16x32xf32>
    %c112_503 = arith.constant 112 : index
    %c0_504 = arith.constant 0 : index
    %745 = vector.load %arg19[%c112_503, %c0_504] : memref<144x512xf32, #tpu.memory_space<vmem>>, vector<16x32xf32>
    tpu.vector_store %arg19[%c112_503, %c0_504], %744 {strides = array<i32>} : memref<144x512xf32, #tpu.memory_space<vmem>>, vector<16x32xf32>,
    %c0_505 = arith.constant 0 : index
    %c133_506 = arith.constant 133 : index
    %746 = vector.load %arg18[%c0_505, %c133_506] : memref<16x288xf32, #tpu.memory_space<vmem>>, vector<16x32xf32>
    %747 = vector.extract_strided_slice %708 {offsets = [8, 0], sizes = [1, 32], strides = [1, 1]} : vector<9x512xf32> to vector<1x32xf32>
    %748 = vector.broadcast %747 : vector<1x32xf32> to vector<16x32xf32>
    %749 = arith.mulf %746, %748 : vector<16x32xf32>
    %c128_507 = arith.constant 128 : index
    %c0_508 = arith.constant 0 : index
    %750 = vector.load %arg19[%c128_507, %c0_508] : memref<144x512xf32, #tpu.memory_space<vmem>>, vector<16x32xf32>
    tpu.vector_store %arg19[%c128_507, %c0_508], %749 {strides = array<i32>} : memref<144x512xf32, #tpu.memory_space<vmem>>, vector<16x32xf32>,
    %c6_509 = arith.constant 6 : index
    %c0_510 = arith.constant 0 : index
    %c0_511 = arith.constant 0 : index
    %751 = vector.load %arg2[%c6_509, %c0_510, %c0_511] : memref<7x16x144xf32, #tpu.memory_space<vmem>>, vector<1x16x144xf32>
    %752 = vector.shape_cast %751 : vector<1x16x144xf32> to vector<16x144xf32>
    %c0_512 = arith.constant 0 : index
    %c0_513 = arith.constant 0 : index
    %753 = vector.load %arg19[%c0_512, %c0_513] : memref<144x512xf32, #tpu.memory_space<vmem>>, vector<144x32xf32>
    %cst_514 = arith.constant dense<0.000000e+00> : vector<16x32xf32>
    %754 = tpu.matmul %752, %753, %cst_514 {dimension_numbers = #tpu.dot_dimension_numbers<[1], [0], [0], [1], [0, 0, 1, 1], [], []>} : vector<16x144xf32>, vector<144x32xf32>, vector<16x32xf32> -> vector<16x32xf32>
    %755 = arith.addf %652, %754 : vector<16x32xf32>
    %c0_515 = arith.constant 0 : index
    %c0_516 = arith.constant 0 : index
    %756 = vector.load %arg15[%c0_515, %c0_516] : memref<16x32xf32, #tpu.memory_space<vmem>>, vector<16x32xf32>
    tpu.vector_store %arg15[%c0_515, %c0_516], %755 {strides = array<i32>} : memref<16x32xf32, #tpu.memory_space<vmem>>, vector<16x32xf32>,
    %c0_517 = arith.constant 0 : index
    %c0_518 = arith.constant 0 : index
    %757 = vector.load %arg15[%c0_517, %c0_518] : memref<16x32xf32, #tpu.memory_space<vmem>>, vector<16x32xf32>
    %c0_519 = arith.constant 0 : index
    %c14 = arith.constant 14 : index
    %758 = vector.load %arg4[%c0_519, %c14] : memref<16x15xf32, #tpu.memory_space<vmem>>, vector<16x1xf32>
    %c0_520 = arith.constant 0 : index
    %c14_521 = arith.constant 14 : index
    %759 = vector.load %arg5[%c0_520, %c14_521] : memref<16x15xf32, #tpu.memory_space<vmem>>, vector<16x1xf32>
    %cst_522 = arith.constant dense<0.000000e+00> : vector<16xf32>
    %760 = vector.multi_reduction <add>, %757, %cst_522 [1] : vector<16x32xf32> to vector<16xf32>
    %761 = vector.shape_cast %760 : vector<16xf32> to vector<16x1xf32>
    %762 = arith.mulf %757, %757 : vector<16x32xf32>
    %cst_523 = arith.constant dense<0.000000e+00> : vector<16xf32>
    %763 = vector.multi_reduction <add>, %762, %cst_523 [1] : vector<16x32xf32> to vector<16xf32>
    %764 = vector.shape_cast %763 : vector<16xf32> to vector<16x1xf32>
    %cst_524 = arith.constant 3.125000e-02 : f32
    %765 = vector.broadcast %cst_524 : f32 to vector<16x1xf32>
    %766 = arith.mulf %761, %765 : vector<16x1xf32>
    %cst_525 = arith.constant 3.125000e-02 : f32
    %767 = vector.broadcast %cst_525 : f32 to vector<16x1xf32>
    %768 = arith.mulf %764, %767 : vector<16x1xf32>
    %769 = arith.mulf %766, %766 : vector<16x1xf32>
    %770 = arith.subf %768, %769 : vector<16x1xf32>
    %cst_526 = arith.constant 9.99999974E-6 : f32
    %771 = vector.broadcast %cst_526 : f32 to vector<16x1xf32>
    %772 = arith.addf %770, %771 : vector<16x1xf32>
    %773 = math.rsqrt %772 : vector<16x1xf32>
    %774 = arith.mulf %758, %773 : vector<16x1xf32>
    %775 = arith.mulf %766, %774 : vector<16x1xf32>
    %776 = arith.subf %759, %775 : vector<16x1xf32>
    %777 = vector.broadcast %774 : vector<16x1xf32> to vector<16x32xf32>
    %778 = arith.mulf %757, %777 : vector<16x32xf32>
    %779 = vector.broadcast %776 : vector<16x1xf32> to vector<16x32xf32>
    %780 = arith.addf %778, %779 : vector<16x32xf32>
    %cst_527 = arith.constant 0.000000e+00 : f32
    %781 = vector.broadcast %cst_527 : f32 to vector<16x32xf32>
    %782 = arith.maximumf %780, %781 : vector<16x32xf32>
    %c0_528 = arith.constant 0 : index
    %c0_529 = arith.constant 0 : index
    %783 = vector.load %arg11[%c0_528, %c0_529] : memref<32x2xf32, #tpu.memory_space<vmem>>, vector<32x2xf32>
    %cst_530 = arith.constant dense<0.000000e+00> : vector<16x2xf32>
    %784 = tpu.matmul %782, %783, %cst_530 {dimension_numbers = #tpu.dot_dimension_numbers<[1], [0], [0], [1], [0, 0, 1, 1], [], []>} : vector<16x32xf32>, vector<32x2xf32>, vector<16x2xf32> -> vector<16x2xf32>
    %c0_531 = arith.constant 0 : index
    %c0_532 = arith.constant 0 : index
    %785 = vector.load %arg6[%c0_531, %c0_532] : memref<10x16xf32, #tpu.memory_space<vmem>>, vector<10x16xf32>
    %cst_533 = arith.constant dense<0.000000e+00> : vector<10x2xf32>
    %786 = tpu.matmul %785, %784, %cst_533 {dimension_numbers = #tpu.dot_dimension_numbers<[1], [0], [0], [1], [0, 0, 1, 1], [], []>} : vector<10x16xf32>, vector<16x2xf32>, vector<10x2xf32> -> vector<10x2xf32>
    %c0_534 = arith.constant 0 : index
    %c0_535 = arith.constant 0 : index
    %787 = vector.load %arg7[%c0_534, %c0_535] : memref<10x1xf32, #tpu.memory_space<vmem>>, vector<10x1xf32>
    %788 = vector.broadcast %787 : vector<10x1xf32> to vector<10x2xf32>
    %789 = arith.addf %786, %788 : vector<10x2xf32>
    %c0_536 = arith.constant 0 : index
    %c0_537 = arith.constant 0 : index
    %790 = vector.load %arg12[%c0_536, %c0_537] : memref<10x2xf32, #tpu.memory_space<vmem>>, vector<10x2xf32>
    tpu.vector_store %arg12[%c0_536, %c0_537], %789 {strides = array<i32>} : memref<10x2xf32, #tpu.memory_space<vmem>>, vector<10x2xf32>,
    return
  }
  func.func @transform_0(%arg0: i32) -> (i32, i32) {
    %c0_i32 = arith.constant 0 : i32
    %c0_i32_0 = arith.constant 0 : i32
    %c0_i32_1 = arith.constant 0 : i32
    return %c0_i32, %c0_i32_0 : i32, i32
  }
  func.func @transform_1(%arg0: i32) -> (i32, i32, i32) {
    %c0_i32 = arith.constant 0 : i32
    %c0_i32_0 = arith.constant 0 : i32
    %c0_i32_1 = arith.constant 0 : i32
    %c0_i32_2 = arith.constant 0 : i32
    return %c0_i32, %c0_i32_0, %c0_i32_1 : i32, i32, i32
  }
  func.func @transform_2(%arg0: i32) -> (i32, i32, i32) {
    %c0_i32 = arith.constant 0 : i32
    %c0_i32_0 = arith.constant 0 : i32
    %c0_i32_1 = arith.constant 0 : i32
    %c0_i32_2 = arith.constant 0 : i32
    return %c0_i32, %c0_i32_0, %c0_i32_1 : i32, i32, i32
  }
  func.func @transform_3(%arg0: i32) -> (i32, i32) {
    %c0_i32 = arith.constant 0 : i32
    %c0_i32_0 = arith.constant 0 : i32
    %c0_i32_1 = arith.constant 0 : i32
    return %c0_i32, %c0_i32_0 : i32, i32
  }
  func.func @transform_4(%arg0: i32) -> (i32, i32) {
    %c0_i32 = arith.constant 0 : i32
    %c0_i32_0 = arith.constant 0 : i32
    %c0_i32_1 = arith.constant 0 : i32
    return %c0_i32, %c0_i32_0 : i32, i32
  }
  func.func @transform_5(%arg0: i32) -> (i32, i32) {
    %c0_i32 = arith.constant 0 : i32
    %c0_i32_0 = arith.constant 0 : i32
    %c0_i32_1 = arith.constant 0 : i32
    return %c0_i32, %c0_i32_0 : i32, i32
  }
  func.func @transform_6(%arg0: i32) -> (i32, i32) {
    %c0_i32 = arith.constant 0 : i32
    %c0_i32_0 = arith.constant 0 : i32
    %c0_i32_1 = arith.constant 0 : i32
    return %c0_i32, %c0_i32_0 : i32, i32
  }
  func.func @transform_7(%arg0: i32) -> (i32, i32, i32) {
    %c0_i32 = arith.constant 0 : i32
    %c0_i32_0 = arith.constant 0 : i32
    %c0_i32_1 = arith.constant 0 : i32
    %c0_i32_2 = arith.constant 0 : i32
    return %c0_i32, %c0_i32_0, %c0_i32_1 : i32, i32, i32
  }
  func.func @transform_8(%arg0: i32) -> (i32, i32) {
    %c0_i32 = arith.constant 0 : i32
    %c0_i32_0 = arith.constant 0 : i32
    %c0_i32_1 = arith.constant 0 : i32
    return %c0_i32, %c0_i32_0 : i32, i32
  }
  func.func @transform_9(%arg0: i32) -> (i32, i32) {
    %c0_i32 = arith.constant 0 : i32
    %c0_i32_0 = arith.constant 0 : i32
    %c0_i32_1 = arith.constant 0 : i32
    return %c0_i32, %c0_i32_0 : i32, i32
  }
  func.func @transform_10(%arg0: i32) -> (i32, i32) {
    %c0_i32 = arith.constant 0 : i32
    %c0_i32_0 = arith.constant 0 : i32
    %c0_i32_1 = arith.constant 0 : i32
    return %c0_i32, %c0_i32_0 : i32, i32
  }
  func.func @transform_11(%arg0: i32) -> (i32, i32) {
    %c0_i32 = arith.constant 0 : i32
    %c0_i32_0 = arith.constant 0 : i32
    %c0_i32_1 = arith.constant 0 : i32
    return %c0_i32, %c0_i32_0 : i32, i32
  }
}

</mosaic_0001>

<llo_original>
// kernel: forward.1
$region0: #{forward.1}
  #allocation0 [shape = 'u32[]', space=smem, size = 0x4, offset = 0x4, fixed_abs, tag = 'smem constant byte address 0x4 - core index']
  #allocation1 [shape = 'u32[144,128]{1,0:T(1,128)}', space=vmem, size = 0x12000, scoped, tag = 'internal scratch']
  #allocation2 [shape = 'f32[16,512]{1,0:T(8,128)}', space=vmem, size = 0x8000, scoped, tag = 'scratch operand']
  #allocation3 [shape = 'f32[16,128]{1,0:T(8,128)}', space=vmem, size = 0x2000, scoped, tag = 'scratch operand']
  #allocation4 [shape = 'f32[16,32]{1,0:T(8,128)}', space=vmem, size = 0x2000, scoped, tag = 'scratch operand']
  #allocation5 [shape = 'f32[16,768]{1,0:T(8,128)}', space=vmem, size = 0xc000, scoped, tag = 'scratch operand']
  #allocation6 [shape = 'f32[16,384]{1,0:T(8,128)}', space=vmem, size = 0x6000, scoped, tag = 'scratch operand']
  #allocation7 [shape = 'f32[16,288]{1,0:T(8,128)}', space=vmem, size = 0x6000, scoped, tag = 'scratch operand']
  #allocation8 [shape = 'f32[144,512]{1,0:T(8,128)}', space=vmem, size = 0x48000, scoped, tag = 'scratch operand']
  %s0 = inlined_call_operand.vmem [shape: f32[16,512], index: 0, kind: input, shape index: {}]
  %s1 = inlined_call_operand.hbm [shape: f32[7,16,144], index: 1, kind: input, shape index: {}]
  %s2 = inlined_call_operand.vmem [shape: f32[8,16,16], index: 2, kind: input, shape index: {}]
  %s3 = inlined_call_operand.hbm [shape: f32[16,15], index: 3, kind: input, shape index: {}]
  %s4 = inlined_call_operand.hbm [shape: f32[16,15], index: 4, kind: input, shape index: {}]
  %s5 = inlined_call_operand.hbm [shape: f32[10,16], index: 5, kind: input, shape index: {}]
  %s6 = inlined_call_operand.vmem [shape: f32[10,1], index: 6, kind: input, shape index: {}]
  %s7 = inlined_call_operand.hbm [shape: f32[3,9,512], index: 7, kind: input, shape index: {}]
  %s8 = inlined_call_operand.hbm [shape: f32[512,128], index: 8, kind: input, shape index: {}]
  %s9 = inlined_call_operand.hbm [shape: f32[128,32], index: 9, kind: input, shape index: {}]
  %s10 = inlined_call_operand.hbm [shape: f32[32,2], index: 10, kind: input, shape index: {}]
  %s11 = inlined_call_operand.vmem [shape: f32[10,2], index: 11, kind: output, shape index: {}]
  %s12 = sld [smem:[#allocation0]]
  $region86: #{forward.1} parent=0
    _
  %s14 = ssub.s32 1, %s12
  %s15 = scalar_select 0, %s14, %s12
  $region1: #{forward.1} parent=0
    #allocation9 [shape = 'u8[114688]{0}', space=vmem, size = 0x1c000, scoped, tag = 'input window, operand 1, single buffered']
    #allocation10 [shape = 's32[1]{0}', space=sflag, size = 0x4, scoped, tag = 'scoped memory for forward.1']
    #allocation11 [shape = 'u8[8192]{0}', space=vmem, size = 0x2000, scoped, tag = 'input window, operand 3, single buffered']
    #allocation12 [shape = 's32[1]{0}', space=sflag, size = 0x4, scoped, tag = 'scoped memory for forward.1']
    #allocation13 [shape = 'u8[8192]{0}', space=vmem, size = 0x2000, scoped, tag = 'input window, operand 4, single buffered']
    #allocation14 [shape = 'u8[8192]{0}', space=vmem, size = 0x2000, scoped, tag = 'input window, operand 5, single buffered']
    #allocation15 [shape = 's32[1]{0}', space=sflag, size = 0x4, scoped, tag = 'scoped memory for forward.1']
    #allocation16 [shape = 'u8[98304]{0}', space=vmem, size = 0x18000, scoped, tag = 'input window, operand 7, single buffered']
    #allocation17 [shape = 'u8[262144]{0}', space=vmem, size = 0x40000, scoped, tag = 'input window, operand 8, single buffered']
    #allocation18 [shape = 's32[1]{0}', space=sflag, size = 0x4, scoped, tag = 'scoped memory for forward.1']
    #allocation19 [shape = 'u8[65536]{0}', space=vmem, size = 0x10000, scoped, tag = 'input window, operand 9, single buffered']
    #allocation20 [shape = 'u8[16384]{0}', space=vmem, size = 0x4000, scoped, tag = 'input window, operand 10, single buffered']
    #allocation21 [shape = 's32[1]{0}', space=sflag, size = 0x4, scoped, tag = 'scoped memory for forward.1']
    %16 = vsyncpa [#allocation10], 0
    %17 = vsyncpa [#allocation12], 0
    %18 = vsyncpa [#allocation15], 0
    %19 = vsyncpa [#allocation18], 0
    %20 = vsyncpa [#allocation21], 0
    // Predicated region
    $region2: #{forward.1} parent=1 // pred_check
      _
    $region3: #{forward.1} parent=1 // pred_check_branch
      %22 = sbr.rel (0) target = $region5
    $region4: #{forward.1} parent=1 // pred_region
      _
    $region5: #{forward.1} parent=1 // pred_fallthru
      _
    // Predicated region
    $region6: #{forward.1} parent=1 // pred_check
      _
    $region7: #{forward.1} parent=1 // pred_check_branch
      %24 = sbr.rel (0) target = $region9
    $region8: #{forward.1} parent=1 // pred_region
      %s26 = ssub.s32 3584, 3584
      %27 = vsyncadd [#allocation10], %s26
      %s28 = sshll.u32 [#allocation9], 4
      %s29 = int_to_ptr.vmem [resolvable:$true] %s28
      %34 = dma.hbm_to_vmem [thread:$0]  %s1, 3584, %s29, [#allocation10], 256, 256, 16
    $region9: #{forward.1} parent=1 // pred_fallthru
      _
    // Predicated region
    $region10: #{forward.1} parent=1 // pred_check
      _
    $region11: #{forward.1} parent=1 // pred_check_branch
      %36 = sbr.rel (0) target = $region13
    $region12: #{forward.1} parent=1 // pred_region
      _
    $region13: #{forward.1} parent=1 // pred_fallthru
      _
    // Predicated region
    $region14: #{forward.1} parent=1 // pred_check
      _
    $region15: #{forward.1} parent=1 // pred_check_branch
      %38 = sbr.rel (0) target = $region17
    $region16: #{forward.1} parent=1 // pred_region
      %s40 = ssub.s32 256, 256
      %41 = vsyncadd [#allocation12], %s40
      %s42 = sshll.u32 [#allocation11], 4
      %s43 = int_to_ptr.vmem [resolvable:$true] %s42
      %48 = dma.hbm_to_vmem [thread:$0]  %s3, 256, %s43, [#allocation12], 128, 128, 8
    $region17: #{forward.1} parent=1 // pred_fallthru
      _
    // Predicated region
    $region18: #{forward.1} parent=1 // pred_check
      _
    $region19: #{forward.1} parent=1 // pred_check_branch
      %50 = sbr.rel (0) target = $region21
    $region20: #{forward.1} parent=1 // pred_region
      %s52 = ssub.s32 256, 256
      %53 = vsyncadd [#allocation12], %s52
      %s54 = sshll.u32 [#allocation13], 4
      %s55 = int_to_ptr.vmem [resolvable:$true] %s54
      %60 = dma.hbm_to_vmem [thread:$0]  %s4, 256, %s55, [#allocation12], 128, 128, 8
    $region21: #{forward.1} parent=1 // pred_fallthru
      _
    // Predicated region
    $region22: #{forward.1} parent=1 // pred_check
      _
    $region23: #{forward.1} parent=1 // pred_check_branch
      %62 = sbr.rel (0) target = $region25
    $region24: #{forward.1} parent=1 // pred_region
      %s64 = ssub.s32 256, 256
      %65 = vsyncadd [#allocation15], %s64
      %s66 = sshll.u32 [#allocation14], 4
      %s67 = int_to_ptr.vmem [resolvable:$true] %s66
      %72 = dma.hbm_to_vmem [thread:$0]  %s5, 256, %s67, [#allocation15], 128, 128, 8
    $region25: #{forward.1} parent=1 // pred_fallthru
      _
    // Predicated region
    $region26: #{forward.1} parent=1 // pred_check
      _
    $region27: #{forward.1} parent=1 // pred_check_branch
      %74 = sbr.rel (0) target = $region29
    $region28: #{forward.1} parent=1 // pred_region
      _
    $region29: #{forward.1} parent=1 // pred_fallthru
      _
    // Predicated region
    $region30: #{forward.1} parent=1 // pred_check
      _
    $region31: #{forward.1} parent=1 // pred_check_branch
      %76 = sbr.rel (0) target = $region33
    $region32: #{forward.1} parent=1 // pred_region
      %s78 = ssub.s32 3072, 3072
      %79 = vsyncadd [#allocation15], %s78
      %s80 = sshll.u32 [#allocation16], 4
      %s81 = int_to_ptr.vmem [resolvable:$true] %s80
      %86 = dma.hbm_to_vmem [thread:$0]  %s7, 3072, %s81, [#allocation15], 512, 512, 32
    $region33: #{forward.1} parent=1 // pred_fallthru
      _
    // Predicated region
    $region34: #{forward.1} parent=1 // pred_check
      _
    $region35: #{forward.1} parent=1 // pred_check_branch
      %88 = sbr.rel (0) target = $region37
    $region36: #{forward.1} parent=1 // pred_region
      %s90 = ssub.s32 8192, 8192
      %91 = vsyncadd [#allocation18], %s90
      %s92 = sshll.u32 [#allocation17], 4
      %s93 = int_to_ptr.vmem [resolvable:$true] %s92
      %98 = dma.hbm_to_vmem [thread:$0]  %s8, 8192, %s93, [#allocation18], 128, 128, 8
    $region37: #{forward.1} parent=1 // pred_fallthru
      _
    // Predicated region
    $region38: #{forward.1} parent=1 // pred_check
      _
    $region39: #{forward.1} parent=1 // pred_check_branch
      %100 = sbr.rel (0) target = $region41
    $region40: #{forward.1} parent=1 // pred_region
      %s102 = ssub.s32 2048, 2048
      %103 = vsyncadd [#allocation18], %s102
      %s104 = sshll.u32 [#allocation19], 4
      %s105 = int_to_ptr.vmem [resolvable:$true] %s104
      %110 = dma.hbm_to_vmem [thread:$0]  %s9, 2048, %s105, [#allocation18], 128, 128, 8
    $region41: #{forward.1} parent=1 // pred_fallthru
      _
    // Predicated region
    $region42: #{forward.1} parent=1 // pred_check
      _
    $region43: #{forward.1} parent=1 // pred_check_branch
      %112 = sbr.rel (0) target = $region45
    $region44: #{forward.1} parent=1 // pred_region
      %s114 = ssub.s32 512, 512
      %115 = vsyncadd [#allocation21], %s114
      %s116 = sshll.u32 [#allocation20], 4
      %s117 = int_to_ptr.vmem [resolvable:$true] %s116
      %122 = dma.hbm_to_vmem [thread:$0]  %s10, 512, %s117, [#allocation21], 128, 128, 8
    $region45: #{forward.1} parent=1 // pred_fallthru
      _
    // Predicated region
    $region46: #{forward.1} parent=1 // pred_check
      _
    $region47: #{forward.1} parent=1 // pred_check_branch
      %124 = sbr.rel (0) target = $region49
    $region48: #{forward.1} parent=1 // pred_region
      %125 = dma.done [#allocation10], 3584
    $region49: #{forward.1} parent=1 // pred_fallthru
      _
    // Predicated region
    $region50: #{forward.1} parent=1 // pred_check
      _
    $region51: #{forward.1} parent=1 // pred_check_branch
      %127 = sbr.rel (0) target = $region53
    $region52: #{forward.1} parent=1 // pred_region
      %128 = dma.done [#allocation12], 256
    $region53: #{forward.1} parent=1 // pred_fallthru
      _
    // Predicated region
    $region54: #{forward.1} parent=1 // pred_check
      _
    $region55: #{forward.1} parent=1 // pred_check_branch
      %130 = sbr.rel (0) target = $region57
    $region56: #{forward.1} parent=1 // pred_region
      %131 = dma.done [#allocation12], 256
    $region57: #{forward.1} parent=1 // pred_fallthru
      _
    // Predicated region
    $region58: #{forward.1} parent=1 // pred_check
      _
    $region59: #{forward.1} parent=1 // pred_check_branch
      %133 = sbr.rel (0) target = $region61
    $region60: #{forward.1} parent=1 // pred_region
      %134 = dma.done [#allocation15], 256
    $region61: #{forward.1} parent=1 // pred_fallthru
      _
    // Predicated region
    $region62: #{forward.1} parent=1 // pred_check
      _
    $region63: #{forward.1} parent=1 // pred_check_branch
      %136 = sbr.rel (0) target = $region65
    $region64: #{forward.1} parent=1 // pred_region
      %137 = dma.done [#allocation15], 3072
    $region65: #{forward.1} parent=1 // pred_fallthru
      _
    // Predicated region
    $region66: #{forward.1} parent=1 // pred_check
      _
    $region67: #{forward.1} parent=1 // pred_check_branch
      %139 = sbr.rel (0) target = $region69
    $region68: #{forward.1} parent=1 // pred_region
      %140 = dma.done [#allocation18], 8192
    $region69: #{forward.1} parent=1 // pred_fallthru
      _
    // Predicated region
    $region70: #{forward.1} parent=1 // pred_check
      _
    $region71: #{forward.1} parent=1 // pred_check_branch
      %142 = sbr.rel (0) target = $region73
    $region72: #{forward.1} parent=1 // pred_region
      %143 = dma.done [#allocation18], 2048
    $region73: #{forward.1} parent=1 // pred_fallthru
      _
    // Predicated region
    $region74: #{forward.1} parent=1 // pred_check
      _
    $region75: #{forward.1} parent=1 // pred_check_branch
      %145 = sbr.rel (0) target = $region77
    $region76: #{forward.1} parent=1 // pred_region
      %146 = dma.done [#allocation21], 512
    $region77: #{forward.1} parent=1 // pred_fallthru
      _
    %147 = vst [vmem:[#allocation5] sm:$0xff] 0.0
    %148 = vst [vmem:[#allocation5 + $0x30] sm:$0xff] 0.0
    %149 = vst [vmem:[#allocation5 + $0x28] sm:$0xff] 0.0
    %150 = vst [vmem:[#allocation5 + $0x58] sm:$0xff] 0.0
    %151 = vst [vmem:[#allocation6] sm:$0xff] 0.0
    %152 = vst [vmem:[#allocation6 + $0x18] sm:$0xff] 0.0
    %153 = vst [vmem:[#allocation6 + $0x10] sm:$0xff] 0.0
    %154 = vst [vmem:[#allocation6 + $0x28] sm:$0xff] 0.0
    %155 = vst [vmem:[#allocation7] sm:$0xff] 0.0
    %156 = vst [vmem:[#allocation7 + $0x18] sm:$0xff] 0.0
    %157 = vst [vmem:[#allocation7 + $0x8] sm:$0xff] 0.0
    %vm158 = vcmask 261120
    %159 = vst.msk [vmem:[#allocation7 + $0x10] sm:$0xff] %vm158, 0.0
    %160 = vst [vmem:[#allocation7 + $0x20] sm:$0xff] 0.0
    %161 = vst.msk [vmem:[#allocation7 + $0x28] sm:$0xff] %vm158, 0.0
    %v162 = vld [vmem:[%s0] sm:$0xff]
    %v163 = vld [vmem:[%s0 + $0x8] sm:$0xff]
    %v164 = vld [vmem:[%s0 + $0x10] sm:$0xff]
    %v165 = vld [vmem:[%s0 + $0x18] sm:$0xff]
    %v166 = vld [vmem:[%s0 + $0x20] sm:$0xff]
    %v167 = vld [vmem:[%s0 + $0x28] sm:$0xff]
    %v168 = vld [vmem:[%s0 + $0x30] sm:$0xff]
    %v169 = vld [vmem:[%s0 + $0x38] sm:$0xff]
    %170 = vst [vmem:[#allocation5 + $0x8] sm:$0xff] %v162
    %171 = vst [vmem:[#allocation5 + $0x10] sm:$0xff] %v163
    %172 = vst [vmem:[#allocation5 + $0x18] sm:$0xff] %v164
    %173 = vst [vmem:[#allocation5 + $0x20] sm:$0xff] %v165
    %174 = vst [vmem:[#allocation5 + $0x38] sm:$0xff] %v166
    %175 = vst [vmem:[#allocation5 + $0x40] sm:$0xff] %v167
    %176 = vst [vmem:[#allocation5 + $0x48] sm:$0xff] %v168
    %177 = vst [vmem:[#allocation5 + $0x50] sm:$0xff] %v169
    %v178 = vld [vmem:[#allocation16] sm:$0xff]
    %v179 = vld [vmem:[#allocation16 + $0x8] sm:$0xff]
    %v180 = vld [vmem:[#allocation16 + $0x10] sm:$0xff]
    %v181 = vld [vmem:[#allocation16 + $0x18] sm:$0xff]
    %v182 = vld [vmem:[#allocation16 + $0x20] sm:$0x1]
    %v183 = vld [vmem:[#allocation16 + $0x28] sm:$0x1]
    %v184 = vld [vmem:[#allocation16 + $0x30] sm:$0x1]
    %v185 = vld [vmem:[#allocation16 + $0x38] sm:$0x1]
    %v186 = vld [vmem:[#allocation5] sm:$0xff]
    %v187 = vld [vmem:[#allocation5 + $0x8] sm:$0xff]
    %v188 = vld [vmem:[#allocation5 + $0x10] sm:$0xff]
    %v189 = vld [vmem:[#allocation5 + $0x18] sm:$0xff]
    %v190 = vld [vmem:[#allocation5 + $0x20] sm:$0xff]
    %v191 = vld [vmem:[#allocation5 + $0x30] sm:$0xff]
    %v192 = vld [vmem:[#allocation5 + $0x38] sm:$0xff]
    %v193 = vld [vmem:[#allocation5 + $0x40] sm:$0xff]
    %v194 = vld [vmem:[#allocation5 + $0x48] sm:$0xff]
    %v195 = vld [vmem:[#allocation5 + $0x50] sm:$0xff]
    %v196 = vlaneseq
    %v197 = vshrl.u32 %v196, 7
    %v198 = vsub.s32 0, %v197
    %v199 = vrot.slane %v178, %v198
    %v200 = vlaneseq
    %v201 = vshrl.u32 %v200, 7
    %v202 = vsub.s32 0, %v201
    %v203 = vrot.slane %v179, %v202
    %v204 = vlaneseq
    %v205 = vshrl.u32 %v204, 7
    %v206 = vsub.s32 0, %v205
    %v207 = vrot.slane %v180, %v206
    %v208 = vlaneseq
    %v209 = vshrl.u32 %v208, 7
    %v210 = vsub.s32 0, %v209
    %v211 = vrot.slane %v181, %v210
    %216 = vrot.lane.b32.xlu0 %v199, 111
    %v217 = vpop.permute.xlu0 %216
    %218 = vrot.lane.b32.xlu0 %v203, 111
    %v219 = vpop.permute.xlu0 %218
    %220 = vrot.lane.b32.xlu0 %v207, 111
    %v221 = vpop.permute.xlu0 %220
    %222 = vrot.lane.b32.xlu0 %v211, 111
    %v223 = vpop.permute.xlu0 %222
    %vm224 = vcmask 908288
    %v225 = vsel %vm224, %v217, %v219
    %v226 = vsel %vm224, %v219, %v221
    %v227 = vsel %vm224, %v221, %v223
    %v233 = vmul.f32 %v186, %v217
    %v234 = vmul.f32 %v187, %v225
    %v235 = vmul.f32 %v188, %v226
    %v236 = vmul.f32 %v189, %v227
    %v237 = vmul.f32 %v190, %v223
    %v238 = vmul.f32 %v191, %v217
    %v239 = vmul.f32 %v192, %v225
    %v240 = vmul.f32 %v193, %v226
    %v241 = vmul.f32 %v194, %v227
    %v242 = vmul.f32 %v195, %v223
    %253 = vrot.lane.b32.xlu0 %v233, 17
    %v254 = vpop.permute.xlu0 %253
    %255 = vrot.lane.b32.xlu0 %v234, 17
    %v256 = vpop.permute.xlu0 %255
    %257 = vrot.lane.b32.xlu0 %v235, 17
    %v258 = vpop.permute.xlu0 %257
    %259 = vrot.lane.b32.xlu0 %v236, 17
    %v260 = vpop.permute.xlu0 %259
    %261 = vrot.lane.b32.xlu0 %v237, 17
    %v262 = vpop.permute.xlu0 %261
    %263 = vrot.lane.b32.xlu0 %v238, 17
    %v264 = vpop.permute.xlu0 %263
    %265 = vrot.lane.b32.xlu0 %v239, 17
    %v266 = vpop.permute.xlu0 %265
    %267 = vrot.lane.b32.xlu0 %v240, 17
    %v268 = vpop.permute.xlu0 %267
    %269 = vrot.lane.b32.xlu0 %v241, 17
    %v270 = vpop.permute.xlu0 %269
    %271 = vrot.lane.b32.xlu0 %v242, 17
    %v272 = vpop.permute.xlu0 %271
    %vm273 = vcmask 138240
    %v274 = vsel %vm273, %v254, %v256
    %v275 = vsel %vm273, %v256, %v258
    %v276 = vsel %vm273, %v258, %v260
    %v277 = vsel %vm273, %v260, %v262
    %v278 = vsel %vm273, %v264, %v266
    %v279 = vsel %vm273, %v266, %v268
    %v280 = vsel %vm273, %v268, %v270
    %v281 = vsel %vm273, %v270, %v272
    %290 = vst [vmem:[#allocation8] sm:$0xff] %v274
    %291 = vst [vmem:[#allocation8 + $0x8] sm:$0xff] %v275
    %292 = vst [vmem:[#allocation8 + $0x10] sm:$0xff] %v276
    %293 = vst [vmem:[#allocation8 + $0x18] sm:$0xff] %v277
    %294 = vst [vmem:[#allocation8 + $0x20] sm:$0xff] %v278
    %295 = vst [vmem:[#allocation8 + $0x28] sm:$0xff] %v279
    %296 = vst [vmem:[#allocation8 + $0x30] sm:$0xff] %v280
    %297 = vst [vmem:[#allocation8 + $0x38] sm:$0xff] %v281
    %v298 = vld [vmem:[#allocation5] sm:$0xff]
    %v299 = vld [vmem:[#allocation5 + $0x8] sm:$0xff]
    %v300 = vld [vmem:[#allocation5 + $0x10] sm:$0xff]
    %v301 = vld [vmem:[#allocation5 + $0x18] sm:$0xff]
    %v302 = vld [vmem:[#allocation5 + $0x20] sm:$0xff]
    %v303 = vld [vmem:[#allocation5 + $0x30] sm:$0xff]
    %v304 = vld [vmem:[#allocation5 + $0x38] sm:$0xff]
    %v305 = vld [vmem:[#allocation5 + $0x40] sm:$0xff]
    %v306 = vld [vmem:[#allocation5 + $0x48] sm:$0xff]
    %v307 = vld [vmem:[#allocation5 + $0x50] sm:$0xff]
    %v308 = vlaneseq
    %v309 = vshrl.u32 %v308, 7
    %v310 = vsub.s32 1, %v309
    %v311 = vrot.slane %v178, %v310
    %v312 = vlaneseq
    %v313 = vshrl.u32 %v312, 7
    %v314 = vsub.s32 1, %v313
    %v315 = vrot.slane %v179, %v314
    %v316 = vlaneseq
    %v317 = vshrl.u32 %v316, 7
    %v318 = vsub.s32 1, %v317
    %v319 = vrot.slane %v180, %v318
    %v320 = vlaneseq
    %v321 = vshrl.u32 %v320, 7
    %v322 = vsub.s32 1, %v321
    %v323 = vrot.slane %v181, %v322
    %328 = vrot.lane.b32.xlu0 %v311, 112
    %v329 = vpop.permute.xlu0 %328
    %330 = vrot.lane.b32.xlu0 %v315, 112
    %v331 = vpop.permute.xlu0 %330
    %332 = vrot.lane.b32.xlu0 %v319, 112
    %v333 = vpop.permute.xlu0 %332
    %334 = vrot.lane.b32.xlu0 %v323, 112
    %v335 = vpop.permute.xlu0 %334
    %vm336 = vcmask 916480
    %v337 = vsel %vm336, %v329, %v331
    %v338 = vsel %vm336, %v331, %v333
    %v339 = vsel %vm336, %v333, %v335
    %v345 = vmul.f32 %v298, %v329
    %v346 = vmul.f32 %v299, %v337
    %v347 = vmul.f32 %v300, %v338
    %v348 = vmul.f32 %v301, %v339
    %v349 = vmul.f32 %v302, %v335
    %v350 = vmul.f32 %v303, %v329
    %v351 = vmul.f32 %v304, %v337
    %v352 = vmul.f32 %v305, %v338
    %v353 = vmul.f32 %v306, %v339
    %v354 = vmul.f32 %v307, %v335
    %365 = vrot.lane.b32.xlu0 %v345, 16
    %v366 = vpop.permute.xlu0 %365
    %367 = vrot.lane.b32.xlu0 %v346, 16
    %v368 = vpop.permute.xlu0 %367
    %369 = vrot.lane.b32.xlu0 %v347, 16
    %v370 = vpop.permute.xlu0 %369
    %371 = vrot.lane.b32.xlu0 %v348, 16
    %v372 = vpop.permute.xlu0 %371
    %373 = vrot.lane.b32.xlu0 %v349, 16
    %v374 = vpop.permute.xlu0 %373
    %375 = vrot.lane.b32.xlu0 %v350, 16
    %v376 = vpop.permute.xlu0 %375
    %377 = vrot.lane.b32.xlu0 %v351, 16
    %v378 = vpop.permute.xlu0 %377
    %379 = vrot.lane.b32.xlu0 %v352, 16
    %v380 = vpop.permute.xlu0 %379
    %381 = vrot.lane.b32.xlu0 %v353, 16
    %v382 = vpop.permute.xlu0 %381
    %383 = vrot.lane.b32.xlu0 %v354, 16
    %v384 = vpop.permute.xlu0 %383
    %vm385 = vcmask 130048
    %v386 = vsel %vm385, %v366, %v368
    %v387 = vsel %vm385, %v368, %v370
    %v388 = vsel %vm385, %v370, %v372
    %v389 = vsel %vm385, %v372, %v374
    %v390 = vsel %vm385, %v376, %v378
    %v391 = vsel %vm385, %v378, %v380
    %v392 = vsel %vm385, %v380, %v382
    %v393 = vsel %vm385, %v382, %v384
    %402 = vst [vmem:[#allocation8 + $0x40] sm:$0xff] %v386
    %403 = vst [vmem:[#allocation8 + $0x48] sm:$0xff] %v387
    %404 = vst [vmem:[#allocation8 + $0x50] sm:$0xff] %v388
    %405 = vst [vmem:[#allocation8 + $0x58] sm:$0xff] %v389
    %406 = vst [vmem:[#allocation8 + $0x60] sm:$0xff] %v390
    %407 = vst [vmem:[#allocation8 + $0x68] sm:$0xff] %v391
    %408 = vst [vmem:[#allocation8 + $0x70] sm:$0xff] %v392
    %409 = vst [vmem:[#allocation8 + $0x78] sm:$0xff] %v393
    %v410 = vld [vmem:[#allocation5] sm:$0xff]
    %v411 = vld [vmem:[#allocation5 + $0x8] sm:$0xff]
    %v412 = vld [vmem:[#allocation5 + $0x10] sm:$0xff]
    %v413 = vld [vmem:[#allocation5 + $0x18] sm:$0xff]
    %v414 = vld [vmem:[#allocation5 + $0x20] sm:$0xff]
    %v415 = vld [vmem:[#allocation5 + $0x30] sm:$0xff]
    %v416 = vld [vmem:[#allocation5 + $0x38] sm:$0xff]
    %v417 = vld [vmem:[#allocation5 + $0x40] sm:$0xff]
    %v418 = vld [vmem:[#allocation5 + $0x48] sm:$0xff]
    %v419 = vld [vmem:[#allocation5 + $0x50] sm:$0xff]
    %v420 = vlaneseq
    %v421 = vshrl.u32 %v420, 7
    %v422 = vsub.s32 2, %v421
    %v423 = vrot.slane %v178, %v422
    %v424 = vlaneseq
    %v425 = vshrl.u32 %v424, 7
    %v426 = vsub.s32 2, %v425
    %v427 = vrot.slane %v179, %v426
    %v428 = vlaneseq
    %v429 = vshrl.u32 %v428, 7
    %v430 = vsub.s32 2, %v429
    %v431 = vrot.slane %v180, %v430
    %v432 = vlaneseq
    %v433 = vshrl.u32 %v432, 7
    %v434 = vsub.s32 2, %v433
    %v435 = vrot.slane %v181, %v434
    %440 = vrot.lane.b32.xlu0 %v423, 113
    %v441 = vpop.permute.xlu0 %440
    %442 = vrot.lane.b32.xlu0 %v427, 113
    %v443 = vpop.permute.xlu0 %442
    %444 = vrot.lane.b32.xlu0 %v431, 113
    %v445 = vpop.permute.xlu0 %444
    %446 = vrot.lane.b32.xlu0 %v435, 113
    %v447 = vpop.permute.xlu0 %446
    %vm448 = vcmask 924672
    %v449 = vsel %vm448, %v441, %v443
    %v450 = vsel %vm448, %v443, %v445
    %v451 = vsel %vm448, %v445, %v447
    %v457 = vmul.f32 %v410, %v441
    %v458 = vmul.f32 %v411, %v449
    %v459 = vmul.f32 %v412, %v450
    %v460 = vmul.f32 %v413, %v451
    %v461 = vmul.f32 %v414, %v447
    %v462 = vmul.f32 %v415, %v441
    %v463 = vmul.f32 %v416, %v449
    %v464 = vmul.f32 %v417, %v450
    %v465 = vmul.f32 %v418, %v451
    %v466 = vmul.f32 %v419, %v447
    %477 = vrot.lane.b32.xlu0 %v457, 15
    %v478 = vpop.permute.xlu0 %477
    %479 = vrot.lane.b32.xlu0 %v458, 15
    %v480 = vpop.permute.xlu0 %479
    %481 = vrot.lane.b32.xlu0 %v459, 15
    %v482 = vpop.permute.xlu0 %481
    %483 = vrot.lane.b32.xlu0 %v460, 15
    %v484 = vpop.permute.xlu0 %483
    %485 = vrot.lane.b32.xlu0 %v461, 15
    %v486 = vpop.permute.xlu0 %485
    %487 = vrot.lane.b32.xlu0 %v462, 15
    %v488 = vpop.permute.xlu0 %487
    %489 = vrot.lane.b32.xlu0 %v463, 15
    %v490 = vpop.permute.xlu0 %489
    %491 = vrot.lane.b32.xlu0 %v464, 15
    %v492 = vpop.permute.xlu0 %491
    %493 = vrot.lane.b32.xlu0 %v465, 15
    %v494 = vpop.permute.xlu0 %493
    %495 = vrot.lane.b32.xlu0 %v466, 15
    %v496 = vpop.permute.xlu0 %495
    %vm497 = vcmask 121856
    %v498 = vsel %vm497, %v478, %v480
    %v499 = vsel %vm497, %v480, %v482
    %v500 = vsel %vm497, %v482, %v484
    %v501 = vsel %vm497, %v484, %v486
    %v502 = vsel %vm497, %v488, %v490
    %v503 = vsel %vm497, %v490, %v492
    %v504 = vsel %vm497, %v492, %v494
    %v505 = vsel %vm497, %v494, %v496
    %514 = vst [vmem:[#allocation8 + $0x80] sm:$0xff] %v498
    %515 = vst [vmem:[#allocation8 + $0x88] sm:$0xff] %v499
    %516 = vst [vmem:[#allocation8 + $0x90] sm:$0xff] %v500
    %517 = vst [vmem:[#allocation8 + $0x98] sm:$0xff] %v501
    %518 = vst [vmem:[#allocation8 + $0xa0] sm:$0xff] %v502
    %519 = vst [vmem:[#allocation8 + $0xa8] sm:$0xff] %v503
    %520 = vst [vmem:[#allocation8 + $0xb0] sm:$0xff] %v504
    %521 = vst [vmem:[#allocation8 + $0xb8] sm:$0xff] %v505
    %v522 = vld [vmem:[#allocation5] sm:$0xff]
    %v523 = vld [vmem:[#allocation5 + $0x8] sm:$0xff]
    %v524 = vld [vmem:[#allocation5 + $0x10] sm:$0xff]
    %v525 = vld [vmem:[#allocation5 + $0x18] sm:$0xff]
    %v526 = vld [vmem:[#allocation5 + $0x20] sm:$0xff]
    %v527 = vld [vmem:[#allocation5 + $0x30] sm:$0xff]
    %v528 = vld [vmem:[#allocation5 + $0x38] sm:$0xff]
    %v529 = vld [vmem:[#allocation5 + $0x40] sm:$0xff]
    %v530 = vld [vmem:[#allocation5 + $0x48] sm:$0xff]
    %v531 = vld [vmem:[#allocation5 + $0x50] sm:$0xff]
    %v532 = vlaneseq
    %v533 = vshrl.u32 %v532, 7
    %v534 = vsub.s32 3, %v533
    %v535 = vrot.slane %v178, %v534
    %v536 = vlaneseq
    %v537 = vshrl.u32 %v536, 7
    %v538 = vsub.s32 3, %v537
    %v539 = vrot.slane %v179, %v538
    %v540 = vlaneseq
    %v541 = vshrl.u32 %v540, 7
    %v542 = vsub.s32 3, %v541
    %v543 = vrot.slane %v180, %v542
    %v544 = vlaneseq
    %v545 = vshrl.u32 %v544, 7
    %v546 = vsub.s32 3, %v545
    %v547 = vrot.slane %v181, %v546
    %552 = vrot.lane.b32.xlu0 %v535, 127
    %v553 = vpop.permute.xlu0 %552
    %554 = vrot.lane.b32.xlu0 %v539, 127
    %v555 = vpop.permute.xlu0 %554
    %556 = vrot.lane.b32.xlu0 %v543, 127
    %v557 = vpop.permute.xlu0 %556
    %558 = vrot.lane.b32.xlu0 %v547, 127
    %v559 = vpop.permute.xlu0 %558
    %vm560 = vcmask 1039360
    %v561 = vsel %vm560, %v553, %v555
    %v562 = vsel %vm560, %v555, %v557
    %v563 = vsel %vm560, %v557, %v559
    %v569 = vmul.f32 %v522, %v553
    %v570 = vmul.f32 %v523, %v561
    %v571 = vmul.f32 %v524, %v562
    %v572 = vmul.f32 %v525, %v563
    %v573 = vmul.f32 %v526, %v559
    %v574 = vmul.f32 %v527, %v553
    %v575 = vmul.f32 %v528, %v561
    %v576 = vmul.f32 %v529, %v562
    %v577 = vmul.f32 %v530, %v563
    %v578 = vmul.f32 %v531, %v559
    %589 = vrot.lane.b32.xlu0 %v569, 1
    %v590 = vpop.permute.xlu0 %589
    %591 = vrot.lane.b32.xlu0 %v570, 1
    %v592 = vpop.permute.xlu0 %591
    %593 = vrot.lane.b32.xlu0 %v571, 1
    %v594 = vpop.permute.xlu0 %593
    %595 = vrot.lane.b32.xlu0 %v572, 1
    %v596 = vpop.permute.xlu0 %595
    %597 = vrot.lane.b32.xlu0 %v573, 1
    %v598 = vpop.permute.xlu0 %597
    %599 = vrot.lane.b32.xlu0 %v574, 1
    %v600 = vpop.permute.xlu0 %599
    %601 = vrot.lane.b32.xlu0 %v575, 1
    %v602 = vpop.permute.xlu0 %601
    %603 = vrot.lane.b32.xlu0 %v576, 1
    %v604 = vpop.permute.xlu0 %603
    %605 = vrot.lane.b32.xlu0 %v577, 1
    %v606 = vpop.permute.xlu0 %605
    %607 = vrot.lane.b32.xlu0 %v578, 1
    %v608 = vpop.permute.xlu0 %607
    %vm609 = vcmask 7168
    %v610 = vsel %vm609, %v590, %v592
    %v611 = vsel %vm609, %v592, %v594
    %v612 = vsel %vm609, %v594, %v596
    %v613 = vsel %vm609, %v596, %v598
    %v614 = vsel %vm609, %v600, %v602
    %v615 = vsel %vm609, %v602, %v604
    %v616 = vsel %vm609, %v604, %v606
    %v617 = vsel %vm609, %v606, %v608
    %626 = vst [vmem:[#allocation8 + $0xc0] sm:$0xff] %v610
    %627 = vst [vmem:[#allocation8 + $0xc8] sm:$0xff] %v611
    %628 = vst [vmem:[#allocation8 + $0xd0] sm:$0xff] %v612
    %629 = vst [vmem:[#allocation8 + $0xd8] sm:$0xff] %v613
    %630 = vst [vmem:[#allocation8 + $0xe0] sm:$0xff] %v614
    %631 = vst [vmem:[#allocation8 + $0xe8] sm:$0xff] %v615
    %632 = vst [vmem:[#allocation8 + $0xf0] sm:$0xff] %v616
    %633 = vst [vmem:[#allocation8 + $0xf8] sm:$0xff] %v617
    %v634 = vld [vmem:[#allocation5 + $0x8] sm:$0xff]
    %v635 = vld [vmem:[#allocation5 + $0x10] sm:$0xff]
    %v636 = vld [vmem:[#allocation5 + $0x18] sm:$0xff]
    %v637 = vld [vmem:[#allocation5 + $0x20] sm:$0xff]
    %v638 = vld [vmem:[#allocation5 + $0x38] sm:$0xff]
    %v639 = vld [vmem:[#allocation5 + $0x40] sm:$0xff]
    %v640 = vld [vmem:[#allocation5 + $0x48] sm:$0xff]
    %v641 = vld [vmem:[#allocation5 + $0x50] sm:$0xff]
    %642 = vst [vmem:[#allocation8 + $0x100] sm:$0xff] %v634
    %643 = vst [vmem:[#allocation8 + $0x108] sm:$0xff] %v635
    %644 = vst [vmem:[#allocation8 + $0x110] sm:$0xff] %v636
    %645 = vst [vmem:[#allocation8 + $0x118] sm:$0xff] %v637
    %646 = vst [vmem:[#allocation8 + $0x120] sm:$0xff] %v638
    %647 = vst [vmem:[#allocation8 + $0x128] sm:$0xff] %v639
    %648 = vst [vmem:[#allocation8 + $0x130] sm:$0xff] %v640
    %649 = vst [vmem:[#allocation8 + $0x138] sm:$0xff] %v641
    %v650 = vld [vmem:[#allocation5 + $0x8] sm:$0xff]
    %v651 = vld [vmem:[#allocation5 + $0x10] sm:$0xff]
    %v652 = vld [vmem:[#allocation5 + $0x18] sm:$0xff]
    %v653 = vld [vmem:[#allocation5 + $0x20] sm:$0xff]
    %v654 = vld [vmem:[#allocation5 + $0x28] sm:$0xff]
    %v655 = vld [vmem:[#allocation5 + $0x38] sm:$0xff]
    %v656 = vld [vmem:[#allocation5 + $0x40] sm:$0xff]
    %v657 = vld [vmem:[#allocation5 + $0x48] sm:$0xff]
    %v658 = vld [vmem:[#allocation5 + $0x50] sm:$0xff]
    %v659 = vld [vmem:[#allocation5 + $0x58] sm:$0xff]
    %v660 = vlaneseq
    %v661 = vshrl.u32 %v660, 7
    %v662 = vsub.s32 5, %v661
    %v663 = vrot.slane %v178, %v662
    %v664 = vlaneseq
    %v665 = vshrl.u32 %v664, 7
    %v666 = vsub.s32 5, %v665
    %v667 = vrot.slane %v179, %v666
    %v668 = vlaneseq
    %v669 = vshrl.u32 %v668, 7
    %v670 = vsub.s32 5, %v669
    %v671 = vrot.slane %v180, %v670
    %v672 = vlaneseq
    %v673 = vshrl.u32 %v672, 7
    %v674 = vsub.s32 5, %v673
    %v675 = vrot.slane %v181, %v674
    %680 = vrot.lane.b32.xlu0 %v663, 1
    %v681 = vpop.permute.xlu0 %680
    %682 = vrot.lane.b32.xlu0 %v667, 1
    %v683 = vpop.permute.xlu0 %682
    %684 = vrot.lane.b32.xlu0 %v671, 1
    %v685 = vpop.permute.xlu0 %684
    %686 = vrot.lane.b32.xlu0 %v675, 1
    %v687 = vpop.permute.xlu0 %686
    %v688 = vsel %vm609, %v681, %v683
    %v689 = vsel %vm609, %v683, %v685
    %v690 = vsel %vm609, %v685, %v687
    %v696 = vmul.f32 %v650, %v681
    %v697 = vmul.f32 %v651, %v688
    %v698 = vmul.f32 %v652, %v689
    %v699 = vmul.f32 %v653, %v690
    %v700 = vmul.f32 %v654, %v687
    %v701 = vmul.f32 %v655, %v681
    %v702 = vmul.f32 %v656, %v688
    %v703 = vmul.f32 %v657, %v689
    %v704 = vmul.f32 %v658, %v690
    %v705 = vmul.f32 %v659, %v687
    %716 = vrot.lane.b32.xlu0 %v696, 127
    %v717 = vpop.permute.xlu0 %716
    %718 = vrot.lane.b32.xlu0 %v697, 127
    %v719 = vpop.permute.xlu0 %718
    %720 = vrot.lane.b32.xlu0 %v698, 127
    %v721 = vpop.permute.xlu0 %720
    %722 = vrot.lane.b32.xlu0 %v699, 127
    %v723 = vpop.permute.xlu0 %722
    %724 = vrot.lane.b32.xlu0 %v700, 127
    %v725 = vpop.permute.xlu0 %724
    %726 = vrot.lane.b32.xlu0 %v701, 127
    %v727 = vpop.permute.xlu0 %726
    %728 = vrot.lane.b32.xlu0 %v702, 127
    %v729 = vpop.permute.xlu0 %728
    %730 = vrot.lane.b32.xlu0 %v703, 127
    %v731 = vpop.permute.xlu0 %730
    %732 = vrot.lane.b32.xlu0 %v704, 127
    %v733 = vpop.permute.xlu0 %732
    %734 = vrot.lane.b32.xlu0 %v705, 127
    %v735 = vpop.permute.xlu0 %734
    %v736 = vsel %vm560, %v717, %v719
    %v737 = vsel %vm560, %v719, %v721
    %v738 = vsel %vm560, %v721, %v723
    %v739 = vsel %vm560, %v723, %v725
    %v740 = vsel %vm560, %v727, %v729
    %v741 = vsel %vm560, %v729, %v731
    %v742 = vsel %vm560, %v731, %v733
    %v743 = vsel %vm560, %v733, %v735
    %752 = vst [vmem:[#allocation8 + $0x140] sm:$0xff] %v736
    %753 = vst [vmem:[#allocation8 + $0x148] sm:$0xff] %v737
    %754 = vst [vmem:[#allocation8 + $0x150] sm:$0xff] %v738
    %755 = vst [vmem:[#allocation8 + $0x158] sm:$0xff] %v739
    %756 = vst [vmem:[#allocation8 + $0x160] sm:$0xff] %v740
    %757 = vst [vmem:[#allocation8 + $0x168] sm:$0xff] %v741
    %758 = vst [vmem:[#allocation8 + $0x170] sm:$0xff] %v742
    %759 = vst [vmem:[#allocation8 + $0x178] sm:$0xff] %v743
    %v760 = vld [vmem:[#allocation5 + $0x8] sm:$0xff]
    %v761 = vld [vmem:[#allocation5 + $0x10] sm:$0xff]
    %v762 = vld [vmem:[#allocation5 + $0x18] sm:$0xff]
    %v763 = vld [vmem:[#allocation5 + $0x20] sm:$0xff]
    %v764 = vld [vmem:[#allocation5 + $0x28] sm:$0xff]
    %v765 = vld [vmem:[#allocation5 + $0x38] sm:$0xff]
    %v766 = vld [vmem:[#allocation5 + $0x40] sm:$0xff]
    %v767 = vld [vmem:[#allocation5 + $0x48] sm:$0xff]
    %v768 = vld [vmem:[#allocation5 + $0x50] sm:$0xff]
    %v769 = vld [vmem:[#allocation5 + $0x58] sm:$0xff]
    %v770 = vlaneseq
    %v771 = vshrl.u32 %v770, 7
    %v772 = vsub.s32 6, %v771
    %v773 = vrot.slane %v178, %v772
    %v774 = vlaneseq
    %v775 = vshrl.u32 %v774, 7
    %v776 = vsub.s32 6, %v775
    %v777 = vrot.slane %v179, %v776
    %v778 = vlaneseq
    %v779 = vshrl.u32 %v778, 7
    %v780 = vsub.s32 6, %v779
    %v781 = vrot.slane %v180, %v780
    %v782 = vlaneseq
    %v783 = vshrl.u32 %v782, 7
    %v784 = vsub.s32 6, %v783
    %v785 = vrot.slane %v181, %v784
    %790 = vrot.lane.b32.xlu0 %v773, 15
    %v791 = vpop.permute.xlu0 %790
    %792 = vrot.lane.b32.xlu0 %v777, 15
    %v793 = vpop.permute.xlu0 %792
    %794 = vrot.lane.b32.xlu0 %v781, 15
    %v795 = vpop.permute.xlu0 %794
    %796 = vrot.lane.b32.xlu0 %v785, 15
    %v797 = vpop.permute.xlu0 %796
    %v798 = vsel %vm497, %v791, %v793
    %v799 = vsel %vm497, %v793, %v795
    %v800 = vsel %vm497, %v795, %v797
    %v806 = vmul.f32 %v760, %v791
    %v807 = vmul.f32 %v761, %v798
    %v808 = vmul.f32 %v762, %v799
    %v809 = vmul.f32 %v763, %v800
    %v810 = vmul.f32 %v764, %v797
    %v811 = vmul.f32 %v765, %v791
    %v812 = vmul.f32 %v766, %v798
    %v813 = vmul.f32 %v767, %v799
    %v814 = vmul.f32 %v768, %v800
    %v815 = vmul.f32 %v769, %v797
    %826 = vrot.lane.b32.xlu0 %v806, 113
    %v827 = vpop.permute.xlu0 %826
    %828 = vrot.lane.b32.xlu0 %v807, 113
    %v829 = vpop.permute.xlu0 %828
    %830 = vrot.lane.b32.xlu0 %v808, 113
    %v831 = vpop.permute.xlu0 %830
    %832 = vrot.lane.b32.xlu0 %v809, 113
    %v833 = vpop.permute.xlu0 %832
    %834 = vrot.lane.b32.xlu0 %v810, 113
    %v835 = vpop.permute.xlu0 %834
    %836 = vrot.lane.b32.xlu0 %v811, 113
    %v837 = vpop.permute.xlu0 %836
    %838 = vrot.lane.b32.xlu0 %v812, 113
    %v839 = vpop.permute.xlu0 %838
    %840 = vrot.lane.b32.xlu0 %v813, 113
    %v841 = vpop.permute.xlu0 %840
    %842 = vrot.lane.b32.xlu0 %v814, 113
    %v843 = vpop.permute.xlu0 %842
    %844 = vrot.lane.b32.xlu0 %v815, 113
    %v845 = vpop.permute.xlu0 %844
    %v846 = vsel %vm448, %v827, %v829
    %v847 = vsel %vm448, %v829, %v831
    %v848 = vsel %vm448, %v831, %v833
    %v849 = vsel %vm448, %v833, %v835
    %v850 = vsel %vm448, %v837, %v839
    %v851 = vsel %vm448, %v839, %v841
    %v852 = vsel %vm448, %v841, %v843
    %v853 = vsel %vm448, %v843, %v845
    %862 = vst [vmem:[#allocation8 + $0x180] sm:$0xff] %v846
    %863 = vst [vmem:[#allocation8 + $0x188] sm:$0xff] %v847
    %864 = vst [vmem:[#allocation8 + $0x190] sm:$0xff] %v848
    %865 = vst [vmem:[#allocation8 + $0x198] sm:$0xff] %v849
    %866 = vst [vmem:[#allocation8 + $0x1a0] sm:$0xff] %v850
    %867 = vst [vmem:[#allocation8 + $0x1a8] sm:$0xff] %v851
    %868 = vst [vmem:[#allocation8 + $0x1b0] sm:$0xff] %v852
    %869 = vst [vmem:[#allocation8 + $0x1b8] sm:$0xff] %v853
    %v870 = vld [vmem:[#allocation5 + $0x8] sm:$0xff]
    %v871 = vld [vmem:[#allocation5 + $0x10] sm:$0xff]
    %v872 = vld [vmem:[#allocation5 + $0x18] sm:$0xff]
    %v873 = vld [vmem:[#allocation5 + $0x20] sm:$0xff]
    %v874 = vld [vmem:[#allocation5 + $0x28] sm:$0xff]
    %v875 = vld [vmem:[#allocation5 + $0x38] sm:$0xff]
    %v876 = vld [vmem:[#allocation5 + $0x40] sm:$0xff]
    %v877 = vld [vmem:[#allocation5 + $0x48] sm:$0xff]
    %v878 = vld [vmem:[#allocation5 + $0x50] sm:$0xff]
    %v879 = vld [vmem:[#allocation5 + $0x58] sm:$0xff]
    %v880 = vlaneseq
    %v881 = vshrl.u32 %v880, 7
    %v882 = vsub.s32 7, %v881
    %v883 = vrot.slane %v178, %v882
    %v884 = vlaneseq
    %v885 = vshrl.u32 %v884, 7
    %v886 = vsub.s32 7, %v885
    %v887 = vrot.slane %v179, %v886
    %v888 = vlaneseq
    %v889 = vshrl.u32 %v888, 7
    %v890 = vsub.s32 7, %v889
    %v891 = vrot.slane %v180, %v890
    %v892 = vlaneseq
    %v893 = vshrl.u32 %v892, 7
    %v894 = vsub.s32 7, %v893
    %v895 = vrot.slane %v181, %v894
    %900 = vrot.lane.b32.xlu0 %v883, 16
    %v901 = vpop.permute.xlu0 %900
    %902 = vrot.lane.b32.xlu0 %v887, 16
    %v903 = vpop.permute.xlu0 %902
    %904 = vrot.lane.b32.xlu0 %v891, 16
    %v905 = vpop.permute.xlu0 %904
    %906 = vrot.lane.b32.xlu0 %v895, 16
    %v907 = vpop.permute.xlu0 %906
    %v908 = vsel %vm385, %v901, %v903
    %v909 = vsel %vm385, %v903, %v905
    %v910 = vsel %vm385, %v905, %v907
    %v916 = vmul.f32 %v870, %v901
    %v917 = vmul.f32 %v871, %v908
    %v918 = vmul.f32 %v872, %v909
    %v919 = vmul.f32 %v873, %v910
    %v920 = vmul.f32 %v874, %v907
    %v921 = vmul.f32 %v875, %v901
    %v922 = vmul.f32 %v876, %v908
    %v923 = vmul.f32 %v877, %v909
    %v924 = vmul.f32 %v878, %v910
    %v925 = vmul.f32 %v879, %v907
    %936 = vrot.lane.b32.xlu0 %v916, 112
    %v937 = vpop.permute.xlu0 %936
    %938 = vrot.lane.b32.xlu0 %v917, 112
    %v939 = vpop.permute.xlu0 %938
    %940 = vrot.lane.b32.xlu0 %v918, 112
    %v941 = vpop.permute.xlu0 %940
    %942 = vrot.lane.b32.xlu0 %v919, 112
    %v943 = vpop.permute.xlu0 %942
    %944 = vrot.lane.b32.xlu0 %v920, 112
    %v945 = vpop.permute.xlu0 %944
    %946 = vrot.lane.b32.xlu0 %v921, 112
    %v947 = vpop.permute.xlu0 %946
    %948 = vrot.lane.b32.xlu0 %v922, 112
    %v949 = vpop.permute.xlu0 %948
    %950 = vrot.lane.b32.xlu0 %v923, 112
    %v951 = vpop.permute.xlu0 %950
    %952 = vrot.lane.b32.xlu0 %v924, 112
    %v953 = vpop.permute.xlu0 %952
    %954 = vrot.lane.b32.xlu0 %v925, 112
    %v955 = vpop.permute.xlu0 %954
    %v956 = vsel %vm336, %v937, %v939
    %v957 = vsel %vm336, %v939, %v941
    %v958 = vsel %vm336, %v941, %v943
    %v959 = vsel %vm336, %v943, %v945
    %v960 = vsel %vm336, %v947, %v949
    %v961 = vsel %vm336, %v949, %v951
    %v962 = vsel %vm336, %v951, %v953
    %v963 = vsel %vm336, %v953, %v955
    %972 = vst [vmem:[#allocation8 + $0x1c0] sm:$0xff] %v956
    %973 = vst [vmem:[#allocation8 + $0x1c8] sm:$0xff] %v957
    %974 = vst [vmem:[#allocation8 + $0x1d0] sm:$0xff] %v958
    %975 = vst [vmem:[#allocation8 + $0x1d8] sm:$0xff] %v959
    %976 = vst [vmem:[#allocation8 + $0x1e0] sm:$0xff] %v960
    %977 = vst [vmem:[#allocation8 + $0x1e8] sm:$0xff] %v961
    %978 = vst [vmem:[#allocation8 + $0x1f0] sm:$0xff] %v962
    %979 = vst [vmem:[#allocation8 + $0x1f8] sm:$0xff] %v963
    %v980 = vld [vmem:[#allocation5 + $0x8] sm:$0xff]
    %v981 = vld [vmem:[#allocation5 + $0x10] sm:$0xff]
    %v982 = vld [vmem:[#allocation5 + $0x18] sm:$0xff]
    %v983 = vld [vmem:[#allocation5 + $0x20] sm:$0xff]
    %v984 = vld [vmem:[#allocation5 + $0x28] sm:$0xff]
    %v985 = vld [vmem:[#allocation5 + $0x38] sm:$0xff]
    %v986 = vld [vmem:[#allocation5 + $0x40] sm:$0xff]
    %v987 = vld [vmem:[#allocation5 + $0x48] sm:$0xff]
    %v988 = vld [vmem:[#allocation5 + $0x50] sm:$0xff]
    %v989 = vld [vmem:[#allocation5 + $0x58] sm:$0xff]
    %v990 = vlaneseq
    %v991 = vshrl.u32 %v990, 7
    %v992 = vsub.s32 0, %v991
    %v993 = vrot.slane %v182, %v992
    %v994 = vlaneseq
    %v995 = vshrl.u32 %v994, 7
    %v996 = vsub.s32 0, %v995
    %v997 = vrot.slane %v183, %v996
    %v998 = vlaneseq
    %v999 = vshrl.u32 %v998, 7
    %v1000 = vsub.s32 0, %v999
    %v1001 = vrot.slane %v184, %v1000
    %v1002 = vlaneseq
    %v1003 = vshrl.u32 %v1002, 7
    %v1004 = vsub.s32 0, %v1003
    %v1005 = vrot.slane %v185, %v1004
    %1010 = vrot.lane.b32.xlu0 %v993, 17
    %v1011 = vpop.permute.xlu0 %1010
    %1012 = vrot.lane.b32.xlu0 %v997, 17
    %v1013 = vpop.permute.xlu0 %1012
    %1014 = vrot.lane.b32.xlu0 %v1001, 17
    %v1015 = vpop.permute.xlu0 %1014
    %1016 = vrot.lane.b32.xlu0 %v1005, 17
    %v1017 = vpop.permute.xlu0 %1016
    %v1018 = vsel %vm273, %v1011, %v1013
    %v1019 = vsel %vm273, %v1013, %v1015
    %v1020 = vsel %vm273, %v1015, %v1017
    %v1026 = vmul.f32 %v980, %v1011
    %v1027 = vmul.f32 %v981, %v1018
    %v1028 = vmul.f32 %v982, %v1019
    %v1029 = vmul.f32 %v983, %v1020
    %v1030 = vmul.f32 %v984, %v1017
    %v1031 = vmul.f32 %v985, %v1011
    %v1032 = vmul.f32 %v986, %v1018
    %v1033 = vmul.f32 %v987, %v1019
    %v1034 = vmul.f32 %v988, %v1020
    %v1035 = vmul.f32 %v989, %v1017
    %1046 = vrot.lane.b32.xlu0 %v1026, 111
    %v1047 = vpop.permute.xlu0 %1046
    %1048 = vrot.lane.b32.xlu0 %v1027, 111
    %v1049 = vpop.permute.xlu0 %1048
    %1050 = vrot.lane.b32.xlu0 %v1028, 111
    %v1051 = vpop.permute.xlu0 %1050
    %1052 = vrot.lane.b32.xlu0 %v1029, 111
    %v1053 = vpop.permute.xlu0 %1052
    %1054 = vrot.lane.b32.xlu0 %v1030, 111
    %v1055 = vpop.permute.xlu0 %1054
    %1056 = vrot.lane.b32.xlu0 %v1031, 111
    %v1057 = vpop.permute.xlu0 %1056
    %1058 = vrot.lane.b32.xlu0 %v1032, 111
    %v1059 = vpop.permute.xlu0 %1058
    %1060 = vrot.lane.b32.xlu0 %v1033, 111
    %v1061 = vpop.permute.xlu0 %1060
    %1062 = vrot.lane.b32.xlu0 %v1034, 111
    %v1063 = vpop.permute.xlu0 %1062
    %1064 = vrot.lane.b32.xlu0 %v1035, 111
    %v1065 = vpop.permute.xlu0 %1064
    %v1066 = vsel %vm224, %v1047, %v1049
    %v1067 = vsel %vm224, %v1049, %v1051
    %v1068 = vsel %vm224, %v1051, %v1053
    %v1069 = vsel %vm224, %v1053, %v1055
    %v1070 = vsel %vm224, %v1057, %v1059
    %v1071 = vsel %vm224, %v1059, %v1061
    %v1072 = vsel %vm224, %v1061, %v1063
    %v1073 = vsel %vm224, %v1063, %v1065
    %1082 = vst [vmem:[#allocation8 + $0x200] sm:$0xff] %v1066
    %1083 = vst [vmem:[#allocation8 + $0x208] sm:$0xff] %v1067
    %1084 = vst [vmem:[#allocation8 + $0x210] sm:$0xff] %v1068
    %1085 = vst [vmem:[#allocation8 + $0x218] sm:$0xff] %v1069
    %1086 = vst [vmem:[#allocation8 + $0x220] sm:$0xff] %v1070
    %1087 = vst [vmem:[#allocation8 + $0x228] sm:$0xff] %v1071
    %1088 = vst [vmem:[#allocation8 + $0x230] sm:$0xff] %v1072
    %1089 = vst [vmem:[#allocation8 + $0x238] sm:$0xff] %v1073
    %v1090 = vld [vmem:[#allocation9] sm:$0xff]
    %v1091 = vld [vmem:[#allocation9 + $0x8] sm:$0xff]
    %v1092 = vld [vmem:[#allocation9 + $0x10] sm:$0xff]
    %v1093 = vld [vmem:[#allocation9 + $0x18] sm:$0xff]
    %v1094 = vld [vmem:[#allocation8] sm:$0xff]
    %v1095 = vld [vmem:[#allocation8 + $0x8] sm:$0xff]
    %v1096 = vld [vmem:[#allocation8 + $0x10] sm:$0xff]
    %v1097 = vld [vmem:[#allocation8 + $0x18] sm:$0xff]
    %v1098 = vld [vmem:[#allocation8 + $0x20] sm:$0xff]
    %v1099 = vld [vmem:[#allocation8 + $0x28] sm:$0xff]
    %v1100 = vld [vmem:[#allocation8 + $0x30] sm:$0xff]
    %v1101 = vld [vmem:[#allocation8 + $0x38] sm:$0xff]
    %v1102 = vld [vmem:[#allocation8 + $0x40] sm:$0xff]
    %v1103 = vld [vmem:[#allocation8 + $0x48] sm:$0xff]
    %v1104 = vld [vmem:[#allocation8 + $0x50] sm:$0xff]
    %v1105 = vld [vmem:[#allocation8 + $0x58] sm:$0xff]
    %v1106 = vld [vmem:[#allocation8 + $0x60] sm:$0xff]
    %v1107 = vld [vmem:[#allocation8 + $0x68] sm:$0xff]
    %v1108 = vld [vmem:[#allocation8 + $0x70] sm:$0xff]
    %v1109 = vld [vmem:[#allocation8 + $0x78] sm:$0xff]
    %v1110 = vld [vmem:[#allocation8 + $0x80] sm:$0xff]
    %v1111 = vld [vmem:[#allocation8 + $0x88] sm:$0xff]
    %v1112 = vld [vmem:[#allocation8 + $0x90] sm:$0xff]
    %v1113 = vld [vmem:[#allocation8 + $0x98] sm:$0xff]
    %v1114 = vld [vmem:[#allocation8 + $0xa0] sm:$0xff]
    %v1115 = vld [vmem:[#allocation8 + $0xa8] sm:$0xff]
    %v1116 = vld [vmem:[#allocation8 + $0xb0] sm:$0xff]
    %v1117 = vld [vmem:[#allocation8 + $0xb8] sm:$0xff]
    %v1118 = vld [vmem:[#allocation8 + $0xc0] sm:$0xff]
    %v1119 = vld [vmem:[#allocation8 + $0xc8] sm:$0xff]
    %v1120 = vld [vmem:[#allocation8 + $0xd0] sm:$0xff]
    %v1121 = vld [vmem:[#allocation8 + $0xd8] sm:$0xff]
    %v1122 = vld [vmem:[#allocation8 + $0xe0] sm:$0xff]
    %v1123 = vld [vmem:[#allocation8 + $0xe8] sm:$0xff]
    %v1124 = vld [vmem:[#allocation8 + $0xf0] sm:$0xff]
    %v1125 = vld [vmem:[#allocation8 + $0xf8] sm:$0xff]
    %v1126 = vld [vmem:[#allocation8 + $0x100] sm:$0xff]
    %v1127 = vld [vmem:[#allocation8 + $0x108] sm:$0xff]
    %v1128 = vld [vmem:[#allocation8 + $0x110] sm:$0xff]
    %v1129 = vld [vmem:[#allocation8 + $0x118] sm:$0xff]
    %v1130 = vld [vmem:[#allocation8 + $0x120] sm:$0xff]
    %v1131 = vld [vmem:[#allocation8 + $0x128] sm:$0xff]
    %v1132 = vld [vmem:[#allocation8 + $0x130] sm:$0xff]
    %v1133 = vld [vmem:[#allocation8 + $0x138] sm:$0xff]
    %v1134 = vld [vmem:[#allocation8 + $0x140] sm:$0xff]
    %v1135 = vld [vmem:[#allocation8 + $0x148] sm:$0xff]
    %v1136 = vld [vmem:[#allocation8 + $0x150] sm:$0xff]
    %v1137 = vld [vmem:[#allocation8 + $0x158] sm:$0xff]
    %v1138 = vld [vmem:[#allocation8 + $0x160] sm:$0xff]
    %v1139 = vld [vmem:[#allocation8 + $0x168] sm:$0xff]
    %v1140 = vld [vmem:[#allocation8 + $0x170] sm:$0xff]
    %v1141 = vld [vmem:[#allocation8 + $0x178] sm:$0xff]
    %v1142 = vld [vmem:[#allocation8 + $0x180] sm:$0xff]
    %v1143 = vld [vmem:[#allocation8 + $0x188] sm:$0xff]
    %v1144 = vld [vmem:[#allocation8 + $0x190] sm:$0xff]
    %v1145 = vld [vmem:[#allocation8 + $0x198] sm:$0xff]
    %v1146 = vld [vmem:[#allocation8 + $0x1a0] sm:$0xff]
    %v1147 = vld [vmem:[#allocation8 + $0x1a8] sm:$0xff]
    %v1148 = vld [vmem:[#allocation8 + $0x1b0] sm:$0xff]
    %v1149 = vld [vmem:[#allocation8 + $0x1b8] sm:$0xff]
    %v1150 = vld [vmem:[#allocation8 + $0x1c0] sm:$0xff]
    %v1151 = vld [vmem:[#allocation8 + $0x1c8] sm:$0xff]
    %v1152 = vld [vmem:[#allocation8 + $0x1d0] sm:$0xff]
    %v1153 = vld [vmem:[#allocation8 + $0x1d8] sm:$0xff]
    %v1154 = vld [vmem:[#allocation8 + $0x1e0] sm:$0xff]
    %v1155 = vld [vmem:[#allocation8 + $0x1e8] sm:$0xff]
    %v1156 = vld [vmem:[#allocation8 + $0x1f0] sm:$0xff]
    %v1157 = vld [vmem:[#allocation8 + $0x1f8] sm:$0xff]
    %v1158 = vld [vmem:[#allocation8 + $0x200] sm:$0xff]
    %v1159 = vld [vmem:[#allocation8 + $0x208] sm:$0xff]
    %v1160 = vld [vmem:[#allocation8 + $0x210] sm:$0xff]
    %v1161 = vld [vmem:[#allocation8 + $0x218] sm:$0xff]
    %v1162 = vld [vmem:[#allocation8 + $0x220] sm:$0xff]
    %v1163 = vld [vmem:[#allocation8 + $0x228] sm:$0xff]
    %v1164 = vld [vmem:[#allocation8 + $0x230] sm:$0xff]
    %v1165 = vld [vmem:[#allocation8 + $0x238] sm:$0xff]
    %v1167 = vsel %vm385, %v1091, 0
    %v1170 = vsel %vm385, %v1093, 0
    %1172 = vmatprep.subr.mxu0 %v1095
    %1173 = vmatpush1.msra.mxu0 %v1094
    %1174 = vmatprep.subr.mxu0 %v1099
    %1175 = vmatpush1.msra.mxu0 %v1098
    %1176 = vmatprep.subr.mxu0 %v1103
    %1177 = vmatpush1.msra.mxu0 %v1102
    %1178 = vmatprep.subr.mxu0 %v1107
    %1179 = vmatpush1.msra.mxu0 %v1106
    %1180 = vmatprep.subr.mxu0 %v1111
    %1181 = vmatpush1.msra.mxu0 %v1110
    %1182 = vmatprep.subr.mxu0 %v1115
    %1183 = vmatpush1.msra.mxu0 %v1114
    %1184 = vmatprep.subr.mxu0 %v1119
    %1185 = vmatpush1.msra.mxu0 %v1118
    %1186 = vmatprep.subr.mxu0 %v1123
    %1187 = vmatpush1.msra.mxu0 %v1122
    %1188 = vmatprep.subr.mxu0 %v1127
    %1189 = vmatpush1.msra.mxu0 %v1126
    %1190 = vmatprep.subr.mxu0 %v1131
    %1191 = vmatpush1.msra.mxu0 %v1130
    %1192 = vmatprep.subr.mxu0 %v1135
    %1193 = vmatpush1.msra.mxu0 %v1134
    %1194 = vmatprep.subr.mxu0 %v1139
    %1195 = vmatpush1.msra.mxu0 %v1138
    %1196 = vmatprep.subr.mxu0 %v1143
    %1197 = vmatpush1.msra.mxu0 %v1142
    %1198 = vmatprep.subr.mxu0 %v1147
    %1199 = vmatpush1.msra.mxu0 %v1146
    %1200 = vmatprep.subr.mxu0 %v1151
    %1201 = vmatpush1.msra.mxu0 %v1150
    %1202 = vmatprep.subr.mxu0 %v1155
    %1203 = vmatpush1.msra.mxu0 %v1154
    %1204 = vmatprep.subr.mxu0 %v1159
    %1205 = vmatpush1.msra.mxu0 %v1158
    %1206 = vmatprep.subr.mxu0 %v1163
    %1207 = vmatpush1.msra.mxu0 %v1162
    %1208 = vmatprep.subr.mxu0 0.0
    %1209 = vmatpush1.msra.mxu0 0.0
    %1210 = vmatprep.subr.mxu0 0.0
    %1211 = vmatpush1.msra.mxu0 0.0
    %1212 = vmatprep.subr.mxu0 0.0
    %1213 = vmatpush1.msra.mxu0 0.0
    %1214 = vmatprep.subr.mxu0 0.0
    %1215 = vmatpush1.msra.mxu0 0.0
    %1216 = vmatprep.subr.mxu0 0.0
    %1217 = vmatpush1.msra.mxu0 0.0
    %1218 = vmatprep.subr.mxu0 0.0
    %1219 = vmatpush1.msra.mxu0 0.0
    %1220 = vmatprep.subr.mxu0 0.0
    %1221 = vmatpush1.msra.mxu0 0.0
    %1222 = vmatprep.subr.mxu0 0.0
    %1223 = vmatpush1.msra.mxu0 0.0
    %1224 = vmatprep.subr.mxu0 0.0
    %1225 = vmatpush1.msra.mxu0 0.0
    %1226 = vmatprep.subr.mxu0 0.0
    %1227 = vmatpush1.msra.mxu0 0.0
    %1228 = vmatprep.subr.mxu0 0.0
    %1229 = vmatpush1.msra.mxu0 0.0
    %1230 = vmatprep.subr.mxu0 0.0
    %1231 = vmatpush1.msra.mxu0 0.0
    %1232 = vmatprep.subr.mxu0 0.0
    %1233 = vmatpush1.msra.mxu0 0.0
    %1234 = vmatprep.subr.mxu0 0.0
    %1235 = vmatpush1.msra.mxu0 0.0
    %1236 = vmatprep.mubr.f32.mxu0 %v1167
    %1237 = vmatmul.mubr.f32.gmra.mrb[0].mxu0 %v1090
    %v1238 = vpop.f32.mrb[0].mxu0
    %v1239 = vadd.f32 0.0, %v1238
    %v1240 = vpop.f32.mrb[0].mxu0
    %v1241 = vadd.f32 0.0, %v1240
    %1242 = vmatprep.mubr.f32.mxu0 %v1170
    %1243 = vmatmul.mubr.f32.gmra.mrb[0].mxu0 %v1092
    %v1244 = vpop.f32.mrb[0].mxu0
    %v1245 = vadd.f32 0.0, %v1244
    %v1246 = vpop.f32.mrb[0].mxu0
    %v1247 = vadd.f32 0.0, %v1246
    %1248 = vdwg.mxu0
    %1249 = vmatprep.subr.mxu0 %v1097
    %1250 = vmatpush1.msra.mxu0 %v1096
    %1251 = vmatprep.subr.mxu0 %v1101
    %1252 = vmatpush1.msra.mxu0 %v1100
    %1253 = vmatprep.subr.mxu0 %v1105
    %1254 = vmatpush1.msra.mxu0 %v1104
    %1255 = vmatprep.subr.mxu0 %v1109
    %1256 = vmatpush1.msra.mxu0 %v1108
    %1257 = vmatprep.subr.mxu0 %v1113
    %1258 = vmatpush1.msra.mxu0 %v1112
    %1259 = vmatprep.subr.mxu0 %v1117
    %1260 = vmatpush1.msra.mxu0 %v1116
    %1261 = vmatprep.subr.mxu0 %v1121
    %1262 = vmatpush1.msra.mxu0 %v1120
    %1263 = vmatprep.subr.mxu0 %v1125
    %1264 = vmatpush1.msra.mxu0 %v1124
    %1265 = vmatprep.subr.mxu0 %v1129
    %1266 = vmatpush1.msra.mxu0 %v1128
    %1267 = vmatprep.subr.mxu0 %v1133
    %1268 = vmatpush1.msra.mxu0 %v1132
    %1269 = vmatprep.subr.mxu0 %v1137
    %1270 = vmatpush1.msra.mxu0 %v1136
    %1271 = vmatprep.subr.mxu0 %v1141
    %1272 = vmatpush1.msra.mxu0 %v1140
    %1273 = vmatprep.subr.mxu0 %v1145
    %1274 = vmatpush1.msra.mxu0 %v1144
    %1275 = vmatprep.subr.mxu0 %v1149
    %1276 = vmatpush1.msra.mxu0 %v1148
    %1277 = vmatprep.subr.mxu0 %v1153
    %1278 = vmatpush1.msra.mxu0 %v1152
    %1279 = vmatprep.subr.mxu0 %v1157
    %1280 = vmatpush1.msra.mxu0 %v1156
    %1281 = vmatprep.subr.mxu0 %v1161
    %1282 = vmatpush1.msra.mxu0 %v1160
    %1283 = vmatprep.subr.mxu0 %v1165
    %1284 = vmatpush1.msra.mxu0 %v1164
    %1285 = vmatprep.subr.mxu0 0.0
    %1286 = vmatpush1.msra.mxu0 0.0
    %1287 = vmatprep.subr.mxu0 0.0
    %1288 = vmatpush1.msra.mxu0 0.0
    %1289 = vmatprep.subr.mxu0 0.0
    %1290 = vmatpush1.msra.mxu0 0.0
    %1291 = vmatprep.subr.mxu0 0.0
    %1292 = vmatpush1.msra.mxu0 0.0
    %1293 = vmatprep.subr.mxu0 0.0
    %1294 = vmatpush1.msra.mxu0 0.0
    %1295 = vmatprep.subr.mxu0 0.0
    %1296 = vmatpush1.msra.mxu0 0.0
    %1297 = vmatprep.subr.mxu0 0.0
    %1298 = vmatpush1.msra.mxu0 0.0
    %1299 = vmatprep.subr.mxu0 0.0
    %1300 = vmatpush1.msra.mxu0 0.0
    %1301 = vmatprep.subr.mxu0 0.0
    %1302 = vmatpush1.msra.mxu0 0.0
    %1303 = vmatprep.subr.mxu0 0.0
    %1304 = vmatpush1.msra.mxu0 0.0
    %1305 = vmatprep.subr.mxu0 0.0
    %1306 = vmatpush1.msra.mxu0 0.0
    %1307 = vmatprep.subr.mxu0 0.0
    %1308 = vmatpush1.msra.mxu0 0.0
    %1309 = vmatprep.subr.mxu0 0.0
    %1310 = vmatpush1.msra.mxu0 0.0
    %1311 = vmatprep.subr.mxu0 0.0
    %1312 = vmatpush1.msra.mxu0 0.0
    %1313 = vmatprep.mubr.f32.mxu0 %v1167
    %1314 = vmatmul.mubr.f32.gmra.mrb[0].mxu0 %v1090
    %v1315 = vpop.f32.mrb[0].mxu0
    %v1316 = vadd.f32 0.0, %v1315
    %v1317 = vpop.f32.mrb[0].mxu0
    %v1318 = vadd.f32 0.0, %v1317
    %1319 = vmatprep.mubr.f32.mxu0 %v1170
    %1320 = vmatmul.mubr.f32.gmra.mrb[0].mxu0 %v1092
    %v1321 = vpop.f32.mrb[0].mxu0
    %v1322 = vadd.f32 0.0, %v1321
    %v1323 = vpop.f32.mrb[0].mxu0
    %v1324 = vadd.f32 0.0, %v1323
    %1325 = vdwg.mxu0
    %1326 = vst [vmem:[#allocation2] sm:$0xff] %v1239
    %1327 = vst [vmem:[#allocation2 + $0x8] sm:$0xff] %v1241
    %1328 = vst [vmem:[#allocation2 + $0x10] sm:$0xff] %v1316
    %1329 = vst [vmem:[#allocation2 + $0x18] sm:$0xff] %v1318
    %1330 = vst [vmem:[#allocation2 + $0x20] sm:$0xff] %v1245
    %1331 = vst [vmem:[#allocation2 + $0x28] sm:$0xff] %v1247
    %1332 = vst [vmem:[#allocation2 + $0x30] sm:$0xff] %v1322
    %1333 = vst [vmem:[#allocation2 + $0x38] sm:$0xff] %v1324
    %v1334 = vld [vmem:[#allocation2] sm:$0xff]
    %v1335 = vld [vmem:[#allocation2 + $0x8] sm:$0xff]
    %v1336 = vld [vmem:[#allocation2 + $0x10] sm:$0xff]
    %v1337 = vld [vmem:[#allocation2 + $0x18] sm:$0xff]
    %v1338 = vld [vmem:[#allocation2 + $0x20] sm:$0xff]
    %v1339 = vld [vmem:[#allocation2 + $0x28] sm:$0xff]
    %v1340 = vld [vmem:[#allocation2 + $0x30] sm:$0xff]
    %v1341 = vld [vmem:[#allocation2 + $0x38] sm:$0xff]
    %v1342 = vld [vmem:[#allocation11] sm:$0xff]
    %v1343 = vld [vmem:[#allocation11 + $0x8] sm:$0xff]
    %v1344 = vld [vmem:[#allocation13] sm:$0xff]
    %v1345 = vld [vmem:[#allocation13 + $0x8] sm:$0xff]
    %v1346 = vadd.f32 %v1334, %v1335
    %v1347 = vadd.f32 %v1346, %v1336
    %v1348 = vadd.f32 %v1347, %v1337
    %1349 = vadd.xlane.f32.xlu0 %v1348
    %v1350 = vpop.xlane.xlu0 %1349
    %v1351 = vadd.f32 %v1338, %v1339
    %v1352 = vadd.f32 %v1351, %v1340
    %v1353 = vadd.f32 %v1352, %v1341
    %1354 = vadd.xlane.f32.xlu0 %v1353
    %v1355 = vpop.xlane.xlu0 %1354
    %v1356 = vmul.f32 %v1334, %v1334
    %v1357 = vmul.f32 %v1335, %v1335
    %v1358 = vmul.f32 %v1336, %v1336
    %v1359 = vmul.f32 %v1337, %v1337
    %v1360 = vmul.f32 %v1338, %v1338
    %v1361 = vmul.f32 %v1339, %v1339
    %v1362 = vmul.f32 %v1340, %v1340
    %v1363 = vmul.f32 %v1341, %v1341
    %v1364 = vadd.f32 %v1356, %v1357
    %v1365 = vadd.f32 %v1364, %v1358
    %v1366 = vadd.f32 %v1365, %v1359
    %1367 = vadd.xlane.f32.xlu0 %v1366
    %v1368 = vpop.xlane.xlu0 %1367
    %v1369 = vadd.f32 %v1360, %v1361
    %v1370 = vadd.f32 %v1369, %v1362
    %v1371 = vadd.f32 %v1370, %v1363
    %1372 = vadd.xlane.f32.xlu0 %v1371
    %v1373 = vpop.xlane.xlu0 %1372
    %v1374 = vmul.f32 %v1350, 0.001953125
    %v1375 = vmul.f32 %v1355, 0.001953125
    %v1376 = vmul.f32 %v1368, 0.001953125
    %v1377 = vmul.f32 %v1373, 0.001953125
    %v1378 = vmul.f32 %v1374, %v1374
    %v1379 = vmul.f32 %v1375, %v1375
    %v1380 = vsub.f32 %v1376, %v1378
    %v1381 = vsub.f32 %v1377, %v1379
    %v1382 = vadd.f32 %v1380, 1e-05
    %v1383 = vadd.f32 %v1381, 1e-05
    %v1384 = vrsqrt.pop %v1382
    %v1385 = vrsqrt.pop %v1383
    %v1386 = vmul.f32 %v1342, %v1384
    %v1387 = vmul.f32 %v1343, %v1385
    %v1388 = vmul.f32 %v1374, %v1386
    %v1389 = vmul.f32 %v1375, %v1387
    %v1390 = vsub.f32 %v1344, %v1388
    %v1391 = vsub.f32 %v1345, %v1389
    %1393 = vset.pattern.permute.xlu0 0
    %1394 = vperm.xlu0 %1393, %v1386
    %v1395 = vpop.permute.xlu0 %1394
    %1398 = vset.pattern.permute.xlu0 0
    %1399 = vperm.xlu0 %1398, %v1387
    %v1400 = vpop.permute.xlu0 %1399
    %v1402 = vmul.f32 %v1334, %v1395
    %v1403 = vmul.f32 %v1335, %v1395
    %v1404 = vmul.f32 %v1336, %v1395
    %v1405 = vmul.f32 %v1337, %v1395
    %v1406 = vmul.f32 %v1338, %v1400
    %v1407 = vmul.f32 %v1339, %v1400
    %v1408 = vmul.f32 %v1340, %v1400
    %v1409 = vmul.f32 %v1341, %v1400
    %1411 = vset.pattern.permute.xlu0 0
    %1412 = vperm.xlu0 %1411, %v1390
    %v1413 = vpop.permute.xlu0 %1412
    %1416 = vset.pattern.permute.xlu0 0
    %1417 = vperm.xlu0 %1416, %v1391
    %v1418 = vpop.permute.xlu0 %1417
    %v1420 = vadd.f32 %v1402, %v1413
    %v1421 = vadd.f32 %v1403, %v1413
    %v1422 = vadd.f32 %v1404, %v1413
    %v1423 = vadd.f32 %v1405, %v1413
    %v1424 = vadd.f32 %v1406, %v1418
    %v1425 = vadd.f32 %v1407, %v1418
    %v1426 = vadd.f32 %v1408, %v1418
    %v1427 = vadd.f32 %v1409, %v1418
    %v1428 = vmax.f32 %v1420, 0.0
    %v1429 = vmax.f32 %v1421, 0.0
    %v1430 = vmax.f32 %v1422, 0.0
    %v1431 = vmax.f32 %v1423, 0.0
    %v1432 = vmax.f32 %v1424, 0.0
    %v1433 = vmax.f32 %v1425, 0.0
    %v1434 = vmax.f32 %v1426, 0.0
    %v1435 = vmax.f32 %v1427, 0.0
    %v1436 = vld [vmem:[%s2] sm:$0xff]
    %v1437 = vld [vmem:[%s2 + $0x8] sm:$0xff]
    %v1439 = vsel %vm385, %v1436, 0
    %v1442 = vsel %vm385, %v1437, 0
    %1444 = vmatprep.subr.mxu0 %v1429
    %1445 = vmatpush1.msra.mxu0 %v1428
    %1446 = vmatprep.subr.mxu0 %v1433
    %1447 = vmatpush1.msra.mxu0 %v1432
    %1448 = vmatprep.subr.mxu0 0.0
    %1449 = vmatpush1.msra.mxu0 0.0
    %1450 = vmatprep.subr.mxu0 0.0
    %1451 = vmatpush1.msra.mxu0 0.0
    %1452 = vmatprep.subr.mxu0 0.0
    %1453 = vmatpush1.msra.mxu0 0.0
    %1454 = vmatprep.subr.mxu0 0.0
    %1455 = vmatpush1.msra.mxu0 0.0
    %1456 = vmatprep.subr.mxu0 0.0
    %1457 = vmatpush1.msra.mxu0 0.0
    %1458 = vmatprep.subr.mxu0 0.0
    %1459 = vmatpush1.msra.mxu0 0.0
    %1460 = vmatprep.subr.mxu0 0.0
    %1461 = vmatpush1.msra.mxu0 0.0
    %1462 = vmatprep.subr.mxu0 0.0
    %1463 = vmatpush1.msra.mxu0 0.0
    %1464 = vmatprep.subr.mxu0 0.0
    %1465 = vmatpush1.msra.mxu0 0.0
    %1466 = vmatprep.subr.mxu0 0.0
    %1467 = vmatpush1.msra.mxu0 0.0
    %1468 = vmatprep.subr.mxu0 0.0
    %1469 = vmatpush1.msra.mxu0 0.0
    %1470 = vmatprep.subr.mxu0 0.0
    %1471 = vmatpush1.msra.mxu0 0.0
    %1472 = vmatprep.subr.mxu0 0.0
    %1473 = vmatpush1.msra.mxu0 0.0
    %1474 = vmatprep.subr.mxu0 0.0
    %1475 = vmatpush1.msra.mxu0 0.0
    %1476 = vmatprep.subr.mxu0 0.0
    %1477 = vmatpush1.msra.mxu0 0.0
    %1478 = vmatprep.subr.mxu0 0.0
    %1479 = vmatpush1.msra.mxu0 0.0
    %1480 = vmatprep.subr.mxu0 0.0
    %1481 = vmatpush1.msra.mxu0 0.0
    %1482 = vmatprep.subr.mxu0 0.0
    %1483 = vmatpush1.msra.mxu0 0.0
    %1484 = vmatprep.subr.mxu0 0.0
    %1485 = vmatpush1.msra.mxu0 0.0
    %1486 = vmatprep.subr.mxu0 0.0
    %1487 = vmatpush1.msra.mxu0 0.0
    %1488 = vmatprep.subr.mxu0 0.0
    %1489 = vmatpush1.msra.mxu0 0.0
    %1490 = vmatprep.subr.mxu0 0.0
    %1491 = vmatpush1.msra.mxu0 0.0
    %1492 = vmatprep.subr.mxu0 0.0
    %1493 = vmatpush1.msra.mxu0 0.0
    %1494 = vmatprep.subr.mxu0 0.0
    %1495 = vmatpush1.msra.mxu0 0.0
    %1496 = vmatprep.subr.mxu0 0.0
    %1497 = vmatpush1.msra.mxu0 0.0
    %1498 = vmatprep.subr.mxu0 0.0
    %1499 = vmatpush1.msra.mxu0 0.0
    %1500 = vmatprep.subr.mxu0 0.0
    %1501 = vmatpush1.msra.mxu0 0.0
    %1502 = vmatprep.subr.mxu0 0.0
    %1503 = vmatpush1.msra.mxu0 0.0
    %1504 = vmatprep.subr.mxu0 0.0
    %1505 = vmatpush1.msra.mxu0 0.0
    %1506 = vmatprep.subr.mxu0 0.0
    %1507 = vmatpush1.msra.mxu0 0.0
    %1508 = vmatprep.mubr.f32.mxu0 0.0
    %1509 = vmatmul.mubr.f32.gmra.mrb[0].mxu0 %v1439
    %v1510 = vpop.f32.mrb[0].mxu0
    %v1511 = vadd.f32 0.0, %v1510
    %v1512 = vpop.f32.mrb[0].mxu0
    %v1513 = vadd.f32 0.0, %v1512
    %1514 = vmatprep.mubr.f32.mxu0 0.0
    %1515 = vmatmul.mubr.f32.gmra.mrb[0].mxu0 %v1442
    %v1516 = vpop.f32.mrb[0].mxu0
    %v1517 = vadd.f32 0.0, %v1516
    %v1518 = vpop.f32.mrb[0].mxu0
    %v1519 = vadd.f32 0.0, %v1518
    %1520 = vdwg.mxu0
    %1521 = vmatprep.subr.mxu0 %v1431
    %1522 = vmatpush1.msra.mxu0 %v1430
    %1523 = vmatprep.subr.mxu0 %v1435
    %1524 = vmatpush1.msra.mxu0 %v1434
    %1525 = vmatprep.subr.mxu0 0.0
    %1526 = vmatpush1.msra.mxu0 0.0
    %1527 = vmatprep.subr.mxu0 0.0
    %1528 = vmatpush1.msra.mxu0 0.0
    %1529 = vmatprep.subr.mxu0 0.0
    %1530 = vmatpush1.msra.mxu0 0.0
    %1531 = vmatprep.subr.mxu0 0.0
    %1532 = vmatpush1.msra.mxu0 0.0
    %1533 = vmatprep.subr.mxu0 0.0
    %1534 = vmatpush1.msra.mxu0 0.0
    %1535 = vmatprep.subr.mxu0 0.0
    %1536 = vmatpush1.msra.mxu0 0.0
    %1537 = vmatprep.subr.mxu0 0.0
    %1538 = vmatpush1.msra.mxu0 0.0
    %1539 = vmatprep.subr.mxu0 0.0
    %1540 = vmatpush1.msra.mxu0 0.0
    %1541 = vmatprep.subr.mxu0 0.0
    %1542 = vmatpush1.msra.mxu0 0.0
    %1543 = vmatprep.subr.mxu0 0.0
    %1544 = vmatpush1.msra.mxu0 0.0
    %1545 = vmatprep.subr.mxu0 0.0
    %1546 = vmatpush1.msra.mxu0 0.0
    %1547 = vmatprep.subr.mxu0 0.0
    %1548 = vmatpush1.msra.mxu0 0.0
    %1549 = vmatprep.subr.mxu0 0.0
    %1550 = vmatpush1.msra.mxu0 0.0
    %1551 = vmatprep.subr.mxu0 0.0
    %1552 = vmatpush1.msra.mxu0 0.0
    %1553 = vmatprep.subr.mxu0 0.0
    %1554 = vmatpush1.msra.mxu0 0.0
    %1555 = vmatprep.subr.mxu0 0.0
    %1556 = vmatpush1.msra.mxu0 0.0
    %1557 = vmatprep.subr.mxu0 0.0
    %1558 = vmatpush1.msra.mxu0 0.0
    %1559 = vmatprep.subr.mxu0 0.0
    %1560 = vmatpush1.msra.mxu0 0.0
    %1561 = vmatprep.subr.mxu0 0.0
    %1562 = vmatpush1.msra.mxu0 0.0
    %1563 = vmatprep.subr.mxu0 0.0
    %1564 = vmatpush1.msra.mxu0 0.0
    %1565 = vmatprep.subr.mxu0 0.0
    %1566 = vmatpush1.msra.mxu0 0.0
    %1567 = vmatprep.subr.mxu0 0.0
    %1568 = vmatpush1.msra.mxu0 0.0
    %1569 = vmatprep.subr.mxu0 0.0
    %1570 = vmatpush1.msra.mxu0 0.0
    %1571 = vmatprep.subr.mxu0 0.0
    %1572 = vmatpush1.msra.mxu0 0.0
    %1573 = vmatprep.subr.mxu0 0.0
    %1574 = vmatpush1.msra.mxu0 0.0
    %1575 = vmatprep.subr.mxu0 0.0
    %1576 = vmatpush1.msra.mxu0 0.0
    %1577 = vmatprep.subr.mxu0 0.0
    %1578 = vmatpush1.msra.mxu0 0.0
    %1579 = vmatprep.subr.mxu0 0.0
    %1580 = vmatpush1.msra.mxu0 0.0
    %1581 = vmatprep.subr.mxu0 0.0
    %1582 = vmatpush1.msra.mxu0 0.0
    %1583 = vmatprep.subr.mxu0 0.0
    %1584 = vmatpush1.msra.mxu0 0.0
    %1585 = vmatprep.mubr.f32.mxu0 0.0
    %1586 = vmatmul.mubr.f32.gmra.mrb[0].mxu0 %v1439
    %v1587 = vpop.f32.mrb[0].mxu0
    %v1588 = vadd.f32 0.0, %v1587
    %v1589 = vpop.f32.mrb[0].mxu0
    %v1590 = vadd.f32 0.0, %v1589
    %1591 = vmatprep.mubr.f32.mxu0 0.0
    %1592 = vmatmul.mubr.f32.gmra.mrb[0].mxu0 %v1442
    %v1593 = vpop.f32.mrb[0].mxu0
    %v1594 = vadd.f32 0.0, %v1593
    %v1595 = vpop.f32.mrb[0].mxu0
    %v1596 = vadd.f32 0.0, %v1595
    %1597 = vdwg.mxu0
    %v1598 = vadd.f32 %v1511, %v1513
    %v1599 = vadd.f32 %v1598, %v1588
    %v1600 = vadd.f32 %v1599, %v1590
    %1601 = vadd.xlane.f32.xlu0 %v1600
    %v1602 = vpop.xlane.xlu0 %1601
    %v1603 = vadd.f32 %v1517, %v1519
    %v1604 = vadd.f32 %v1603, %v1594
    %v1605 = vadd.f32 %v1604, %v1596
    %1606 = vadd.xlane.f32.xlu0 %v1605
    %v1607 = vpop.xlane.xlu0 %1606
    %v1608 = vmul.f32 %v1511, %v1511
    %v1609 = vmul.f32 %v1513, %v1513
    %v1610 = vmul.f32 %v1588, %v1588
    %v1611 = vmul.f32 %v1590, %v1590
    %v1612 = vmul.f32 %v1517, %v1517
    %v1613 = vmul.f32 %v1519, %v1519
    %v1614 = vmul.f32 %v1594, %v1594
    %v1615 = vmul.f32 %v1596, %v1596
    %v1616 = vadd.f32 %v1608, %v1609
    %v1617 = vadd.f32 %v1616, %v1610
    %v1618 = vadd.f32 %v1617, %v1611
    %1619 = vadd.xlane.f32.xlu0 %v1618
    %v1620 = vpop.xlane.xlu0 %1619
    %v1621 = vadd.f32 %v1612, %v1613
    %v1622 = vadd.f32 %v1621, %v1614
    %v1623 = vadd.f32 %v1622, %v1615
    %1624 = vadd.xlane.f32.xlu0 %v1623
    %v1625 = vpop.xlane.xlu0 %1624
    %v1626 = vmul.f32 %v1602, 0.001953125
    %v1627 = vmul.f32 %v1607, 0.001953125
    %v1628 = vmul.f32 %v1620, 0.001953125
    %v1629 = vmul.f32 %v1625, 0.001953125
    %v1630 = vmul.f32 %v1626, %v1626
    %v1631 = vmul.f32 %v1627, %v1627
    %v1632 = vsub.f32 %v1628, %v1630
    %v1633 = vsub.f32 %v1629, %v1631
    %v1634 = vadd.f32 %v1632, 1e-05
    %v1635 = vadd.f32 %v1633, 1e-05
    %v1636 = vrsqrt.pop %v1634
    %v1637 = vrsqrt.pop %v1635
    %v1638 = vmul.f32 %v1342, %v1636
    %v1639 = vmul.f32 %v1343, %v1637
    %v1640 = vmul.f32 %v1626, %v1638
    %v1641 = vmul.f32 %v1627, %v1639
    %v1642 = vsub.f32 %v1344, %v1640
    %v1643 = vsub.f32 %v1345, %v1641
    %1645 = vset.pattern.permute.xlu0 1
    %1646 = vperm.xlu0 %1645, %v1638
    %v1647 = vpop.permute.xlu0 %1646
    %1650 = vset.pattern.permute.xlu0 1
    %1651 = vperm.xlu0 %1650, %v1639
    %v1652 = vpop.permute.xlu0 %1651
    %v1654 = vmul.f32 %v1511, %v1647
    %v1655 = vmul.f32 %v1513, %v1647
    %v1656 = vmul.f32 %v1588, %v1647
    %v1657 = vmul.f32 %v1590, %v1647
    %v1658 = vmul.f32 %v1517, %v1652
    %v1659 = vmul.f32 %v1519, %v1652
    %v1660 = vmul.f32 %v1594, %v1652
    %v1661 = vmul.f32 %v1596, %v1652
    %1663 = vset.pattern.permute.xlu0 1
    %1664 = vperm.xlu0 %1663, %v1642
    %v1665 = vpop.permute.xlu0 %1664
    %1668 = vset.pattern.permute.xlu0 1
    %1669 = vperm.xlu0 %1668, %v1643
    %v1670 = vpop.permute.xlu0 %1669
    %v1672 = vadd.f32 %v1654, %v1665
    %v1673 = vadd.f32 %v1655, %v1665
    %v1674 = vadd.f32 %v1656, %v1665
    %v1675 = vadd.f32 %v1657, %v1665
    %v1676 = vadd.f32 %v1658, %v1670
    %v1677 = vadd.f32 %v1659, %v1670
    %v1678 = vadd.f32 %v1660, %v1670
    %v1679 = vadd.f32 %v1661, %v1670
    %v1680 = vmax.f32 %v1672, 0.0
    %v1681 = vmax.f32 %v1673, 0.0
    %v1682 = vmax.f32 %v1674, 0.0
    %v1683 = vmax.f32 %v1675, 0.0
    %v1684 = vmax.f32 %v1676, 0.0
    %v1685 = vmax.f32 %v1677, 0.0
    %v1686 = vmax.f32 %v1678, 0.0
    %v1687 = vmax.f32 %v1679, 0.0
    %1688 = vst [vmem:[#allocation5 + $0x8] sm:$0xff] %v1680
    %1689 = vst [vmem:[#allocation5 + $0x10] sm:$0xff] %v1681
    %1690 = vst [vmem:[#allocation5 + $0x18] sm:$0xff] %v1682
    %1691 = vst [vmem:[#allocation5 + $0x20] sm:$0xff] %v1683
    %1692 = vst [vmem:[#allocation5 + $0x38] sm:$0xff] %v1684
    %1693 = vst [vmem:[#allocation5 + $0x40] sm:$0xff] %v1685
    %1694 = vst [vmem:[#allocation5 + $0x48] sm:$0xff] %v1686
    %1695 = vst [vmem:[#allocation5 + $0x50] sm:$0xff] %v1687
    %v1696 = vld [vmem:[#allocation16] sm:$0xff]
    %v1697 = vld [vmem:[#allocation16 + $0x8] sm:$0xff]
    %v1698 = vld [vmem:[#allocation16 + $0x10] sm:$0xff]
    %v1699 = vld [vmem:[#allocation16 + $0x18] sm:$0xff]
    %v1700 = vld [vmem:[#allocation16 + $0x20] sm:$0x1]
    %v1701 = vld [vmem:[#allocation16 + $0x28] sm:$0x1]
    %v1702 = vld [vmem:[#allocation16 + $0x30] sm:$0x1]
    %v1703 = vld [vmem:[#allocation16 + $0x38] sm:$0x1]
    %v1704 = vld [vmem:[#allocation5] sm:$0xff]
    %v1705 = vld [vmem:[#allocation5 + $0x8] sm:$0xff]
    %v1706 = vld [vmem:[#allocation5 + $0x10] sm:$0xff]
    %v1707 = vld [vmem:[#allocation5 + $0x18] sm:$0xff]
    %v1708 = vld [vmem:[#allocation5 + $0x20] sm:$0xff]
    %v1709 = vld [vmem:[#allocation5 + $0x30] sm:$0xff]
    %v1710 = vld [vmem:[#allocation5 + $0x38] sm:$0xff]
    %v1711 = vld [vmem:[#allocation5 + $0x40] sm:$0xff]
    %v1712 = vld [vmem:[#allocation5 + $0x48] sm:$0xff]
    %v1713 = vld [vmem:[#allocation5 + $0x50] sm:$0xff]
    %v1714 = vlaneseq
    %v1715 = vshrl.u32 %v1714, 7
    %v1716 = vsub.s32 0, %v1715
    %v1717 = vrot.slane %v1696, %v1716
    %v1718 = vlaneseq
    %v1719 = vshrl.u32 %v1718, 7
    %v1720 = vsub.s32 0, %v1719
    %v1721 = vrot.slane %v1697, %v1720
    %v1722 = vlaneseq
    %v1723 = vshrl.u32 %v1722, 7
    %v1724 = vsub.s32 0, %v1723
    %v1725 = vrot.slane %v1698, %v1724
    %v1726 = vlaneseq
    %v1727 = vshrl.u32 %v1726, 7
    %v1728 = vsub.s32 0, %v1727
    %v1729 = vrot.slane %v1699, %v1728
    %1734 = vrot.lane.b32.xlu0 %v1717, 111
    %v1735 = vpop.permute.xlu0 %1734
    %1736 = vrot.lane.b32.xlu0 %v1721, 111
    %v1737 = vpop.permute.xlu0 %1736
    %1738 = vrot.lane.b32.xlu0 %v1725, 111
    %v1739 = vpop.permute.xlu0 %1738
    %1740 = vrot.lane.b32.xlu0 %v1729, 111
    %v1741 = vpop.permute.xlu0 %1740
    %v1742 = vsel %vm224, %v1735, %v1737
    %v1743 = vsel %vm224, %v1737, %v1739
    %v1744 = vsel %vm224, %v1739, %v1741
    %v1750 = vmul.f32 %v1704, %v1735
    %v1751 = vmul.f32 %v1705, %v1742
    %v1752 = vmul.f32 %v1706, %v1743
    %v1753 = vmul.f32 %v1707, %v1744
    %v1754 = vmul.f32 %v1708, %v1741
    %v1755 = vmul.f32 %v1709, %v1735
    %v1756 = vmul.f32 %v1710, %v1742
    %v1757 = vmul.f32 %v1711, %v1743
    %v1758 = vmul.f32 %v1712, %v1744
    %v1759 = vmul.f32 %v1713, %v1741
    %1770 = vrot.lane.b32.xlu0 %v1750, 17
    %v1771 = vpop.permute.xlu0 %1770
    %1772 = vrot.lane.b32.xlu0 %v1751, 17
    %v1773 = vpop.permute.xlu0 %1772
    %1774 = vrot.lane.b32.xlu0 %v1752, 17
    %v1775 = vpop.permute.xlu0 %1774
    %1776 = vrot.lane.b32.xlu0 %v1753, 17
    %v1777 = vpop.permute.xlu0 %1776
    %1778 = vrot.lane.b32.xlu0 %v1754, 17
    %v1779 = vpop.permute.xlu0 %1778
    %1780 = vrot.lane.b32.xlu0 %v1755, 17
    %v1781 = vpop.permute.xlu0 %1780
    %1782 = vrot.lane.b32.xlu0 %v1756, 17
    %v1783 = vpop.permute.xlu0 %1782
    %1784 = vrot.lane.b32.xlu0 %v1757, 17
    %v1785 = vpop.permute.xlu0 %1784
    %1786 = vrot.lane.b32.xlu0 %v1758, 17
    %v1787 = vpop.permute.xlu0 %1786
    %1788 = vrot.lane.b32.xlu0 %v1759, 17
    %v1789 = vpop.permute.xlu0 %1788
    %v1790 = vsel %vm273, %v1771, %v1773
    %v1791 = vsel %vm273, %v1773, %v1775
    %v1792 = vsel %vm273, %v1775, %v1777
    %v1793 = vsel %vm273, %v1777, %v1779
    %v1794 = vsel %vm273, %v1781, %v1783
    %v1795 = vsel %vm273, %v1783, %v1785
    %v1796 = vsel %vm273, %v1785, %v1787
    %v1797 = vsel %vm273, %v1787, %v1789
    %1806 = vst [vmem:[#allocation8] sm:$0xff] %v1790
    %1807 = vst [vmem:[#allocation8 + $0x8] sm:$0xff] %v1791
    %1808 = vst [vmem:[#allocation8 + $0x10] sm:$0xff] %v1792
    %1809 = vst [vmem:[#allocation8 + $0x18] sm:$0xff] %v1793
    %1810 = vst [vmem:[#allocation8 + $0x20] sm:$0xff] %v1794
    %1811 = vst [vmem:[#allocation8 + $0x28] sm:$0xff] %v1795
    %1812 = vst [vmem:[#allocation8 + $0x30] sm:$0xff] %v1796
    %1813 = vst [vmem:[#allocation8 + $0x38] sm:$0xff] %v1797
    %v1814 = vld [vmem:[#allocation5] sm:$0xff]
    %v1815 = vld [vmem:[#allocation5 + $0x8] sm:$0xff]
    %v1816 = vld [vmem:[#allocation5 + $0x10] sm:$0xff]
    %v1817 = vld [vmem:[#allocation5 + $0x18] sm:$0xff]
    %v1818 = vld [vmem:[#allocation5 + $0x20] sm:$0xff]
    %v1819 = vld [vmem:[#allocation5 + $0x30] sm:$0xff]
    %v1820 = vld [vmem:[#allocation5 + $0x38] sm:$0xff]
    %v1821 = vld [vmem:[#allocation5 + $0x40] sm:$0xff]
    %v1822 = vld [vmem:[#allocation5 + $0x48] sm:$0xff]
    %v1823 = vld [vmem:[#allocation5 + $0x50] sm:$0xff]
    %v1824 = vlaneseq
    %v1825 = vshrl.u32 %v1824, 7
    %v1826 = vsub.s32 1, %v1825
    %v1827 = vrot.slane %v1696, %v1826
    %v1828 = vlaneseq
    %v1829 = vshrl.u32 %v1828, 7
    %v1830 = vsub.s32 1, %v1829
    %v1831 = vrot.slane %v1697, %v1830
    %v1832 = vlaneseq
    %v1833 = vshrl.u32 %v1832, 7
    %v1834 = vsub.s32 1, %v1833
    %v1835 = vrot.slane %v1698, %v1834
    %v1836 = vlaneseq
    %v1837 = vshrl.u32 %v1836, 7
    %v1838 = vsub.s32 1, %v1837
    %v1839 = vrot.slane %v1699, %v1838
    %1844 = vrot.lane.b32.xlu0 %v1827, 112
    %v1845 = vpop.permute.xlu0 %1844
    %1846 = vrot.lane.b32.xlu0 %v1831, 112
    %v1847 = vpop.permute.xlu0 %1846
    %1848 = vrot.lane.b32.xlu0 %v1835, 112
    %v1849 = vpop.permute.xlu0 %1848
    %1850 = vrot.lane.b32.xlu0 %v1839, 112
    %v1851 = vpop.permute.xlu0 %1850
    %v1852 = vsel %vm336, %v1845, %v1847
    %v1853 = vsel %vm336, %v1847, %v1849
    %v1854 = vsel %vm336, %v1849, %v1851
    %v1860 = vmul.f32 %v1814, %v1845
    %v1861 = vmul.f32 %v1815, %v1852
    %v1862 = vmul.f32 %v1816, %v1853
    %v1863 = vmul.f32 %v1817, %v1854
    %v1864 = vmul.f32 %v1818, %v1851
    %v1865 = vmul.f32 %v1819, %v1845
    %v1866 = vmul.f32 %v1820, %v1852
    %v1867 = vmul.f32 %v1821, %v1853
    %v1868 = vmul.f32 %v1822, %v1854
    %v1869 = vmul.f32 %v1823, %v1851
    %1880 = vrot.lane.b32.xlu0 %v1860, 16
    %v1881 = vpop.permute.xlu0 %1880
    %1882 = vrot.lane.b32.xlu0 %v1861, 16
    %v1883 = vpop.permute.xlu0 %1882
    %1884 = vrot.lane.b32.xlu0 %v1862, 16
    %v1885 = vpop.permute.xlu0 %1884
    %1886 = vrot.lane.b32.xlu0 %v1863, 16
    %v1887 = vpop.permute.xlu0 %1886
    %1888 = vrot.lane.b32.xlu0 %v1864, 16
    %v1889 = vpop.permute.xlu0 %1888
    %1890 = vrot.lane.b32.xlu0 %v1865, 16
    %v1891 = vpop.permute.xlu0 %1890
    %1892 = vrot.lane.b32.xlu0 %v1866, 16
    %v1893 = vpop.permute.xlu0 %1892
    %1894 = vrot.lane.b32.xlu0 %v1867, 16
    %v1895 = vpop.permute.xlu0 %1894
    %1896 = vrot.lane.b32.xlu0 %v1868, 16
    %v1897 = vpop.permute.xlu0 %1896
    %1898 = vrot.lane.b32.xlu0 %v1869, 16
    %v1899 = vpop.permute.xlu0 %1898
    %v1900 = vsel %vm385, %v1881, %v1883
    %v1901 = vsel %vm385, %v1883, %v1885
    %v1902 = vsel %vm385, %v1885, %v1887
    %v1903 = vsel %vm385, %v1887, %v1889
    %v1904 = vsel %vm385, %v1891, %v1893
    %v1905 = vsel %vm385, %v1893, %v1895
    %v1906 = vsel %vm385, %v1895, %v1897
    %v1907 = vsel %vm385, %v1897, %v1899
    %1916 = vst [vmem:[#allocation8 + $0x40] sm:$0xff] %v1900
    %1917 = vst [vmem:[#allocation8 + $0x48] sm:$0xff] %v1901
    %1918 = vst [vmem:[#allocation8 + $0x50] sm:$0xff] %v1902
    %1919 = vst [vmem:[#allocation8 + $0x58] sm:$0xff] %v1903
    %1920 = vst [vmem:[#allocation8 + $0x60] sm:$0xff] %v1904
    %1921 = vst [vmem:[#allocation8 + $0x68] sm:$0xff] %v1905
    %1922 = vst [vmem:[#allocation8 + $0x70] sm:$0xff] %v1906
    %1923 = vst [vmem:[#allocation8 + $0x78] sm:$0xff] %v1907
    %v1924 = vld [vmem:[#allocation5] sm:$0xff]
    %v1925 = vld [vmem:[#allocation5 + $0x8] sm:$0xff]
    %v1926 = vld [vmem:[#allocation5 + $0x10] sm:$0xff]
    %v1927 = vld [vmem:[#allocation5 + $0x18] sm:$0xff]
    %v1928 = vld [vmem:[#allocation5 + $0x20] sm:$0xff]
    %v1929 = vld [vmem:[#allocation5 + $0x30] sm:$0xff]
    %v1930 = vld [vmem:[#allocation5 + $0x38] sm:$0xff]
    %v1931 = vld [vmem:[#allocation5 + $0x40] sm:$0xff]
    %v1932 = vld [vmem:[#allocation5 + $0x48] sm:$0xff]
    %v1933 = vld [vmem:[#allocation5 + $0x50] sm:$0xff]
    %v1934 = vlaneseq
    %v1935 = vshrl.u32 %v1934, 7
    %v1936 = vsub.s32 2, %v1935
    %v1937 = vrot.slane %v1696, %v1936
    %v1938 = vlaneseq
    %v1939 = vshrl.u32 %v1938, 7
    %v1940 = vsub.s32 2, %v1939
    %v1941 = vrot.slane %v1697, %v1940
    %v1942 = vlaneseq
    %v1943 = vshrl.u32 %v1942, 7
    %v1944 = vsub.s32 2, %v1943
    %v1945 = vrot.slane %v1698, %v1944
    %v1946 = vlaneseq
    %v1947 = vshrl.u32 %v1946, 7
    %v1948 = vsub.s32 2, %v1947
    %v1949 = vrot.slane %v1699, %v1948
    %1954 = vrot.lane.b32.xlu0 %v1937, 113
    %v1955 = vpop.permute.xlu0 %1954
    %1956 = vrot.lane.b32.xlu0 %v1941, 113
    %v1957 = vpop.permute.xlu0 %1956
    %1958 = vrot.lane.b32.xlu0 %v1945, 113
    %v1959 = vpop.permute.xlu0 %1958
    %1960 = vrot.lane.b32.xlu0 %v1949, 113
    %v1961 = vpop.permute.xlu0 %1960
    %v1962 = vsel %vm448, %v1955, %v1957
    %v1963 = vsel %vm448, %v1957, %v1959
    %v1964 = vsel %vm448, %v1959, %v1961
    %v1970 = vmul.f32 %v1924, %v1955
    %v1971 = vmul.f32 %v1925, %v1962
    %v1972 = vmul.f32 %v1926, %v1963
    %v1973 = vmul.f32 %v1927, %v1964
    %v1974 = vmul.f32 %v1928, %v1961
    %v1975 = vmul.f32 %v1929, %v1955
    %v1976 = vmul.f32 %v1930, %v1962
    %v1977 = vmul.f32 %v1931, %v1963
    %v1978 = vmul.f32 %v1932, %v1964
    %v1979 = vmul.f32 %v1933, %v1961
    %1990 = vrot.lane.b32.xlu0 %v1970, 15
    %v1991 = vpop.permute.xlu0 %1990
    %1992 = vrot.lane.b32.xlu0 %v1971, 15
    %v1993 = vpop.permute.xlu0 %1992
    %1994 = vrot.lane.b32.xlu0 %v1972, 15
    %v1995 = vpop.permute.xlu0 %1994
    %1996 = vrot.lane.b32.xlu0 %v1973, 15
    %v1997 = vpop.permute.xlu0 %1996
    %1998 = vrot.lane.b32.xlu0 %v1974, 15
    %v1999 = vpop.permute.xlu0 %1998
    %2000 = vrot.lane.b32.xlu0 %v1975, 15
    %v2001 = vpop.permute.xlu0 %2000
    %2002 = vrot.lane.b32.xlu0 %v1976, 15
    %v2003 = vpop.permute.xlu0 %2002
    %2004 = vrot.lane.b32.xlu0 %v1977, 15
    %v2005 = vpop.permute.xlu0 %2004
    %2006 = vrot.lane.b32.xlu0 %v1978, 15
    %v2007 = vpop.permute.xlu0 %2006
    %2008 = vrot.lane.b32.xlu0 %v1979, 15
    %v2009 = vpop.permute.xlu0 %2008
    %v2010 = vsel %vm497, %v1991, %v1993
    %v2011 = vsel %vm497, %v1993, %v1995
    %v2012 = vsel %vm497, %v1995, %v1997
    %v2013 = vsel %vm497, %v1997, %v1999
    %v2014 = vsel %vm497, %v2001, %v2003
    %v2015 = vsel %vm497, %v2003, %v2005
    %v2016 = vsel %vm497, %v2005, %v2007
    %v2017 = vsel %vm497, %v2007, %v2009
    %2026 = vst [vmem:[#allocation8 + $0x80] sm:$0xff] %v2010
    %2027 = vst [vmem:[#allocation8 + $0x88] sm:$0xff] %v2011
    %2028 = vst [vmem:[#allocation8 + $0x90] sm:$0xff] %v2012
    %2029 = vst [vmem:[#allocation8 + $0x98] sm:$0xff] %v2013
    %2030 = vst [vmem:[#allocation8 + $0xa0] sm:$0xff] %v2014
    %2031 = vst [vmem:[#allocation8 + $0xa8] sm:$0xff] %v2015
    %2032 = vst [vmem:[#allocation8 + $0xb0] sm:$0xff] %v2016
    %2033 = vst [vmem:[#allocation8 + $0xb8] sm:$0xff] %v2017
    %v2034 = vld [vmem:[#allocation5] sm:$0xff]
    %v2035 = vld [vmem:[#allocation5 + $0x8] sm:$0xff]
    %v2036 = vld [vmem:[#allocation5 + $0x10] sm:$0xff]
    %v2037 = vld [vmem:[#allocation5 + $0x18] sm:$0xff]
    %v2038 = vld [vmem:[#allocation5 + $0x20] sm:$0xff]
    %v2039 = vld [vmem:[#allocation5 + $0x30] sm:$0xff]
    %v2040 = vld [vmem:[#allocation5 + $0x38] sm:$0xff]
    %v2041 = vld [vmem:[#allocation5 + $0x40] sm:$0xff]
    %v2042 = vld [vmem:[#allocation5 + $0x48] sm:$0xff]
    %v2043 = vld [vmem:[#allocation5 + $0x50] sm:$0xff]
    %v2044 = vlaneseq
    %v2045 = vshrl.u32 %v2044, 7
    %v2046 = vsub.s32 3, %v2045
    %v2047 = vrot.slane %v1696, %v2046
    %v2048 = vlaneseq
    %v2049 = vshrl.u32 %v2048, 7
    %v2050 = vsub.s32 3, %v2049
    %v2051 = vrot.slane %v1697, %v2050
    %v2052 = vlaneseq
    %v2053 = vshrl.u32 %v2052, 7
    %v2054 = vsub.s32 3, %v2053
    %v2055 = vrot.slane %v1698, %v2054
    %v2056 = vlaneseq
    %v2057 = vshrl.u32 %v2056, 7
    %v2058 = vsub.s32 3, %v2057
    %v2059 = vrot.slane %v1699, %v2058
    %2064 = vrot.lane.b32.xlu0 %v2047, 127
    %v2065 = vpop.permute.xlu0 %2064
    %2066 = vrot.lane.b32.xlu0 %v2051, 127
    %v2067 = vpop.permute.xlu0 %2066
    %2068 = vrot.lane.b32.xlu0 %v2055, 127
    %v2069 = vpop.permute.xlu0 %2068
    %2070 = vrot.lane.b32.xlu0 %v2059, 127
    %v2071 = vpop.permute.xlu0 %2070
    %v2072 = vsel %vm560, %v2065, %v2067
    %v2073 = vsel %vm560, %v2067, %v2069
    %v2074 = vsel %vm560, %v2069, %v2071
    %v2080 = vmul.f32 %v2034, %v2065
    %v2081 = vmul.f32 %v2035, %v2072
    %v2082 = vmul.f32 %v2036, %v2073
    %v2083 = vmul.f32 %v2037, %v2074
    %v2084 = vmul.f32 %v2038, %v2071
    %v2085 = vmul.f32 %v2039, %v2065
    %v2086 = vmul.f32 %v2040, %v2072
    %v2087 = vmul.f32 %v2041, %v2073
    %v2088 = vmul.f32 %v2042, %v2074
    %v2089 = vmul.f32 %v2043, %v2071
    %2100 = vrot.lane.b32.xlu0 %v2080, 1
    %v2101 = vpop.permute.xlu0 %2100
    %2102 = vrot.lane.b32.xlu0 %v2081, 1
    %v2103 = vpop.permute.xlu0 %2102
    %2104 = vrot.lane.b32.xlu0 %v2082, 1
    %v2105 = vpop.permute.xlu0 %2104
    %2106 = vrot.lane.b32.xlu0 %v2083, 1
    %v2107 = vpop.permute.xlu0 %2106
    %2108 = vrot.lane.b32.xlu0 %v2084, 1
    %v2109 = vpop.permute.xlu0 %2108
    %2110 = vrot.lane.b32.xlu0 %v2085, 1
    %v2111 = vpop.permute.xlu0 %2110
    %2112 = vrot.lane.b32.xlu0 %v2086, 1
    %v2113 = vpop.permute.xlu0 %2112
    %2114 = vrot.lane.b32.xlu0 %v2087, 1
    %v2115 = vpop.permute.xlu0 %2114
    %2116 = vrot.lane.b32.xlu0 %v2088, 1
    %v2117 = vpop.permute.xlu0 %2116
    %2118 = vrot.lane.b32.xlu0 %v2089, 1
    %v2119 = vpop.permute.xlu0 %2118
    %v2120 = vsel %vm609, %v2101, %v2103
    %v2121 = vsel %vm609, %v2103, %v2105
    %v2122 = vsel %vm609, %v2105, %v2107
    %v2123 = vsel %vm609, %v2107, %v2109
    %v2124 = vsel %vm609, %v2111, %v2113
    %v2125 = vsel %vm609, %v2113, %v2115
    %v2126 = vsel %vm609, %v2115, %v2117
    %v2127 = vsel %vm609, %v2117, %v2119
    %2136 = vst [vmem:[#allocation8 + $0xc0] sm:$0xff] %v2120
    %2137 = vst [vmem:[#allocation8 + $0xc8] sm:$0xff] %v2121
    %2138 = vst [vmem:[#allocation8 + $0xd0] sm:$0xff] %v2122
    %2139 = vst [vmem:[#allocation8 + $0xd8] sm:$0xff] %v2123
    %2140 = vst [vmem:[#allocation8 + $0xe0] sm:$0xff] %v2124
    %2141 = vst [vmem:[#allocation8 + $0xe8] sm:$0xff] %v2125
    %2142 = vst [vmem:[#allocation8 + $0xf0] sm:$0xff] %v2126
    %2143 = vst [vmem:[#allocation8 + $0xf8] sm:$0xff] %v2127
    %v2144 = vld [vmem:[#allocation5 + $0x8] sm:$0xff]
    %v2145 = vld [vmem:[#allocation5 + $0x10] sm:$0xff]
    %v2146 = vld [vmem:[#allocation5 + $0x18] sm:$0xff]
    %v2147 = vld [vmem:[#allocation5 + $0x20] sm:$0xff]
    %v2148 = vld [vmem:[#allocation5 + $0x38] sm:$0xff]
    %v2149 = vld [vmem:[#allocation5 + $0x40] sm:$0xff]
    %v2150 = vld [vmem:[#allocation5 + $0x48] sm:$0xff]
    %v2151 = vld [vmem:[#allocation5 + $0x50] sm:$0xff]
    %2152 = vst [vmem:[#allocation8 + $0x100] sm:$0xff] %v2144
    %2153 = vst [vmem:[#allocation8 + $0x108] sm:$0xff] %v2145
    %2154 = vst [vmem:[#allocation8 + $0x110] sm:$0xff] %v2146
    %2155 = vst [vmem:[#allocation8 + $0x118] sm:$0xff] %v2147
    %2156 = vst [vmem:[#allocation8 + $0x120] sm:$0xff] %v2148
    %2157 = vst [vmem:[#allocation8 + $0x128] sm:$0xff] %v2149
    %2158 = vst [vmem:[#allocation8 + $0x130] sm:$0xff] %v2150
    %2159 = vst [vmem:[#allocation8 + $0x138] sm:$0xff] %v2151
    %v2160 = vld [vmem:[#allocation5 + $0x8] sm:$0xff]
    %v2161 = vld [vmem:[#allocation5 + $0x10] sm:$0xff]
    %v2162 = vld [vmem:[#allocation5 + $0x18] sm:$0xff]
    %v2163 = vld [vmem:[#allocation5 + $0x20] sm:$0xff]
    %v2164 = vld [vmem:[#allocation5 + $0x28] sm:$0xff]
    %v2165 = vld [vmem:[#allocation5 + $0x38] sm:$0xff]
    %v2166 = vld [vmem:[#allocation5 + $0x40] sm:$0xff]
    %v2167 = vld [vmem:[#allocation5 + $0x48] sm:$0xff]
    %v2168 = vld [vmem:[#allocation5 + $0x50] sm:$0xff]
    %v2169 = vld [vmem:[#allocation5 + $0x58] sm:$0xff]
    %v2170 = vlaneseq
    %v2171 = vshrl.u32 %v2170, 7
    %v2172 = vsub.s32 5, %v2171
    %v2173 = vrot.slane %v1696, %v2172
    %v2174 = vlaneseq
    %v2175 = vshrl.u32 %v2174, 7
    %v2176 = vsub.s32 5, %v2175
    %v2177 = vrot.slane %v1697, %v2176
    %v2178 = vlaneseq
    %v2179 = vshrl.u32 %v2178, 7
    %v2180 = vsub.s32 5, %v2179
    %v2181 = vrot.slane %v1698, %v2180
    %v2182 = vlaneseq
    %v2183 = vshrl.u32 %v2182, 7
    %v2184 = vsub.s32 5, %v2183
    %v2185 = vrot.slane %v1699, %v2184
    %2190 = vrot.lane.b32.xlu0 %v2173, 1
    %v2191 = vpop.permute.xlu0 %2190
    %2192 = vrot.lane.b32.xlu0 %v2177, 1
    %v2193 = vpop.permute.xlu0 %2192
    %2194 = vrot.lane.b32.xlu0 %v2181, 1
    %v2195 = vpop.permute.xlu0 %2194
    %2196 = vrot.lane.b32.xlu0 %v2185, 1
    %v2197 = vpop.permute.xlu0 %2196
    %v2198 = vsel %vm609, %v2191, %v2193
    %v2199 = vsel %vm609, %v2193, %v2195
    %v2200 = vsel %vm609, %v2195, %v2197
    %v2206 = vmul.f32 %v2160, %v2191
    %v2207 = vmul.f32 %v2161, %v2198
    %v2208 = vmul.f32 %v2162, %v2199
    %v2209 = vmul.f32 %v2163, %v2200
    %v2210 = vmul.f32 %v2164, %v2197
    %v2211 = vmul.f32 %v2165, %v2191
    %v2212 = vmul.f32 %v2166, %v2198
    %v2213 = vmul.f32 %v2167, %v2199
    %v2214 = vmul.f32 %v2168, %v2200
    %v2215 = vmul.f32 %v2169, %v2197
    %2226 = vrot.lane.b32.xlu0 %v2206, 127
    %v2227 = vpop.permute.xlu0 %2226
    %2228 = vrot.lane.b32.xlu0 %v2207, 127
    %v2229 = vpop.permute.xlu0 %2228
    %2230 = vrot.lane.b32.xlu0 %v2208, 127
    %v2231 = vpop.permute.xlu0 %2230
    %2232 = vrot.lane.b32.xlu0 %v2209, 127
    %v2233 = vpop.permute.xlu0 %2232
    %2234 = vrot.lane.b32.xlu0 %v2210, 127
    %v2235 = vpop.permute.xlu0 %2234
    %2236 = vrot.lane.b32.xlu0 %v2211, 127
    %v2237 = vpop.permute.xlu0 %2236
    %2238 = vrot.lane.b32.xlu0 %v2212, 127
    %v2239 = vpop.permute.xlu0 %2238
    %2240 = vrot.lane.b32.xlu0 %v2213, 127
    %v2241 = vpop.permute.xlu0 %2240
    %2242 = vrot.lane.b32.xlu0 %v2214, 127
    %v2243 = vpop.permute.xlu0 %2242
    %2244 = vrot.lane.b32.xlu0 %v2215, 127
    %v2245 = vpop.permute.xlu0 %2244
    %v2246 = vsel %vm560, %v2227, %v2229
    %v2247 = vsel %vm560, %v2229, %v2231
    %v2248 = vsel %vm560, %v2231, %v2233
    %v2249 = vsel %vm560, %v2233, %v2235
    %v2250 = vsel %vm560, %v2237, %v2239
    %v2251 = vsel %vm560, %v2239, %v2241
    %v2252 = vsel %vm560, %v2241, %v2243
    %v2253 = vsel %vm560, %v2243, %v2245
    %2262 = vst [vmem:[#allocation8 + $0x140] sm:$0xff] %v2246
    %2263 = vst [vmem:[#allocation8 + $0x148] sm:$0xff] %v2247
    %2264 = vst [vmem:[#allocation8 + $0x150] sm:$0xff] %v2248
    %2265 = vst [vmem:[#allocation8 + $0x158] sm:$0xff] %v2249
    %2266 = vst [vmem:[#allocation8 + $0x160] sm:$0xff] %v2250
    %2267 = vst [vmem:[#allocation8 + $0x168] sm:$0xff] %v2251
    %2268 = vst [vmem:[#allocation8 + $0x170] sm:$0xff] %v2252
    %2269 = vst [vmem:[#allocation8 + $0x178] sm:$0xff] %v2253
    %v2270 = vld [vmem:[#allocation5 + $0x8] sm:$0xff]
    %v2271 = vld [vmem:[#allocation5 + $0x10] sm:$0xff]
    %v2272 = vld [vmem:[#allocation5 + $0x18] sm:$0xff]
    %v2273 = vld [vmem:[#allocation5 + $0x20] sm:$0xff]
    %v2274 = vld [vmem:[#allocation5 + $0x28] sm:$0xff]
    %v2275 = vld [vmem:[#allocation5 + $0x38] sm:$0xff]
    %v2276 = vld [vmem:[#allocation5 + $0x40] sm:$0xff]
    %v2277 = vld [vmem:[#allocation5 + $0x48] sm:$0xff]
    %v2278 = vld [vmem:[#allocation5 + $0x50] sm:$0xff]
    %v2279 = vld [vmem:[#allocation5 + $0x58] sm:$0xff]
    %v2280 = vlaneseq
    %v2281 = vshrl.u32 %v2280, 7
    %v2282 = vsub.s32 6, %v2281
    %v2283 = vrot.slane %v1696, %v2282
    %v2284 = vlaneseq
    %v2285 = vshrl.u32 %v2284, 7
    %v2286 = vsub.s32 6, %v2285
    %v2287 = vrot.slane %v1697, %v2286
    %v2288 = vlaneseq
    %v2289 = vshrl.u32 %v2288, 7
    %v2290 = vsub.s32 6, %v2289
    %v2291 = vrot.slane %v1698, %v2290
    %v2292 = vlaneseq
    %v2293 = vshrl.u32 %v2292, 7
    %v2294 = vsub.s32 6, %v2293
    %v2295 = vrot.slane %v1699, %v2294
    %2300 = vrot.lane.b32.xlu0 %v2283, 15
    %v2301 = vpop.permute.xlu0 %2300
    %2302 = vrot.lane.b32.xlu0 %v2287, 15
    %v2303 = vpop.permute.xlu0 %2302
    %2304 = vrot.lane.b32.xlu0 %v2291, 15
    %v2305 = vpop.permute.xlu0 %2304
    %2306 = vrot.lane.b32.xlu0 %v2295, 15
    %v2307 = vpop.permute.xlu0 %2306
    %v2308 = vsel %vm497, %v2301, %v2303
    %v2309 = vsel %vm497, %v2303, %v2305
    %v2310 = vsel %vm497, %v2305, %v2307
    %v2316 = vmul.f32 %v2270, %v2301
    %v2317 = vmul.f32 %v2271, %v2308
    %v2318 = vmul.f32 %v2272, %v2309
    %v2319 = vmul.f32 %v2273, %v2310
    %v2320 = vmul.f32 %v2274, %v2307
    %v2321 = vmul.f32 %v2275, %v2301
    %v2322 = vmul.f32 %v2276, %v2308
    %v2323 = vmul.f32 %v2277, %v2309
    %v2324 = vmul.f32 %v2278, %v2310
    %v2325 = vmul.f32 %v2279, %v2307
    %2336 = vrot.lane.b32.xlu0 %v2316, 113
    %v2337 = vpop.permute.xlu0 %2336
    %2338 = vrot.lane.b32.xlu0 %v2317, 113
    %v2339 = vpop.permute.xlu0 %2338
    %2340 = vrot.lane.b32.xlu0 %v2318, 113
    %v2341 = vpop.permute.xlu0 %2340
    %2342 = vrot.lane.b32.xlu0 %v2319, 113
    %v2343 = vpop.permute.xlu0 %2342
    %2344 = vrot.lane.b32.xlu0 %v2320, 113
    %v2345 = vpop.permute.xlu0 %2344
    %2346 = vrot.lane.b32.xlu0 %v2321, 113
    %v2347 = vpop.permute.xlu0 %2346
    %2348 = vrot.lane.b32.xlu0 %v2322, 113
    %v2349 = vpop.permute.xlu0 %2348
    %2350 = vrot.lane.b32.xlu0 %v2323, 113
    %v2351 = vpop.permute.xlu0 %2350
    %2352 = vrot.lane.b32.xlu0 %v2324, 113
    %v2353 = vpop.permute.xlu0 %2352
    %2354 = vrot.lane.b32.xlu0 %v2325, 113
    %v2355 = vpop.permute.xlu0 %2354
    %v2356 = vsel %vm448, %v2337, %v2339
    %v2357 = vsel %vm448, %v2339, %v2341
    %v2358 = vsel %vm448, %v2341, %v2343
    %v2359 = vsel %vm448, %v2343, %v2345
    %v2360 = vsel %vm448, %v2347, %v2349
    %v2361 = vsel %vm448, %v2349, %v2351
    %v2362 = vsel %vm448, %v2351, %v2353
    %v2363 = vsel %vm448, %v2353, %v2355
    %2372 = vst [vmem:[#allocation8 + $0x180] sm:$0xff] %v2356
    %2373 = vst [vmem:[#allocation8 + $0x188] sm:$0xff] %v2357
    %2374 = vst [vmem:[#allocation8 + $0x190] sm:$0xff] %v2358
    %2375 = vst [vmem:[#allocation8 + $0x198] sm:$0xff] %v2359
    %2376 = vst [vmem:[#allocation8 + $0x1a0] sm:$0xff] %v2360
    %2377 = vst [vmem:[#allocation8 + $0x1a8] sm:$0xff] %v2361
    %2378 = vst [vmem:[#allocation8 + $0x1b0] sm:$0xff] %v2362
    %2379 = vst [vmem:[#allocation8 + $0x1b8] sm:$0xff] %v2363
    %v2380 = vld [vmem:[#allocation5 + $0x8] sm:$0xff]
    %v2381 = vld [vmem:[#allocation5 + $0x10] sm:$0xff]
    %v2382 = vld [vmem:[#allocation5 + $0x18] sm:$0xff]
    %v2383 = vld [vmem:[#allocation5 + $0x20] sm:$0xff]
    %v2384 = vld [vmem:[#allocation5 + $0x28] sm:$0xff]
    %v2385 = vld [vmem:[#allocation5 + $0x38] sm:$0xff]
    %v2386 = vld [vmem:[#allocation5 + $0x40] sm:$0xff]
    %v2387 = vld [vmem:[#allocation5 + $0x48] sm:$0xff]
    %v2388 = vld [vmem:[#allocation5 + $0x50] sm:$0xff]
    %v2389 = vld [vmem:[#allocation5 + $0x58] sm:$0xff]
    %v2390 = vlaneseq
    %v2391 = vshrl.u32 %v2390, 7
    %v2392 = vsub.s32 7, %v2391
    %v2393 = vrot.slane %v1696, %v2392
    %v2394 = vlaneseq
    %v2395 = vshrl.u32 %v2394, 7
    %v2396 = vsub.s32 7, %v2395
    %v2397 = vrot.slane %v1697, %v2396
    %v2398 = vlaneseq
    %v2399 = vshrl.u32 %v2398, 7
    %v2400 = vsub.s32 7, %v2399
    %v2401 = vrot.slane %v1698, %v2400
    %v2402 = vlaneseq
    %v2403 = vshrl.u32 %v2402, 7
    %v2404 = vsub.s32 7, %v2403
    %v2405 = vrot.slane %v1699, %v2404
    %2410 = vrot.lane.b32.xlu0 %v2393, 16
    %v2411 = vpop.permute.xlu0 %2410
    %2412 = vrot.lane.b32.xlu0 %v2397, 16
    %v2413 = vpop.permute.xlu0 %2412
    %2414 = vrot.lane.b32.xlu0 %v2401, 16
    %v2415 = vpop.permute.xlu0 %2414
    %2416 = vrot.lane.b32.xlu0 %v2405, 16
    %v2417 = vpop.permute.xlu0 %2416
    %v2418 = vsel %vm385, %v2411, %v2413
    %v2419 = vsel %vm385, %v2413, %v2415
    %v2420 = vsel %vm385, %v2415, %v2417
    %v2426 = vmul.f32 %v2380, %v2411
    %v2427 = vmul.f32 %v2381, %v2418
    %v2428 = vmul.f32 %v2382, %v2419
    %v2429 = vmul.f32 %v2383, %v2420
    %v2430 = vmul.f32 %v2384, %v2417
    %v2431 = vmul.f32 %v2385, %v2411
    %v2432 = vmul.f32 %v2386, %v2418
    %v2433 = vmul.f32 %v2387, %v2419
    %v2434 = vmul.f32 %v2388, %v2420
    %v2435 = vmul.f32 %v2389, %v2417
    %2446 = vrot.lane.b32.xlu0 %v2426, 112
    %v2447 = vpop.permute.xlu0 %2446
    %2448 = vrot.lane.b32.xlu0 %v2427, 112
    %v2449 = vpop.permute.xlu0 %2448
    %2450 = vrot.lane.b32.xlu0 %v2428, 112
    %v2451 = vpop.permute.xlu0 %2450
    %2452 = vrot.lane.b32.xlu0 %v2429, 112
    %v2453 = vpop.permute.xlu0 %2452
    %2454 = vrot.lane.b32.xlu0 %v2430, 112
    %v2455 = vpop.permute.xlu0 %2454
    %2456 = vrot.lane.b32.xlu0 %v2431, 112
    %v2457 = vpop.permute.xlu0 %2456
    %2458 = vrot.lane.b32.xlu0 %v2432, 112
    %v2459 = vpop.permute.xlu0 %2458
    %2460 = vrot.lane.b32.xlu0 %v2433, 112
    %v2461 = vpop.permute.xlu0 %2460
    %2462 = vrot.lane.b32.xlu0 %v2434, 112
    %v2463 = vpop.permute.xlu0 %2462
    %2464 = vrot.lane.b32.xlu0 %v2435, 112
    %v2465 = vpop.permute.xlu0 %2464
    %v2466 = vsel %vm336, %v2447, %v2449
    %v2467 = vsel %vm336, %v2449, %v2451
    %v2468 = vsel %vm336, %v2451, %v2453
    %v2469 = vsel %vm336, %v2453, %v2455
    %v2470 = vsel %vm336, %v2457, %v2459
    %v2471 = vsel %vm336, %v2459, %v2461
    %v2472 = vsel %vm336, %v2461, %v2463
    %v2473 = vsel %vm336, %v2463, %v2465
    %2482 = vst [vmem:[#allocation8 + $0x1c0] sm:$0xff] %v2466
    %2483 = vst [vmem:[#allocation8 + $0x1c8] sm:$0xff] %v2467
    %2484 = vst [vmem:[#allocation8 + $0x1d0] sm:$0xff] %v2468
    %2485 = vst [vmem:[#allocation8 + $0x1d8] sm:$0xff] %v2469
    %2486 = vst [vmem:[#allocation8 + $0x1e0] sm:$0xff] %v2470
    %2487 = vst [vmem:[#allocation8 + $0x1e8] sm:$0xff] %v2471
    %2488 = vst [vmem:[#allocation8 + $0x1f0] sm:$0xff] %v2472
    %2489 = vst [vmem:[#allocation8 + $0x1f8] sm:$0xff] %v2473
    %v2490 = vld [vmem:[#allocation5 + $0x8] sm:$0xff]
    %v2491 = vld [vmem:[#allocation5 + $0x10] sm:$0xff]
    %v2492 = vld [vmem:[#allocation5 + $0x18] sm:$0xff]
    %v2493 = vld [vmem:[#allocation5 + $0x20] sm:$0xff]
    %v2494 = vld [vmem:[#allocation5 + $0x28] sm:$0xff]
    %v2495 = vld [vmem:[#allocation5 + $0x38] sm:$0xff]
    %v2496 = vld [vmem:[#allocation5 + $0x40] sm:$0xff]
    %v2497 = vld [vmem:[#allocation5 + $0x48] sm:$0xff]
    %v2498 = vld [vmem:[#allocation5 + $0x50] sm:$0xff]
    %v2499 = vld [vmem:[#allocation5 + $0x58] sm:$0xff]
    %v2500 = vlaneseq
    %v2501 = vshrl.u32 %v2500, 7
    %v2502 = vsub.s32 0, %v2501
    %v2503 = vrot.slane %v1700, %v2502
    %v2504 = vlaneseq
    %v2505 = vshrl.u32 %v2504, 7
    %v2506 = vsub.s32 0, %v2505
    %v2507 = vrot.slane %v1701, %v2506
    %v2508 = vlaneseq
    %v2509 = vshrl.u32 %v2508, 7
    %v2510 = vsub.s32 0, %v2509
    %v2511 = vrot.slane %v1702, %v2510
    %v2512 = vlaneseq
    %v2513 = vshrl.u32 %v2512, 7
    %v2514 = vsub.s32 0, %v2513
    %v2515 = vrot.slane %v1703, %v2514
    %2520 = vrot.lane.b32.xlu0 %v2503, 17
    %v2521 = vpop.permute.xlu0 %2520
    %2522 = vrot.lane.b32.xlu0 %v2507, 17
    %v2523 = vpop.permute.xlu0 %2522
    %2524 = vrot.lane.b32.xlu0 %v2511, 17
    %v2525 = vpop.permute.xlu0 %2524
    %2526 = vrot.lane.b32.xlu0 %v2515, 17
    %v2527 = vpop.permute.xlu0 %2526
    %v2528 = vsel %vm273, %v2521, %v2523
    %v2529 = vsel %vm273, %v2523, %v2525
    %v2530 = vsel %vm273, %v2525, %v2527
    %v2536 = vmul.f32 %v2490, %v2521
    %v2537 = vmul.f32 %v2491, %v2528
    %v2538 = vmul.f32 %v2492, %v2529
    %v2539 = vmul.f32 %v2493, %v2530
    %v2540 = vmul.f32 %v2494, %v2527
    %v2541 = vmul.f32 %v2495, %v2521
    %v2542 = vmul.f32 %v2496, %v2528
    %v2543 = vmul.f32 %v2497, %v2529
    %v2544 = vmul.f32 %v2498, %v2530
    %v2545 = vmul.f32 %v2499, %v2527
    %2556 = vrot.lane.b32.xlu0 %v2536, 111
    %v2557 = vpop.permute.xlu0 %2556
    %2558 = vrot.lane.b32.xlu0 %v2537, 111
    %v2559 = vpop.permute.xlu0 %2558
    %2560 = vrot.lane.b32.xlu0 %v2538, 111
    %v2561 = vpop.permute.xlu0 %2560
    %2562 = vrot.lane.b32.xlu0 %v2539, 111
    %v2563 = vpop.permute.xlu0 %2562
    %2564 = vrot.lane.b32.xlu0 %v2540, 111
    %v2565 = vpop.permute.xlu0 %2564
    %2566 = vrot.lane.b32.xlu0 %v2541, 111
    %v2567 = vpop.permute.xlu0 %2566
    %2568 = vrot.lane.b32.xlu0 %v2542, 111
    %v2569 = vpop.permute.xlu0 %2568
    %2570 = vrot.lane.b32.xlu0 %v2543, 111
    %v2571 = vpop.permute.xlu0 %2570
    %2572 = vrot.lane.b32.xlu0 %v2544, 111
    %v2573 = vpop.permute.xlu0 %2572
    %2574 = vrot.lane.b32.xlu0 %v2545, 111
    %v2575 = vpop.permute.xlu0 %2574
    %v2576 = vsel %vm224, %v2557, %v2559
    %v2577 = vsel %vm224, %v2559, %v2561
    %v2578 = vsel %vm224, %v2561, %v2563
    %v2579 = vsel %vm224, %v2563, %v2565
    %v2580 = vsel %vm224, %v2567, %v2569
    %v2581 = vsel %vm224, %v2569, %v2571
    %v2582 = vsel %vm224, %v2571, %v2573
    %v2583 = vsel %vm224, %v2573, %v2575
    %2592 = vst [vmem:[#allocation8 + $0x200] sm:$0xff] %v2576
    %2593 = vst [vmem:[#allocation8 + $0x208] sm:$0xff] %v2577
    %2594 = vst [vmem:[#allocation8 + $0x210] sm:$0xff] %v2578
    %2595 = vst [vmem:[#allocation8 + $0x218] sm:$0xff] %v2579
    %2596 = vst [vmem:[#allocation8 + $0x220] sm:$0xff] %v2580
    %2597 = vst [vmem:[#allocation8 + $0x228] sm:$0xff] %v2581
    %2598 = vst [vmem:[#allocation8 + $0x230] sm:$0xff] %v2582
    %2599 = vst [vmem:[#allocation8 + $0x238] sm:$0xff] %v2583
    %s2600 = scalar_lea.vmem [#allocation9], 32
    %v2601 = vld [vmem:[%s2600] sm:$0xff]
    %v2602 = vld [vmem:[%s2600 + $0x8] sm:$0xff]
    %v2603 = vld [vmem:[%s2600 + $0x10] sm:$0xff]
    %v2604 = vld [vmem:[%s2600 + $0x18] sm:$0xff]
    %v2605 = vld [vmem:[#allocation8] sm:$0xff]
    %v2606 = vld [vmem:[#allocation8 + $0x8] sm:$0xff]
    %v2607 = vld [vmem:[#allocation8 + $0x10] sm:$0xff]
    %v2608 = vld [vmem:[#allocation8 + $0x18] sm:$0xff]
    %v2609 = vld [vmem:[#allocation8 + $0x20] sm:$0xff]
    %v2610 = vld [vmem:[#allocation8 + $0x28] sm:$0xff]
    %v2611 = vld [vmem:[#allocation8 + $0x30] sm:$0xff]
    %v2612 = vld [vmem:[#allocation8 + $0x38] sm:$0xff]
    %v2613 = vld [vmem:[#allocation8 + $0x40] sm:$0xff]
    %v2614 = vld [vmem:[#allocation8 + $0x48] sm:$0xff]
    %v2615 = vld [vmem:[#allocation8 + $0x50] sm:$0xff]
    %v2616 = vld [vmem:[#allocation8 + $0x58] sm:$0xff]
    %v2617 = vld [vmem:[#allocation8 + $0x60] sm:$0xff]
    %v2618 = vld [vmem:[#allocation8 + $0x68] sm:$0xff]
    %v2619 = vld [vmem:[#allocation8 + $0x70] sm:$0xff]
    %v2620 = vld [vmem:[#allocation8 + $0x78] sm:$0xff]
    %v2621 = vld [vmem:[#allocation8 + $0x80] sm:$0xff]
    %v2622 = vld [vmem:[#allocation8 + $0x88] sm:$0xff]
    %v2623 = vld [vmem:[#allocation8 + $0x90] sm:$0xff]
    %v2624 = vld [vmem:[#allocation8 + $0x98] sm:$0xff]
    %v2625 = vld [vmem:[#allocation8 + $0xa0] sm:$0xff]
    %v2626 = vld [vmem:[#allocation8 + $0xa8] sm:$0xff]
    %v2627 = vld [vmem:[#allocation8 + $0xb0] sm:$0xff]
    %v2628 = vld [vmem:[#allocation8 + $0xb8] sm:$0xff]
    %v2629 = vld [vmem:[#allocation8 + $0xc0] sm:$0xff]
    %v2630 = vld [vmem:[#allocation8 + $0xc8] sm:$0xff]
    %v2631 = vld [vmem:[#allocation8 + $0xd0] sm:$0xff]
    %v2632 = vld [vmem:[#allocation8 + $0xd8] sm:$0xff]
    %v2633 = vld [vmem:[#allocation8 + $0xe0] sm:$0xff]
    %v2634 = vld [vmem:[#allocation8 + $0xe8] sm:$0xff]
    %v2635 = vld [vmem:[#allocation8 + $0xf0] sm:$0xff]
    %v2636 = vld [vmem:[#allocation8 + $0xf8] sm:$0xff]
    %v2637 = vld [vmem:[#allocation8 + $0x100] sm:$0xff]
    %v2638 = vld [vmem:[#allocation8 + $0x108] sm:$0xff]
    %v2639 = vld [vmem:[#allocation8 + $0x110] sm:$0xff]
    %v2640 = vld [vmem:[#allocation8 + $0x118] sm:$0xff]
    %v2641 = vld [vmem:[#allocation8 + $0x120] sm:$0xff]
    %v2642 = vld [vmem:[#allocation8 + $0x128] sm:$0xff]
    %v2643 = vld [vmem:[#allocation8 + $0x130] sm:$0xff]
    %v2644 = vld [vmem:[#allocation8 + $0x138] sm:$0xff]
    %v2645 = vld [vmem:[#allocation8 + $0x140] sm:$0xff]
    %v2646 = vld [vmem:[#allocation8 + $0x148] sm:$0xff]
    %v2647 = vld [vmem:[#allocation8 + $0x150] sm:$0xff]
    %v2648 = vld [vmem:[#allocation8 + $0x158] sm:$0xff]
    %v2649 = vld [vmem:[#allocation8 + $0x160] sm:$0xff]
    %v2650 = vld [vmem:[#allocation8 + $0x168] sm:$0xff]
    %v2651 = vld [vmem:[#allocation8 + $0x170] sm:$0xff]
    %v2652 = vld [vmem:[#allocation8 + $0x178] sm:$0xff]
    %v2653 = vld [vmem:[#allocation8 + $0x180] sm:$0xff]
    %v2654 = vld [vmem:[#allocation8 + $0x188] sm:$0xff]
    %v2655 = vld [vmem:[#allocation8 + $0x190] sm:$0xff]
    %v2656 = vld [vmem:[#allocation8 + $0x198] sm:$0xff]
    %v2657 = vld [vmem:[#allocation8 + $0x1a0] sm:$0xff]
    %v2658 = vld [vmem:[#allocation8 + $0x1a8] sm:$0xff]
    %v2659 = vld [vmem:[#allocation8 + $0x1b0] sm:$0xff]
    %v2660 = vld [vmem:[#allocation8 + $0x1b8] sm:$0xff]
    %v2661 = vld [vmem:[#allocation8 + $0x1c0] sm:$0xff]
    %v2662 = vld [vmem:[#allocation8 + $0x1c8] sm:$0xff]
    %v2663 = vld [vmem:[#allocation8 + $0x1d0] sm:$0xff]
    %v2664 = vld [vmem:[#allocation8 + $0x1d8] sm:$0xff]
    %v2665 = vld [vmem:[#allocation8 + $0x1e0] sm:$0xff]
    %v2666 = vld [vmem:[#allocation8 + $0x1e8] sm:$0xff]
    %v2667 = vld [vmem:[#allocation8 + $0x1f0] sm:$0xff]
    %v2668 = vld [vmem:[#allocation8 + $0x1f8] sm:$0xff]
    %v2669 = vld [vmem:[#allocation8 + $0x200] sm:$0xff]
    %v2670 = vld [vmem:[#allocation8 + $0x208] sm:$0xff]
    %v2671 = vld [vmem:[#allocation8 + $0x210] sm:$0xff]
    %v2672 = vld [vmem:[#allocation8 + $0x218] sm:$0xff]
    %v2673 = vld [vmem:[#allocation8 + $0x220] sm:$0xff]
    %v2674 = vld [vmem:[#allocation8 + $0x228] sm:$0xff]
    %v2675 = vld [vmem:[#allocation8 + $0x230] sm:$0xff]
    %v2676 = vld [vmem:[#allocation8 + $0x238] sm:$0xff]
    %v2678 = vsel %vm385, %v2602, 0
    %v2681 = vsel %vm385, %v2604, 0
    %2683 = vmatprep.subr.mxu0 %v2606
    %2684 = vmatpush1.msra.mxu0 %v2605
    %2685 = vmatprep.subr.mxu0 %v2610
    %2686 = vmatpush1.msra.mxu0 %v2609
    %2687 = vmatprep.subr.mxu0 %v2614
    %2688 = vmatpush1.msra.mxu0 %v2613
    %2689 = vmatprep.subr.mxu0 %v2618
    %2690 = vmatpush1.msra.mxu0 %v2617
    %2691 = vmatprep.subr.mxu0 %v2622
    %2692 = vmatpush1.msra.mxu0 %v2621
    %2693 = vmatprep.subr.mxu0 %v2626
    %2694 = vmatpush1.msra.mxu0 %v2625
    %2695 = vmatprep.subr.mxu0 %v2630
    %2696 = vmatpush1.msra.mxu0 %v2629
    %2697 = vmatprep.subr.mxu0 %v2634
    %2698 = vmatpush1.msra.mxu0 %v2633
    %2699 = vmatprep.subr.mxu0 %v2638
    %2700 = vmatpush1.msra.mxu0 %v2637
    %2701 = vmatprep.subr.mxu0 %v2642
    %2702 = vmatpush1.msra.mxu0 %v2641
    %2703 = vmatprep.subr.mxu0 %v2646
    %2704 = vmatpush1.msra.mxu0 %v2645
    %2705 = vmatprep.subr.mxu0 %v2650
    %2706 = vmatpush1.msra.mxu0 %v2649
    %2707 = vmatprep.subr.mxu0 %v2654
    %2708 = vmatpush1.msra.mxu0 %v2653
    %2709 = vmatprep.subr.mxu0 %v2658
    %2710 = vmatpush1.msra.mxu0 %v2657
    %2711 = vmatprep.subr.mxu0 %v2662
    %2712 = vmatpush1.msra.mxu0 %v2661
    %2713 = vmatprep.subr.mxu0 %v2666
    %2714 = vmatpush1.msra.mxu0 %v2665
    %2715 = vmatprep.subr.mxu0 %v2670
    %2716 = vmatpush1.msra.mxu0 %v2669
    %2717 = vmatprep.subr.mxu0 %v2674
    %2718 = vmatpush1.msra.mxu0 %v2673
    %2719 = vmatprep.subr.mxu0 0.0
    %2720 = vmatpush1.msra.mxu0 0.0
    %2721 = vmatprep.subr.mxu0 0.0
    %2722 = vmatpush1.msra.mxu0 0.0
    %2723 = vmatprep.subr.mxu0 0.0
    %2724 = vmatpush1.msra.mxu0 0.0
    %2725 = vmatprep.subr.mxu0 0.0
    %2726 = vmatpush1.msra.mxu0 0.0
    %2727 = vmatprep.subr.mxu0 0.0
    %2728 = vmatpush1.msra.mxu0 0.0
    %2729 = vmatprep.subr.mxu0 0.0
    %2730 = vmatpush1.msra.mxu0 0.0
    %2731 = vmatprep.subr.mxu0 0.0
    %2732 = vmatpush1.msra.mxu0 0.0
    %2733 = vmatprep.subr.mxu0 0.0
    %2734 = vmatpush1.msra.mxu0 0.0
    %2735 = vmatprep.subr.mxu0 0.0
    %2736 = vmatpush1.msra.mxu0 0.0
    %2737 = vmatprep.subr.mxu0 0.0
    %2738 = vmatpush1.msra.mxu0 0.0
    %2739 = vmatprep.subr.mxu0 0.0
    %2740 = vmatpush1.msra.mxu0 0.0
    %2741 = vmatprep.subr.mxu0 0.0
    %2742 = vmatpush1.msra.mxu0 0.0
    %2743 = vmatprep.subr.mxu0 0.0
    %2744 = vmatpush1.msra.mxu0 0.0
    %2745 = vmatprep.subr.mxu0 0.0
    %2746 = vmatpush1.msra.mxu0 0.0
    %2747 = vmatprep.mubr.f32.mxu0 %v2678
    %2748 = vmatmul.mubr.f32.gmra.mrb[0].mxu0 %v2601
    %v2749 = vpop.f32.mrb[0].mxu0
    %v2750 = vadd.f32 0.0, %v2749
    %v2751 = vpop.f32.mrb[0].mxu0
    %v2752 = vadd.f32 0.0, %v2751
    %2753 = vmatprep.mubr.f32.mxu0 %v2681
    %2754 = vmatmul.mubr.f32.gmra.mrb[0].mxu0 %v2603
    %v2755 = vpop.f32.mrb[0].mxu0
    %v2756 = vadd.f32 0.0, %v2755
    %v2757 = vpop.f32.mrb[0].mxu0
    %v2758 = vadd.f32 0.0, %v2757
    %2759 = vdwg.mxu0
    %2760 = vmatprep.subr.mxu0 %v2608
    %2761 = vmatpush1.msra.mxu0 %v2607
    %2762 = vmatprep.subr.mxu0 %v2612
    %2763 = vmatpush1.msra.mxu0 %v2611
    %2764 = vmatprep.subr.mxu0 %v2616
    %2765 = vmatpush1.msra.mxu0 %v2615
    %2766 = vmatprep.subr.mxu0 %v2620
    %2767 = vmatpush1.msra.mxu0 %v2619
    %2768 = vmatprep.subr.mxu0 %v2624
    %2769 = vmatpush1.msra.mxu0 %v2623
    %2770 = vmatprep.subr.mxu0 %v2628
    %2771 = vmatpush1.msra.mxu0 %v2627
    %2772 = vmatprep.subr.mxu0 %v2632
    %2773 = vmatpush1.msra.mxu0 %v2631
    %2774 = vmatprep.subr.mxu0 %v2636
    %2775 = vmatpush1.msra.mxu0 %v2635
    %2776 = vmatprep.subr.mxu0 %v2640
    %2777 = vmatpush1.msra.mxu0 %v2639
    %2778 = vmatprep.subr.mxu0 %v2644
    %2779 = vmatpush1.msra.mxu0 %v2643
    %2780 = vmatprep.subr.mxu0 %v2648
    %2781 = vmatpush1.msra.mxu0 %v2647
    %2782 = vmatprep.subr.mxu0 %v2652
    %2783 = vmatpush1.msra.mxu0 %v2651
    %2784 = vmatprep.subr.mxu0 %v2656
    %2785 = vmatpush1.msra.mxu0 %v2655
    %2786 = vmatprep.subr.mxu0 %v2660
    %2787 = vmatpush1.msra.mxu0 %v2659
    %2788 = vmatprep.subr.mxu0 %v2664
    %2789 = vmatpush1.msra.mxu0 %v2663
    %2790 = vmatprep.subr.mxu0 %v2668
    %2791 = vmatpush1.msra.mxu0 %v2667
    %2792 = vmatprep.subr.mxu0 %v2672
    %2793 = vmatpush1.msra.mxu0 %v2671
    %2794 = vmatprep.subr.mxu0 %v2676
    %2795 = vmatpush1.msra.mxu0 %v2675
    %2796 = vmatprep.subr.mxu0 0.0
    %2797 = vmatpush1.msra.mxu0 0.0
    %2798 = vmatprep.subr.mxu0 0.0
    %2799 = vmatpush1.msra.mxu0 0.0
    %2800 = vmatprep.subr.mxu0 0.0
    %2801 = vmatpush1.msra.mxu0 0.0
    %2802 = vmatprep.subr.mxu0 0.0
    %2803 = vmatpush1.msra.mxu0 0.0
    %2804 = vmatprep.subr.mxu0 0.0
    %2805 = vmatpush1.msra.mxu0 0.0
    %2806 = vmatprep.subr.mxu0 0.0
    %2807 = vmatpush1.msra.mxu0 0.0
    %2808 = vmatprep.subr.mxu0 0.0
    %2809 = vmatpush1.msra.mxu0 0.0
    %2810 = vmatprep.subr.mxu0 0.0
    %2811 = vmatpush1.msra.mxu0 0.0
    %2812 = vmatprep.subr.mxu0 0.0
    %2813 = vmatpush1.msra.mxu0 0.0
    %2814 = vmatprep.subr.mxu0 0.0
    %2815 = vmatpush1.msra.mxu0 0.0
    %2816 = vmatprep.subr.mxu0 0.0
    %2817 = vmatpush1.msra.mxu0 0.0
    %2818 = vmatprep.subr.mxu0 0.0
    %2819 = vmatpush1.msra.mxu0 0.0
    %2820 = vmatprep.subr.mxu0 0.0
    %2821 = vmatpush1.msra.mxu0 0.0
    %2822 = vmatprep.subr.mxu0 0.0
    %2823 = vmatpush1.msra.mxu0 0.0
    %2824 = vmatprep.mubr.f32.mxu0 %v2678
    %2825 = vmatmul.mubr.f32.gmra.mrb[0].mxu0 %v2601
    %v2826 = vpop.f32.mrb[0].mxu0
    %v2827 = vadd.f32 0.0, %v2826
    %v2828 = vpop.f32.mrb[0].mxu0
    %v2829 = vadd.f32 0.0, %v2828
    %2830 = vmatprep.mubr.f32.mxu0 %v2681
    %2831 = vmatmul.mubr.f32.gmra.mrb[0].mxu0 %v2603
    %v2832 = vpop.f32.mrb[0].mxu0
    %v2833 = vadd.f32 0.0, %v2832
    %v2834 = vpop.f32.mrb[0].mxu0
    %v2835 = vadd.f32 0.0, %v2834
    %2836 = vdwg.mxu0
    %v2837 = vadd.f32 %v1334, %v2750
    %v2838 = vadd.f32 %v1335, %v2752
    %v2839 = vadd.f32 %v1336, %v2827
    %v2840 = vadd.f32 %v1337, %v2829
    %v2841 = vadd.f32 %v1338, %v2756
    %v2842 = vadd.f32 %v1339, %v2758
    %v2843 = vadd.f32 %v1340, %v2833
    %v2844 = vadd.f32 %v1341, %v2835
    %2845 = vst [vmem:[#allocation2] sm:$0xff] %v2837
    %2846 = vst [vmem:[#allocation2 + $0x8] sm:$0xff] %v2838
    %2847 = vst [vmem:[#allocation2 + $0x10] sm:$0xff] %v2839
    %2848 = vst [vmem:[#allocation2 + $0x18] sm:$0xff] %v2840
    %2849 = vst [vmem:[#allocation2 + $0x20] sm:$0xff] %v2841
    %2850 = vst [vmem:[#allocation2 + $0x28] sm:$0xff] %v2842
    %2851 = vst [vmem:[#allocation2 + $0x30] sm:$0xff] %v2843
    %2852 = vst [vmem:[#allocation2 + $0x38] sm:$0xff] %v2844
    %v2853 = vld [vmem:[#allocation2] sm:$0xff]
    %v2854 = vld [vmem:[#allocation2 + $0x8] sm:$0xff]
    %v2855 = vld [vmem:[#allocation2 + $0x10] sm:$0xff]
    %v2856 = vld [vmem:[#allocation2 + $0x18] sm:$0xff]
    %v2857 = vld [vmem:[#allocation2 + $0x20] sm:$0xff]
    %v2858 = vld [vmem:[#allocation2 + $0x28] sm:$0xff]
    %v2859 = vld [vmem:[#allocation2 + $0x30] sm:$0xff]
    %v2860 = vld [vmem:[#allocation2 + $0x38] sm:$0xff]
    %v2861 = vld [vmem:[#allocation11] sm:$0xff]
    %v2862 = vld [vmem:[#allocation11 + $0x8] sm:$0xff]
    %v2863 = vld [vmem:[#allocation13] sm:$0xff]
    %v2864 = vld [vmem:[#allocation13 + $0x8] sm:$0xff]
    %v2865 = vadd.f32 %v2853, %v2854
    %v2866 = vadd.f32 %v2865, %v2855
    %v2867 = vadd.f32 %v2866, %v2856
    %2868 = vadd.xlane.f32.xlu0 %v2867
    %v2869 = vpop.xlane.xlu0 %2868
    %v2870 = vadd.f32 %v2857, %v2858
    %v2871 = vadd.f32 %v2870, %v2859
    %v2872 = vadd.f32 %v2871, %v2860
    %2873 = vadd.xlane.f32.xlu0 %v2872
    %v2874 = vpop.xlane.xlu0 %2873
    %v2875 = vmul.f32 %v2853, %v2853
    %v2876 = vmul.f32 %v2854, %v2854
    %v2877 = vmul.f32 %v2855, %v2855
    %v2878 = vmul.f32 %v2856, %v2856
    %v2879 = vmul.f32 %v2857, %v2857
    %v2880 = vmul.f32 %v2858, %v2858
    %v2881 = vmul.f32 %v2859, %v2859
    %v2882 = vmul.f32 %v2860, %v2860
    %v2883 = vadd.f32 %v2875, %v2876
    %v2884 = vadd.f32 %v2883, %v2877
    %v2885 = vadd.f32 %v2884, %v2878
    %2886 = vadd.xlane.f32.xlu0 %v2885
    %v2887 = vpop.xlane.xlu0 %2886
    %v2888 = vadd.f32 %v2879, %v2880
    %v2889 = vadd.f32 %v2888, %v2881
    %v2890 = vadd.f32 %v2889, %v2882
    %2891 = vadd.xlane.f32.xlu0 %v2890
    %v2892 = vpop.xlane.xlu0 %2891
    %v2893 = vmul.f32 %v2869, 0.001953125
    %v2894 = vmul.f32 %v2874, 0.001953125
    %v2895 = vmul.f32 %v2887, 0.001953125
    %v2896 = vmul.f32 %v2892, 0.001953125
    %v2897 = vmul.f32 %v2893, %v2893
    %v2898 = vmul.f32 %v2894, %v2894
    %v2899 = vsub.f32 %v2895, %v2897
    %v2900 = vsub.f32 %v2896, %v2898
    %v2901 = vadd.f32 %v2899, 1e-05
    %v2902 = vadd.f32 %v2900, 1e-05
    %v2903 = vrsqrt.pop %v2901
    %v2904 = vrsqrt.pop %v2902
    %v2905 = vmul.f32 %v2861, %v2903
    %v2906 = vmul.f32 %v2862, %v2904
    %v2907 = vmul.f32 %v2893, %v2905
    %v2908 = vmul.f32 %v2894, %v2906
    %v2909 = vsub.f32 %v2863, %v2907
    %v2910 = vsub.f32 %v2864, %v2908
    %2912 = vset.pattern.permute.xlu0 2
    %2913 = vperm.xlu0 %2912, %v2905
    %v2914 = vpop.permute.xlu0 %2913
    %2917 = vset.pattern.permute.xlu0 2
    %2918 = vperm.xlu0 %2917, %v2906
    %v2919 = vpop.permute.xlu0 %2918
    %v2921 = vmul.f32 %v2853, %v2914
    %v2922 = vmul.f32 %v2854, %v2914
    %v2923 = vmul.f32 %v2855, %v2914
    %v2924 = vmul.f32 %v2856, %v2914
    %v2925 = vmul.f32 %v2857, %v2919
    %v2926 = vmul.f32 %v2858, %v2919
    %v2927 = vmul.f32 %v2859, %v2919
    %v2928 = vmul.f32 %v2860, %v2919
    %2930 = vset.pattern.permute.xlu0 2
    %2931 = vperm.xlu0 %2930, %v2909
    %v2932 = vpop.permute.xlu0 %2931
    %2935 = vset.pattern.permute.xlu0 2
    %2936 = vperm.xlu0 %2935, %v2910
    %v2937 = vpop.permute.xlu0 %2936
    %v2939 = vadd.f32 %v2921, %v2932
    %v2940 = vadd.f32 %v2922, %v2932
    %v2941 = vadd.f32 %v2923, %v2932
    %v2942 = vadd.f32 %v2924, %v2932
    %v2943 = vadd.f32 %v2925, %v2937
    %v2944 = vadd.f32 %v2926, %v2937
    %v2945 = vadd.f32 %v2927, %v2937
    %v2946 = vadd.f32 %v2928, %v2937
    %v2947 = vmax.f32 %v2939, 0.0
    %v2948 = vmax.f32 %v2940, 0.0
    %v2949 = vmax.f32 %v2941, 0.0
    %v2950 = vmax.f32 %v2942, 0.0
    %v2951 = vmax.f32 %v2943, 0.0
    %v2952 = vmax.f32 %v2944, 0.0
    %v2953 = vmax.f32 %v2945, 0.0
    %v2954 = vmax.f32 %v2946, 0.0
    %s2955 = scalar_lea.vmem %s2, 16
    %v2956 = vld [vmem:[%s2955] sm:$0xff]
    %v2957 = vld [vmem:[%s2955 + $0x8] sm:$0xff]
    %v2959 = vsel %vm385, %v2956, 0
    %v2962 = vsel %vm385, %v2957, 0
    %2964 = vmatprep.subr.mxu0 %v2948
    %2965 = vmatpush1.msra.mxu0 %v2947
    %2966 = vmatprep.subr.mxu0 %v2952
    %2967 = vmatpush1.msra.mxu0 %v2951
    %2968 = vmatprep.subr.mxu0 0.0
    %2969 = vmatpush1.msra.mxu0 0.0
    %2970 = vmatprep.subr.mxu0 0.0
    %2971 = vmatpush1.msra.mxu0 0.0
    %2972 = vmatprep.subr.mxu0 0.0
    %2973 = vmatpush1.msra.mxu0 0.0
    %2974 = vmatprep.subr.mxu0 0.0
    %2975 = vmatpush1.msra.mxu0 0.0
    %2976 = vmatprep.subr.mxu0 0.0
    %2977 = vmatpush1.msra.mxu0 0.0
    %2978 = vmatprep.subr.mxu0 0.0
    %2979 = vmatpush1.msra.mxu0 0.0
    %2980 = vmatprep.subr.mxu0 0.0
    %2981 = vmatpush1.msra.mxu0 0.0
    %2982 = vmatprep.subr.mxu0 0.0
    %2983 = vmatpush1.msra.mxu0 0.0
    %2984 = vmatprep.subr.mxu0 0.0
    %2985 = vmatpush1.msra.mxu0 0.0
    %2986 = vmatprep.subr.mxu0 0.0
    %2987 = vmatpush1.msra.mxu0 0.0
    %2988 = vmatprep.subr.mxu0 0.0
    %2989 = vmatpush1.msra.mxu0 0.0
    %2990 = vmatprep.subr.mxu0 0.0
    %2991 = vmatpush1.msra.mxu0 0.0
    %2992 = vmatprep.subr.mxu0 0.0
    %2993 = vmatpush1.msra.mxu0 0.0
    %2994 = vmatprep.subr.mxu0 0.0
    %2995 = vmatpush1.msra.mxu0 0.0
    %2996 = vmatprep.subr.mxu0 0.0
    %2997 = vmatpush1.msra.mxu0 0.0
    %2998 = vmatprep.subr.mxu0 0.0
    %2999 = vmatpush1.msra.mxu0 0.0
    %3000 = vmatprep.subr.mxu0 0.0
    %3001 = vmatpush1.msra.mxu0 0.0
    %3002 = vmatprep.subr.mxu0 0.0
    %3003 = vmatpush1.msra.mxu0 0.0
    %3004 = vmatprep.subr.mxu0 0.0
    %3005 = vmatpush1.msra.mxu0 0.0
    %3006 = vmatprep.subr.mxu0 0.0
    %3007 = vmatpush1.msra.mxu0 0.0
    %3008 = vmatprep.subr.mxu0 0.0
    %3009 = vmatpush1.msra.mxu0 0.0
    %3010 = vmatprep.subr.mxu0 0.0
    %3011 = vmatpush1.msra.mxu0 0.0
    %3012 = vmatprep.subr.mxu0 0.0
    %3013 = vmatpush1.msra.mxu0 0.0
    %3014 = vmatprep.subr.mxu0 0.0
    %3015 = vmatpush1.msra.mxu0 0.0
    %3016 = vmatprep.subr.mxu0 0.0
    %3017 = vmatpush1.msra.mxu0 0.0
    %3018 = vmatprep.subr.mxu0 0.0
    %3019 = vmatpush1.msra.mxu0 0.0
    %3020 = vmatprep.subr.mxu0 0.0
    %3021 = vmatpush1.msra.mxu0 0.0
    %3022 = vmatprep.subr.mxu0 0.0
    %3023 = vmatpush1.msra.mxu0 0.0
    %3024 = vmatprep.subr.mxu0 0.0
    %3025 = vmatpush1.msra.mxu0 0.0
    %3026 = vmatprep.subr.mxu0 0.0
    %3027 = vmatpush1.msra.mxu0 0.0
    %3028 = vmatprep.mubr.f32.mxu0 0.0
    %3029 = vmatmul.mubr.f32.gmra.mrb[0].mxu0 %v2959
    %v3030 = vpop.f32.mrb[0].mxu0
    %v3031 = vadd.f32 0.0, %v3030
    %v3032 = vpop.f32.mrb[0].mxu0
    %v3033 = vadd.f32 0.0, %v3032
    %3034 = vmatprep.mubr.f32.mxu0 0.0
    %3035 = vmatmul.mubr.f32.gmra.mrb[0].mxu0 %v2962
    %v3036 = vpop.f32.mrb[0].mxu0
    %v3037 = vadd.f32 0.0, %v3036
    %v3038 = vpop.f32.mrb[0].mxu0
    %v3039 = vadd.f32 0.0, %v3038
    %3040 = vdwg.mxu0
    %3041 = vmatprep.subr.mxu0 %v2950
    %3042 = vmatpush1.msra.mxu0 %v2949
    %3043 = vmatprep.subr.mxu0 %v2954
    %3044 = vmatpush1.msra.mxu0 %v2953
    %3045 = vmatprep.subr.mxu0 0.0
    %3046 = vmatpush1.msra.mxu0 0.0
    %3047 = vmatprep.subr.mxu0 0.0
    %3048 = vmatpush1.msra.mxu0 0.0
    %3049 = vmatprep.subr.mxu0 0.0
    %3050 = vmatpush1.msra.mxu0 0.0
    %3051 = vmatprep.subr.mxu0 0.0
    %3052 = vmatpush1.msra.mxu0 0.0
    %3053 = vmatprep.subr.mxu0 0.0
    %3054 = vmatpush1.msra.mxu0 0.0
    %3055 = vmatprep.subr.mxu0 0.0
    %3056 = vmatpush1.msra.mxu0 0.0
    %3057 = vmatprep.subr.mxu0 0.0
    %3058 = vmatpush1.msra.mxu0 0.0
    %3059 = vmatprep.subr.mxu0 0.0
    %3060 = vmatpush1.msra.mxu0 0.0
    %3061 = vmatprep.subr.mxu0 0.0
    %3062 = vmatpush1.msra.mxu0 0.0
    %3063 = vmatprep.subr.mxu0 0.0
    %3064 = vmatpush1.msra.mxu0 0.0
    %3065 = vmatprep.subr.mxu0 0.0
    %3066 = vmatpush1.msra.mxu0 0.0
    %3067 = vmatprep.subr.mxu0 0.0
    %3068 = vmatpush1.msra.mxu0 0.0
    %3069 = vmatprep.subr.mxu0 0.0
    %3070 = vmatpush1.msra.mxu0 0.0
    %3071 = vmatprep.subr.mxu0 0.0
    %3072 = vmatpush1.msra.mxu0 0.0
    %3073 = vmatprep.subr.mxu0 0.0
    %3074 = vmatpush1.msra.mxu0 0.0
    %3075 = vmatprep.subr.mxu0 0.0
    %3076 = vmatpush1.msra.mxu0 0.0
    %3077 = vmatprep.subr.mxu0 0.0
    %3078 = vmatpush1.msra.mxu0 0.0
    %3079 = vmatprep.subr.mxu0 0.0
    %3080 = vmatpush1.msra.mxu0 0.0
    %3081 = vmatprep.subr.mxu0 0.0
    %3082 = vmatpush1.msra.mxu0 0.0
    %3083 = vmatprep.subr.mxu0 0.0
    %3084 = vmatpush1.msra.mxu0 0.0
    %3085 = vmatprep.subr.mxu0 0.0
    %3086 = vmatpush1.msra.mxu0 0.0
    %3087 = vmatprep.subr.mxu0 0.0
    %3088 = vmatpush1.msra.mxu0 0.0
    %3089 = vmatprep.subr.mxu0 0.0
    %3090 = vmatpush1.msra.mxu0 0.0
    %3091 = vmatprep.subr.mxu0 0.0
    %3092 = vmatpush1.msra.mxu0 0.0
    %3093 = vmatprep.subr.mxu0 0.0
    %3094 = vmatpush1.msra.mxu0 0.0
    %3095 = vmatprep.subr.mxu0 0.0
    %3096 = vmatpush1.msra.mxu0 0.0
    %3097 = vmatprep.subr.mxu0 0.0
    %3098 = vmatpush1.msra.mxu0 0.0
    %3099 = vmatprep.subr.mxu0 0.0
    %3100 = vmatpush1.msra.mxu0 0.0
    %3101 = vmatprep.subr.mxu0 0.0
    %3102 = vmatpush1.msra.mxu0 0.0
    %3103 = vmatprep.subr.mxu0 0.0
    %3104 = vmatpush1.msra.mxu0 0.0
    %3105 = vmatprep.mubr.f32.mxu0 0.0
    %3106 = vmatmul.mubr.f32.gmra.mrb[0].mxu0 %v2959
    %v3107 = vpop.f32.mrb[0].mxu0
    %v3108 = vadd.f32 0.0, %v3107
    %v3109 = vpop.f32.mrb[0].mxu0
    %v3110 = vadd.f32 0.0, %v3109
    %3111 = vmatprep.mubr.f32.mxu0 0.0
    %3112 = vmatmul.mubr.f32.gmra.mrb[0].mxu0 %v2962
    %v3113 = vpop.f32.mrb[0].mxu0
    %v3114 = vadd.f32 0.0, %v3113
    %v3115 = vpop.f32.mrb[0].mxu0
    %v3116 = vadd.f32 0.0, %v3115
    %3117 = vdwg.mxu0
    %v3118 = vadd.f32 %v3031, %v3033
    %v3119 = vadd.f32 %v3118, %v3108
    %v3120 = vadd.f32 %v3119, %v3110
    %3121 = vadd.xlane.f32.xlu0 %v3120
    %v3122 = vpop.xlane.xlu0 %3121
    %v3123 = vadd.f32 %v3037, %v3039
    %v3124 = vadd.f32 %v3123, %v3114
    %v3125 = vadd.f32 %v3124, %v3116
    %3126 = vadd.xlane.f32.xlu0 %v3125
    %v3127 = vpop.xlane.xlu0 %3126
    %v3128 = vmul.f32 %v3031, %v3031
    %v3129 = vmul.f32 %v3033, %v3033
    %v3130 = vmul.f32 %v3108, %v3108
    %v3131 = vmul.f32 %v3110, %v3110
    %v3132 = vmul.f32 %v3037, %v3037
    %v3133 = vmul.f32 %v3039, %v3039
    %v3134 = vmul.f32 %v3114, %v3114
    %v3135 = vmul.f32 %v3116, %v3116
    %v3136 = vadd.f32 %v3128, %v3129
    %v3137 = vadd.f32 %v3136, %v3130
    %v3138 = vadd.f32 %v3137, %v3131
    %3139 = vadd.xlane.f32.xlu0 %v3138
    %v3140 = vpop.xlane.xlu0 %3139
    %v3141 = vadd.f32 %v3132, %v3133
    %v3142 = vadd.f32 %v3141, %v3134
    %v3143 = vadd.f32 %v3142, %v3135
    %3144 = vadd.xlane.f32.xlu0 %v3143
    %v3145 = vpop.xlane.xlu0 %3144
    %v3146 = vmul.f32 %v3122, 0.001953125
    %v3147 = vmul.f32 %v3127, 0.001953125
    %v3148 = vmul.f32 %v3140, 0.001953125
    %v3149 = vmul.f32 %v3145, 0.001953125
    %v3150 = vmul.f32 %v3146, %v3146
    %v3151 = vmul.f32 %v3147, %v3147
    %v3152 = vsub.f32 %v3148, %v3150
    %v3153 = vsub.f32 %v3149, %v3151
    %v3154 = vadd.f32 %v3152, 1e-05
    %v3155 = vadd.f32 %v3153, 1e-05
    %v3156 = vrsqrt.pop %v3154
    %v3157 = vrsqrt.pop %v3155
    %v3158 = vmul.f32 %v2861, %v3156
    %v3159 = vmul.f32 %v2862, %v3157
    %v3160 = vmul.f32 %v3146, %v3158
    %v3161 = vmul.f32 %v3147, %v3159
    %v3162 = vsub.f32 %v2863, %v3160
    %v3163 = vsub.f32 %v2864, %v3161
    %3165 = vset.pattern.permute.xlu0 3
    %3166 = vperm.xlu0 %3165, %v3158
    %v3167 = vpop.permute.xlu0 %3166
    %3170 = vset.pattern.permute.xlu0 3
    %3171 = vperm.xlu0 %3170, %v3159
    %v3172 = vpop.permute.xlu0 %3171
    %v3174 = vmul.f32 %v3031, %v3167
    %v3175 = vmul.f32 %v3033, %v3167
    %v3176 = vmul.f32 %v3108, %v3167
    %v3177 = vmul.f32 %v3110, %v3167
    %v3178 = vmul.f32 %v3037, %v3172
    %v3179 = vmul.f32 %v3039, %v3172
    %v3180 = vmul.f32 %v3114, %v3172
    %v3181 = vmul.f32 %v3116, %v3172
    %3183 = vset.pattern.permute.xlu0 3
    %3184 = vperm.xlu0 %3183, %v3162
    %v3185 = vpop.permute.xlu0 %3184
    %3188 = vset.pattern.permute.xlu0 3
    %3189 = vperm.xlu0 %3188, %v3163
    %v3190 = vpop.permute.xlu0 %3189
    %v3192 = vadd.f32 %v3174, %v3185
    %v3193 = vadd.f32 %v3175, %v3185
    %v3194 = vadd.f32 %v3176, %v3185
    %v3195 = vadd.f32 %v3177, %v3185
    %v3196 = vadd.f32 %v3178, %v3190
    %v3197 = vadd.f32 %v3179, %v3190
    %v3198 = vadd.f32 %v3180, %v3190
    %v3199 = vadd.f32 %v3181, %v3190
    %v3200 = vmax.f32 %v3192, 0.0
    %v3201 = vmax.f32 %v3193, 0.0
    %v3202 = vmax.f32 %v3194, 0.0
    %v3203 = vmax.f32 %v3195, 0.0
    %v3204 = vmax.f32 %v3196, 0.0
    %v3205 = vmax.f32 %v3197, 0.0
    %v3206 = vmax.f32 %v3198, 0.0
    %v3207 = vmax.f32 %v3199, 0.0
    %3208 = vst [vmem:[#allocation5 + $0x8] sm:$0xff] %v3200
    %3209 = vst [vmem:[#allocation5 + $0x10] sm:$0xff] %v3201
    %3210 = vst [vmem:[#allocation5 + $0x18] sm:$0xff] %v3202
    %3211 = vst [vmem:[#allocation5 + $0x20] sm:$0xff] %v3203
    %3212 = vst [vmem:[#allocation5 + $0x38] sm:$0xff] %v3204
    %3213 = vst [vmem:[#allocation5 + $0x40] sm:$0xff] %v3205
    %3214 = vst [vmem:[#allocation5 + $0x48] sm:$0xff] %v3206
    %3215 = vst [vmem:[#allocation5 + $0x50] sm:$0xff] %v3207
    %v3216 = vld [vmem:[#allocation16] sm:$0xff]
    %v3217 = vld [vmem:[#allocation16 + $0x8] sm:$0xff]
    %v3218 = vld [vmem:[#allocation16 + $0x10] sm:$0xff]
    %v3219 = vld [vmem:[#allocation16 + $0x18] sm:$0xff]
    %v3220 = vld [vmem:[#allocation16 + $0x20] sm:$0x1]
    %v3221 = vld [vmem:[#allocation16 + $0x28] sm:$0x1]
    %v3222 = vld [vmem:[#allocation16 + $0x30] sm:$0x1]
    %v3223 = vld [vmem:[#allocation16 + $0x38] sm:$0x1]
    %v3224 = vld [vmem:[#allocation5] sm:$0xff]
    %v3225 = vld [vmem:[#allocation5 + $0x8] sm:$0xff]
    %v3226 = vld [vmem:[#allocation5 + $0x10] sm:$0xff]
    %v3227 = vld [vmem:[#allocation5 + $0x18] sm:$0xff]
    %v3228 = vld [vmem:[#allocation5 + $0x20] sm:$0xff]
    %v3229 = vld [vmem:[#allocation5 + $0x30] sm:$0xff]
    %v3230 = vld [vmem:[#allocation5 + $0x38] sm:$0xff]
    %v3231 = vld [vmem:[#allocation5 + $0x40] sm:$0xff]
    %v3232 = vld [vmem:[#allocation5 + $0x48] sm:$0xff]
    %v3233 = vld [vmem:[#allocation5 + $0x50] sm:$0xff]
    %v3234 = vlaneseq
    %v3235 = vshrl.u32 %v3234, 7
    %v3236 = vsub.s32 0, %v3235
    %v3237 = vrot.slane %v3216, %v3236
    %v3238 = vlaneseq
    %v3239 = vshrl.u32 %v3238, 7
    %v3240 = vsub.s32 0, %v3239
    %v3241 = vrot.slane %v3217, %v3240
    %v3242 = vlaneseq
    %v3243 = vshrl.u32 %v3242, 7
    %v3244 = vsub.s32 0, %v3243
    %v3245 = vrot.slane %v3218, %v3244
    %v3246 = vlaneseq
    %v3247 = vshrl.u32 %v3246, 7
    %v3248 = vsub.s32 0, %v3247
    %v3249 = vrot.slane %v3219, %v3248
    %3254 = vrot.lane.b32.xlu0 %v3237, 111
    %v3255 = vpop.permute.xlu0 %3254
    %3256 = vrot.lane.b32.xlu0 %v3241, 111
    %v3257 = vpop.permute.xlu0 %3256
    %3258 = vrot.lane.b32.xlu0 %v3245, 111
    %v3259 = vpop.permute.xlu0 %3258
    %3260 = vrot.lane.b32.xlu0 %v3249, 111
    %v3261 = vpop.permute.xlu0 %3260
    %v3262 = vsel %vm224, %v3255, %v3257
    %v3263 = vsel %vm224, %v3257, %v3259
    %v3264 = vsel %vm224, %v3259, %v3261
    %v3270 = vmul.f32 %v3224, %v3255
    %v3271 = vmul.f32 %v3225, %v3262
    %v3272 = vmul.f32 %v3226, %v3263
    %v3273 = vmul.f32 %v3227, %v3264
    %v3274 = vmul.f32 %v3228, %v3261
    %v3275 = vmul.f32 %v3229, %v3255
    %v3276 = vmul.f32 %v3230, %v3262
    %v3277 = vmul.f32 %v3231, %v3263
    %v3278 = vmul.f32 %v3232, %v3264
    %v3279 = vmul.f32 %v3233, %v3261
    %3290 = vrot.lane.b32.xlu0 %v3270, 17
    %v3291 = vpop.permute.xlu0 %3290
    %3292 = vrot.lane.b32.xlu0 %v3271, 17
    %v3293 = vpop.permute.xlu0 %3292
    %3294 = vrot.lane.b32.xlu0 %v3272, 17
    %v3295 = vpop.permute.xlu0 %3294
    %3296 = vrot.lane.b32.xlu0 %v3273, 17
    %v3297 = vpop.permute.xlu0 %3296
    %3298 = vrot.lane.b32.xlu0 %v3274, 17
    %v3299 = vpop.permute.xlu0 %3298
    %3300 = vrot.lane.b32.xlu0 %v3275, 17
    %v3301 = vpop.permute.xlu0 %3300
    %3302 = vrot.lane.b32.xlu0 %v3276, 17
    %v3303 = vpop.permute.xlu0 %3302
    %3304 = vrot.lane.b32.xlu0 %v3277, 17
    %v3305 = vpop.permute.xlu0 %3304
    %3306 = vrot.lane.b32.xlu0 %v3278, 17
    %v3307 = vpop.permute.xlu0 %3306
    %3308 = vrot.lane.b32.xlu0 %v3279, 17
    %v3309 = vpop.permute.xlu0 %3308
    %v3310 = vsel %vm273, %v3291, %v3293
    %v3311 = vsel %vm273, %v3293, %v3295
    %v3312 = vsel %vm273, %v3295, %v3297
    %v3313 = vsel %vm273, %v3297, %v3299
    %v3314 = vsel %vm273, %v3301, %v3303
    %v3315 = vsel %vm273, %v3303, %v3305
    %v3316 = vsel %vm273, %v3305, %v3307
    %v3317 = vsel %vm273, %v3307, %v3309
    %3326 = vst [vmem:[#allocation8] sm:$0xff] %v3310
    %3327 = vst [vmem:[#allocation8 + $0x8] sm:$0xff] %v3311
    %3328 = vst [vmem:[#allocation8 + $0x10] sm:$0xff] %v3312
    %3329 = vst [vmem:[#allocation8 + $0x18] sm:$0xff] %v3313
    %3330 = vst [vmem:[#allocation8 + $0x20] sm:$0xff] %v3314
    %3331 = vst [vmem:[#allocation8 + $0x28] sm:$0xff] %v3315
    %3332 = vst [vmem:[#allocation8 + $0x30] sm:$0xff] %v3316
    %3333 = vst [vmem:[#allocation8 + $0x38] sm:$0xff] %v3317
    %v3334 = vld [vmem:[#allocation5] sm:$0xff]
    %v3335 = vld [vmem:[#allocation5 + $0x8] sm:$0xff]
    %v3336 = vld [vmem:[#allocation5 + $0x10] sm:$0xff]
    %v3337 = vld [vmem:[#allocation5 + $0x18] sm:$0xff]
    %v3338 = vld [vmem:[#allocation5 + $0x20] sm:$0xff]
    %v3339 = vld [vmem:[#allocation5 + $0x30] sm:$0xff]
    %v3340 = vld [vmem:[#allocation5 + $0x38] sm:$0xff]
    %v3341 = vld [vmem:[#allocation5 + $0x40] sm:$0xff]
    %v3342 = vld [vmem:[#allocation5 + $0x48] sm:$0xff]
    %v3343 = vld [vmem:[#allocation5 + $0x50] sm:$0xff]
    %v3344 = vlaneseq
    %v3345 = vshrl.u32 %v3344, 7
    %v3346 = vsub.s32 1, %v3345
    %v3347 = vrot.slane %v3216, %v3346
    %v3348 = vlaneseq
    %v3349 = vshrl.u32 %v3348, 7
    %v3350 = vsub.s32 1, %v3349
    %v3351 = vrot.slane %v3217, %v3350
    %v3352 = vlaneseq
    %v3353 = vshrl.u32 %v3352, 7
    %v3354 = vsub.s32 1, %v3353
    %v3355 = vrot.slane %v3218, %v3354
    %v3356 = vlaneseq
    %v3357 = vshrl.u32 %v3356, 7
    %v3358 = vsub.s32 1, %v3357
    %v3359 = vrot.slane %v3219, %v3358
    %3364 = vrot.lane.b32.xlu0 %v3347, 112
    %v3365 = vpop.permute.xlu0 %3364
    %3366 = vrot.lane.b32.xlu0 %v3351, 112
    %v3367 = vpop.permute.xlu0 %3366
    %3368 = vrot.lane.b32.xlu0 %v3355, 112
    %v3369 = vpop.permute.xlu0 %3368
    %3370 = vrot.lane.b32.xlu0 %v3359, 112
    %v3371 = vpop.permute.xlu0 %3370
    %v3372 = vsel %vm336, %v3365, %v3367
    %v3373 = vsel %vm336, %v3367, %v3369
    %v3374 = vsel %vm336, %v3369, %v3371
    %v3380 = vmul.f32 %v3334, %v3365
    %v3381 = vmul.f32 %v3335, %v3372
    %v3382 = vmul.f32 %v3336, %v3373
    %v3383 = vmul.f32 %v3337, %v3374
    %v3384 = vmul.f32 %v3338, %v3371
    %v3385 = vmul.f32 %v3339, %v3365
    %v3386 = vmul.f32 %v3340, %v3372
    %v3387 = vmul.f32 %v3341, %v3373
    %v3388 = vmul.f32 %v3342, %v3374
    %v3389 = vmul.f32 %v3343, %v3371
    %3400 = vrot.lane.b32.xlu0 %v3380, 16
    %v3401 = vpop.permute.xlu0 %3400
    %3402 = vrot.lane.b32.xlu0 %v3381, 16
    %v3403 = vpop.permute.xlu0 %3402
    %3404 = vrot.lane.b32.xlu0 %v3382, 16
    %v3405 = vpop.permute.xlu0 %3404
    %3406 = vrot.lane.b32.xlu0 %v3383, 16
    %v3407 = vpop.permute.xlu0 %3406
    %3408 = vrot.lane.b32.xlu0 %v3384, 16
    %v3409 = vpop.permute.xlu0 %3408
    %3410 = vrot.lane.b32.xlu0 %v3385, 16
    %v3411 = vpop.permute.xlu0 %3410
    %3412 = vrot.lane.b32.xlu0 %v3386, 16
    %v3413 = vpop.permute.xlu0 %3412
    %3414 = vrot.lane.b32.xlu0 %v3387, 16
    %v3415 = vpop.permute.xlu0 %3414
    %3416 = vrot.lane.b32.xlu0 %v3388, 16
    %v3417 = vpop.permute.xlu0 %3416
    %3418 = vrot.lane.b32.xlu0 %v3389, 16
    %v3419 = vpop.permute.xlu0 %3418
    %v3420 = vsel %vm385, %v3401, %v3403
    %v3421 = vsel %vm385, %v3403, %v3405
    %v3422 = vsel %vm385, %v3405, %v3407
    %v3423 = vsel %vm385, %v3407, %v3409
    %v3424 = vsel %vm385, %v3411, %v3413
    %v3425 = vsel %vm385, %v3413, %v3415
    %v3426 = vsel %vm385, %v3415, %v3417
    %v3427 = vsel %vm385, %v3417, %v3419
    %3436 = vst [vmem:[#allocation8 + $0x40] sm:$0xff] %v3420
    %3437 = vst [vmem:[#allocation8 + $0x48] sm:$0xff] %v3421
    %3438 = vst [vmem:[#allocation8 + $0x50] sm:$0xff] %v3422
    %3439 = vst [vmem:[#allocation8 + $0x58] sm:$0xff] %v3423
    %3440 = vst [vmem:[#allocation8 + $0x60] sm:$0xff] %v3424
    %3441 = vst [vmem:[#allocation8 + $0x68] sm:$0xff] %v3425
    %3442 = vst [vmem:[#allocation8 + $0x70] sm:$0xff] %v3426
    %3443 = vst [vmem:[#allocation8 + $0x78] sm:$0xff] %v3427
    %v3444 = vld [vmem:[#allocation5] sm:$0xff]
    %v3445 = vld [vmem:[#allocation5 + $0x8] sm:$0xff]
    %v3446 = vld [vmem:[#allocation5 + $0x10] sm:$0xff]
    %v3447 = vld [vmem:[#allocation5 + $0x18] sm:$0xff]
    %v3448 = vld [vmem:[#allocation5 + $0x20] sm:$0xff]
    %v3449 = vld [vmem:[#allocation5 + $0x30] sm:$0xff]
    %v3450 = vld [vmem:[#allocation5 + $0x38] sm:$0xff]
    %v3451 = vld [vmem:[#allocation5 + $0x40] sm:$0xff]
    %v3452 = vld [vmem:[#allocation5 + $0x48] sm:$0xff]
    %v3453 = vld [vmem:[#allocation5 + $0x50] sm:$0xff]
    %v3454 = vlaneseq
    %v3455 = vshrl.u32 %v3454, 7
    %v3456 = vsub.s32 2, %v3455
    %v3457 = vrot.slane %v3216, %v3456
    %v3458 = vlaneseq
    %v3459 = vshrl.u32 %v3458, 7
    %v3460 = vsub.s32 2, %v3459
    %v3461 = vrot.slane %v3217, %v3460
    %v3462 = vlaneseq
    %v3463 = vshrl.u32 %v3462, 7
    %v3464 = vsub.s32 2, %v3463
    %v3465 = vrot.slane %v3218, %v3464
    %v3466 = vlaneseq
    %v3467 = vshrl.u32 %v3466, 7
    %v3468 = vsub.s32 2, %v3467
    %v3469 = vrot.slane %v3219, %v3468
    %3474 = vrot.lane.b32.xlu0 %v3457, 113
    %v3475 = vpop.permute.xlu0 %3474
    %3476 = vrot.lane.b32.xlu0 %v3461, 113
    %v3477 = vpop.permute.xlu0 %3476
    %3478 = vrot.lane.b32.xlu0 %v3465, 113
    %v3479 = vpop.permute.xlu0 %3478
    %3480 = vrot.lane.b32.xlu0 %v3469, 113
    %v3481 = vpop.permute.xlu0 %3480
    %v3482 = vsel %vm448, %v3475, %v3477
    %v3483 = vsel %vm448, %v3477, %v3479
    %v3484 = vsel %vm448, %v3479, %v3481
    %v3490 = vmul.f32 %v3444, %v3475
    %v3491 = vmul.f32 %v3445, %v3482
    %v3492 = vmul.f32 %v3446, %v3483
    %v3493 = vmul.f32 %v3447, %v3484
    %v3494 = vmul.f32 %v3448, %v3481
    %v3495 = vmul.f32 %v3449, %v3475
    %v3496 = vmul.f32 %v3450, %v3482
    %v3497 = vmul.f32 %v3451, %v3483
    %v3498 = vmul.f32 %v3452, %v3484
    %v3499 = vmul.f32 %v3453, %v3481
    %3510 = vrot.lane.b32.xlu0 %v3490, 15
    %v3511 = vpop.permute.xlu0 %3510
    %3512 = vrot.lane.b32.xlu0 %v3491, 15
    %v3513 = vpop.permute.xlu0 %3512
    %3514 = vrot.lane.b32.xlu0 %v3492, 15
    %v3515 = vpop.permute.xlu0 %3514
    %3516 = vrot.lane.b32.xlu0 %v3493, 15
    %v3517 = vpop.permute.xlu0 %3516
    %3518 = vrot.lane.b32.xlu0 %v3494, 15
    %v3519 = vpop.permute.xlu0 %3518
    %3520 = vrot.lane.b32.xlu0 %v3495, 15
    %v3521 = vpop.permute.xlu0 %3520
    %3522 = vrot.lane.b32.xlu0 %v3496, 15
    %v3523 = vpop.permute.xlu0 %3522
    %3524 = vrot.lane.b32.xlu0 %v3497, 15
    %v3525 = vpop.permute.xlu0 %3524
    %3526 = vrot.lane.b32.xlu0 %v3498, 15
    %v3527 = vpop.permute.xlu0 %3526
    %3528 = vrot.lane.b32.xlu0 %v3499, 15
    %v3529 = vpop.permute.xlu0 %3528
    %v3530 = vsel %vm497, %v3511, %v3513
    %v3531 = vsel %vm497, %v3513, %v3515
    %v3532 = vsel %vm497, %v3515, %v3517
    %v3533 = vsel %vm497, %v3517, %v3519
    %v3534 = vsel %vm497, %v3521, %v3523
    %v3535 = vsel %vm497, %v3523, %v3525
    %v3536 = vsel %vm497, %v3525, %v3527
    %v3537 = vsel %vm497, %v3527, %v3529
    %3546 = vst [vmem:[#allocation8 + $0x80] sm:$0xff] %v3530
    %3547 = vst [vmem:[#allocation8 + $0x88] sm:$0xff] %v3531
    %3548 = vst [vmem:[#allocation8 + $0x90] sm:$0xff] %v3532
    %3549 = vst [vmem:[#allocation8 + $0x98] sm:$0xff] %v3533
    %3550 = vst [vmem:[#allocation8 + $0xa0] sm:$0xff] %v3534
    %3551 = vst [vmem:[#allocation8 + $0xa8] sm:$0xff] %v3535
    %3552 = vst [vmem:[#allocation8 + $0xb0] sm:$0xff] %v3536
    %3553 = vst [vmem:[#allocation8 + $0xb8] sm:$0xff] %v3537
    %v3554 = vld [vmem:[#allocation5] sm:$0xff]
    %v3555 = vld [vmem:[#allocation5 + $0x8] sm:$0xff]
    %v3556 = vld [vmem:[#allocation5 + $0x10] sm:$0xff]
    %v3557 = vld [vmem:[#allocation5 + $0x18] sm:$0xff]
    %v3558 = vld [vmem:[#allocation5 + $0x20] sm:$0xff]
    %v3559 = vld [vmem:[#allocation5 + $0x30] sm:$0xff]
    %v3560 = vld [vmem:[#allocation5 + $0x38] sm:$0xff]
    %v3561 = vld [vmem:[#allocation5 + $0x40] sm:$0xff]
    %v3562 = vld [vmem:[#allocation5 + $0x48] sm:$0xff]
    %v3563 = vld [vmem:[#allocation5 + $0x50] sm:$0xff]
    %v3564 = vlaneseq
    %v3565 = vshrl.u32 %v3564, 7
    %v3566 = vsub.s32 3, %v3565
    %v3567 = vrot.slane %v3216, %v3566
    %v3568 = vlaneseq
    %v3569 = vshrl.u32 %v3568, 7
    %v3570 = vsub.s32 3, %v3569
    %v3571 = vrot.slane %v3217, %v3570
    %v3572 = vlaneseq
    %v3573 = vshrl.u32 %v3572, 7
    %v3574 = vsub.s32 3, %v3573
    %v3575 = vrot.slane %v3218, %v3574
    %v3576 = vlaneseq
    %v3577 = vshrl.u32 %v3576, 7
    %v3578 = vsub.s32 3, %v3577
    %v3579 = vrot.slane %v3219, %v3578
    %3584 = vrot.lane.b32.xlu0 %v3567, 127
    %v3585 = vpop.permute.xlu0 %3584
    %3586 = vrot.lane.b32.xlu0 %v3571, 127
    %v3587 = vpop.permute.xlu0 %3586
    %3588 = vrot.lane.b32.xlu0 %v3575, 127
    %v3589 = vpop.permute.xlu0 %3588
    %3590 = vrot.lane.b32.xlu0 %v3579, 127
    %v3591 = vpop.permute.xlu0 %3590
    %v3592 = vsel %vm560, %v3585, %v3587
    %v3593 = vsel %vm560, %v3587, %v3589
    %v3594 = vsel %vm560, %v3589, %v3591
    %v3600 = vmul.f32 %v3554, %v3585
    %v3601 = vmul.f32 %v3555, %v3592
    %v3602 = vmul.f32 %v3556, %v3593
    %v3603 = vmul.f32 %v3557, %v3594
    %v3604 = vmul.f32 %v3558, %v3591
    %v3605 = vmul.f32 %v3559, %v3585
    %v3606 = vmul.f32 %v3560, %v3592
    %v3607 = vmul.f32 %v3561, %v3593
    %v3608 = vmul.f32 %v3562, %v3594
    %v3609 = vmul.f32 %v3563, %v3591
    %3620 = vrot.lane.b32.xlu0 %v3600, 1
    %v3621 = vpop.permute.xlu0 %3620
    %3622 = vrot.lane.b32.xlu0 %v3601, 1
    %v3623 = vpop.permute.xlu0 %3622
    %3624 = vrot.lane.b32.xlu0 %v3602, 1
    %v3625 = vpop.permute.xlu0 %3624
    %3626 = vrot.lane.b32.xlu0 %v3603, 1
    %v3627 = vpop.permute.xlu0 %3626
    %3628 = vrot.lane.b32.xlu0 %v3604, 1
    %v3629 = vpop.permute.xlu0 %3628
    %3630 = vrot.lane.b32.xlu0 %v3605, 1
    %v3631 = vpop.permute.xlu0 %3630
    %3632 = vrot.lane.b32.xlu0 %v3606, 1
    %v3633 = vpop.permute.xlu0 %3632
    %3634 = vrot.lane.b32.xlu0 %v3607, 1
    %v3635 = vpop.permute.xlu0 %3634
    %3636 = vrot.lane.b32.xlu0 %v3608, 1
    %v3637 = vpop.permute.xlu0 %3636
    %3638 = vrot.lane.b32.xlu0 %v3609, 1
    %v3639 = vpop.permute.xlu0 %3638
    %v3640 = vsel %vm609, %v3621, %v3623
    %v3641 = vsel %vm609, %v3623, %v3625
    %v3642 = vsel %vm609, %v3625, %v3627
    %v3643 = vsel %vm609, %v3627, %v3629
    %v3644 = vsel %vm609, %v3631, %v3633
    %v3645 = vsel %vm609, %v3633, %v3635
    %v3646 = vsel %vm609, %v3635, %v3637
    %v3647 = vsel %vm609, %v3637, %v3639
    %3656 = vst [vmem:[#allocation8 + $0xc0] sm:$0xff] %v3640
    %3657 = vst [vmem:[#allocation8 + $0xc8] sm:$0xff] %v3641
    %3658 = vst [vmem:[#allocation8 + $0xd0] sm:$0xff] %v3642
    %3659 = vst [vmem:[#allocation8 + $0xd8] sm:$0xff] %v3643
    %3660 = vst [vmem:[#allocation8 + $0xe0] sm:$0xff] %v3644
    %3661 = vst [vmem:[#allocation8 + $0xe8] sm:$0xff] %v3645
    %3662 = vst [vmem:[#allocation8 + $0xf0] sm:$0xff] %v3646
    %3663 = vst [vmem:[#allocation8 + $0xf8] sm:$0xff] %v3647
    %v3664 = vld [vmem:[#allocation5 + $0x8] sm:$0xff]
    %v3665 = vld [vmem:[#allocation5 + $0x10] sm:$0xff]
    %v3666 = vld [vmem:[#allocation5 + $0x18] sm:$0xff]
    %v3667 = vld [vmem:[#allocation5 + $0x20] sm:$0xff]
    %v3668 = vld [vmem:[#allocation5 + $0x38] sm:$0xff]
    %v3669 = vld [vmem:[#allocation5 + $0x40] sm:$0xff]
    %v3670 = vld [vmem:[#allocation5 + $0x48] sm:$0xff]
    %v3671 = vld [vmem:[#allocation5 + $0x50] sm:$0xff]
    %3672 = vst [vmem:[#allocation8 + $0x100] sm:$0xff] %v3664
    %3673 = vst [vmem:[#allocation8 + $0x108] sm:$0xff] %v3665
    %3674 = vst [vmem:[#allocation8 + $0x110] sm:$0xff] %v3666
    %3675 = vst [vmem:[#allocation8 + $0x118] sm:$0xff] %v3667
    %3676 = vst [vmem:[#allocation8 + $0x120] sm:$0xff] %v3668
    %3677 = vst [vmem:[#allocation8 + $0x128] sm:$0xff] %v3669
    %3678 = vst [vmem:[#allocation8 + $0x130] sm:$0xff] %v3670
    %3679 = vst [vmem:[#allocation8 + $0x138] sm:$0xff] %v3671
    %v3680 = vld [vmem:[#allocation5 + $0x8] sm:$0xff]
    %v3681 = vld [vmem:[#allocation5 + $0x10] sm:$0xff]
    %v3682 = vld [vmem:[#allocation5 + $0x18] sm:$0xff]
    %v3683 = vld [vmem:[#allocation5 + $0x20] sm:$0xff]
    %v3684 = vld [vmem:[#allocation5 + $0x28] sm:$0xff]
    %v3685 = vld [vmem:[#allocation5 + $0x38] sm:$0xff]
    %v3686 = vld [vmem:[#allocation5 + $0x40] sm:$0xff]
    %v3687 = vld [vmem:[#allocation5 + $0x48] sm:$0xff]
    %v3688 = vld [vmem:[#allocation5 + $0x50] sm:$0xff]
    %v3689 = vld [vmem:[#allocation5 + $0x58] sm:$0xff]
    %v3690 = vlaneseq
    %v3691 = vshrl.u32 %v3690, 7
    %v3692 = vsub.s32 5, %v3691
    %v3693 = vrot.slane %v3216, %v3692
    %v3694 = vlaneseq
    %v3695 = vshrl.u32 %v3694, 7
    %v3696 = vsub.s32 5, %v3695
    %v3697 = vrot.slane %v3217, %v3696
    %v3698 = vlaneseq
    %v3699 = vshrl.u32 %v3698, 7
    %v3700 = vsub.s32 5, %v3699
    %v3701 = vrot.slane %v3218, %v3700
    %v3702 = vlaneseq
    %v3703 = vshrl.u32 %v3702, 7
    %v3704 = vsub.s32 5, %v3703
    %v3705 = vrot.slane %v3219, %v3704
    %3710 = vrot.lane.b32.xlu0 %v3693, 1
    %v3711 = vpop.permute.xlu0 %3710
    %3712 = vrot.lane.b32.xlu0 %v3697, 1
    %v3713 = vpop.permute.xlu0 %3712
    %3714 = vrot.lane.b32.xlu0 %v3701, 1
    %v3715 = vpop.permute.xlu0 %3714
    %3716 = vrot.lane.b32.xlu0 %v3705, 1
    %v3717 = vpop.permute.xlu0 %3716
    %v3718 = vsel %vm609, %v3711, %v3713
    %v3719 = vsel %vm609, %v3713, %v3715
    %v3720 = vsel %vm609, %v3715, %v3717
    %v3726 = vmul.f32 %v3680, %v3711
    %v3727 = vmul.f32 %v3681, %v3718
    %v3728 = vmul.f32 %v3682, %v3719
    %v3729 = vmul.f32 %v3683, %v3720
    %v3730 = vmul.f32 %v3684, %v3717
    %v3731 = vmul.f32 %v3685, %v3711
    %v3732 = vmul.f32 %v3686, %v3718
    %v3733 = vmul.f32 %v3687, %v3719
    %v3734 = vmul.f32 %v3688, %v3720
    %v3735 = vmul.f32 %v3689, %v3717
    %3746 = vrot.lane.b32.xlu0 %v3726, 127
    %v3747 = vpop.permute.xlu0 %3746
    %3748 = vrot.lane.b32.xlu0 %v3727, 127
    %v3749 = vpop.permute.xlu0 %3748
    %3750 = vrot.lane.b32.xlu0 %v3728, 127
    %v3751 = vpop.permute.xlu0 %3750
    %3752 = vrot.lane.b32.xlu0 %v3729, 127
    %v3753 = vpop.permute.xlu0 %3752
    %3754 = vrot.lane.b32.xlu0 %v3730, 127
    %v3755 = vpop.permute.xlu0 %3754
    %3756 = vrot.lane.b32.xlu0 %v3731, 127
    %v3757 = vpop.permute.xlu0 %3756
    %3758 = vrot.lane.b32.xlu0 %v3732, 127
    %v3759 = vpop.permute.xlu0 %3758
    %3760 = vrot.lane.b32.xlu0 %v3733, 127
    %v3761 = vpop.permute.xlu0 %3760
    %3762 = vrot.lane.b32.xlu0 %v3734, 127
    %v3763 = vpop.permute.xlu0 %3762
    %3764 = vrot.lane.b32.xlu0 %v3735, 127
    %v3765 = vpop.permute.xlu0 %3764
    %v3766 = vsel %vm560, %v3747, %v3749
    %v3767 = vsel %vm560, %v3749, %v3751
    %v3768 = vsel %vm560, %v3751, %v3753
    %v3769 = vsel %vm560, %v3753, %v3755
    %v3770 = vsel %vm560, %v3757, %v3759
    %v3771 = vsel %vm560, %v3759, %v3761
    %v3772 = vsel %vm560, %v3761, %v3763
    %v3773 = vsel %vm560, %v3763, %v3765
    %3782 = vst [vmem:[#allocation8 + $0x140] sm:$0xff] %v3766
    %3783 = vst [vmem:[#allocation8 + $0x148] sm:$0xff] %v3767
    %3784 = vst [vmem:[#allocation8 + $0x150] sm:$0xff] %v3768
    %3785 = vst [vmem:[#allocation8 + $0x158] sm:$0xff] %v3769
    %3786 = vst [vmem:[#allocation8 + $0x160] sm:$0xff] %v3770
    %3787 = vst [vmem:[#allocation8 + $0x168] sm:$0xff] %v3771
    %3788 = vst [vmem:[#allocation8 + $0x170] sm:$0xff] %v3772
    %3789 = vst [vmem:[#allocation8 + $0x178] sm:$0xff] %v3773
    %v3790 = vld [vmem:[#allocation5 + $0x8] sm:$0xff]
    %v3791 = vld [vmem:[#allocation5 + $0x10] sm:$0xff]
    %v3792 = vld [vmem:[#allocation5 + $0x18] sm:$0xff]
    %v3793 = vld [vmem:[#allocation5 + $0x20] sm:$0xff]
    %v3794 = vld [vmem:[#allocation5 + $0x28] sm:$0xff]
    %v3795 = vld [vmem:[#allocation5 + $0x38] sm:$0xff]
    %v3796 = vld [vmem:[#allocation5 + $0x40] sm:$0xff]
    %v3797 = vld [vmem:[#allocation5 + $0x48] sm:$0xff]
    %v3798 = vld [vmem:[#allocation5 + $0x50] sm:$0xff]
    %v3799 = vld [vmem:[#allocation5 + $0x58] sm:$0xff]
    %v3800 = vlaneseq
    %v3801 = vshrl.u32 %v3800, 7
    %v3802 = vsub.s32 6, %v3801
    %v3803 = vrot.slane %v3216, %v3802
    %v3804 = vlaneseq
    %v3805 = vshrl.u32 %v3804, 7
    %v3806 = vsub.s32 6, %v3805
    %v3807 = vrot.slane %v3217, %v3806
    %v3808 = vlaneseq
    %v3809 = vshrl.u32 %v3808, 7
    %v3810 = vsub.s32 6, %v3809
    %v3811 = vrot.slane %v3218, %v3810
    %v3812 = vlaneseq
    %v3813 = vshrl.u32 %v3812, 7
    %v3814 = vsub.s32 6, %v3813
    %v3815 = vrot.slane %v3219, %v3814
    %3820 = vrot.lane.b32.xlu0 %v3803, 15
    %v3821 = vpop.permute.xlu0 %3820
    %3822 = vrot.lane.b32.xlu0 %v3807, 15
    %v3823 = vpop.permute.xlu0 %3822
    %3824 = vrot.lane.b32.xlu0 %v3811, 15
    %v3825 = vpop.permute.xlu0 %3824
    %3826 = vrot.lane.b32.xlu0 %v3815, 15
    %v3827 = vpop.permute.xlu0 %3826
    %v3828 = vsel %vm497, %v3821, %v3823
    %v3829 = vsel %vm497, %v3823, %v3825
    %v3830 = vsel %vm497, %v3825, %v3827
    %v3836 = vmul.f32 %v3790, %v3821
    %v3837 = vmul.f32 %v3791, %v3828
    %v3838 = vmul.f32 %v3792, %v3829
    %v3839 = vmul.f32 %v3793, %v3830
    %v3840 = vmul.f32 %v3794, %v3827
    %v3841 = vmul.f32 %v3795, %v3821
    %v3842 = vmul.f32 %v3796, %v3828
    %v3843 = vmul.f32 %v3797, %v3829
    %v3844 = vmul.f32 %v3798, %v3830
    %v3845 = vmul.f32 %v3799, %v3827
    %3856 = vrot.lane.b32.xlu0 %v3836, 113
    %v3857 = vpop.permute.xlu0 %3856
    %3858 = vrot.lane.b32.xlu0 %v3837, 113
    %v3859 = vpop.permute.xlu0 %3858
    %3860 = vrot.lane.b32.xlu0 %v3838, 113
    %v3861 = vpop.permute.xlu0 %3860
    %3862 = vrot.lane.b32.xlu0 %v3839, 113
    %v3863 = vpop.permute.xlu0 %3862
    %3864 = vrot.lane.b32.xlu0 %v3840, 113
    %v3865 = vpop.permute.xlu0 %3864
    %3866 = vrot.lane.b32.xlu0 %v3841, 113
    %v3867 = vpop.permute.xlu0 %3866
    %3868 = vrot.lane.b32.xlu0 %v3842, 113
    %v3869 = vpop.permute.xlu0 %3868
    %3870 = vrot.lane.b32.xlu0 %v3843, 113
    %v3871 = vpop.permute.xlu0 %3870
    %3872 = vrot.lane.b32.xlu0 %v3844, 113
    %v3873 = vpop.permute.xlu0 %3872
    %3874 = vrot.lane.b32.xlu0 %v3845, 113
    %v3875 = vpop.permute.xlu0 %3874
    %v3876 = vsel %vm448, %v3857, %v3859
    %v3877 = vsel %vm448, %v3859, %v3861
    %v3878 = vsel %vm448, %v3861, %v3863
    %v3879 = vsel %vm448, %v3863, %v3865
    %v3880 = vsel %vm448, %v3867, %v3869
    %v3881 = vsel %vm448, %v3869, %v3871
    %v3882 = vsel %vm448, %v3871, %v3873
    %v3883 = vsel %vm448, %v3873, %v3875
    %3892 = vst [vmem:[#allocation8 + $0x180] sm:$0xff] %v3876
    %3893 = vst [vmem:[#allocation8 + $0x188] sm:$0xff] %v3877
    %3894 = vst [vmem:[#allocation8 + $0x190] sm:$0xff] %v3878
    %3895 = vst [vmem:[#allocation8 + $0x198] sm:$0xff] %v3879
    %3896 = vst [vmem:[#allocation8 + $0x1a0] sm:$0xff] %v3880
    %3897 = vst [vmem:[#allocation8 + $0x1a8] sm:$0xff] %v3881
    %3898 = vst [vmem:[#allocation8 + $0x1b0] sm:$0xff] %v3882
    %3899 = vst [vmem:[#allocation8 + $0x1b8] sm:$0xff] %v3883
    %v3900 = vld [vmem:[#allocation5 + $0x8] sm:$0xff]
    %v3901 = vld [vmem:[#allocation5 + $0x10] sm:$0xff]
    %v3902 = vld [vmem:[#allocation5 + $0x18] sm:$0xff]
    %v3903 = vld [vmem:[#allocation5 + $0x20] sm:$0xff]
    %v3904 = vld [vmem:[#allocation5 + $0x28] sm:$0xff]
    %v3905 = vld [vmem:[#allocation5 + $0x38] sm:$0xff]
    %v3906 = vld [vmem:[#allocation5 + $0x40] sm:$0xff]
    %v3907 = vld [vmem:[#allocation5 + $0x48] sm:$0xff]
    %v3908 = vld [vmem:[#allocation5 + $0x50] sm:$0xff]
    %v3909 = vld [vmem:[#allocation5 + $0x58] sm:$0xff]
    %v3910 = vlaneseq
    %v3911 = vshrl.u32 %v3910, 7
    %v3912 = vsub.s32 7, %v3911
    %v3913 = vrot.slane %v3216, %v3912
    %v3914 = vlaneseq
    %v3915 = vshrl.u32 %v3914, 7
    %v3916 = vsub.s32 7, %v3915
    %v3917 = vrot.slane %v3217, %v3916
    %v3918 = vlaneseq
    %v3919 = vshrl.u32 %v3918, 7
    %v3920 = vsub.s32 7, %v3919
    %v3921 = vrot.slane %v3218, %v3920
    %v3922 = vlaneseq
    %v3923 = vshrl.u32 %v3922, 7
    %v3924 = vsub.s32 7, %v3923
    %v3925 = vrot.slane %v3219, %v3924
    %3930 = vrot.lane.b32.xlu0 %v3913, 16
    %v3931 = vpop.permute.xlu0 %3930
    %3932 = vrot.lane.b32.xlu0 %v3917, 16
    %v3933 = vpop.permute.xlu0 %3932
    %3934 = vrot.lane.b32.xlu0 %v3921, 16
    %v3935 = vpop.permute.xlu0 %3934
    %3936 = vrot.lane.b32.xlu0 %v3925, 16
    %v3937 = vpop.permute.xlu0 %3936
    %v3938 = vsel %vm385, %v3931, %v3933
    %v3939 = vsel %vm385, %v3933, %v3935
    %v3940 = vsel %vm385, %v3935, %v3937
    %v3946 = vmul.f32 %v3900, %v3931
    %v3947 = vmul.f32 %v3901, %v3938
    %v3948 = vmul.f32 %v3902, %v3939
    %v3949 = vmul.f32 %v3903, %v3940
    %v3950 = vmul.f32 %v3904, %v3937
    %v3951 = vmul.f32 %v3905, %v3931
    %v3952 = vmul.f32 %v3906, %v3938
    %v3953 = vmul.f32 %v3907, %v3939
    %v3954 = vmul.f32 %v3908, %v3940
    %v3955 = vmul.f32 %v3909, %v3937
    %3966 = vrot.lane.b32.xlu0 %v3946, 112
    %v3967 = vpop.permute.xlu0 %3966
    %3968 = vrot.lane.b32.xlu0 %v3947, 112
    %v3969 = vpop.permute.xlu0 %3968
    %3970 = vrot.lane.b32.xlu0 %v3948, 112
    %v3971 = vpop.permute.xlu0 %3970
    %3972 = vrot.lane.b32.xlu0 %v3949, 112
    %v3973 = vpop.permute.xlu0 %3972
    %3974 = vrot.lane.b32.xlu0 %v3950, 112
    %v3975 = vpop.permute.xlu0 %3974
    %3976 = vrot.lane.b32.xlu0 %v3951, 112
    %v3977 = vpop.permute.xlu0 %3976
    %3978 = vrot.lane.b32.xlu0 %v3952, 112
    %v3979 = vpop.permute.xlu0 %3978
    %3980 = vrot.lane.b32.xlu0 %v3953, 112
    %v3981 = vpop.permute.xlu0 %3980
    %3982 = vrot.lane.b32.xlu0 %v3954, 112
    %v3983 = vpop.permute.xlu0 %3982
    %3984 = vrot.lane.b32.xlu0 %v3955, 112
    %v3985 = vpop.permute.xlu0 %3984
    %v3986 = vsel %vm336, %v3967, %v3969
    %v3987 = vsel %vm336, %v3969, %v3971
    %v3988 = vsel %vm336, %v3971, %v3973
    %v3989 = vsel %vm336, %v3973, %v3975
    %v3990 = vsel %vm336, %v3977, %v3979
    %v3991 = vsel %vm336, %v3979, %v3981
    %v3992 = vsel %vm336, %v3981, %v3983
    %v3993 = vsel %vm336, %v3983, %v3985
    %4002 = vst [vmem:[#allocation8 + $0x1c0] sm:$0xff] %v3986
    %4003 = vst [vmem:[#allocation8 + $0x1c8] sm:$0xff] %v3987
    %4004 = vst [vmem:[#allocation8 + $0x1d0] sm:$0xff] %v3988
    %4005 = vst [vmem:[#allocation8 + $0x1d8] sm:$0xff] %v3989
    %4006 = vst [vmem:[#allocation8 + $0x1e0] sm:$0xff] %v3990
    %4007 = vst [vmem:[#allocation8 + $0x1e8] sm:$0xff] %v3991
    %4008 = vst [vmem:[#allocation8 + $0x1f0] sm:$0xff] %v3992
    %4009 = vst [vmem:[#allocation8 + $0x1f8] sm:$0xff] %v3993
    %v4010 = vld [vmem:[#allocation5 + $0x8] sm:$0xff]
    %v4011 = vld [vmem:[#allocation5 + $0x10] sm:$0xff]
    %v4012 = vld [vmem:[#allocation5 + $0x18] sm:$0xff]
    %v4013 = vld [vmem:[#allocation5 + $0x20] sm:$0xff]
    %v4014 = vld [vmem:[#allocation5 + $0x28] sm:$0xff]
    %v4015 = vld [vmem:[#allocation5 + $0x38] sm:$0xff]
    %v4016 = vld [vmem:[#allocation5 + $0x40] sm:$0xff]
    %v4017 = vld [vmem:[#allocation5 + $0x48] sm:$0xff]
    %v4018 = vld [vmem:[#allocation5 + $0x50] sm:$0xff]
    %v4019 = vld [vmem:[#allocation5 + $0x58] sm:$0xff]
    %v4020 = vlaneseq
    %v4021 = vshrl.u32 %v4020, 7
    %v4022 = vsub.s32 0, %v4021
    %v4023 = vrot.slane %v3220, %v4022
    %v4024 = vlaneseq
    %v4025 = vshrl.u32 %v4024, 7
    %v4026 = vsub.s32 0, %v4025
    %v4027 = vrot.slane %v3221, %v4026
    %v4028 = vlaneseq
    %v4029 = vshrl.u32 %v4028, 7
    %v4030 = vsub.s32 0, %v4029
    %v4031 = vrot.slane %v3222, %v4030
    %v4032 = vlaneseq
    %v4033 = vshrl.u32 %v4032, 7
    %v4034 = vsub.s32 0, %v4033
    %v4035 = vrot.slane %v3223, %v4034
    %4040 = vrot.lane.b32.xlu0 %v4023, 17
    %v4041 = vpop.permute.xlu0 %4040
    %4042 = vrot.lane.b32.xlu0 %v4027, 17
    %v4043 = vpop.permute.xlu0 %4042
    %4044 = vrot.lane.b32.xlu0 %v4031, 17
    %v4045 = vpop.permute.xlu0 %4044
    %4046 = vrot.lane.b32.xlu0 %v4035, 17
    %v4047 = vpop.permute.xlu0 %4046
    %v4048 = vsel %vm273, %v4041, %v4043
    %v4049 = vsel %vm273, %v4043, %v4045
    %v4050 = vsel %vm273, %v4045, %v4047
    %v4056 = vmul.f32 %v4010, %v4041
    %v4057 = vmul.f32 %v4011, %v4048
    %v4058 = vmul.f32 %v4012, %v4049
    %v4059 = vmul.f32 %v4013, %v4050
    %v4060 = vmul.f32 %v4014, %v4047
    %v4061 = vmul.f32 %v4015, %v4041
    %v4062 = vmul.f32 %v4016, %v4048
    %v4063 = vmul.f32 %v4017, %v4049
    %v4064 = vmul.f32 %v4018, %v4050
    %v4065 = vmul.f32 %v4019, %v4047
    %4076 = vrot.lane.b32.xlu0 %v4056, 111
    %v4077 = vpop.permute.xlu0 %4076
    %4078 = vrot.lane.b32.xlu0 %v4057, 111
    %v4079 = vpop.permute.xlu0 %4078
    %4080 = vrot.lane.b32.xlu0 %v4058, 111
    %v4081 = vpop.permute.xlu0 %4080
    %4082 = vrot.lane.b32.xlu0 %v4059, 111
    %v4083 = vpop.permute.xlu0 %4082
    %4084 = vrot.lane.b32.xlu0 %v4060, 111
    %v4085 = vpop.permute.xlu0 %4084
    %4086 = vrot.lane.b32.xlu0 %v4061, 111
    %v4087 = vpop.permute.xlu0 %4086
    %4088 = vrot.lane.b32.xlu0 %v4062, 111
    %v4089 = vpop.permute.xlu0 %4088
    %4090 = vrot.lane.b32.xlu0 %v4063, 111
    %v4091 = vpop.permute.xlu0 %4090
    %4092 = vrot.lane.b32.xlu0 %v4064, 111
    %v4093 = vpop.permute.xlu0 %4092
    %4094 = vrot.lane.b32.xlu0 %v4065, 111
    %v4095 = vpop.permute.xlu0 %4094
    %v4096 = vsel %vm224, %v4077, %v4079
    %v4097 = vsel %vm224, %v4079, %v4081
    %v4098 = vsel %vm224, %v4081, %v4083
    %v4099 = vsel %vm224, %v4083, %v4085
    %v4100 = vsel %vm224, %v4087, %v4089
    %v4101 = vsel %vm224, %v4089, %v4091
    %v4102 = vsel %vm224, %v4091, %v4093
    %v4103 = vsel %vm224, %v4093, %v4095
    %4112 = vst [vmem:[#allocation8 + $0x200] sm:$0xff] %v4096
    %4113 = vst [vmem:[#allocation8 + $0x208] sm:$0xff] %v4097
    %4114 = vst [vmem:[#allocation8 + $0x210] sm:$0xff] %v4098
    %4115 = vst [vmem:[#allocation8 + $0x218] sm:$0xff] %v4099
    %4116 = vst [vmem:[#allocation8 + $0x220] sm:$0xff] %v4100
    %4117 = vst [vmem:[#allocation8 + $0x228] sm:$0xff] %v4101
    %4118 = vst [vmem:[#allocation8 + $0x230] sm:$0xff] %v4102
    %4119 = vst [vmem:[#allocation8 + $0x238] sm:$0xff] %v4103
    %s4120 = scalar_lea.vmem [#allocation9], 64
    %v4121 = vld [vmem:[%s4120] sm:$0xff]
    %v4122 = vld [vmem:[%s4120 + $0x8] sm:$0xff]
    %v4123 = vld [vmem:[%s4120 + $0x10] sm:$0xff]
    %v4124 = vld [vmem:[%s4120 + $0x18] sm:$0xff]
    %v4125 = vld [vmem:[#allocation8] sm:$0xff]
    %v4126 = vld [vmem:[#allocation8 + $0x8] sm:$0xff]
    %v4127 = vld [vmem:[#allocation8 + $0x10] sm:$0xff]
    %v4128 = vld [vmem:[#allocation8 + $0x18] sm:$0xff]
    %v4129 = vld [vmem:[#allocation8 + $0x20] sm:$0xff]
    %v4130 = vld [vmem:[#allocation8 + $0x28] sm:$0xff]
    %v4131 = vld [vmem:[#allocation8 + $0x30] sm:$0xff]
    %v4132 = vld [vmem:[#allocation8 + $0x38] sm:$0xff]
    %v4133 = vld [vmem:[#allocation8 + $0x40] sm:$0xff]
    %v4134 = vld [vmem:[#allocation8 + $0x48] sm:$0xff]
    %v4135 = vld [vmem:[#allocation8 + $0x50] sm:$0xff]
    %v4136 = vld [vmem:[#allocation8 + $0x58] sm:$0xff]
    %v4137 = vld [vmem:[#allocation8 + $0x60] sm:$0xff]
    %v4138 = vld [vmem:[#allocation8 + $0x68] sm:$0xff]
    %v4139 = vld [vmem:[#allocation8 + $0x70] sm:$0xff]
    %v4140 = vld [vmem:[#allocation8 + $0x78] sm:$0xff]
    %v4141 = vld [vmem:[#allocation8 + $0x80] sm:$0xff]
    %v4142 = vld [vmem:[#allocation8 + $0x88] sm:$0xff]
    %v4143 = vld [vmem:[#allocation8 + $0x90] sm:$0xff]
    %v4144 = vld [vmem:[#allocation8 + $0x98] sm:$0xff]
    %v4145 = vld [vmem:[#allocation8 + $0xa0] sm:$0xff]
    %v4146 = vld [vmem:[#allocation8 + $0xa8] sm:$0xff]
    %v4147 = vld [vmem:[#allocation8 + $0xb0] sm:$0xff]
    %v4148 = vld [vmem:[#allocation8 + $0xb8] sm:$0xff]
    %v4149 = vld [vmem:[#allocation8 + $0xc0] sm:$0xff]
    %v4150 = vld [vmem:[#allocation8 + $0xc8] sm:$0xff]
    %v4151 = vld [vmem:[#allocation8 + $0xd0] sm:$0xff]
    %v4152 = vld [vmem:[#allocation8 + $0xd8] sm:$0xff]
    %v4153 = vld [vmem:[#allocation8 + $0xe0] sm:$0xff]
    %v4154 = vld [vmem:[#allocation8 + $0xe8] sm:$0xff]
    %v4155 = vld [vmem:[#allocation8 + $0xf0] sm:$0xff]
    %v4156 = vld [vmem:[#allocation8 + $0xf8] sm:$0xff]
    %v4157 = vld [vmem:[#allocation8 + $0x100] sm:$0xff]
    %v4158 = vld [vmem:[#allocation8 + $0x108] sm:$0xff]
    %v4159 = vld [vmem:[#allocation8 + $0x110] sm:$0xff]
    %v4160 = vld [vmem:[#allocation8 + $0x118] sm:$0xff]
    %v4161 = vld [vmem:[#allocation8 + $0x120] sm:$0xff]
    %v4162 = vld [vmem:[#allocation8 + $0x128] sm:$0xff]
    %v4163 = vld [vmem:[#allocation8 + $0x130] sm:$0xff]
    %v4164 = vld [vmem:[#allocation8 + $0x138] sm:$0xff]
    %v4165 = vld [vmem:[#allocation8 + $0x140] sm:$0xff]
    %v4166 = vld [vmem:[#allocation8 + $0x148] sm:$0xff]
    %v4167 = vld [vmem:[#allocation8 + $0x150] sm:$0xff]
    %v4168 = vld [vmem:[#allocation8 + $0x158] sm:$0xff]
    %v4169 = vld [vmem:[#allocation8 + $0x160] sm:$0xff]
    %v4170 = vld [vmem:[#allocation8 + $0x168] sm:$0xff]
    %v4171 = vld [vmem:[#allocation8 + $0x170] sm:$0xff]
    %v4172 = vld [vmem:[#allocation8 + $0x178] sm:$0xff]
    %v4173 = vld [vmem:[#allocation8 + $0x180] sm:$0xff]
    %v4174 = vld [vmem:[#allocation8 + $0x188] sm:$0xff]
    %v4175 = vld [vmem:[#allocation8 + $0x190] sm:$0xff]
    %v4176 = vld [vmem:[#allocation8 + $0x198] sm:$0xff]
    %v4177 = vld [vmem:[#allocation8 + $0x1a0] sm:$0xff]
    %v4178 = vld [vmem:[#allocation8 + $0x1a8] sm:$0xff]
    %v4179 = vld [vmem:[#allocation8 + $0x1b0] sm:$0xff]
    %v4180 = vld [vmem:[#allocation8 + $0x1b8] sm:$0xff]
    %v4181 = vld [vmem:[#allocation8 + $0x1c0] sm:$0xff]
    %v4182 = vld [vmem:[#allocation8 + $0x1c8] sm:$0xff]
    %v4183 = vld [vmem:[#allocation8 + $0x1d0] sm:$0xff]
    %v4184 = vld [vmem:[#allocation8 + $0x1d8] sm:$0xff]
    %v4185 = vld [vmem:[#allocation8 + $0x1e0] sm:$0xff]
    %v4186 = vld [vmem:[#allocation8 + $0x1e8] sm:$0xff]
    %v4187 = vld [vmem:[#allocation8 + $0x1f0] sm:$0xff]
    %v4188 = vld [vmem:[#allocation8 + $0x1f8] sm:$0xff]
    %v4189 = vld [vmem:[#allocation8 + $0x200] sm:$0xff]
    %v4190 = vld [vmem:[#allocation8 + $0x208] sm:$0xff]
    %v4191 = vld [vmem:[#allocation8 + $0x210] sm:$0xff]
    %v4192 = vld [vmem:[#allocation8 + $0x218] sm:$0xff]
    %v4193 = vld [vmem:[#allocation8 + $0x220] sm:$0xff]
    %v4194 = vld [vmem:[#allocation8 + $0x228] sm:$0xff]
    %v4195 = vld [vmem:[#allocation8 + $0x230] sm:$0xff]
    %v4196 = vld [vmem:[#allocation8 + $0x238] sm:$0xff]
    %v4198 = vsel %vm385, %v4122, 0
    %v4201 = vsel %vm385, %v4124, 0
    %4203 = vmatprep.subr.mxu0 %v4126
    %4204 = vmatpush1.msra.mxu0 %v4125
    %4205 = vmatprep.subr.mxu0 %v4130
    %4206 = vmatpush1.msra.mxu0 %v4129
    %4207 = vmatprep.subr.mxu0 %v4134
    %4208 = vmatpush1.msra.mxu0 %v4133
    %4209 = vmatprep.subr.mxu0 %v4138
    %4210 = vmatpush1.msra.mxu0 %v4137
    %4211 = vmatprep.subr.mxu0 %v4142
    %4212 = vmatpush1.msra.mxu0 %v4141
    %4213 = vmatprep.subr.mxu0 %v4146
    %4214 = vmatpush1.msra.mxu0 %v4145
    %4215 = vmatprep.subr.mxu0 %v4150
    %4216 = vmatpush1.msra.mxu0 %v4149
    %4217 = vmatprep.subr.mxu0 %v4154
    %4218 = vmatpush1.msra.mxu0 %v4153
    %4219 = vmatprep.subr.mxu0 %v4158
    %4220 = vmatpush1.msra.mxu0 %v4157
    %4221 = vmatprep.subr.mxu0 %v4162
    %4222 = vmatpush1.msra.mxu0 %v4161
    %4223 = vmatprep.subr.mxu0 %v4166
    %4224 = vmatpush1.msra.mxu0 %v4165
    %4225 = vmatprep.subr.mxu0 %v4170
    %4226 = vmatpush1.msra.mxu0 %v4169
    %4227 = vmatprep.subr.mxu0 %v4174
    %4228 = vmatpush1.msra.mxu0 %v4173
    %4229 = vmatprep.subr.mxu0 %v4178
    %4230 = vmatpush1.msra.mxu0 %v4177
    %4231 = vmatprep.subr.mxu0 %v4182
    %4232 = vmatpush1.msra.mxu0 %v4181
    %4233 = vmatprep.subr.mxu0 %v4186
    %4234 = vmatpush1.msra.mxu0 %v4185
    %4235 = vmatprep.subr.mxu0 %v4190
    %4236 = vmatpush1.msra.mxu0 %v4189
    %4237 = vmatprep.subr.mxu0 %v4194
    %4238 = vmatpush1.msra.mxu0 %v4193
    %4239 = vmatprep.subr.mxu0 0.0
    %4240 = vmatpush1.msra.mxu0 0.0
    %4241 = vmatprep.subr.mxu0 0.0
    %4242 = vmatpush1.msra.mxu0 0.0
    %4243 = vmatprep.subr.mxu0 0.0
    %4244 = vmatpush1.msra.mxu0 0.0
    %4245 = vmatprep.subr.mxu0 0.0
    %4246 = vmatpush1.msra.mxu0 0.0
    %4247 = vmatprep.subr.mxu0 0.0
    %4248 = vmatpush1.msra.mxu0 0.0
    %4249 = vmatprep.subr.mxu0 0.0
    %4250 = vmatpush1.msra.mxu0 0.0
    %4251 = vmatprep.subr.mxu0 0.0
    %4252 = vmatpush1.msra.mxu0 0.0
    %4253 = vmatprep.subr.mxu0 0.0
    %4254 = vmatpush1.msra.mxu0 0.0
    %4255 = vmatprep.subr.mxu0 0.0
    %4256 = vmatpush1.msra.mxu0 0.0
    %4257 = vmatprep.subr.mxu0 0.0
    %4258 = vmatpush1.msra.mxu0 0.0
    %4259 = vmatprep.subr.mxu0 0.0
    %4260 = vmatpush1.msra.mxu0 0.0
    %4261 = vmatprep.subr.mxu0 0.0
    %4262 = vmatpush1.msra.mxu0 0.0
    %4263 = vmatprep.subr.mxu0 0.0
    %4264 = vmatpush1.msra.mxu0 0.0
    %4265 = vmatprep.subr.mxu0 0.0
    %4266 = vmatpush1.msra.mxu0 0.0
    %4267 = vmatprep.mubr.f32.mxu0 %v4198
    %4268 = vmatmul.mubr.f32.gmra.mrb[0].mxu0 %v4121
    %v4269 = vpop.f32.mrb[0].mxu0
    %v4270 = vadd.f32 0.0, %v4269
    %v4271 = vpop.f32.mrb[0].mxu0
    %v4272 = vadd.f32 0.0, %v4271
    %4273 = vmatprep.mubr.f32.mxu0 %v4201
    %4274 = vmatmul.mubr.f32.gmra.mrb[0].mxu0 %v4123
    %v4275 = vpop.f32.mrb[0].mxu0
    %v4276 = vadd.f32 0.0, %v4275
    %v4277 = vpop.f32.mrb[0].mxu0
    %v4278 = vadd.f32 0.0, %v4277
    %4279 = vdwg.mxu0
    %4280 = vmatprep.subr.mxu0 %v4128
    %4281 = vmatpush1.msra.mxu0 %v4127
    %4282 = vmatprep.subr.mxu0 %v4132
    %4283 = vmatpush1.msra.mxu0 %v4131
    %4284 = vmatprep.subr.mxu0 %v4136
    %4285 = vmatpush1.msra.mxu0 %v4135
    %4286 = vmatprep.subr.mxu0 %v4140
    %4287 = vmatpush1.msra.mxu0 %v4139
    %4288 = vmatprep.subr.mxu0 %v4144
    %4289 = vmatpush1.msra.mxu0 %v4143
    %4290 = vmatprep.subr.mxu0 %v4148
    %4291 = vmatpush1.msra.mxu0 %v4147
    %4292 = vmatprep.subr.mxu0 %v4152
    %4293 = vmatpush1.msra.mxu0 %v4151
    %4294 = vmatprep.subr.mxu0 %v4156
    %4295 = vmatpush1.msra.mxu0 %v4155
    %4296 = vmatprep.subr.mxu0 %v4160
    %4297 = vmatpush1.msra.mxu0 %v4159
    %4298 = vmatprep.subr.mxu0 %v4164
    %4299 = vmatpush1.msra.mxu0 %v4163
    %4300 = vmatprep.subr.mxu0 %v4168
    %4301 = vmatpush1.msra.mxu0 %v4167
    %4302 = vmatprep.subr.mxu0 %v4172
    %4303 = vmatpush1.msra.mxu0 %v4171
    %4304 = vmatprep.subr.mxu0 %v4176
    %4305 = vmatpush1.msra.mxu0 %v4175
    %4306 = vmatprep.subr.mxu0 %v4180
    %4307 = vmatpush1.msra.mxu0 %v4179
    %4308 = vmatprep.subr.mxu0 %v4184
    %4309 = vmatpush1.msra.mxu0 %v4183
    %4310 = vmatprep.subr.mxu0 %v4188
    %4311 = vmatpush1.msra.mxu0 %v4187
    %4312 = vmatprep.subr.mxu0 %v4192
    %4313 = vmatpush1.msra.mxu0 %v4191
    %4314 = vmatprep.subr.mxu0 %v4196
    %4315 = vmatpush1.msra.mxu0 %v4195
    %4316 = vmatprep.subr.mxu0 0.0
    %4317 = vmatpush1.msra.mxu0 0.0
    %4318 = vmatprep.subr.mxu0 0.0
    %4319 = vmatpush1.msra.mxu0 0.0
    %4320 = vmatprep.subr.mxu0 0.0
    %4321 = vmatpush1.msra.mxu0 0.0
    %4322 = vmatprep.subr.mxu0 0.0
    %4323 = vmatpush1.msra.mxu0 0.0
    %4324 = vmatprep.subr.mxu0 0.0
    %4325 = vmatpush1.msra.mxu0 0.0
    %4326 = vmatprep.subr.mxu0 0.0
    %4327 = vmatpush1.msra.mxu0 0.0
    %4328 = vmatprep.subr.mxu0 0.0
    %4329 = vmatpush1.msra.mxu0 0.0
    %4330 = vmatprep.subr.mxu0 0.0
    %4331 = vmatpush1.msra.mxu0 0.0
    %4332 = vmatprep.subr.mxu0 0.0
    %4333 = vmatpush1.msra.mxu0 0.0
    %4334 = vmatprep.subr.mxu0 0.0
    %4335 = vmatpush1.msra.mxu0 0.0
    %4336 = vmatprep.subr.mxu0 0.0
    %4337 = vmatpush1.msra.mxu0 0.0
    %4338 = vmatprep.subr.mxu0 0.0
    %4339 = vmatpush1.msra.mxu0 0.0
    %4340 = vmatprep.subr.mxu0 0.0
    %4341 = vmatpush1.msra.mxu0 0.0
    %4342 = vmatprep.subr.mxu0 0.0
    %4343 = vmatpush1.msra.mxu0 0.0
    %4344 = vmatprep.mubr.f32.mxu0 %v4198
    %4345 = vmatmul.mubr.f32.gmra.mrb[0].mxu0 %v4121
    %v4346 = vpop.f32.mrb[0].mxu0
    %v4347 = vadd.f32 0.0, %v4346
    %v4348 = vpop.f32.mrb[0].mxu0
    %v4349 = vadd.f32 0.0, %v4348
    %4350 = vmatprep.mubr.f32.mxu0 %v4201
    %4351 = vmatmul.mubr.f32.gmra.mrb[0].mxu0 %v4123
    %v4352 = vpop.f32.mrb[0].mxu0
    %v4353 = vadd.f32 0.0, %v4352
    %v4354 = vpop.f32.mrb[0].mxu0
    %v4355 = vadd.f32 0.0, %v4354
    %4356 = vdwg.mxu0
    %v4357 = vadd.f32 %v2853, %v4270
    %v4358 = vadd.f32 %v2854, %v4272
    %v4359 = vadd.f32 %v2855, %v4347
    %v4360 = vadd.f32 %v2856, %v4349
    %v4361 = vadd.f32 %v2857, %v4276
    %v4362 = vadd.f32 %v2858, %v4278
    %v4363 = vadd.f32 %v2859, %v4353
    %v4364 = vadd.f32 %v2860, %v4355
    %4365 = vst [vmem:[#allocation2] sm:$0xff] %v4357
    %4366 = vst [vmem:[#allocation2 + $0x8] sm:$0xff] %v4358
    %4367 = vst [vmem:[#allocation2 + $0x10] sm:$0xff] %v4359
    %4368 = vst [vmem:[#allocation2 + $0x18] sm:$0xff] %v4360
    %4369 = vst [vmem:[#allocation2 + $0x20] sm:$0xff] %v4361
    %4370 = vst [vmem:[#allocation2 + $0x28] sm:$0xff] %v4362
    %4371 = vst [vmem:[#allocation2 + $0x30] sm:$0xff] %v4363
    %4372 = vst [vmem:[#allocation2 + $0x38] sm:$0xff] %v4364
    %v4373 = vld [vmem:[#allocation2] sm:$0xff]
    %v4374 = vld [vmem:[#allocation2 + $0x8] sm:$0xff]
    %v4375 = vld [vmem:[#allocation2 + $0x10] sm:$0xff]
    %v4376 = vld [vmem:[#allocation2 + $0x18] sm:$0xff]
    %v4377 = vld [vmem:[#allocation2 + $0x20] sm:$0xff]
    %v4378 = vld [vmem:[#allocation2 + $0x28] sm:$0xff]
    %v4379 = vld [vmem:[#allocation2 + $0x30] sm:$0xff]
    %v4380 = vld [vmem:[#allocation2 + $0x38] sm:$0xff]
    %v4381 = vld [vmem:[#allocation11] sm:$0xff]
    %v4382 = vld [vmem:[#allocation11 + $0x8] sm:$0xff]
    %v4383 = vld [vmem:[#allocation13] sm:$0xff]
    %v4384 = vld [vmem:[#allocation13 + $0x8] sm:$0xff]
    %v4385 = vadd.f32 %v4373, %v4374
    %v4386 = vadd.f32 %v4385, %v4375
    %v4387 = vadd.f32 %v4386, %v4376
    %4388 = vadd.xlane.f32.xlu0 %v4387
    %v4389 = vpop.xlane.xlu0 %4388
    %v4390 = vadd.f32 %v4377, %v4378
    %v4391 = vadd.f32 %v4390, %v4379
    %v4392 = vadd.f32 %v4391, %v4380
    %4393 = vadd.xlane.f32.xlu0 %v4392
    %v4394 = vpop.xlane.xlu0 %4393
    %v4395 = vmul.f32 %v4373, %v4373
    %v4396 = vmul.f32 %v4374, %v4374
    %v4397 = vmul.f32 %v4375, %v4375
    %v4398 = vmul.f32 %v4376, %v4376
    %v4399 = vmul.f32 %v4377, %v4377
    %v4400 = vmul.f32 %v4378, %v4378
    %v4401 = vmul.f32 %v4379, %v4379
    %v4402 = vmul.f32 %v4380, %v4380
    %v4403 = vadd.f32 %v4395, %v4396
    %v4404 = vadd.f32 %v4403, %v4397
    %v4405 = vadd.f32 %v4404, %v4398
    %4406 = vadd.xlane.f32.xlu0 %v4405
    %v4407 = vpop.xlane.xlu0 %4406
    %v4408 = vadd.f32 %v4399, %v4400
    %v4409 = vadd.f32 %v4408, %v4401
    %v4410 = vadd.f32 %v4409, %v4402
    %4411 = vadd.xlane.f32.xlu0 %v4410
    %v4412 = vpop.xlane.xlu0 %4411
    %v4413 = vmul.f32 %v4389, 0.001953125
    %v4414 = vmul.f32 %v4394, 0.001953125
    %v4415 = vmul.f32 %v4407, 0.001953125
    %v4416 = vmul.f32 %v4412, 0.001953125
    %v4417 = vmul.f32 %v4413, %v4413
    %v4418 = vmul.f32 %v4414, %v4414
    %v4419 = vsub.f32 %v4415, %v4417
    %v4420 = vsub.f32 %v4416, %v4418
    %v4421 = vadd.f32 %v4419, 1e-05
    %v4422 = vadd.f32 %v4420, 1e-05
    %v4423 = vrsqrt.pop %v4421
    %v4424 = vrsqrt.pop %v4422
    %v4425 = vmul.f32 %v4381, %v4423
    %v4426 = vmul.f32 %v4382, %v4424
    %v4427 = vmul.f32 %v4413, %v4425
    %v4428 = vmul.f32 %v4414, %v4426
    %v4429 = vsub.f32 %v4383, %v4427
    %v4430 = vsub.f32 %v4384, %v4428
    %4432 = vset.pattern.permute.xlu0 4
    %4433 = vperm.xlu0 %4432, %v4425
    %v4434 = vpop.permute.xlu0 %4433
    %4437 = vset.pattern.permute.xlu0 4
    %4438 = vperm.xlu0 %4437, %v4426
    %v4439 = vpop.permute.xlu0 %4438
    %v4441 = vmul.f32 %v4373, %v4434
    %v4442 = vmul.f32 %v4374, %v4434
    %v4443 = vmul.f32 %v4375, %v4434
    %v4444 = vmul.f32 %v4376, %v4434
    %v4445 = vmul.f32 %v4377, %v4439
    %v4446 = vmul.f32 %v4378, %v4439
    %v4447 = vmul.f32 %v4379, %v4439
    %v4448 = vmul.f32 %v4380, %v4439
    %4450 = vset.pattern.permute.xlu0 4
    %4451 = vperm.xlu0 %4450, %v4429
    %v4452 = vpop.permute.xlu0 %4451
    %4455 = vset.pattern.permute.xlu0 4
    %4456 = vperm.xlu0 %4455, %v4430
    %v4457 = vpop.permute.xlu0 %4456
    %v4459 = vadd.f32 %v4441, %v4452
    %v4460 = vadd.f32 %v4442, %v4452
    %v4461 = vadd.f32 %v4443, %v4452
    %v4462 = vadd.f32 %v4444, %v4452
    %v4463 = vadd.f32 %v4445, %v4457
    %v4464 = vadd.f32 %v4446, %v4457
    %v4465 = vadd.f32 %v4447, %v4457
    %v4466 = vadd.f32 %v4448, %v4457
    %v4467 = vmax.f32 %v4459, 0.0
    %v4468 = vmax.f32 %v4460, 0.0
    %v4469 = vmax.f32 %v4461, 0.0
    %v4470 = vmax.f32 %v4462, 0.0
    %v4471 = vmax.f32 %v4463, 0.0
    %v4472 = vmax.f32 %v4464, 0.0
    %v4473 = vmax.f32 %v4465, 0.0
    %v4474 = vmax.f32 %v4466, 0.0
    %s4475 = scalar_lea.vmem %s2, 32
    %v4476 = vld [vmem:[%s4475] sm:$0xff]
    %v4477 = vld [vmem:[%s4475 + $0x8] sm:$0xff]
    %v4479 = vsel %vm385, %v4476, 0
    %v4482 = vsel %vm385, %v4477, 0
    %4484 = vmatprep.subr.mxu0 %v4468
    %4485 = vmatpush1.msra.mxu0 %v4467
    %4486 = vmatprep.subr.mxu0 %v4472
    %4487 = vmatpush1.msra.mxu0 %v4471
    %4488 = vmatprep.subr.mxu0 0.0
    %4489 = vmatpush1.msra.mxu0 0.0
    %4490 = vmatprep.subr.mxu0 0.0
    %4491 = vmatpush1.msra.mxu0 0.0
    %4492 = vmatprep.subr.mxu0 0.0
    %4493 = vmatpush1.msra.mxu0 0.0
    %4494 = vmatprep.subr.mxu0 0.0
    %4495 = vmatpush1.msra.mxu0 0.0
    %4496 = vmatprep.subr.mxu0 0.0
    %4497 = vmatpush1.msra.mxu0 0.0
    %4498 = vmatprep.subr.mxu0 0.0
    %4499 = vmatpush1.msra.mxu0 0.0
    %4500 = vmatprep.subr.mxu0 0.0
    %4501 = vmatpush1.msra.mxu0 0.0
    %4502 = vmatprep.subr.mxu0 0.0
    %4503 = vmatpush1.msra.mxu0 0.0
    %4504 = vmatprep.subr.mxu0 0.0
    %4505 = vmatpush1.msra.mxu0 0.0
    %4506 = vmatprep.subr.mxu0 0.0
    %4507 = vmatpush1.msra.mxu0 0.0
    %4508 = vmatprep.subr.mxu0 0.0
    %4509 = vmatpush1.msra.mxu0 0.0
    %4510 = vmatprep.subr.mxu0 0.0
    %4511 = vmatpush1.msra.mxu0 0.0
    %4512 = vmatprep.subr.mxu0 0.0
    %4513 = vmatpush1.msra.mxu0 0.0
    %4514 = vmatprep.subr.mxu0 0.0
    %4515 = vmatpush1.msra.mxu0 0.0
    %4516 = vmatprep.subr.mxu0 0.0
    %4517 = vmatpush1.msra.mxu0 0.0
    %4518 = vmatprep.subr.mxu0 0.0
    %4519 = vmatpush1.msra.mxu0 0.0
    %4520 = vmatprep.subr.mxu0 0.0
    %4521 = vmatpush1.msra.mxu0 0.0
    %4522 = vmatprep.subr.mxu0 0.0
    %4523 = vmatpush1.msra.mxu0 0.0
    %4524 = vmatprep.subr.mxu0 0.0
    %4525 = vmatpush1.msra.mxu0 0.0
    %4526 = vmatprep.subr.mxu0 0.0
    %4527 = vmatpush1.msra.mxu0 0.0
    %4528 = vmatprep.subr.mxu0 0.0
    %4529 = vmatpush1.msra.mxu0 0.0
    %4530 = vmatprep.subr.mxu0 0.0
    %4531 = vmatpush1.msra.mxu0 0.0
    %4532 = vmatprep.subr.mxu0 0.0
    %4533 = vmatpush1.msra.mxu0 0.0
    %4534 = vmatprep.subr.mxu0 0.0
    %4535 = vmatpush1.msra.mxu0 0.0
    %4536 = vmatprep.subr.mxu0 0.0
    %4537 = vmatpush1.msra.mxu0 0.0
    %4538 = vmatprep.subr.mxu0 0.0
    %4539 = vmatpush1.msra.mxu0 0.0
    %4540 = vmatprep.subr.mxu0 0.0
    %4541 = vmatpush1.msra.mxu0 0.0
    %4542 = vmatprep.subr.mxu0 0.0
    %4543 = vmatpush1.msra.mxu0 0.0
    %4544 = vmatprep.subr.mxu0 0.0
    %4545 = vmatpush1.msra.mxu0 0.0
    %4546 = vmatprep.subr.mxu0 0.0
    %4547 = vmatpush1.msra.mxu0 0.0
    %4548 = vmatprep.mubr.f32.mxu0 0.0
    %4549 = vmatmul.mubr.f32.gmra.mrb[0].mxu0 %v4479
    %v4550 = vpop.f32.mrb[0].mxu0
    %v4551 = vadd.f32 0.0, %v4550
    %v4552 = vpop.f32.mrb[0].mxu0
    %v4553 = vadd.f32 0.0, %v4552
    %4554 = vmatprep.mubr.f32.mxu0 0.0
    %4555 = vmatmul.mubr.f32.gmra.mrb[0].mxu0 %v4482
    %v4556 = vpop.f32.mrb[0].mxu0
    %v4557 = vadd.f32 0.0, %v4556
    %v4558 = vpop.f32.mrb[0].mxu0
    %v4559 = vadd.f32 0.0, %v4558
    %4560 = vdwg.mxu0
    %4561 = vmatprep.subr.mxu0 %v4470
    %4562 = vmatpush1.msra.mxu0 %v4469
    %4563 = vmatprep.subr.mxu0 %v4474
    %4564 = vmatpush1.msra.mxu0 %v4473
    %4565 = vmatprep.subr.mxu0 0.0
    %4566 = vmatpush1.msra.mxu0 0.0
    %4567 = vmatprep.subr.mxu0 0.0
    %4568 = vmatpush1.msra.mxu0 0.0
    %4569 = vmatprep.subr.mxu0 0.0
    %4570 = vmatpush1.msra.mxu0 0.0
    %4571 = vmatprep.subr.mxu0 0.0
    %4572 = vmatpush1.msra.mxu0 0.0
    %4573 = vmatprep.subr.mxu0 0.0
    %4574 = vmatpush1.msra.mxu0 0.0
    %4575 = vmatprep.subr.mxu0 0.0
    %4576 = vmatpush1.msra.mxu0 0.0
    %4577 = vmatprep.subr.mxu0 0.0
    %4578 = vmatpush1.msra.mxu0 0.0
    %4579 = vmatprep.subr.mxu0 0.0
    %4580 = vmatpush1.msra.mxu0 0.0
    %4581 = vmatprep.subr.mxu0 0.0
    %4582 = vmatpush1.msra.mxu0 0.0
    %4583 = vmatprep.subr.mxu0 0.0
    %4584 = vmatpush1.msra.mxu0 0.0
    %4585 = vmatprep.subr.mxu0 0.0
    %4586 = vmatpush1.msra.mxu0 0.0
    %4587 = vmatprep.subr.mxu0 0.0
    %4588 = vmatpush1.msra.mxu0 0.0
    %4589 = vmatprep.subr.mxu0 0.0
    %4590 = vmatpush1.msra.mxu0 0.0
    %4591 = vmatprep.subr.mxu0 0.0
    %4592 = vmatpush1.msra.mxu0 0.0
    %4593 = vmatprep.subr.mxu0 0.0
    %4594 = vmatpush1.msra.mxu0 0.0
    %4595 = vmatprep.subr.mxu0 0.0
    %4596 = vmatpush1.msra.mxu0 0.0
    %4597 = vmatprep.subr.mxu0 0.0
    %4598 = vmatpush1.msra.mxu0 0.0
    %4599 = vmatprep.subr.mxu0 0.0
    %4600 = vmatpush1.msra.mxu0 0.0
    %4601 = vmatprep.subr.mxu0 0.0
    %4602 = vmatpush1.msra.mxu0 0.0
    %4603 = vmatprep.subr.mxu0 0.0
    %4604 = vmatpush1.msra.mxu0 0.0
    %4605 = vmatprep.subr.mxu0 0.0
    %4606 = vmatpush1.msra.mxu0 0.0
    %4607 = vmatprep.subr.mxu0 0.0
    %4608 = vmatpush1.msra.mxu0 0.0
    %4609 = vmatprep.subr.mxu0 0.0
    %4610 = vmatpush1.msra.mxu0 0.0
    %4611 = vmatprep.subr.mxu0 0.0
    %4612 = vmatpush1.msra.mxu0 0.0
    %4613 = vmatprep.subr.mxu0 0.0
    %4614 = vmatpush1.msra.mxu0 0.0
    %4615 = vmatprep.subr.mxu0 0.0
    %4616 = vmatpush1.msra.mxu0 0.0
    %4617 = vmatprep.subr.mxu0 0.0
    %4618 = vmatpush1.msra.mxu0 0.0
    %4619 = vmatprep.subr.mxu0 0.0
    %4620 = vmatpush1.msra.mxu0 0.0
    %4621 = vmatprep.subr.mxu0 0.0
    %4622 = vmatpush1.msra.mxu0 0.0
    %4623 = vmatprep.subr.mxu0 0.0
    %4624 = vmatpush1.msra.mxu0 0.0
    %4625 = vmatprep.mubr.f32.mxu0 0.0
    %4626 = vmatmul.mubr.f32.gmra.mrb[0].mxu0 %v4479
    %v4627 = vpop.f32.mrb[0].mxu0
    %v4628 = vadd.f32 0.0, %v4627
    %v4629 = vpop.f32.mrb[0].mxu0
    %v4630 = vadd.f32 0.0, %v4629
    %4631 = vmatprep.mubr.f32.mxu0 0.0
    %4632 = vmatmul.mubr.f32.gmra.mrb[0].mxu0 %v4482
    %v4633 = vpop.f32.mrb[0].mxu0
    %v4634 = vadd.f32 0.0, %v4633
    %v4635 = vpop.f32.mrb[0].mxu0
    %v4636 = vadd.f32 0.0, %v4635
    %4637 = vdwg.mxu0
    %v4638 = vld [vmem:[#allocation17] sm:$0xff]
    %v4639 = vld [vmem:[#allocation17 + $0x8] sm:$0xff]
    %v4640 = vld [vmem:[#allocation17 + $0x10] sm:$0xff]
    %v4641 = vld [vmem:[#allocation17 + $0x18] sm:$0xff]
    %v4642 = vld [vmem:[#allocation17 + $0x20] sm:$0xff]
    %v4643 = vld [vmem:[#allocation17 + $0x28] sm:$0xff]
    %v4644 = vld [vmem:[#allocation17 + $0x30] sm:$0xff]
    %v4645 = vld [vmem:[#allocation17 + $0x38] sm:$0xff]
    %v4646 = vld [vmem:[#allocation17 + $0x40] sm:$0xff]
    %v4647 = vld [vmem:[#allocation17 + $0x48] sm:$0xff]
    %v4648 = vld [vmem:[#allocation17 + $0x50] sm:$0xff]
    %v4649 = vld [vmem:[#allocation17 + $0x58] sm:$0xff]
    %v4650 = vld [vmem:[#allocation17 + $0x60] sm:$0xff]
    %v4651 = vld [vmem:[#allocation17 + $0x68] sm:$0xff]
    %v4652 = vld [vmem:[#allocation17 + $0x70] sm:$0xff]
    %v4653 = vld [vmem:[#allocation17 + $0x78] sm:$0xff]
    %v4654 = vld [vmem:[#allocation17 + $0x80] sm:$0xff]
    %v4655 = vld [vmem:[#allocation17 + $0x88] sm:$0xff]
    %v4656 = vld [vmem:[#allocation17 + $0x90] sm:$0xff]
    %v4657 = vld [vmem:[#allocation17 + $0x98] sm:$0xff]
    %v4658 = vld [vmem:[#allocation17 + $0xa0] sm:$0xff]
    %v4659 = vld [vmem:[#allocation17 + $0xa8] sm:$0xff]
    %v4660 = vld [vmem:[#allocation17 + $0xb0] sm:$0xff]
    %v4661 = vld [vmem:[#allocation17 + $0xb8] sm:$0xff]
    %v4662 = vld [vmem:[#allocation17 + $0xc0] sm:$0xff]
    %v4663 = vld [vmem:[#allocation17 + $0xc8] sm:$0xff]
    %v4664 = vld [vmem:[#allocation17 + $0xd0] sm:$0xff]
    %v4665 = vld [vmem:[#allocation17 + $0xd8] sm:$0xff]
    %v4666 = vld [vmem:[#allocation17 + $0xe0] sm:$0xff]
    %v4667 = vld [vmem:[#allocation17 + $0xe8] sm:$0xff]
    %v4668 = vld [vmem:[#allocation17 + $0xf0] sm:$0xff]
    %v4669 = vld [vmem:[#allocation17 + $0xf8] sm:$0xff]
    %v4670 = vld [vmem:[#allocation17 + $0x100] sm:$0xff]
    %v4671 = vld [vmem:[#allocation17 + $0x108] sm:$0xff]
    %v4672 = vld [vmem:[#allocation17 + $0x110] sm:$0xff]
    %v4673 = vld [vmem:[#allocation17 + $0x118] sm:$0xff]
    %v4674 = vld [vmem:[#allocation17 + $0x120] sm:$0xff]
    %v4675 = vld [vmem:[#allocation17 + $0x128] sm:$0xff]
    %v4676 = vld [vmem:[#allocation17 + $0x130] sm:$0xff]
    %v4677 = vld [vmem:[#allocation17 + $0x138] sm:$0xff]
    %v4678 = vld [vmem:[#allocation17 + $0x140] sm:$0xff]
    %v4679 = vld [vmem:[#allocation17 + $0x148] sm:$0xff]
    %v4680 = vld [vmem:[#allocation17 + $0x150] sm:$0xff]
    %v4681 = vld [vmem:[#allocation17 + $0x158] sm:$0xff]
    %v4682 = vld [vmem:[#allocation17 + $0x160] sm:$0xff]
    %v4683 = vld [vmem:[#allocation17 + $0x168] sm:$0xff]
    %v4684 = vld [vmem:[#allocation17 + $0x170] sm:$0xff]
    %v4685 = vld [vmem:[#allocation17 + $0x178] sm:$0xff]
    %v4686 = vld [vmem:[#allocation17 + $0x180] sm:$0xff]
    %v4687 = vld [vmem:[#allocation17 + $0x188] sm:$0xff]
    %v4688 = vld [vmem:[#allocation17 + $0x190] sm:$0xff]
    %v4689 = vld [vmem:[#allocation17 + $0x198] sm:$0xff]
    %v4690 = vld [vmem:[#allocation17 + $0x1a0] sm:$0xff]
    %v4691 = vld [vmem:[#allocation17 + $0x1a8] sm:$0xff]
    %v4692 = vld [vmem:[#allocation17 + $0x1b0] sm:$0xff]
    %v4693 = vld [vmem:[#allocation17 + $0x1b8] sm:$0xff]
    %v4694 = vld [vmem:[#allocation17 + $0x1c0] sm:$0xff]
    %v4695 = vld [vmem:[#allocation17 + $0x1c8] sm:$0xff]
    %v4696 = vld [vmem:[#allocation17 + $0x1d0] sm:$0xff]
    %v4697 = vld [vmem:[#allocation17 + $0x1d8] sm:$0xff]
    %v4698 = vld [vmem:[#allocation17 + $0x1e0] sm:$0xff]
    %v4699 = vld [vmem:[#allocation17 + $0x1e8] sm:$0xff]
    %v4700 = vld [vmem:[#allocation17 + $0x1f0] sm:$0xff]
    %v4701 = vld [vmem:[#allocation17 + $0x1f8] sm:$0xff]
    %4702 = vmatprep.subr.mxu0 0.0
    %4703 = vmatpush1.msra.mxu0 %v4638
    %4704 = vmatprep.subr.mxu0 0.0
    %4705 = vmatpush1.msra.mxu0 %v4639
    %4706 = vmatprep.subr.mxu0 0.0
    %4707 = vmatpush1.msra.mxu0 %v4640
    %4708 = vmatprep.subr.mxu0 0.0
    %4709 = vmatpush1.msra.mxu0 %v4641
    %4710 = vmatprep.subr.mxu0 0.0
    %4711 = vmatpush1.msra.mxu0 %v4642
    %4712 = vmatprep.subr.mxu0 0.0
    %4713 = vmatpush1.msra.mxu0 %v4643
    %4714 = vmatprep.subr.mxu0 0.0
    %4715 = vmatpush1.msra.mxu0 %v4644
    %4716 = vmatprep.subr.mxu0 0.0
    %4717 = vmatpush1.msra.mxu0 %v4645
    %4718 = vmatprep.subr.mxu0 0.0
    %4719 = vmatpush1.msra.mxu0 %v4646
    %4720 = vmatprep.subr.mxu0 0.0
    %4721 = vmatpush1.msra.mxu0 %v4647
    %4722 = vmatprep.subr.mxu0 0.0
    %4723 = vmatpush1.msra.mxu0 %v4648
    %4724 = vmatprep.subr.mxu0 0.0
    %4725 = vmatpush1.msra.mxu0 %v4649
    %4726 = vmatprep.subr.mxu0 0.0
    %4727 = vmatpush1.msra.mxu0 %v4650
    %4728 = vmatprep.subr.mxu0 0.0
    %4729 = vmatpush1.msra.mxu0 %v4651
    %4730 = vmatprep.subr.mxu0 0.0
    %4731 = vmatpush1.msra.mxu0 %v4652
    %4732 = vmatprep.subr.mxu0 0.0
    %4733 = vmatpush1.msra.mxu0 %v4653
    %4734 = vmatprep.subr.mxu0 0.0
    %4735 = vmatpush1.msra.mxu0 %v4654
    %4736 = vmatprep.subr.mxu0 0.0
    %4737 = vmatpush1.msra.mxu0 %v4655
    %4738 = vmatprep.subr.mxu0 0.0
    %4739 = vmatpush1.msra.mxu0 %v4656
    %4740 = vmatprep.subr.mxu0 0.0
    %4741 = vmatpush1.msra.mxu0 %v4657
    %4742 = vmatprep.subr.mxu0 0.0
    %4743 = vmatpush1.msra.mxu0 %v4658
    %4744 = vmatprep.subr.mxu0 0.0
    %4745 = vmatpush1.msra.mxu0 %v4659
    %4746 = vmatprep.subr.mxu0 0.0
    %4747 = vmatpush1.msra.mxu0 %v4660
    %4748 = vmatprep.subr.mxu0 0.0
    %4749 = vmatpush1.msra.mxu0 %v4661
    %4750 = vmatprep.subr.mxu0 0.0
    %4751 = vmatpush1.msra.mxu0 %v4662
    %4752 = vmatprep.subr.mxu0 0.0
    %4753 = vmatpush1.msra.mxu0 %v4663
    %4754 = vmatprep.subr.mxu0 0.0
    %4755 = vmatpush1.msra.mxu0 %v4664
    %4756 = vmatprep.subr.mxu0 0.0
    %4757 = vmatpush1.msra.mxu0 %v4665
    %4758 = vmatprep.subr.mxu0 0.0
    %4759 = vmatpush1.msra.mxu0 %v4666
    %4760 = vmatprep.subr.mxu0 0.0
    %4761 = vmatpush1.msra.mxu0 %v4667
    %4762 = vmatprep.subr.mxu0 0.0
    %4763 = vmatpush1.msra.mxu0 %v4668
    %4764 = vmatprep.subr.mxu0 0.0
    %4765 = vmatpush1.msra.mxu0 %v4669
    %4766 = vmatprep.mubr.f32.mxu0 %v4553
    %4767 = vmatmul.mubr.f32.gmra.mrb[0].mxu0 %v4551
    %v4768 = vpop.f32.mrb[0].mxu0
    %v4769 = vadd.f32 0.0, %v4768
    %v4770 = vpop.f32.mrb[0].mxu0
    %4771 = vmatprep.mubr.f32.mxu0 %v4559
    %4772 = vmatmul.mubr.f32.gmra.mrb[0].mxu0 %v4557
    %v4773 = vpop.f32.mrb[0].mxu0
    %v4774 = vadd.f32 0.0, %v4773
    %v4775 = vpop.f32.mrb[0].mxu0
    %4776 = vdwg.mxu0
    %4777 = vmatprep.subr.mxu0 0.0
    %4778 = vmatpush1.msra.mxu0 %v4670
    %4779 = vmatprep.subr.mxu0 0.0
    %4780 = vmatpush1.msra.mxu0 %v4671
    %4781 = vmatprep.subr.mxu0 0.0
    %4782 = vmatpush1.msra.mxu0 %v4672
    %4783 = vmatprep.subr.mxu0 0.0
    %4784 = vmatpush1.msra.mxu0 %v4673
    %4785 = vmatprep.subr.mxu0 0.0
    %4786 = vmatpush1.msra.mxu0 %v4674
    %4787 = vmatprep.subr.mxu0 0.0
    %4788 = vmatpush1.msra.mxu0 %v4675
    %4789 = vmatprep.subr.mxu0 0.0
    %4790 = vmatpush1.msra.mxu0 %v4676
    %4791 = vmatprep.subr.mxu0 0.0
    %4792 = vmatpush1.msra.mxu0 %v4677
    %4793 = vmatprep.subr.mxu0 0.0
    %4794 = vmatpush1.msra.mxu0 %v4678
    %4795 = vmatprep.subr.mxu0 0.0
    %4796 = vmatpush1.msra.mxu0 %v4679
    %4797 = vmatprep.subr.mxu0 0.0
    %4798 = vmatpush1.msra.mxu0 %v4680
    %4799 = vmatprep.subr.mxu0 0.0
    %4800 = vmatpush1.msra.mxu0 %v4681
    %4801 = vmatprep.subr.mxu0 0.0
    %4802 = vmatpush1.msra.mxu0 %v4682
    %4803 = vmatprep.subr.mxu0 0.0
    %4804 = vmatpush1.msra.mxu0 %v4683
    %4805 = vmatprep.subr.mxu0 0.0
    %4806 = vmatpush1.msra.mxu0 %v4684
    %4807 = vmatprep.subr.mxu0 0.0
    %4808 = vmatpush1.msra.mxu0 %v4685
    %4809 = vmatprep.subr.mxu0 0.0
    %4810 = vmatpush1.msra.mxu0 %v4686
    %4811 = vmatprep.subr.mxu0 0.0
    %4812 = vmatpush1.msra.mxu0 %v4687
    %4813 = vmatprep.subr.mxu0 0.0
    %4814 = vmatpush1.msra.mxu0 %v4688
    %4815 = vmatprep.subr.mxu0 0.0
    %4816 = vmatpush1.msra.mxu0 %v4689
    %4817 = vmatprep.subr.mxu0 0.0
    %4818 = vmatpush1.msra.mxu0 %v4690
    %4819 = vmatprep.subr.mxu0 0.0
    %4820 = vmatpush1.msra.mxu0 %v4691
    %4821 = vmatprep.subr.mxu0 0.0
    %4822 = vmatpush1.msra.mxu0 %v4692
    %4823 = vmatprep.subr.mxu0 0.0
    %4824 = vmatpush1.msra.mxu0 %v4693
    %4825 = vmatprep.subr.mxu0 0.0
    %4826 = vmatpush1.msra.mxu0 %v4694
    %4827 = vmatprep.subr.mxu0 0.0
    %4828 = vmatpush1.msra.mxu0 %v4695
    %4829 = vmatprep.subr.mxu0 0.0
    %4830 = vmatpush1.msra.mxu0 %v4696
    %4831 = vmatprep.subr.mxu0 0.0
    %4832 = vmatpush1.msra.mxu0 %v4697
    %4833 = vmatprep.subr.mxu0 0.0
    %4834 = vmatpush1.msra.mxu0 %v4698
    %4835 = vmatprep.subr.mxu0 0.0
    %4836 = vmatpush1.msra.mxu0 %v4699
    %4837 = vmatprep.subr.mxu0 0.0
    %4838 = vmatpush1.msra.mxu0 %v4700
    %4839 = vmatprep.subr.mxu0 0.0
    %4840 = vmatpush1.msra.mxu0 %v4701
    %4841 = vmatprep.mubr.f32.mxu0 %v4630
    %4842 = vmatmul.mubr.f32.gmra.mrb[0].mxu0 %v4628
    %v4843 = vpop.f32.mrb[0].mxu0
    %v4844 = vadd.f32 %v4769, %v4843
    %v4845 = vpop.f32.mrb[0].mxu0
    %4846 = vmatprep.mubr.f32.mxu0 %v4636
    %4847 = vmatmul.mubr.f32.gmra.mrb[0].mxu0 %v4634
    %v4848 = vpop.f32.mrb[0].mxu0
    %v4849 = vadd.f32 %v4774, %v4848
    %v4850 = vpop.f32.mrb[0].mxu0
    %4851 = vdwg.mxu0
    %4852 = vst [vmem:[#allocation3] sm:$0xff] %v4844
    %4853 = vst [vmem:[#allocation3 + $0x8] sm:$0xff] %v4849
    %v4854 = vld [vmem:[#allocation3] sm:$0xff]
    %v4855 = vld [vmem:[#allocation3 + $0x8] sm:$0xff]
    %v4856 = vld [vmem:[#allocation11] sm:$0xff]
    %v4857 = vld [vmem:[#allocation11 + $0x8] sm:$0xff]
    %v4858 = vld [vmem:[#allocation13] sm:$0xff]
    %v4859 = vld [vmem:[#allocation13 + $0x8] sm:$0xff]
    %4860 = vadd.xlane.f32.xlu0 %v4854
    %v4861 = vpop.xlane.xlu0 %4860
    %4862 = vadd.xlane.f32.xlu0 %v4855
    %v4863 = vpop.xlane.xlu0 %4862
    %v4864 = vmul.f32 %v4854, %v4854
    %v4865 = vmul.f32 %v4855, %v4855
    %4866 = vadd.xlane.f32.xlu0 %v4864
    %v4867 = vpop.xlane.xlu0 %4866
    %4868 = vadd.xlane.f32.xlu0 %v4865
    %v4869 = vpop.xlane.xlu0 %4868
    %v4870 = vmul.f32 %v4861, 0.0078125
    %v4871 = vmul.f32 %v4863, 0.0078125
    %v4872 = vmul.f32 %v4867, 0.0078125
    %v4873 = vmul.f32 %v4869, 0.0078125
    %v4874 = vmul.f32 %v4870, %v4870
    %v4875 = vmul.f32 %v4871, %v4871
    %v4876 = vsub.f32 %v4872, %v4874
    %v4877 = vsub.f32 %v4873, %v4875
    %v4878 = vadd.f32 %v4876, 1e-05
    %v4879 = vadd.f32 %v4877, 1e-05
    %v4880 = vrsqrt.pop %v4878
    %v4881 = vrsqrt.pop %v4879
    %v4882 = vmul.f32 %v4856, %v4880
    %v4883 = vmul.f32 %v4857, %v4881
    %v4884 = vmul.f32 %v4870, %v4882
    %v4885 = vmul.f32 %v4871, %v4883
    %v4886 = vsub.f32 %v4858, %v4884
    %v4887 = vsub.f32 %v4859, %v4885
    %4889 = vset.pattern.permute.xlu0 5
    %4890 = vperm.xlu0 %4889, %v4882
    %v4891 = vpop.permute.xlu0 %4890
    %4894 = vset.pattern.permute.xlu0 5
    %4895 = vperm.xlu0 %4894, %v4883
    %v4896 = vpop.permute.xlu0 %4895
    %v4898 = vmul.f32 %v4854, %v4891
    %v4899 = vmul.f32 %v4855, %v4896
    %4901 = vset.pattern.permute.xlu0 5
    %4902 = vperm.xlu0 %4901, %v4886
    %v4903 = vpop.permute.xlu0 %4902
    %4906 = vset.pattern.permute.xlu0 5
    %4907 = vperm.xlu0 %4906, %v4887
    %v4908 = vpop.permute.xlu0 %4907
    %v4910 = vadd.f32 %v4898, %v4903
    %v4911 = vadd.f32 %v4899, %v4908
    %v4912 = vmax.f32 %v4910, 0.0
    %v4913 = vmax.f32 %v4911, 0.0
    %s4914 = scalar_lea.vmem %s2, 48
    %v4915 = vld [vmem:[%s4914] sm:$0xff]
    %v4916 = vld [vmem:[%s4914 + $0x8] sm:$0xff]
    %v4918 = vsel %vm385, %v4915, 0
    %v4921 = vsel %vm385, %v4916, 0
    %4923 = vmatprep.subr.mxu0 0.0
    %4924 = vmatpush1.msra.mxu0 %v4912
    %4925 = vmatprep.subr.mxu0 0.0
    %4926 = vmatpush1.msra.mxu0 %v4913
    %4927 = vmatprep.subr.mxu0 0.0
    %4928 = vmatpush1.msra.mxu0 0.0
    %4929 = vmatprep.subr.mxu0 0.0
    %4930 = vmatpush1.msra.mxu0 0.0
    %4931 = vmatprep.subr.mxu0 0.0
    %4932 = vmatpush1.msra.mxu0 0.0
    %4933 = vmatprep.subr.mxu0 0.0
    %4934 = vmatpush1.msra.mxu0 0.0
    %4935 = vmatprep.subr.mxu0 0.0
    %4936 = vmatpush1.msra.mxu0 0.0
    %4937 = vmatprep.subr.mxu0 0.0
    %4938 = vmatpush1.msra.mxu0 0.0
    %4939 = vmatprep.subr.mxu0 0.0
    %4940 = vmatpush1.msra.mxu0 0.0
    %4941 = vmatprep.subr.mxu0 0.0
    %4942 = vmatpush1.msra.mxu0 0.0
    %4943 = vmatprep.subr.mxu0 0.0
    %4944 = vmatpush1.msra.mxu0 0.0
    %4945 = vmatprep.subr.mxu0 0.0
    %4946 = vmatpush1.msra.mxu0 0.0
    %4947 = vmatprep.subr.mxu0 0.0
    %4948 = vmatpush1.msra.mxu0 0.0
    %4949 = vmatprep.subr.mxu0 0.0
    %4950 = vmatpush1.msra.mxu0 0.0
    %4951 = vmatprep.subr.mxu0 0.0
    %4952 = vmatpush1.msra.mxu0 0.0
    %4953 = vmatprep.subr.mxu0 0.0
    %4954 = vmatpush1.msra.mxu0 0.0
    %4955 = vmatprep.subr.mxu0 0.0
    %4956 = vmatpush1.msra.mxu0 0.0
    %4957 = vmatprep.subr.mxu0 0.0
    %4958 = vmatpush1.msra.mxu0 0.0
    %4959 = vmatprep.subr.mxu0 0.0
    %4960 = vmatpush1.msra.mxu0 0.0
    %4961 = vmatprep.subr.mxu0 0.0
    %4962 = vmatpush1.msra.mxu0 0.0
    %4963 = vmatprep.subr.mxu0 0.0
    %4964 = vmatpush1.msra.mxu0 0.0
    %4965 = vmatprep.subr.mxu0 0.0
    %4966 = vmatpush1.msra.mxu0 0.0
    %4967 = vmatprep.subr.mxu0 0.0
    %4968 = vmatpush1.msra.mxu0 0.0
    %4969 = vmatprep.subr.mxu0 0.0
    %4970 = vmatpush1.msra.mxu0 0.0
    %4971 = vmatprep.subr.mxu0 0.0
    %4972 = vmatpush1.msra.mxu0 0.0
    %4973 = vmatprep.subr.mxu0 0.0
    %4974 = vmatpush1.msra.mxu0 0.0
    %4975 = vmatprep.subr.mxu0 0.0
    %4976 = vmatpush1.msra.mxu0 0.0
    %4977 = vmatprep.subr.mxu0 0.0
    %4978 = vmatpush1.msra.mxu0 0.0
    %4979 = vmatprep.subr.mxu0 0.0
    %4980 = vmatpush1.msra.mxu0 0.0
    %4981 = vmatprep.subr.mxu0 0.0
    %4982 = vmatpush1.msra.mxu0 0.0
    %4983 = vmatprep.subr.mxu0 0.0
    %4984 = vmatpush1.msra.mxu0 0.0
    %4985 = vmatprep.subr.mxu0 0.0
    %4986 = vmatpush1.msra.mxu0 0.0
    %4987 = vmatprep.mubr.f32.mxu0 0.0
    %4988 = vmatmul.mubr.f32.gmra.mrb[0].mxu0 %v4918
    %v4989 = vpop.f32.mrb[0].mxu0
    %v4990 = vadd.f32 0.0, %v4989
    %v4991 = vpop.f32.mrb[0].mxu0
    %4992 = vmatprep.mubr.f32.mxu0 0.0
    %4993 = vmatmul.mubr.f32.gmra.mrb[0].mxu0 %v4921
    %v4994 = vpop.f32.mrb[0].mxu0
    %v4995 = vadd.f32 0.0, %v4994
    %v4996 = vpop.f32.mrb[0].mxu0
    %4997 = vdwg.mxu0
    %4998 = vadd.xlane.f32.xlu0 %v4990
    %v4999 = vpop.xlane.xlu0 %4998
    %5000 = vadd.xlane.f32.xlu0 %v4995
    %v5001 = vpop.xlane.xlu0 %5000
    %v5002 = vmul.f32 %v4990, %v4990
    %v5003 = vmul.f32 %v4995, %v4995
    %5004 = vadd.xlane.f32.xlu0 %v5002
    %v5005 = vpop.xlane.xlu0 %5004
    %5006 = vadd.xlane.f32.xlu0 %v5003
    %v5007 = vpop.xlane.xlu0 %5006
    %v5008 = vmul.f32 %v4999, 0.0078125
    %v5009 = vmul.f32 %v5001, 0.0078125
    %v5010 = vmul.f32 %v5005, 0.0078125
    %v5011 = vmul.f32 %v5007, 0.0078125
    %v5012 = vmul.f32 %v5008, %v5008
    %v5013 = vmul.f32 %v5009, %v5009
    %v5014 = vsub.f32 %v5010, %v5012
    %v5015 = vsub.f32 %v5011, %v5013
    %v5016 = vadd.f32 %v5014, 1e-05
    %v5017 = vadd.f32 %v5015, 1e-05
    %v5018 = vrsqrt.pop %v5016
    %v5019 = vrsqrt.pop %v5017
    %v5020 = vmul.f32 %v4856, %v5018
    %v5021 = vmul.f32 %v4857, %v5019
    %v5022 = vmul.f32 %v5008, %v5020
    %v5023 = vmul.f32 %v5009, %v5021
    %v5024 = vsub.f32 %v4858, %v5022
    %v5025 = vsub.f32 %v4859, %v5023
    %5027 = vset.pattern.permute.xlu0 6
    %5028 = vperm.xlu0 %5027, %v5020
    %v5029 = vpop.permute.xlu0 %5028
    %5032 = vset.pattern.permute.xlu0 6
    %5033 = vperm.xlu0 %5032, %v5021
    %v5034 = vpop.permute.xlu0 %5033
    %v5036 = vmul.f32 %v4990, %v5029
    %v5037 = vmul.f32 %v4995, %v5034
    %5039 = vset.pattern.permute.xlu0 6
    %5040 = vperm.xlu0 %5039, %v5024
    %v5041 = vpop.permute.xlu0 %5040
    %5044 = vset.pattern.permute.xlu0 6
    %5045 = vperm.xlu0 %5044, %v5025
    %v5046 = vpop.permute.xlu0 %5045
    %v5048 = vadd.f32 %v5036, %v5041
    %v5049 = vadd.f32 %v5037, %v5046
    %v5050 = vmax.f32 %v5048, 0.0
    %v5051 = vmax.f32 %v5049, 0.0
    %5052 = vst [vmem:[#allocation6 + $0x8] sm:$0xff] %v5050
    %5053 = vst [vmem:[#allocation6 + $0x20] sm:$0xff] %v5051
    %s5054 = scalar_lea.vmem [#allocation16], 64
    %v5055 = vld [vmem:[%s5054] sm:$0xff]
    %v5056 = vld [vmem:[%s5054 + $0x20] sm:$0x1]
    %v5057 = vld [vmem:[#allocation6] sm:$0xff]
    %v5058 = vld [vmem:[#allocation6 + $0x8] sm:$0xff]
    %v5059 = vld [vmem:[#allocation6 + $0x18] sm:$0xff]
    %v5060 = vld [vmem:[#allocation6 + $0x20] sm:$0xff]
    %v5061 = vlaneseq
    %v5062 = vshrl.u32 %v5061, 7
    %v5063 = vsub.s32 0, %v5062
    %v5064 = vrot.slane %v5055, %v5063
    %5066 = vrot.lane.b32.xlu0 %v5064, 119
    %v5067 = vpop.permute.xlu0 %5066
    %v5069 = vmul.f32 %v5057, %v5067
    %v5070 = vmul.f32 %v5058, %v5067
    %v5071 = vmul.f32 %v5059, %v5067
    %v5072 = vmul.f32 %v5060, %v5067
    %5077 = vrot.lane.b32.xlu0 %v5069, 9
    %v5078 = vpop.permute.xlu0 %5077
    %5079 = vrot.lane.b32.xlu0 %v5070, 9
    %v5080 = vpop.permute.xlu0 %5079
    %5081 = vrot.lane.b32.xlu0 %v5071, 9
    %v5082 = vpop.permute.xlu0 %5081
    %5083 = vrot.lane.b32.xlu0 %v5072, 9
    %v5084 = vpop.permute.xlu0 %5083
    %vm5085 = vcmask 72704
    %v5086 = vsel %vm5085, %v5078, %v5080
    %v5087 = vsel %vm5085, %v5082, %v5084
    %5090 = vst [vmem:[#allocation8] sm:$0xff] %v5086
    %5091 = vst [vmem:[#allocation8 + $0x20] sm:$0xff] %v5087
    %v5092 = vld [vmem:[#allocation6] sm:$0xff]
    %v5093 = vld [vmem:[#allocation6 + $0x8] sm:$0xff]
    %v5094 = vld [vmem:[#allocation6 + $0x18] sm:$0xff]
    %v5095 = vld [vmem:[#allocation6 + $0x20] sm:$0xff]
    %v5096 = vlaneseq
    %v5097 = vshrl.u32 %v5096, 7
    %v5098 = vsub.s32 1, %v5097
    %v5099 = vrot.slane %v5055, %v5098
    %5101 = vrot.lane.b32.xlu0 %v5099, 120
    %v5102 = vpop.permute.xlu0 %5101
    %v5104 = vmul.f32 %v5092, %v5102
    %v5105 = vmul.f32 %v5093, %v5102
    %v5106 = vmul.f32 %v5094, %v5102
    %v5107 = vmul.f32 %v5095, %v5102
    %5112 = vrot.lane.b32.xlu0 %v5104, 8
    %v5113 = vpop.permute.xlu0 %5112
    %5114 = vrot.lane.b32.xlu0 %v5105, 8
    %v5115 = vpop.permute.xlu0 %5114
    %5116 = vrot.lane.b32.xlu0 %v5106, 8
    %v5117 = vpop.permute.xlu0 %5116
    %5118 = vrot.lane.b32.xlu0 %v5107, 8
    %v5119 = vpop.permute.xlu0 %5118
    %vm5120 = vcmask 64512
    %v5121 = vsel %vm5120, %v5113, %v5115
    %v5122 = vsel %vm5120, %v5117, %v5119
    %5125 = vst [vmem:[#allocation8 + $0x40] sm:$0xff] %v5121
    %5126 = vst [vmem:[#allocation8 + $0x60] sm:$0xff] %v5122
    %v5127 = vld [vmem:[#allocation6] sm:$0xff]
    %v5128 = vld [vmem:[#allocation6 + $0x8] sm:$0xff]
    %v5129 = vld [vmem:[#allocation6 + $0x18] sm:$0xff]
    %v5130 = vld [vmem:[#allocation6 + $0x20] sm:$0xff]
    %v5131 = vlaneseq
    %v5132 = vshrl.u32 %v5131, 7
    %v5133 = vsub.s32 2, %v5132
    %v5134 = vrot.slane %v5055, %v5133
    %5136 = vrot.lane.b32.xlu0 %v5134, 121
    %v5137 = vpop.permute.xlu0 %5136
    %v5139 = vmul.f32 %v5127, %v5137
    %v5140 = vmul.f32 %v5128, %v5137
    %v5141 = vmul.f32 %v5129, %v5137
    %v5142 = vmul.f32 %v5130, %v5137
    %5147 = vrot.lane.b32.xlu0 %v5139, 7
    %v5148 = vpop.permute.xlu0 %5147
    %5149 = vrot.lane.b32.xlu0 %v5140, 7
    %v5150 = vpop.permute.xlu0 %5149
    %5151 = vrot.lane.b32.xlu0 %v5141, 7
    %v5152 = vpop.permute.xlu0 %5151
    %5153 = vrot.lane.b32.xlu0 %v5142, 7
    %v5154 = vpop.permute.xlu0 %5153
    %vm5155 = vcmask 56320
    %v5156 = vsel %vm5155, %v5148, %v5150
    %v5157 = vsel %vm5155, %v5152, %v5154
    %5160 = vst [vmem:[#allocation8 + $0x80] sm:$0xff] %v5156
    %5161 = vst [vmem:[#allocation8 + $0xa0] sm:$0xff] %v5157
    %v5162 = vld [vmem:[#allocation6] sm:$0xff]
    %v5163 = vld [vmem:[#allocation6 + $0x8] sm:$0xff]
    %v5164 = vld [vmem:[#allocation6 + $0x18] sm:$0xff]
    %v5165 = vld [vmem:[#allocation6 + $0x20] sm:$0xff]
    %v5166 = vlaneseq
    %v5167 = vshrl.u32 %v5166, 7
    %v5168 = vsub.s32 3, %v5167
    %v5169 = vrot.slane %v5055, %v5168
    %5171 = vrot.lane.b32.xlu0 %v5169, 127
    %v5172 = vpop.permute.xlu0 %5171
    %v5174 = vmul.f32 %v5162, %v5172
    %v5175 = vmul.f32 %v5163, %v5172
    %v5176 = vmul.f32 %v5164, %v5172
    %v5177 = vmul.f32 %v5165, %v5172
    %5182 = vrot.lane.b32.xlu0 %v5174, 1
    %v5183 = vpop.permute.xlu0 %5182
    %5184 = vrot.lane.b32.xlu0 %v5175, 1
    %v5185 = vpop.permute.xlu0 %5184
    %5186 = vrot.lane.b32.xlu0 %v5176, 1
    %v5187 = vpop.permute.xlu0 %5186
    %5188 = vrot.lane.b32.xlu0 %v5177, 1
    %v5189 = vpop.permute.xlu0 %5188
    %v5190 = vsel %vm609, %v5183, %v5185
    %v5191 = vsel %vm609, %v5187, %v5189
    %5194 = vst [vmem:[#allocation8 + $0xc0] sm:$0xff] %v5190
    %5195 = vst [vmem:[#allocation8 + $0xe0] sm:$0xff] %v5191
    %v5196 = vld [vmem:[#allocation6 + $0x8] sm:$0xff]
    %v5197 = vld [vmem:[#allocation6 + $0x20] sm:$0xff]
    %5198 = vst [vmem:[#allocation8 + $0x100] sm:$0xff] %v5196
    %5199 = vst [vmem:[#allocation8 + $0x120] sm:$0xff] %v5197
    %v5200 = vld [vmem:[#allocation6 + $0x8] sm:$0xff]
    %v5201 = vld [vmem:[#allocation6 + $0x10] sm:$0xff]
    %v5202 = vld [vmem:[#allocation6 + $0x20] sm:$0xff]
    %v5203 = vld [vmem:[#allocation6 + $0x28] sm:$0xff]
    %v5204 = vlaneseq
    %v5205 = vshrl.u32 %v5204, 7
    %v5206 = vsub.s32 5, %v5205
    %v5207 = vrot.slane %v5055, %v5206
    %5209 = vrot.lane.b32.xlu0 %v5207, 1
    %v5210 = vpop.permute.xlu0 %5209
    %v5212 = vmul.f32 %v5200, %v5210
    %v5213 = vmul.f32 %v5201, %v5210
    %v5214 = vmul.f32 %v5202, %v5210
    %v5215 = vmul.f32 %v5203, %v5210
    %5220 = vrot.lane.b32.xlu0 %v5212, 127
    %v5221 = vpop.permute.xlu0 %5220
    %5222 = vrot.lane.b32.xlu0 %v5213, 127
    %v5223 = vpop.permute.xlu0 %5222
    %5224 = vrot.lane.b32.xlu0 %v5214, 127
    %v5225 = vpop.permute.xlu0 %5224
    %5226 = vrot.lane.b32.xlu0 %v5215, 127
    %v5227 = vpop.permute.xlu0 %5226
    %v5228 = vsel %vm560, %v5221, %v5223
    %v5229 = vsel %vm560, %v5225, %v5227
    %5232 = vst [vmem:[#allocation8 + $0x140] sm:$0xff] %v5228
    %5233 = vst [vmem:[#allocation8 + $0x160] sm:$0xff] %v5229
    %v5234 = vld [vmem:[#allocation6 + $0x8] sm:$0xff]
    %v5235 = vld [vmem:[#allocation6 + $0x10] sm:$0xff]
    %v5236 = vld [vmem:[#allocation6 + $0x20] sm:$0xff]
    %v5237 = vld [vmem:[#allocation6 + $0x28] sm:$0xff]
    %v5238 = vlaneseq
    %v5239 = vshrl.u32 %v5238, 7
    %v5240 = vsub.s32 6, %v5239
    %v5241 = vrot.slane %v5055, %v5240
    %5243 = vrot.lane.b32.xlu0 %v5241, 7
    %v5244 = vpop.permute.xlu0 %5243
    %v5246 = vmul.f32 %v5234, %v5244
    %v5247 = vmul.f32 %v5235, %v5244
    %v5248 = vmul.f32 %v5236, %v5244
    %v5249 = vmul.f32 %v5237, %v5244
    %5254 = vrot.lane.b32.xlu0 %v5246, 121
    %v5255 = vpop.permute.xlu0 %5254
    %5256 = vrot.lane.b32.xlu0 %v5247, 121
    %v5257 = vpop.permute.xlu0 %5256
    %5258 = vrot.lane.b32.xlu0 %v5248, 121
    %v5259 = vpop.permute.xlu0 %5258
    %5260 = vrot.lane.b32.xlu0 %v5249, 121
    %v5261 = vpop.permute.xlu0 %5260
    %vm5262 = vcmask 990208
    %v5263 = vsel %vm5262, %v5255, %v5257
    %v5264 = vsel %vm5262, %v5259, %v5261
    %5267 = vst [vmem:[#allocation8 + $0x180] sm:$0xff] %v5263
    %5268 = vst [vmem:[#allocation8 + $0x1a0] sm:$0xff] %v5264
    %v5269 = vld [vmem:[#allocation6 + $0x8] sm:$0xff]
    %v5270 = vld [vmem:[#allocation6 + $0x10] sm:$0xff]
    %v5271 = vld [vmem:[#allocation6 + $0x20] sm:$0xff]
    %v5272 = vld [vmem:[#allocation6 + $0x28] sm:$0xff]
    %v5273 = vlaneseq
    %v5274 = vshrl.u32 %v5273, 7
    %v5275 = vsub.s32 7, %v5274
    %v5276 = vrot.slane %v5055, %v5275
    %5278 = vrot.lane.b32.xlu0 %v5276, 8
    %v5279 = vpop.permute.xlu0 %5278
    %v5281 = vmul.f32 %v5269, %v5279
    %v5282 = vmul.f32 %v5270, %v5279
    %v5283 = vmul.f32 %v5271, %v5279
    %v5284 = vmul.f32 %v5272, %v5279
    %5289 = vrot.lane.b32.xlu0 %v5281, 120
    %v5290 = vpop.permute.xlu0 %5289
    %5291 = vrot.lane.b32.xlu0 %v5282, 120
    %v5292 = vpop.permute.xlu0 %5291
    %5293 = vrot.lane.b32.xlu0 %v5283, 120
    %v5294 = vpop.permute.xlu0 %5293
    %5295 = vrot.lane.b32.xlu0 %v5284, 120
    %v5296 = vpop.permute.xlu0 %5295
    %vm5297 = vcmask 982016
    %v5298 = vsel %vm5297, %v5290, %v5292
    %v5299 = vsel %vm5297, %v5294, %v5296
    %5302 = vst [vmem:[#allocation8 + $0x1c0] sm:$0xff] %v5298
    %5303 = vst [vmem:[#allocation8 + $0x1e0] sm:$0xff] %v5299
    %v5304 = vld [vmem:[#allocation6 + $0x8] sm:$0xff]
    %v5305 = vld [vmem:[#allocation6 + $0x10] sm:$0xff]
    %v5306 = vld [vmem:[#allocation6 + $0x20] sm:$0xff]
    %v5307 = vld [vmem:[#allocation6 + $0x28] sm:$0xff]
    %v5308 = vlaneseq
    %v5309 = vshrl.u32 %v5308, 7
    %v5310 = vsub.s32 0, %v5309
    %v5311 = vrot.slane %v5056, %v5310
    %5313 = vrot.lane.b32.xlu0 %v5311, 9
    %v5314 = vpop.permute.xlu0 %5313
    %v5316 = vmul.f32 %v5304, %v5314
    %v5317 = vmul.f32 %v5305, %v5314
    %v5318 = vmul.f32 %v5306, %v5314
    %v5319 = vmul.f32 %v5307, %v5314
    %5324 = vrot.lane.b32.xlu0 %v5316, 119
    %v5325 = vpop.permute.xlu0 %5324
    %5326 = vrot.lane.b32.xlu0 %v5317, 119
    %v5327 = vpop.permute.xlu0 %5326
    %5328 = vrot.lane.b32.xlu0 %v5318, 119
    %v5329 = vpop.permute.xlu0 %5328
    %5330 = vrot.lane.b32.xlu0 %v5319, 119
    %v5331 = vpop.permute.xlu0 %5330
    %vm5332 = vcmask 973824
    %v5333 = vsel %vm5332, %v5325, %v5327
    %v5334 = vsel %vm5332, %v5329, %v5331
    %5337 = vst [vmem:[#allocation8 + $0x200] sm:$0xff] %v5333
    %5338 = vst [vmem:[#allocation8 + $0x220] sm:$0xff] %v5334
    %s5339 = scalar_lea.vmem [#allocation9], 96
    %v5340 = vld [vmem:[%s5339] sm:$0xff]
    %v5341 = vld [vmem:[%s5339 + $0x8] sm:$0xff]
    %v5342 = vld [vmem:[%s5339 + $0x10] sm:$0xff]
    %v5343 = vld [vmem:[%s5339 + $0x18] sm:$0xff]
    %v5344 = vld [vmem:[#allocation8] sm:$0xff]
    %v5345 = vld [vmem:[#allocation8 + $0x20] sm:$0xff]
    %v5346 = vld [vmem:[#allocation8 + $0x40] sm:$0xff]
    %v5347 = vld [vmem:[#allocation8 + $0x60] sm:$0xff]
    %v5348 = vld [vmem:[#allocation8 + $0x80] sm:$0xff]
    %v5349 = vld [vmem:[#allocation8 + $0xa0] sm:$0xff]
    %v5350 = vld [vmem:[#allocation8 + $0xc0] sm:$0xff]
    %v5351 = vld [vmem:[#allocation8 + $0xe0] sm:$0xff]
    %v5352 = vld [vmem:[#allocation8 + $0x100] sm:$0xff]
    %v5353 = vld [vmem:[#allocation8 + $0x120] sm:$0xff]
    %v5354 = vld [vmem:[#allocation8 + $0x140] sm:$0xff]
    %v5355 = vld [vmem:[#allocation8 + $0x160] sm:$0xff]
    %v5356 = vld [vmem:[#allocation8 + $0x180] sm:$0xff]
    %v5357 = vld [vmem:[#allocation8 + $0x1a0] sm:$0xff]
    %v5358 = vld [vmem:[#allocation8 + $0x1c0] sm:$0xff]
    %v5359 = vld [vmem:[#allocation8 + $0x1e0] sm:$0xff]
    %v5360 = vld [vmem:[#allocation8 + $0x200] sm:$0xff]
    %v5361 = vld [vmem:[#allocation8 + $0x220] sm:$0xff]
    %v5363 = vsel %vm385, %v5341, 0
    %v5366 = vsel %vm385, %v5343, 0
    %5368 = vmatprep.subr.mxu0 0.0
    %5369 = vmatpush1.msra.mxu0 %v5344
    %5370 = vmatprep.subr.mxu0 0.0
    %5371 = vmatpush1.msra.mxu0 %v5345
    %5372 = vmatprep.subr.mxu0 0.0
    %5373 = vmatpush1.msra.mxu0 %v5346
    %5374 = vmatprep.subr.mxu0 0.0
    %5375 = vmatpush1.msra.mxu0 %v5347
    %5376 = vmatprep.subr.mxu0 0.0
    %5377 = vmatpush1.msra.mxu0 %v5348
    %5378 = vmatprep.subr.mxu0 0.0
    %5379 = vmatpush1.msra.mxu0 %v5349
    %5380 = vmatprep.subr.mxu0 0.0
    %5381 = vmatpush1.msra.mxu0 %v5350
    %5382 = vmatprep.subr.mxu0 0.0
    %5383 = vmatpush1.msra.mxu0 %v5351
    %5384 = vmatprep.subr.mxu0 0.0
    %5385 = vmatpush1.msra.mxu0 %v5352
    %5386 = vmatprep.subr.mxu0 0.0
    %5387 = vmatpush1.msra.mxu0 %v5353
    %5388 = vmatprep.subr.mxu0 0.0
    %5389 = vmatpush1.msra.mxu0 %v5354
    %5390 = vmatprep.subr.mxu0 0.0
    %5391 = vmatpush1.msra.mxu0 %v5355
    %5392 = vmatprep.subr.mxu0 0.0
    %5393 = vmatpush1.msra.mxu0 %v5356
    %5394 = vmatprep.subr.mxu0 0.0
    %5395 = vmatpush1.msra.mxu0 %v5357
    %5396 = vmatprep.subr.mxu0 0.0
    %5397 = vmatpush1.msra.mxu0 %v5358
    %5398 = vmatprep.subr.mxu0 0.0
    %5399 = vmatpush1.msra.mxu0 %v5359
    %5400 = vmatprep.subr.mxu0 0.0
    %5401 = vmatpush1.msra.mxu0 %v5360
    %5402 = vmatprep.subr.mxu0 0.0
    %5403 = vmatpush1.msra.mxu0 %v5361
    %5404 = vmatprep.subr.mxu0 0.0
    %5405 = vmatpush1.msra.mxu0 0.0
    %5406 = vmatprep.subr.mxu0 0.0
    %5407 = vmatpush1.msra.mxu0 0.0
    %5408 = vmatprep.subr.mxu0 0.0
    %5409 = vmatpush1.msra.mxu0 0.0
    %5410 = vmatprep.subr.mxu0 0.0
    %5411 = vmatpush1.msra.mxu0 0.0
    %5412 = vmatprep.subr.mxu0 0.0
    %5413 = vmatpush1.msra.mxu0 0.0
    %5414 = vmatprep.subr.mxu0 0.0
    %5415 = vmatpush1.msra.mxu0 0.0
    %5416 = vmatprep.subr.mxu0 0.0
    %5417 = vmatpush1.msra.mxu0 0.0
    %5418 = vmatprep.subr.mxu0 0.0
    %5419 = vmatpush1.msra.mxu0 0.0
    %5420 = vmatprep.subr.mxu0 0.0
    %5421 = vmatpush1.msra.mxu0 0.0
    %5422 = vmatprep.subr.mxu0 0.0
    %5423 = vmatpush1.msra.mxu0 0.0
    %5424 = vmatprep.subr.mxu0 0.0
    %5425 = vmatpush1.msra.mxu0 0.0
    %5426 = vmatprep.subr.mxu0 0.0
    %5427 = vmatpush1.msra.mxu0 0.0
    %5428 = vmatprep.subr.mxu0 0.0
    %5429 = vmatpush1.msra.mxu0 0.0
    %5430 = vmatprep.subr.mxu0 0.0
    %5431 = vmatpush1.msra.mxu0 0.0
    %5432 = vmatprep.mubr.f32.mxu0 %v5363
    %5433 = vmatmul.mubr.f32.gmra.mrb[0].mxu0 %v5340
    %v5434 = vpop.f32.mrb[0].mxu0
    %v5435 = vadd.f32 0.0, %v5434
    %v5436 = vpop.f32.mrb[0].mxu0
    %5437 = vmatprep.mubr.f32.mxu0 %v5366
    %5438 = vmatmul.mubr.f32.gmra.mrb[0].mxu0 %v5342
    %v5439 = vpop.f32.mrb[0].mxu0
    %v5440 = vadd.f32 0.0, %v5439
    %v5441 = vpop.f32.mrb[0].mxu0
    %5442 = vdwg.mxu0
    %v5443 = vadd.f32 %v4854, %v5435
    %v5444 = vadd.f32 %v4855, %v5440
    %5445 = vst [vmem:[#allocation3] sm:$0xff] %v5443
    %5446 = vst [vmem:[#allocation3 + $0x8] sm:$0xff] %v5444
    %v5447 = vld [vmem:[#allocation3] sm:$0xff]
    %v5448 = vld [vmem:[#allocation3 + $0x8] sm:$0xff]
    %v5449 = vld [vmem:[#allocation11] sm:$0xff]
    %v5450 = vld [vmem:[#allocation11 + $0x8] sm:$0xff]
    %v5451 = vld [vmem:[#allocation13] sm:$0xff]
    %v5452 = vld [vmem:[#allocation13 + $0x8] sm:$0xff]
    %5453 = vadd.xlane.f32.xlu0 %v5447
    %v5454 = vpop.xlane.xlu0 %5453
    %5455 = vadd.xlane.f32.xlu0 %v5448
    %v5456 = vpop.xlane.xlu0 %5455
    %v5457 = vmul.f32 %v5447, %v5447
    %v5458 = vmul.f32 %v5448, %v5448
    %5459 = vadd.xlane.f32.xlu0 %v5457
    %v5460 = vpop.xlane.xlu0 %5459
    %5461 = vadd.xlane.f32.xlu0 %v5458
    %v5462 = vpop.xlane.xlu0 %5461
    %v5463 = vmul.f32 %v5454, 0.0078125
    %v5464 = vmul.f32 %v5456, 0.0078125
    %v5465 = vmul.f32 %v5460, 0.0078125
    %v5466 = vmul.f32 %v5462, 0.0078125
    %v5467 = vmul.f32 %v5463, %v5463
    %v5468 = vmul.f32 %v5464, %v5464
    %v5469 = vsub.f32 %v5465, %v5467
    %v5470 = vsub.f32 %v5466, %v5468
    %v5471 = vadd.f32 %v5469, 1e-05
    %v5472 = vadd.f32 %v5470, 1e-05
    %v5473 = vrsqrt.pop %v5471
    %v5474 = vrsqrt.pop %v5472
    %v5475 = vmul.f32 %v5449, %v5473
    %v5476 = vmul.f32 %v5450, %v5474
    %v5477 = vmul.f32 %v5463, %v5475
    %v5478 = vmul.f32 %v5464, %v5476
    %v5479 = vsub.f32 %v5451, %v5477
    %v5480 = vsub.f32 %v5452, %v5478
    %5482 = vset.pattern.permute.xlu0 7
    %5483 = vperm.xlu0 %5482, %v5475
    %v5484 = vpop.permute.xlu0 %5483
    %5487 = vset.pattern.permute.xlu0 7
    %5488 = vperm.xlu0 %5487, %v5476
    %v5489 = vpop.permute.xlu0 %5488
    %v5491 = vmul.f32 %v5447, %v5484
    %v5492 = vmul.f32 %v5448, %v5489
    %5494 = vset.pattern.permute.xlu0 7
    %5495 = vperm.xlu0 %5494, %v5479
    %v5496 = vpop.permute.xlu0 %5495
    %5499 = vset.pattern.permute.xlu0 7
    %5500 = vperm.xlu0 %5499, %v5480
    %v5501 = vpop.permute.xlu0 %5500
    %v5503 = vadd.f32 %v5491, %v5496
    %v5504 = vadd.f32 %v5492, %v5501
    %v5505 = vmax.f32 %v5503, 0.0
    %v5506 = vmax.f32 %v5504, 0.0
    %s5507 = scalar_lea.vmem %s2, 64
    %v5508 = vld [vmem:[%s5507] sm:$0xff]
    %v5509 = vld [vmem:[%s5507 + $0x8] sm:$0xff]
    %v5511 = vsel %vm385, %v5508, 0
    %v5514 = vsel %vm385, %v5509, 0
    %5516 = vmatprep.subr.mxu0 0.0
    %5517 = vmatpush1.msra.mxu0 %v5505
    %5518 = vmatprep.subr.mxu0 0.0
    %5519 = vmatpush1.msra.mxu0 %v5506
    %5520 = vmatprep.subr.mxu0 0.0
    %5521 = vmatpush1.msra.mxu0 0.0
    %5522 = vmatprep.subr.mxu0 0.0
    %5523 = vmatpush1.msra.mxu0 0.0
    %5524 = vmatprep.subr.mxu0 0.0
    %5525 = vmatpush1.msra.mxu0 0.0
    %5526 = vmatprep.subr.mxu0 0.0
    %5527 = vmatpush1.msra.mxu0 0.0
    %5528 = vmatprep.subr.mxu0 0.0
    %5529 = vmatpush1.msra.mxu0 0.0
    %5530 = vmatprep.subr.mxu0 0.0
    %5531 = vmatpush1.msra.mxu0 0.0
    %5532 = vmatprep.subr.mxu0 0.0
    %5533 = vmatpush1.msra.mxu0 0.0
    %5534 = vmatprep.subr.mxu0 0.0
    %5535 = vmatpush1.msra.mxu0 0.0
    %5536 = vmatprep.subr.mxu0 0.0
    %5537 = vmatpush1.msra.mxu0 0.0
    %5538 = vmatprep.subr.mxu0 0.0
    %5539 = vmatpush1.msra.mxu0 0.0
    %5540 = vmatprep.subr.mxu0 0.0
    %5541 = vmatpush1.msra.mxu0 0.0
    %5542 = vmatprep.subr.mxu0 0.0
    %5543 = vmatpush1.msra.mxu0 0.0
    %5544 = vmatprep.subr.mxu0 0.0
    %5545 = vmatpush1.msra.mxu0 0.0
    %5546 = vmatprep.subr.mxu0 0.0
    %5547 = vmatpush1.msra.mxu0 0.0
    %5548 = vmatprep.subr.mxu0 0.0
    %5549 = vmatpush1.msra.mxu0 0.0
    %5550 = vmatprep.subr.mxu0 0.0
    %5551 = vmatpush1.msra.mxu0 0.0
    %5552 = vmatprep.subr.mxu0 0.0
    %5553 = vmatpush1.msra.mxu0 0.0
    %5554 = vmatprep.subr.mxu0 0.0
    %5555 = vmatpush1.msra.mxu0 0.0
    %5556 = vmatprep.subr.mxu0 0.0
    %5557 = vmatpush1.msra.mxu0 0.0
    %5558 = vmatprep.subr.mxu0 0.0
    %5559 = vmatpush1.msra.mxu0 0.0
    %5560 = vmatprep.subr.mxu0 0.0
    %5561 = vmatpush1.msra.mxu0 0.0
    %5562 = vmatprep.subr.mxu0 0.0
    %5563 = vmatpush1.msra.mxu0 0.0
    %5564 = vmatprep.subr.mxu0 0.0
    %5565 = vmatpush1.msra.mxu0 0.0
    %5566 = vmatprep.subr.mxu0 0.0
    %5567 = vmatpush1.msra.mxu0 0.0
    %5568 = vmatprep.subr.mxu0 0.0
    %5569 = vmatpush1.msra.mxu0 0.0
    %5570 = vmatprep.subr.mxu0 0.0
    %5571 = vmatpush1.msra.mxu0 0.0
    %5572 = vmatprep.subr.mxu0 0.0
    %5573 = vmatpush1.msra.mxu0 0.0
    %5574 = vmatprep.subr.mxu0 0.0
    %5575 = vmatpush1.msra.mxu0 0.0
    %5576 = vmatprep.subr.mxu0 0.0
    %5577 = vmatpush1.msra.mxu0 0.0
    %5578 = vmatprep.subr.mxu0 0.0
    %5579 = vmatpush1.msra.mxu0 0.0
    %5580 = vmatprep.mubr.f32.mxu0 0.0
    %5581 = vmatmul.mubr.f32.gmra.mrb[0].mxu0 %v5511
    %v5582 = vpop.f32.mrb[0].mxu0
    %v5583 = vadd.f32 0.0, %v5582
    %v5584 = vpop.f32.mrb[0].mxu0
    %5585 = vmatprep.mubr.f32.mxu0 0.0
    %5586 = vmatmul.mubr.f32.gmra.mrb[0].mxu0 %v5514
    %v5587 = vpop.f32.mrb[0].mxu0
    %v5588 = vadd.f32 0.0, %v5587
    %v5589 = vpop.f32.mrb[0].mxu0
    %5590 = vdwg.mxu0
    %5591 = vadd.xlane.f32.xlu0 %v5583
    %v5592 = vpop.xlane.xlu0 %5591
    %5593 = vadd.xlane.f32.xlu0 %v5588
    %v5594 = vpop.xlane.xlu0 %5593
    %v5595 = vmul.f32 %v5583, %v5583
    %v5596 = vmul.f32 %v5588, %v5588
    %5597 = vadd.xlane.f32.xlu0 %v5595
    %v5598 = vpop.xlane.xlu0 %5597
    %5599 = vadd.xlane.f32.xlu0 %v5596
    %v5600 = vpop.xlane.xlu0 %5599
    %v5601 = vmul.f32 %v5592, 0.0078125
    %v5602 = vmul.f32 %v5594, 0.0078125
    %v5603 = vmul.f32 %v5598, 0.0078125
    %v5604 = vmul.f32 %v5600, 0.0078125
    %v5605 = vmul.f32 %v5601, %v5601
    %v5606 = vmul.f32 %v5602, %v5602
    %v5607 = vsub.f32 %v5603, %v5605
    %v5608 = vsub.f32 %v5604, %v5606
    %v5609 = vadd.f32 %v5607, 1e-05
    %v5610 = vadd.f32 %v5608, 1e-05
    %v5611 = vrsqrt.pop %v5609
    %v5612 = vrsqrt.pop %v5610
    %v5613 = vmul.f32 %v5449, %v5611
    %v5614 = vmul.f32 %v5450, %v5612
    %v5615 = vmul.f32 %v5601, %v5613
    %v5616 = vmul.f32 %v5602, %v5614
    %v5617 = vsub.f32 %v5451, %v5615
    %v5618 = vsub.f32 %v5452, %v5616
    %5620 = vset.pattern.permute.xlu0 8
    %5621 = vperm.xlu0 %5620, %v5613
    %v5622 = vpop.permute.xlu0 %5621
    %5625 = vset.pattern.permute.xlu0 8
    %5626 = vperm.xlu0 %5625, %v5614
    %v5627 = vpop.permute.xlu0 %5626
    %v5629 = vmul.f32 %v5583, %v5622
    %v5630 = vmul.f32 %v5588, %v5627
    %5632 = vset.pattern.permute.xlu0 8
    %5633 = vperm.xlu0 %5632, %v5617
    %v5634 = vpop.permute.xlu0 %5633
    %5637 = vset.pattern.permute.xlu0 8
    %5638 = vperm.xlu0 %5637, %v5618
    %v5639 = vpop.permute.xlu0 %5638
    %v5641 = vadd.f32 %v5629, %v5634
    %v5642 = vadd.f32 %v5630, %v5639
    %v5643 = vmax.f32 %v5641, 0.0
    %v5644 = vmax.f32 %v5642, 0.0
    %5645 = vst [vmem:[#allocation6 + $0x8] sm:$0xff] %v5643
    %5646 = vst [vmem:[#allocation6 + $0x20] sm:$0xff] %v5644
    %v5647 = vld [vmem:[%s5054] sm:$0xff]
    %v5648 = vld [vmem:[%s5054 + $0x20] sm:$0x1]
    %v5649 = vld [vmem:[#allocation6] sm:$0xff]
    %v5650 = vld [vmem:[#allocation6 + $0x8] sm:$0xff]
    %v5651 = vld [vmem:[#allocation6 + $0x18] sm:$0xff]
    %v5652 = vld [vmem:[#allocation6 + $0x20] sm:$0xff]
    %v5653 = vlaneseq
    %v5654 = vshrl.u32 %v5653, 7
    %v5655 = vsub.s32 0, %v5654
    %v5656 = vrot.slane %v5647, %v5655
    %5658 = vrot.lane.b32.xlu0 %v5656, 119
    %v5659 = vpop.permute.xlu0 %5658
    %v5661 = vmul.f32 %v5649, %v5659
    %v5662 = vmul.f32 %v5650, %v5659
    %v5663 = vmul.f32 %v5651, %v5659
    %v5664 = vmul.f32 %v5652, %v5659
    %5669 = vrot.lane.b32.xlu0 %v5661, 9
    %v5670 = vpop.permute.xlu0 %5669
    %5671 = vrot.lane.b32.xlu0 %v5662, 9
    %v5672 = vpop.permute.xlu0 %5671
    %5673 = vrot.lane.b32.xlu0 %v5663, 9
    %v5674 = vpop.permute.xlu0 %5673
    %5675 = vrot.lane.b32.xlu0 %v5664, 9
    %v5676 = vpop.permute.xlu0 %5675
    %v5677 = vsel %vm5085, %v5670, %v5672
    %v5678 = vsel %vm5085, %v5674, %v5676
    %5681 = vst [vmem:[#allocation8] sm:$0xff] %v5677
    %5682 = vst [vmem:[#allocation8 + $0x20] sm:$0xff] %v5678
    %v5683 = vld [vmem:[#allocation6] sm:$0xff]
    %v5684 = vld [vmem:[#allocation6 + $0x8] sm:$0xff]
    %v5685 = vld [vmem:[#allocation6 + $0x18] sm:$0xff]
    %v5686 = vld [vmem:[#allocation6 + $0x20] sm:$0xff]
    %v5687 = vlaneseq
    %v5688 = vshrl.u32 %v5687, 7
    %v5689 = vsub.s32 1, %v5688
    %v5690 = vrot.slane %v5647, %v5689
    %5692 = vrot.lane.b32.xlu0 %v5690, 120
    %v5693 = vpop.permute.xlu0 %5692
    %v5695 = vmul.f32 %v5683, %v5693
    %v5696 = vmul.f32 %v5684, %v5693
    %v5697 = vmul.f32 %v5685, %v5693
    %v5698 = vmul.f32 %v5686, %v5693
    %5703 = vrot.lane.b32.xlu0 %v5695, 8
    %v5704 = vpop.permute.xlu0 %5703
    %5705 = vrot.lane.b32.xlu0 %v5696, 8
    %v5706 = vpop.permute.xlu0 %5705
    %5707 = vrot.lane.b32.xlu0 %v5697, 8
    %v5708 = vpop.permute.xlu0 %5707
    %5709 = vrot.lane.b32.xlu0 %v5698, 8
    %v5710 = vpop.permute.xlu0 %5709
    %v5711 = vsel %vm5120, %v5704, %v5706
    %v5712 = vsel %vm5120, %v5708, %v5710
    %5715 = vst [vmem:[#allocation8 + $0x40] sm:$0xff] %v5711
    %5716 = vst [vmem:[#allocation8 + $0x60] sm:$0xff] %v5712
    %v5717 = vld [vmem:[#allocation6] sm:$0xff]
    %v5718 = vld [vmem:[#allocation6 + $0x8] sm:$0xff]
    %v5719 = vld [vmem:[#allocation6 + $0x18] sm:$0xff]
    %v5720 = vld [vmem:[#allocation6 + $0x20] sm:$0xff]
    %v5721 = vlaneseq
    %v5722 = vshrl.u32 %v5721, 7
    %v5723 = vsub.s32 2, %v5722
    %v5724 = vrot.slane %v5647, %v5723
    %5726 = vrot.lane.b32.xlu0 %v5724, 121
    %v5727 = vpop.permute.xlu0 %5726
    %v5729 = vmul.f32 %v5717, %v5727
    %v5730 = vmul.f32 %v5718, %v5727
    %v5731 = vmul.f32 %v5719, %v5727
    %v5732 = vmul.f32 %v5720, %v5727
    %5737 = vrot.lane.b32.xlu0 %v5729, 7
    %v5738 = vpop.permute.xlu0 %5737
    %5739 = vrot.lane.b32.xlu0 %v5730, 7
    %v5740 = vpop.permute.xlu0 %5739
    %5741 = vrot.lane.b32.xlu0 %v5731, 7
    %v5742 = vpop.permute.xlu0 %5741
    %5743 = vrot.lane.b32.xlu0 %v5732, 7
    %v5744 = vpop.permute.xlu0 %5743
    %v5745 = vsel %vm5155, %v5738, %v5740
    %v5746 = vsel %vm5155, %v5742, %v5744
    %5749 = vst [vmem:[#allocation8 + $0x80] sm:$0xff] %v5745
    %5750 = vst [vmem:[#allocation8 + $0xa0] sm:$0xff] %v5746
    %v5751 = vld [vmem:[#allocation6] sm:$0xff]
    %v5752 = vld [vmem:[#allocation6 + $0x8] sm:$0xff]
    %v5753 = vld [vmem:[#allocation6 + $0x18] sm:$0xff]
    %v5754 = vld [vmem:[#allocation6 + $0x20] sm:$0xff]
    %v5755 = vlaneseq
    %v5756 = vshrl.u32 %v5755, 7
    %v5757 = vsub.s32 3, %v5756
    %v5758 = vrot.slane %v5647, %v5757
    %5760 = vrot.lane.b32.xlu0 %v5758, 127
    %v5761 = vpop.permute.xlu0 %5760
    %v5763 = vmul.f32 %v5751, %v5761
    %v5764 = vmul.f32 %v5752, %v5761
    %v5765 = vmul.f32 %v5753, %v5761
    %v5766 = vmul.f32 %v5754, %v5761
    %5771 = vrot.lane.b32.xlu0 %v5763, 1
    %v5772 = vpop.permute.xlu0 %5771
    %5773 = vrot.lane.b32.xlu0 %v5764, 1
    %v5774 = vpop.permute.xlu0 %5773
    %5775 = vrot.lane.b32.xlu0 %v5765, 1
    %v5776 = vpop.permute.xlu0 %5775
    %5777 = vrot.lane.b32.xlu0 %v5766, 1
    %v5778 = vpop.permute.xlu0 %5777
    %v5779 = vsel %vm609, %v5772, %v5774
    %v5780 = vsel %vm609, %v5776, %v5778
    %5783 = vst [vmem:[#allocation8 + $0xc0] sm:$0xff] %v5779
    %5784 = vst [vmem:[#allocation8 + $0xe0] sm:$0xff] %v5780
    %v5785 = vld [vmem:[#allocation6 + $0x8] sm:$0xff]
    %v5786 = vld [vmem:[#allocation6 + $0x20] sm:$0xff]
    %5787 = vst [vmem:[#allocation8 + $0x100] sm:$0xff] %v5785
    %5788 = vst [vmem:[#allocation8 + $0x120] sm:$0xff] %v5786
    %v5789 = vld [vmem:[#allocation6 + $0x8] sm:$0xff]
    %v5790 = vld [vmem:[#allocation6 + $0x10] sm:$0xff]
    %v5791 = vld [vmem:[#allocation6 + $0x20] sm:$0xff]
    %v5792 = vld [vmem:[#allocation6 + $0x28] sm:$0xff]
    %v5793 = vlaneseq
    %v5794 = vshrl.u32 %v5793, 7
    %v5795 = vsub.s32 5, %v5794
    %v5796 = vrot.slane %v5647, %v5795
    %5798 = vrot.lane.b32.xlu0 %v5796, 1
    %v5799 = vpop.permute.xlu0 %5798
    %v5801 = vmul.f32 %v5789, %v5799
    %v5802 = vmul.f32 %v5790, %v5799
    %v5803 = vmul.f32 %v5791, %v5799
    %v5804 = vmul.f32 %v5792, %v5799
    %5809 = vrot.lane.b32.xlu0 %v5801, 127
    %v5810 = vpop.permute.xlu0 %5809
    %5811 = vrot.lane.b32.xlu0 %v5802, 127
    %v5812 = vpop.permute.xlu0 %5811
    %5813 = vrot.lane.b32.xlu0 %v5803, 127
    %v5814 = vpop.permute.xlu0 %5813
    %5815 = vrot.lane.b32.xlu0 %v5804, 127
    %v5816 = vpop.permute.xlu0 %5815
    %v5817 = vsel %vm560, %v5810, %v5812
    %v5818 = vsel %vm560, %v5814, %v5816
    %5821 = vst [vmem:[#allocation8 + $0x140] sm:$0xff] %v5817
    %5822 = vst [vmem:[#allocation8 + $0x160] sm:$0xff] %v5818
    %v5823 = vld [vmem:[#allocation6 + $0x8] sm:$0xff]
    %v5824 = vld [vmem:[#allocation6 + $0x10] sm:$0xff]
    %v5825 = vld [vmem:[#allocation6 + $0x20] sm:$0xff]
    %v5826 = vld [vmem:[#allocation6 + $0x28] sm:$0xff]
    %v5827 = vlaneseq
    %v5828 = vshrl.u32 %v5827, 7
    %v5829 = vsub.s32 6, %v5828
    %v5830 = vrot.slane %v5647, %v5829
    %5832 = vrot.lane.b32.xlu0 %v5830, 7
    %v5833 = vpop.permute.xlu0 %5832
    %v5835 = vmul.f32 %v5823, %v5833
    %v5836 = vmul.f32 %v5824, %v5833
    %v5837 = vmul.f32 %v5825, %v5833
    %v5838 = vmul.f32 %v5826, %v5833
    %5843 = vrot.lane.b32.xlu0 %v5835, 121
    %v5844 = vpop.permute.xlu0 %5843
    %5845 = vrot.lane.b32.xlu0 %v5836, 121
    %v5846 = vpop.permute.xlu0 %5845
    %5847 = vrot.lane.b32.xlu0 %v5837, 121
    %v5848 = vpop.permute.xlu0 %5847
    %5849 = vrot.lane.b32.xlu0 %v5838, 121
    %v5850 = vpop.permute.xlu0 %5849
    %v5851 = vsel %vm5262, %v5844, %v5846
    %v5852 = vsel %vm5262, %v5848, %v5850
    %5855 = vst [vmem:[#allocation8 + $0x180] sm:$0xff] %v5851
    %5856 = vst [vmem:[#allocation8 + $0x1a0] sm:$0xff] %v5852
    %v5857 = vld [vmem:[#allocation6 + $0x8] sm:$0xff]
    %v5858 = vld [vmem:[#allocation6 + $0x10] sm:$0xff]
    %v5859 = vld [vmem:[#allocation6 + $0x20] sm:$0xff]
    %v5860 = vld [vmem:[#allocation6 + $0x28] sm:$0xff]
    %v5861 = vlaneseq
    %v5862 = vshrl.u32 %v5861, 7
    %v5863 = vsub.s32 7, %v5862
    %v5864 = vrot.slane %v5647, %v5863
    %5866 = vrot.lane.b32.xlu0 %v5864, 8
    %v5867 = vpop.permute.xlu0 %5866
    %v5869 = vmul.f32 %v5857, %v5867
    %v5870 = vmul.f32 %v5858, %v5867
    %v5871 = vmul.f32 %v5859, %v5867
    %v5872 = vmul.f32 %v5860, %v5867
    %5877 = vrot.lane.b32.xlu0 %v5869, 120
    %v5878 = vpop.permute.xlu0 %5877
    %5879 = vrot.lane.b32.xlu0 %v5870, 120
    %v5880 = vpop.permute.xlu0 %5879
    %5881 = vrot.lane.b32.xlu0 %v5871, 120
    %v5882 = vpop.permute.xlu0 %5881
    %5883 = vrot.lane.b32.xlu0 %v5872, 120
    %v5884 = vpop.permute.xlu0 %5883
    %v5885 = vsel %vm5297, %v5878, %v5880
    %v5886 = vsel %vm5297, %v5882, %v5884
    %5889 = vst [vmem:[#allocation8 + $0x1c0] sm:$0xff] %v5885
    %5890 = vst [vmem:[#allocation8 + $0x1e0] sm:$0xff] %v5886
    %v5891 = vld [vmem:[#allocation6 + $0x8] sm:$0xff]
    %v5892 = vld [vmem:[#allocation6 + $0x10] sm:$0xff]
    %v5893 = vld [vmem:[#allocation6 + $0x20] sm:$0xff]
    %v5894 = vld [vmem:[#allocation6 + $0x28] sm:$0xff]
    %v5895 = vlaneseq
    %v5896 = vshrl.u32 %v5895, 7
    %v5897 = vsub.s32 0, %v5896
    %v5898 = vrot.slane %v5648, %v5897
    %5900 = vrot.lane.b32.xlu0 %v5898, 9
    %v5901 = vpop.permute.xlu0 %5900
    %v5903 = vmul.f32 %v5891, %v5901
    %v5904 = vmul.f32 %v5892, %v5901
    %v5905 = vmul.f32 %v5893, %v5901
    %v5906 = vmul.f32 %v5894, %v5901
    %5911 = vrot.lane.b32.xlu0 %v5903, 119
    %v5912 = vpop.permute.xlu0 %5911
    %5913 = vrot.lane.b32.xlu0 %v5904, 119
    %v5914 = vpop.permute.xlu0 %5913
    %5915 = vrot.lane.b32.xlu0 %v5905, 119
    %v5916 = vpop.permute.xlu0 %5915
    %5917 = vrot.lane.b32.xlu0 %v5906, 119
    %v5918 = vpop.permute.xlu0 %5917
    %v5919 = vsel %vm5332, %v5912, %v5914
    %v5920 = vsel %vm5332, %v5916, %v5918
    %5923 = vst [vmem:[#allocation8 + $0x200] sm:$0xff] %v5919
    %5924 = vst [vmem:[#allocation8 + $0x220] sm:$0xff] %v5920
    %s5925 = scalar_lea.vmem [#allocation9], 128
    %v5926 = vld [vmem:[%s5925] sm:$0xff]
    %v5927 = vld [vmem:[%s5925 + $0x8] sm:$0xff]
    %v5928 = vld [vmem:[%s5925 + $0x10] sm:$0xff]
    %v5929 = vld [vmem:[%s5925 + $0x18] sm:$0xff]
    %v5930 = vld [vmem:[#allocation8] sm:$0xff]
    %v5931 = vld [vmem:[#allocation8 + $0x20] sm:$0xff]
    %v5932 = vld [vmem:[#allocation8 + $0x40] sm:$0xff]
    %v5933 = vld [vmem:[#allocation8 + $0x60] sm:$0xff]
    %v5934 = vld [vmem:[#allocation8 + $0x80] sm:$0xff]
    %v5935 = vld [vmem:[#allocation8 + $0xa0] sm:$0xff]
    %v5936 = vld [vmem:[#allocation8 + $0xc0] sm:$0xff]
    %v5937 = vld [vmem:[#allocation8 + $0xe0] sm:$0xff]
    %v5938 = vld [vmem:[#allocation8 + $0x100] sm:$0xff]
    %v5939 = vld [vmem:[#allocation8 + $0x120] sm:$0xff]
    %v5940 = vld [vmem:[#allocation8 + $0x140] sm:$0xff]
    %v5941 = vld [vmem:[#allocation8 + $0x160] sm:$0xff]
    %v5942 = vld [vmem:[#allocation8 + $0x180] sm:$0xff]
    %v5943 = vld [vmem:[#allocation8 + $0x1a0] sm:$0xff]
    %v5944 = vld [vmem:[#allocation8 + $0x1c0] sm:$0xff]
    %v5945 = vld [vmem:[#allocation8 + $0x1e0] sm:$0xff]
    %v5946 = vld [vmem:[#allocation8 + $0x200] sm:$0xff]
    %v5947 = vld [vmem:[#allocation8 + $0x220] sm:$0xff]
    %v5949 = vsel %vm385, %v5927, 0
    %v5952 = vsel %vm385, %v5929, 0
    %5954 = vmatprep.subr.mxu0 0.0
    %5955 = vmatpush1.msra.mxu0 %v5930
    %5956 = vmatprep.subr.mxu0 0.0
    %5957 = vmatpush1.msra.mxu0 %v5931
    %5958 = vmatprep.subr.mxu0 0.0
    %5959 = vmatpush1.msra.mxu0 %v5932
    %5960 = vmatprep.subr.mxu0 0.0
    %5961 = vmatpush1.msra.mxu0 %v5933
    %5962 = vmatprep.subr.mxu0 0.0
    %5963 = vmatpush1.msra.mxu0 %v5934
    %5964 = vmatprep.subr.mxu0 0.0
    %5965 = vmatpush1.msra.mxu0 %v5935
    %5966 = vmatprep.subr.mxu0 0.0
    %5967 = vmatpush1.msra.mxu0 %v5936
    %5968 = vmatprep.subr.mxu0 0.0
    %5969 = vmatpush1.msra.mxu0 %v5937
    %5970 = vmatprep.subr.mxu0 0.0
    %5971 = vmatpush1.msra.mxu0 %v5938
    %5972 = vmatprep.subr.mxu0 0.0
    %5973 = vmatpush1.msra.mxu0 %v5939
    %5974 = vmatprep.subr.mxu0 0.0
    %5975 = vmatpush1.msra.mxu0 %v5940
    %5976 = vmatprep.subr.mxu0 0.0
    %5977 = vmatpush1.msra.mxu0 %v5941
    %5978 = vmatprep.subr.mxu0 0.0
    %5979 = vmatpush1.msra.mxu0 %v5942
    %5980 = vmatprep.subr.mxu0 0.0
    %5981 = vmatpush1.msra.mxu0 %v5943
    %5982 = vmatprep.subr.mxu0 0.0
    %5983 = vmatpush1.msra.mxu0 %v5944
    %5984 = vmatprep.subr.mxu0 0.0
    %5985 = vmatpush1.msra.mxu0 %v5945
    %5986 = vmatprep.subr.mxu0 0.0
    %5987 = vmatpush1.msra.mxu0 %v5946
    %5988 = vmatprep.subr.mxu0 0.0
    %5989 = vmatpush1.msra.mxu0 %v5947
    %5990 = vmatprep.subr.mxu0 0.0
    %5991 = vmatpush1.msra.mxu0 0.0
    %5992 = vmatprep.subr.mxu0 0.0
    %5993 = vmatpush1.msra.mxu0 0.0
    %5994 = vmatprep.subr.mxu0 0.0
    %5995 = vmatpush1.msra.mxu0 0.0
    %5996 = vmatprep.subr.mxu0 0.0
    %5997 = vmatpush1.msra.mxu0 0.0
    %5998 = vmatprep.subr.mxu0 0.0
    %5999 = vmatpush1.msra.mxu0 0.0
    %6000 = vmatprep.subr.mxu0 0.0
    %6001 = vmatpush1.msra.mxu0 0.0
    %6002 = vmatprep.subr.mxu0 0.0
    %6003 = vmatpush1.msra.mxu0 0.0
    %6004 = vmatprep.subr.mxu0 0.0
    %6005 = vmatpush1.msra.mxu0 0.0
    %6006 = vmatprep.subr.mxu0 0.0
    %6007 = vmatpush1.msra.mxu0 0.0
    %6008 = vmatprep.subr.mxu0 0.0
    %6009 = vmatpush1.msra.mxu0 0.0
    %6010 = vmatprep.subr.mxu0 0.0
    %6011 = vmatpush1.msra.mxu0 0.0
    %6012 = vmatprep.subr.mxu0 0.0
    %6013 = vmatpush1.msra.mxu0 0.0
    %6014 = vmatprep.subr.mxu0 0.0
    %6015 = vmatpush1.msra.mxu0 0.0
    %6016 = vmatprep.subr.mxu0 0.0
    %6017 = vmatpush1.msra.mxu0 0.0
    %6018 = vmatprep.mubr.f32.mxu0 %v5949
    %6019 = vmatmul.mubr.f32.gmra.mrb[0].mxu0 %v5926
    %v6020 = vpop.f32.mrb[0].mxu0
    %v6021 = vadd.f32 0.0, %v6020
    %v6022 = vpop.f32.mrb[0].mxu0
    %6023 = vmatprep.mubr.f32.mxu0 %v5952
    %6024 = vmatmul.mubr.f32.gmra.mrb[0].mxu0 %v5928
    %v6025 = vpop.f32.mrb[0].mxu0
    %v6026 = vadd.f32 0.0, %v6025
    %v6027 = vpop.f32.mrb[0].mxu0
    %6028 = vdwg.mxu0
    %v6029 = vadd.f32 %v5447, %v6021
    %v6030 = vadd.f32 %v5448, %v6026
    %6031 = vst [vmem:[#allocation3] sm:$0xff] %v6029
    %6032 = vst [vmem:[#allocation3 + $0x8] sm:$0xff] %v6030
    %v6033 = vld [vmem:[#allocation3] sm:$0xff]
    %v6034 = vld [vmem:[#allocation3 + $0x8] sm:$0xff]
    %v6035 = vld [vmem:[#allocation11] sm:$0xff]
    %v6036 = vld [vmem:[#allocation11 + $0x8] sm:$0xff]
    %v6037 = vld [vmem:[#allocation13] sm:$0xff]
    %v6038 = vld [vmem:[#allocation13 + $0x8] sm:$0xff]
    %6039 = vadd.xlane.f32.xlu0 %v6033
    %v6040 = vpop.xlane.xlu0 %6039
    %6041 = vadd.xlane.f32.xlu0 %v6034
    %v6042 = vpop.xlane.xlu0 %6041
    %v6043 = vmul.f32 %v6033, %v6033
    %v6044 = vmul.f32 %v6034, %v6034
    %6045 = vadd.xlane.f32.xlu0 %v6043
    %v6046 = vpop.xlane.xlu0 %6045
    %6047 = vadd.xlane.f32.xlu0 %v6044
    %v6048 = vpop.xlane.xlu0 %6047
    %v6049 = vmul.f32 %v6040, 0.0078125
    %v6050 = vmul.f32 %v6042, 0.0078125
    %v6051 = vmul.f32 %v6046, 0.0078125
    %v6052 = vmul.f32 %v6048, 0.0078125
    %v6053 = vmul.f32 %v6049, %v6049
    %v6054 = vmul.f32 %v6050, %v6050
    %v6055 = vsub.f32 %v6051, %v6053
    %v6056 = vsub.f32 %v6052, %v6054
    %v6057 = vadd.f32 %v6055, 1e-05
    %v6058 = vadd.f32 %v6056, 1e-05
    %v6059 = vrsqrt.pop %v6057
    %v6060 = vrsqrt.pop %v6058
    %v6061 = vmul.f32 %v6035, %v6059
    %v6062 = vmul.f32 %v6036, %v6060
    %v6063 = vmul.f32 %v6049, %v6061
    %v6064 = vmul.f32 %v6050, %v6062
    %v6065 = vsub.f32 %v6037, %v6063
    %v6066 = vsub.f32 %v6038, %v6064
    %6068 = vset.pattern.permute.xlu0 9
    %6069 = vperm.xlu0 %6068, %v6061
    %v6070 = vpop.permute.xlu0 %6069
    %6073 = vset.pattern.permute.xlu0 9
    %6074 = vperm.xlu0 %6073, %v6062
    %v6075 = vpop.permute.xlu0 %6074
    %v6077 = vmul.f32 %v6033, %v6070
    %v6078 = vmul.f32 %v6034, %v6075
    %6080 = vset.pattern.permute.xlu0 9
    %6081 = vperm.xlu0 %6080, %v6065
    %v6082 = vpop.permute.xlu0 %6081
    %6085 = vset.pattern.permute.xlu0 9
    %6086 = vperm.xlu0 %6085, %v6066
    %v6087 = vpop.permute.xlu0 %6086
    %v6089 = vadd.f32 %v6077, %v6082
    %v6090 = vadd.f32 %v6078, %v6087
    %v6091 = vmax.f32 %v6089, 0.0
    %v6092 = vmax.f32 %v6090, 0.0
    %s6093 = scalar_lea.vmem %s2, 80
    %v6094 = vld [vmem:[%s6093] sm:$0xff]
    %v6095 = vld [vmem:[%s6093 + $0x8] sm:$0xff]
    %v6097 = vsel %vm385, %v6094, 0
    %v6100 = vsel %vm385, %v6095, 0
    %6102 = vmatprep.subr.mxu0 0.0
    %6103 = vmatpush1.msra.mxu0 %v6091
    %6104 = vmatprep.subr.mxu0 0.0
    %6105 = vmatpush1.msra.mxu0 %v6092
    %6106 = vmatprep.subr.mxu0 0.0
    %6107 = vmatpush1.msra.mxu0 0.0
    %6108 = vmatprep.subr.mxu0 0.0
    %6109 = vmatpush1.msra.mxu0 0.0
    %6110 = vmatprep.subr.mxu0 0.0
    %6111 = vmatpush1.msra.mxu0 0.0
    %6112 = vmatprep.subr.mxu0 0.0
    %6113 = vmatpush1.msra.mxu0 0.0
    %6114 = vmatprep.subr.mxu0 0.0
    %6115 = vmatpush1.msra.mxu0 0.0
    %6116 = vmatprep.subr.mxu0 0.0
    %6117 = vmatpush1.msra.mxu0 0.0
    %6118 = vmatprep.subr.mxu0 0.0
    %6119 = vmatpush1.msra.mxu0 0.0
    %6120 = vmatprep.subr.mxu0 0.0
    %6121 = vmatpush1.msra.mxu0 0.0
    %6122 = vmatprep.subr.mxu0 0.0
    %6123 = vmatpush1.msra.mxu0 0.0
    %6124 = vmatprep.subr.mxu0 0.0
    %6125 = vmatpush1.msra.mxu0 0.0
    %6126 = vmatprep.subr.mxu0 0.0
    %6127 = vmatpush1.msra.mxu0 0.0
    %6128 = vmatprep.subr.mxu0 0.0
    %6129 = vmatpush1.msra.mxu0 0.0
    %6130 = vmatprep.subr.mxu0 0.0
    %6131 = vmatpush1.msra.mxu0 0.0
    %6132 = vmatprep.subr.mxu0 0.0
    %6133 = vmatpush1.msra.mxu0 0.0
    %6134 = vmatprep.subr.mxu0 0.0
    %6135 = vmatpush1.msra.mxu0 0.0
    %6136 = vmatprep.subr.mxu0 0.0
    %6137 = vmatpush1.msra.mxu0 0.0
    %6138 = vmatprep.subr.mxu0 0.0
    %6139 = vmatpush1.msra.mxu0 0.0
    %6140 = vmatprep.subr.mxu0 0.0
    %6141 = vmatpush1.msra.mxu0 0.0
    %6142 = vmatprep.subr.mxu0 0.0
    %6143 = vmatpush1.msra.mxu0 0.0
    %6144 = vmatprep.subr.mxu0 0.0
    %6145 = vmatpush1.msra.mxu0 0.0
    %6146 = vmatprep.subr.mxu0 0.0
    %6147 = vmatpush1.msra.mxu0 0.0
    %6148 = vmatprep.subr.mxu0 0.0
    %6149 = vmatpush1.msra.mxu0 0.0
    %6150 = vmatprep.subr.mxu0 0.0
    %6151 = vmatpush1.msra.mxu0 0.0
    %6152 = vmatprep.subr.mxu0 0.0
    %6153 = vmatpush1.msra.mxu0 0.0
    %6154 = vmatprep.subr.mxu0 0.0
    %6155 = vmatpush1.msra.mxu0 0.0
    %6156 = vmatprep.subr.mxu0 0.0
    %6157 = vmatpush1.msra.mxu0 0.0
    %6158 = vmatprep.subr.mxu0 0.0
    %6159 = vmatpush1.msra.mxu0 0.0
    %6160 = vmatprep.subr.mxu0 0.0
    %6161 = vmatpush1.msra.mxu0 0.0
    %6162 = vmatprep.subr.mxu0 0.0
    %6163 = vmatpush1.msra.mxu0 0.0
    %6164 = vmatprep.subr.mxu0 0.0
    %6165 = vmatpush1.msra.mxu0 0.0
    %6166 = vmatprep.mubr.f32.mxu0 0.0
    %6167 = vmatmul.mubr.f32.gmra.mrb[0].mxu0 %v6097
    %v6168 = vpop.f32.mrb[0].mxu0
    %v6169 = vadd.f32 0.0, %v6168
    %v6170 = vpop.f32.mrb[0].mxu0
    %6171 = vmatprep.mubr.f32.mxu0 0.0
    %6172 = vmatmul.mubr.f32.gmra.mrb[0].mxu0 %v6100
    %v6173 = vpop.f32.mrb[0].mxu0
    %v6174 = vadd.f32 0.0, %v6173
    %v6175 = vpop.f32.mrb[0].mxu0
    %6176 = vdwg.mxu0
    %v6177 = vld [vmem:[#allocation19] sm:$0xff]
    %v6178 = vld [vmem:[#allocation19 + $0x8] sm:$0xff]
    %v6179 = vld [vmem:[#allocation19 + $0x10] sm:$0xff]
    %v6180 = vld [vmem:[#allocation19 + $0x18] sm:$0xff]
    %v6181 = vld [vmem:[#allocation19 + $0x20] sm:$0xff]
    %v6182 = vld [vmem:[#allocation19 + $0x28] sm:$0xff]
    %v6183 = vld [vmem:[#allocation19 + $0x30] sm:$0xff]
    %v6184 = vld [vmem:[#allocation19 + $0x38] sm:$0xff]
    %v6185 = vld [vmem:[#allocation19 + $0x40] sm:$0xff]
    %v6186 = vld [vmem:[#allocation19 + $0x48] sm:$0xff]
    %v6187 = vld [vmem:[#allocation19 + $0x50] sm:$0xff]
    %v6188 = vld [vmem:[#allocation19 + $0x58] sm:$0xff]
    %v6189 = vld [vmem:[#allocation19 + $0x60] sm:$0xff]
    %v6190 = vld [vmem:[#allocation19 + $0x68] sm:$0xff]
    %v6191 = vld [vmem:[#allocation19 + $0x70] sm:$0xff]
    %v6192 = vld [vmem:[#allocation19 + $0x78] sm:$0xff]
    %6193 = vmatprep.subr.mxu0 0.0
    %6194 = vmatpush1.msra.mxu0 %v6177
    %6195 = vmatprep.subr.mxu0 0.0
    %6196 = vmatpush1.msra.mxu0 %v6178
    %6197 = vmatprep.subr.mxu0 0.0
    %6198 = vmatpush1.msra.mxu0 %v6179
    %6199 = vmatprep.subr.mxu0 0.0
    %6200 = vmatpush1.msra.mxu0 %v6180
    %6201 = vmatprep.subr.mxu0 0.0
    %6202 = vmatpush1.msra.mxu0 %v6181
    %6203 = vmatprep.subr.mxu0 0.0
    %6204 = vmatpush1.msra.mxu0 %v6182
    %6205 = vmatprep.subr.mxu0 0.0
    %6206 = vmatpush1.msra.mxu0 %v6183
    %6207 = vmatprep.subr.mxu0 0.0
    %6208 = vmatpush1.msra.mxu0 %v6184
    %6209 = vmatprep.subr.mxu0 0.0
    %6210 = vmatpush1.msra.mxu0 %v6185
    %6211 = vmatprep.subr.mxu0 0.0
    %6212 = vmatpush1.msra.mxu0 %v6186
    %6213 = vmatprep.subr.mxu0 0.0
    %6214 = vmatpush1.msra.mxu0 %v6187
    %6215 = vmatprep.subr.mxu0 0.0
    %6216 = vmatpush1.msra.mxu0 %v6188
    %6217 = vmatprep.subr.mxu0 0.0
    %6218 = vmatpush1.msra.mxu0 %v6189
    %6219 = vmatprep.subr.mxu0 0.0
    %6220 = vmatpush1.msra.mxu0 %v6190
    %6221 = vmatprep.subr.mxu0 0.0
    %6222 = vmatpush1.msra.mxu0 %v6191
    %6223 = vmatprep.subr.mxu0 0.0
    %6224 = vmatpush1.msra.mxu0 %v6192
    %6225 = vmatprep.subr.mxu0 0.0
    %6226 = vmatpush1.msra.mxu0 0.0
    %6227 = vmatprep.subr.mxu0 0.0
    %6228 = vmatpush1.msra.mxu0 0.0
    %6229 = vmatprep.subr.mxu0 0.0
    %6230 = vmatpush1.msra.mxu0 0.0
    %6231 = vmatprep.subr.mxu0 0.0
    %6232 = vmatpush1.msra.mxu0 0.0
    %6233 = vmatprep.subr.mxu0 0.0
    %6234 = vmatpush1.msra.mxu0 0.0
    %6235 = vmatprep.subr.mxu0 0.0
    %6236 = vmatpush1.msra.mxu0 0.0
    %6237 = vmatprep.subr.mxu0 0.0
    %6238 = vmatpush1.msra.mxu0 0.0
    %6239 = vmatprep.subr.mxu0 0.0
    %6240 = vmatpush1.msra.mxu0 0.0
    %6241 = vmatprep.subr.mxu0 0.0
    %6242 = vmatpush1.msra.mxu0 0.0
    %6243 = vmatprep.subr.mxu0 0.0
    %6244 = vmatpush1.msra.mxu0 0.0
    %6245 = vmatprep.subr.mxu0 0.0
    %6246 = vmatpush1.msra.mxu0 0.0
    %6247 = vmatprep.subr.mxu0 0.0
    %6248 = vmatpush1.msra.mxu0 0.0
    %6249 = vmatprep.subr.mxu0 0.0
    %6250 = vmatpush1.msra.mxu0 0.0
    %6251 = vmatprep.subr.mxu0 0.0
    %6252 = vmatpush1.msra.mxu0 0.0
    %6253 = vmatprep.subr.mxu0 0.0
    %6254 = vmatpush1.msra.mxu0 0.0
    %6255 = vmatprep.subr.mxu0 0.0
    %6256 = vmatpush1.msra.mxu0 0.0
    %6257 = vmatprep.mubr.f32.mxu0 0.0
    %6258 = vmatmul.mubr.f32.gmra.mrb[0].mxu0 %v6169
    %v6259 = vpop.f32.mrb[0].mxu0
    %v6260 = vadd.f32 0.0, %v6259
    %v6261 = vpop.f32.mrb[0].mxu0
    %6262 = vmatprep.mubr.f32.mxu0 0.0
    %6263 = vmatmul.mubr.f32.gmra.mrb[0].mxu0 %v6174
    %v6264 = vpop.f32.mrb[0].mxu0
    %v6265 = vadd.f32 0.0, %v6264
    %v6266 = vpop.f32.mrb[0].mxu0
    %6267 = vdwg.mxu0
    %6268 = vst.msk [vmem:[#allocation4] sm:$0xff] %vm158, %v6260
    %6269 = vst.msk [vmem:[#allocation4 + $0x8] sm:$0xff] %vm158, %v6265
    %v6270 = vld [vmem:[#allocation4] sm:$0xff]
    %v6271 = vld [vmem:[#allocation4 + $0x8] sm:$0xff]
    %v6272 = vld [vmem:[#allocation11] sm:$0xff]
    %v6273 = vld [vmem:[#allocation11 + $0x8] sm:$0xff]
    %v6274 = vld [vmem:[#allocation13] sm:$0xff]
    %v6275 = vld [vmem:[#allocation13 + $0x8] sm:$0xff]
    %v6276 = vsel %vm158, %v6270, 0.0
    %6277 = vadd.xlane.f32.xlu0 %v6276
    %v6278 = vpop.xlane.xlu0 %6277
    %v6279 = vsel %vm158, %v6271, 0.0
    %6280 = vadd.xlane.f32.xlu0 %v6279
    %v6281 = vpop.xlane.xlu0 %6280
    %v6282 = vmul.f32 %v6270, %v6270
    %v6283 = vmul.f32 %v6271, %v6271
    %v6284 = vsel %vm158, %v6282, 0.0
    %6285 = vadd.xlane.f32.xlu0 %v6284
    %v6286 = vpop.xlane.xlu0 %6285
    %v6287 = vsel %vm158, %v6283, 0.0
    %6288 = vadd.xlane.f32.xlu0 %v6287
    %v6289 = vpop.xlane.xlu0 %6288
    %v6290 = vmul.f32 %v6278, 0.03125
    %v6291 = vmul.f32 %v6281, 0.03125
    %v6292 = vmul.f32 %v6286, 0.03125
    %v6293 = vmul.f32 %v6289, 0.03125
    %v6294 = vmul.f32 %v6290, %v6290
    %v6295 = vmul.f32 %v6291, %v6291
    %v6296 = vsub.f32 %v6292, %v6294
    %v6297 = vsub.f32 %v6293, %v6295
    %v6298 = vadd.f32 %v6296, 1e-05
    %v6299 = vadd.f32 %v6297, 1e-05
    %v6300 = vrsqrt.pop %v6298
    %v6301 = vrsqrt.pop %v6299
    %v6302 = vmul.f32 %v6272, %v6300
    %v6303 = vmul.f32 %v6273, %v6301
    %v6304 = vmul.f32 %v6290, %v6302
    %v6305 = vmul.f32 %v6291, %v6303
    %v6306 = vsub.f32 %v6274, %v6304
    %v6307 = vsub.f32 %v6275, %v6305
    %6309 = vset.pattern.permute.xlu0 10
    %6310 = vperm.xlu0 %6309, %v6302
    %v6311 = vpop.permute.xlu0 %6310
    %6314 = vset.pattern.permute.xlu0 10
    %6315 = vperm.xlu0 %6314, %v6303
    %v6316 = vpop.permute.xlu0 %6315
    %v6318 = vmul.f32 %v6270, %v6311
    %v6319 = vmul.f32 %v6271, %v6316
    %6321 = vset.pattern.permute.xlu0 10
    %6322 = vperm.xlu0 %6321, %v6306
    %v6323 = vpop.permute.xlu0 %6322
    %6326 = vset.pattern.permute.xlu0 10
    %6327 = vperm.xlu0 %6326, %v6307
    %v6328 = vpop.permute.xlu0 %6327
    %v6330 = vadd.f32 %v6318, %v6323
    %v6331 = vadd.f32 %v6319, %v6328
    %v6332 = vmax.f32 %v6330, 0.0
    %v6333 = vmax.f32 %v6331, 0.0
    %s6334 = scalar_lea.vmem %s2, 96
    %v6335 = vld [vmem:[%s6334] sm:$0xff]
    %v6336 = vld [vmem:[%s6334 + $0x8] sm:$0xff]
    %v6338 = vsel %vm385, %v6335, 0
    %v6341 = vsel %vm385, %v6336, 0
    %6343 = vmatprep.subr.mxu0 0.0
    %6344 = vmatpush1.msra.mxu0 %v6332
    %6345 = vmatprep.subr.mxu0 0.0
    %6346 = vmatpush1.msra.mxu0 %v6333
    %6347 = vmatprep.subr.mxu0 0.0
    %6348 = vmatpush1.msra.mxu0 0.0
    %6349 = vmatprep.subr.mxu0 0.0
    %6350 = vmatpush1.msra.mxu0 0.0
    %6351 = vmatprep.subr.mxu0 0.0
    %6352 = vmatpush1.msra.mxu0 0.0
    %6353 = vmatprep.subr.mxu0 0.0
    %6354 = vmatpush1.msra.mxu0 0.0
    %6355 = vmatprep.subr.mxu0 0.0
    %6356 = vmatpush1.msra.mxu0 0.0
    %6357 = vmatprep.subr.mxu0 0.0
    %6358 = vmatpush1.msra.mxu0 0.0
    %6359 = vmatprep.subr.mxu0 0.0
    %6360 = vmatpush1.msra.mxu0 0.0
    %6361 = vmatprep.subr.mxu0 0.0
    %6362 = vmatpush1.msra.mxu0 0.0
    %6363 = vmatprep.subr.mxu0 0.0
    %6364 = vmatpush1.msra.mxu0 0.0
    %6365 = vmatprep.subr.mxu0 0.0
    %6366 = vmatpush1.msra.mxu0 0.0
    %6367 = vmatprep.subr.mxu0 0.0
    %6368 = vmatpush1.msra.mxu0 0.0
    %6369 = vmatprep.subr.mxu0 0.0
    %6370 = vmatpush1.msra.mxu0 0.0
    %6371 = vmatprep.subr.mxu0 0.0
    %6372 = vmatpush1.msra.mxu0 0.0
    %6373 = vmatprep.subr.mxu0 0.0
    %6374 = vmatpush1.msra.mxu0 0.0
    %6375 = vmatprep.subr.mxu0 0.0
    %6376 = vmatpush1.msra.mxu0 0.0
    %6377 = vmatprep.subr.mxu0 0.0
    %6378 = vmatpush1.msra.mxu0 0.0
    %6379 = vmatprep.subr.mxu0 0.0
    %6380 = vmatpush1.msra.mxu0 0.0
    %6381 = vmatprep.subr.mxu0 0.0
    %6382 = vmatpush1.msra.mxu0 0.0
    %6383 = vmatprep.subr.mxu0 0.0
    %6384 = vmatpush1.msra.mxu0 0.0
    %6385 = vmatprep.subr.mxu0 0.0
    %6386 = vmatpush1.msra.mxu0 0.0
    %6387 = vmatprep.subr.mxu0 0.0
    %6388 = vmatpush1.msra.mxu0 0.0
    %6389 = vmatprep.subr.mxu0 0.0
    %6390 = vmatpush1.msra.mxu0 0.0
    %6391 = vmatprep.subr.mxu0 0.0
    %6392 = vmatpush1.msra.mxu0 0.0
    %6393 = vmatprep.subr.mxu0 0.0
    %6394 = vmatpush1.msra.mxu0 0.0
    %6395 = vmatprep.subr.mxu0 0.0
    %6396 = vmatpush1.msra.mxu0 0.0
    %6397 = vmatprep.subr.mxu0 0.0
    %6398 = vmatpush1.msra.mxu0 0.0
    %6399 = vmatprep.subr.mxu0 0.0
    %6400 = vmatpush1.msra.mxu0 0.0
    %6401 = vmatprep.subr.mxu0 0.0
    %6402 = vmatpush1.msra.mxu0 0.0
    %6403 = vmatprep.subr.mxu0 0.0
    %6404 = vmatpush1.msra.mxu0 0.0
    %6405 = vmatprep.subr.mxu0 0.0
    %6406 = vmatpush1.msra.mxu0 0.0
    %6407 = vmatprep.mubr.f32.mxu0 0.0
    %6408 = vmatmul.mubr.f32.gmra.mrb[0].mxu0 %v6338
    %v6409 = vpop.f32.mrb[0].mxu0
    %v6410 = vadd.f32 0.0, %v6409
    %v6411 = vpop.f32.mrb[0].mxu0
    %6412 = vmatprep.mubr.f32.mxu0 0.0
    %6413 = vmatmul.mubr.f32.gmra.mrb[0].mxu0 %v6341
    %v6414 = vpop.f32.mrb[0].mxu0
    %v6415 = vadd.f32 0.0, %v6414
    %v6416 = vpop.f32.mrb[0].mxu0
    %6417 = vdwg.mxu0
    %v6418 = vsel %vm158, %v6410, 0.0
    %6419 = vadd.xlane.f32.xlu0 %v6418
    %v6420 = vpop.xlane.xlu0 %6419
    %v6421 = vsel %vm158, %v6415, 0.0
    %6422 = vadd.xlane.f32.xlu0 %v6421
    %v6423 = vpop.xlane.xlu0 %6422
    %v6424 = vmul.f32 %v6410, %v6410
    %v6425 = vmul.f32 %v6415, %v6415
    %v6426 = vsel %vm158, %v6424, 0.0
    %6427 = vadd.xlane.f32.xlu0 %v6426
    %v6428 = vpop.xlane.xlu0 %6427
    %v6429 = vsel %vm158, %v6425, 0.0
    %6430 = vadd.xlane.f32.xlu0 %v6429
    %v6431 = vpop.xlane.xlu0 %6430
    %v6432 = vmul.f32 %v6420, 0.03125
    %v6433 = vmul.f32 %v6423, 0.03125
    %v6434 = vmul.f32 %v6428, 0.03125
    %v6435 = vmul.f32 %v6431, 0.03125
    %v6436 = vmul.f32 %v6432, %v6432
    %v6437 = vmul.f32 %v6433, %v6433
    %v6438 = vsub.f32 %v6434, %v6436
    %v6439 = vsub.f32 %v6435, %v6437
    %v6440 = vadd.f32 %v6438, 1e-05
    %v6441 = vadd.f32 %v6439, 1e-05
    %v6442 = vrsqrt.pop %v6440
    %v6443 = vrsqrt.pop %v6441
    %v6444 = vmul.f32 %v6272, %v6442
    %v6445 = vmul.f32 %v6273, %v6443
    %v6446 = vmul.f32 %v6432, %v6444
    %v6447 = vmul.f32 %v6433, %v6445
    %v6448 = vsub.f32 %v6274, %v6446
    %v6449 = vsub.f32 %v6275, %v6447
    %6451 = vset.pattern.permute.xlu0 11
    %6452 = vperm.xlu0 %6451, %v6444
    %v6453 = vpop.permute.xlu0 %6452
    %6456 = vset.pattern.permute.xlu0 11
    %6457 = vperm.xlu0 %6456, %v6445
    %v6458 = vpop.permute.xlu0 %6457
    %v6460 = vmul.f32 %v6410, %v6453
    %v6461 = vmul.f32 %v6415, %v6458
    %6463 = vset.pattern.permute.xlu0 11
    %6464 = vperm.xlu0 %6463, %v6448
    %v6465 = vpop.permute.xlu0 %6464
    %6468 = vset.pattern.permute.xlu0 11
    %6469 = vperm.xlu0 %6468, %v6449
    %v6470 = vpop.permute.xlu0 %6469
    %v6472 = vadd.f32 %v6460, %v6465
    %v6473 = vadd.f32 %v6461, %v6470
    %v6474 = vmax.f32 %v6472, 0.0
    %v6475 = vmax.f32 %v6473, 0.0
    %6476 = vst.msk [vmem:[#allocation7 + $0x8] sm:$0xff] %vm158, %v6474
    %6477 = vst.msk [vmem:[#allocation7 + $0x20] sm:$0xff] %vm158, %v6475
    %s6478 = scalar_lea.vmem [#allocation16], 128
    %v6479 = vld [vmem:[%s6478] sm:$0xff]
    %v6480 = vld [vmem:[%s6478 + $0x20] sm:$0x1]
    %v6481 = vld [vmem:[#allocation7] sm:$0xff]
    %v6482 = vld [vmem:[#allocation7 + $0x8] sm:$0xff]
    %v6483 = vld [vmem:[#allocation7 + $0x18] sm:$0xff]
    %v6484 = vld [vmem:[#allocation7 + $0x20] sm:$0xff]
    %v6485 = vlaneseq
    %v6486 = vshrl.u32 %v6485, 7
    %v6487 = vsub.s32 0, %v6486
    %v6488 = vrot.slane %v6479, %v6487
    %6490 = vrot.lane.b32.xlu0 %v6488, 123
    %v6491 = vpop.permute.xlu0 %6490
    %v6493 = vmul.f32 %v6481, %v6491
    %v6494 = vmul.f32 %v6482, %v6491
    %v6495 = vmul.f32 %v6483, %v6491
    %v6496 = vmul.f32 %v6484, %v6491
    %6501 = vrot.lane.b32.xlu0 %v6493, 5
    %v6502 = vpop.permute.xlu0 %6501
    %6503 = vrot.lane.b32.xlu0 %v6494, 5
    %v6504 = vpop.permute.xlu0 %6503
    %6505 = vrot.lane.b32.xlu0 %v6495, 5
    %v6506 = vpop.permute.xlu0 %6505
    %6507 = vrot.lane.b32.xlu0 %v6496, 5
    %v6508 = vpop.permute.xlu0 %6507
    %vm6509 = vcmask 39936
    %v6510 = vsel %vm6509, %v6502, %v6504
    %v6511 = vsel %vm6509, %v6506, %v6508
    %6514 = vst.msk [vmem:[#allocation8] sm:$0xff] %vm158, %v6510
    %6515 = vst.msk [vmem:[#allocation8 + $0x20] sm:$0xff] %vm158, %v6511
    %v6516 = vld [vmem:[#allocation7] sm:$0xff]
    %v6517 = vld [vmem:[#allocation7 + $0x8] sm:$0xff]
    %v6518 = vld [vmem:[#allocation7 + $0x18] sm:$0xff]
    %v6519 = vld [vmem:[#allocation7 + $0x20] sm:$0xff]
    %v6520 = vlaneseq
    %v6521 = vshrl.u32 %v6520, 7
    %v6522 = vsub.s32 1, %v6521
    %v6523 = vrot.slane %v6479, %v6522
    %6525 = vrot.lane.b32.xlu0 %v6523, 124
    %v6526 = vpop.permute.xlu0 %6525
    %v6528 = vmul.f32 %v6516, %v6526
    %v6529 = vmul.f32 %v6517, %v6526
    %v6530 = vmul.f32 %v6518, %v6526
    %v6531 = vmul.f32 %v6519, %v6526
    %6536 = vrot.lane.b32.xlu0 %v6528, 4
    %v6537 = vpop.permute.xlu0 %6536
    %6538 = vrot.lane.b32.xlu0 %v6529, 4
    %v6539 = vpop.permute.xlu0 %6538
    %6540 = vrot.lane.b32.xlu0 %v6530, 4
    %v6541 = vpop.permute.xlu0 %6540
    %6542 = vrot.lane.b32.xlu0 %v6531, 4
    %v6543 = vpop.permute.xlu0 %6542
    %vm6544 = vcmask 31744
    %v6545 = vsel %vm6544, %v6537, %v6539
    %v6546 = vsel %vm6544, %v6541, %v6543
    %6549 = vst.msk [vmem:[#allocation8 + $0x40] sm:$0xff] %vm158, %v6545
    %6550 = vst.msk [vmem:[#allocation8 + $0x60] sm:$0xff] %vm158, %v6546
    %v6551 = vld [vmem:[#allocation7] sm:$0xff]
    %v6552 = vld [vmem:[#allocation7 + $0x8] sm:$0xff]
    %v6553 = vld [vmem:[#allocation7 + $0x18] sm:$0xff]
    %v6554 = vld [vmem:[#allocation7 + $0x20] sm:$0xff]
    %v6555 = vlaneseq
    %v6556 = vshrl.u32 %v6555, 7
    %v6557 = vsub.s32 2, %v6556
    %v6558 = vrot.slane %v6479, %v6557
    %6560 = vrot.lane.b32.xlu0 %v6558, 125
    %v6561 = vpop.permute.xlu0 %6560
    %v6563 = vmul.f32 %v6551, %v6561
    %v6564 = vmul.f32 %v6552, %v6561
    %v6565 = vmul.f32 %v6553, %v6561
    %v6566 = vmul.f32 %v6554, %v6561
    %6571 = vrot.lane.b32.xlu0 %v6563, 3
    %v6572 = vpop.permute.xlu0 %6571
    %6573 = vrot.lane.b32.xlu0 %v6564, 3
    %v6574 = vpop.permute.xlu0 %6573
    %6575 = vrot.lane.b32.xlu0 %v6565, 3
    %v6576 = vpop.permute.xlu0 %6575
    %6577 = vrot.lane.b32.xlu0 %v6566, 3
    %v6578 = vpop.permute.xlu0 %6577
    %vm6579 = vcmask 23552
    %v6580 = vsel %vm6579, %v6572, %v6574
    %v6581 = vsel %vm6579, %v6576, %v6578
    %6584 = vst.msk [vmem:[#allocation8 + $0x80] sm:$0xff] %vm158, %v6580
    %6585 = vst.msk [vmem:[#allocation8 + $0xa0] sm:$0xff] %vm158, %v6581
    %v6586 = vld [vmem:[#allocation7] sm:$0xff]
    %v6587 = vld [vmem:[#allocation7 + $0x8] sm:$0xff]
    %v6588 = vld [vmem:[#allocation7 + $0x18] sm:$0xff]
    %v6589 = vld [vmem:[#allocation7 + $0x20] sm:$0xff]
    %v6590 = vlaneseq
    %v6591 = vshrl.u32 %v6590, 7
    %v6592 = vsub.s32 3, %v6591
    %v6593 = vrot.slane %v6479, %v6592
    %6595 = vrot.lane.b32.xlu0 %v6593, 127
    %v6596 = vpop.permute.xlu0 %6595
    %v6598 = vmul.f32 %v6586, %v6596
    %v6599 = vmul.f32 %v6587, %v6596
    %v6600 = vmul.f32 %v6588, %v6596
    %v6601 = vmul.f32 %v6589, %v6596
    %6606 = vrot.lane.b32.xlu0 %v6598, 1
    %v6607 = vpop.permute.xlu0 %6606
    %6608 = vrot.lane.b32.xlu0 %v6599, 1
    %v6609 = vpop.permute.xlu0 %6608
    %6610 = vrot.lane.b32.xlu0 %v6600, 1
    %v6611 = vpop.permute.xlu0 %6610
    %6612 = vrot.lane.b32.xlu0 %v6601, 1
    %v6613 = vpop.permute.xlu0 %6612
    %v6614 = vsel %vm609, %v6607, %v6609
    %v6615 = vsel %vm609, %v6611, %v6613
    %6618 = vst.msk [vmem:[#allocation8 + $0xc0] sm:$0xff] %vm158, %v6614
    %6619 = vst.msk [vmem:[#allocation8 + $0xe0] sm:$0xff] %vm158, %v6615
    %v6620 = vld [vmem:[#allocation7 + $0x8] sm:$0xff]
    %v6621 = vld [vmem:[#allocation7 + $0x20] sm:$0xff]
    %6622 = vst.msk [vmem:[#allocation8 + $0x100] sm:$0xff] %vm158, %v6620
    %6623 = vst.msk [vmem:[#allocation8 + $0x120] sm:$0xff] %vm158, %v6621
    %v6624 = vld [vmem:[#allocation7 + $0x8] sm:$0xff]
    %v6625 = vld [vmem:[#allocation7 + $0x20] sm:$0xff]
    %v6626 = vlaneseq
    %v6627 = vshrl.u32 %v6626, 7
    %v6628 = vsub.s32 5, %v6627
    %v6629 = vrot.slane %v6479, %v6628
    %6631 = vrot.lane.b32.xlu0 %v6629, 1
    %v6632 = vpop.permute.xlu0 %6631
    %v6634 = vmul.f32 %v6624, %v6632
    %v6635 = vmul.f32 %v6625, %v6632
    %6638 = vrot.lane.b32.xlu0 %v6634, 127
    %v6639 = vpop.permute.xlu0 %6638
    %6640 = vrot.lane.b32.xlu0 %v6635, 127
    %v6641 = vpop.permute.xlu0 %6640
    %6644 = vst.msk [vmem:[#allocation8 + $0x140] sm:$0xff] %vm158, %v6639
    %6645 = vst.msk [vmem:[#allocation8 + $0x160] sm:$0xff] %vm158, %v6641
    %v6646 = vld [vmem:[#allocation7 + $0x8] sm:$0xff]
    %v6647 = vld [vmem:[#allocation7 + $0x20] sm:$0xff]
    %v6648 = vlaneseq
    %v6649 = vshrl.u32 %v6648, 7
    %v6650 = vsub.s32 6, %v6649
    %v6651 = vrot.slane %v6479, %v6650
    %6653 = vrot.lane.b32.xlu0 %v6651, 3
    %v6654 = vpop.permute.xlu0 %6653
    %v6656 = vmul.f32 %v6646, %v6654
    %v6657 = vmul.f32 %v6647, %v6654
    %6660 = vrot.lane.b32.xlu0 %v6656, 125
    %v6661 = vpop.permute.xlu0 %6660
    %6662 = vrot.lane.b32.xlu0 %v6657, 125
    %v6663 = vpop.permute.xlu0 %6662
    %6666 = vst.msk [vmem:[#allocation8 + $0x180] sm:$0xff] %vm158, %v6661
    %6667 = vst.msk [vmem:[#allocation8 + $0x1a0] sm:$0xff] %vm158, %v6663
    %v6668 = vld [vmem:[#allocation7 + $0x8] sm:$0xff]
    %v6669 = vld [vmem:[#allocation7 + $0x20] sm:$0xff]
    %v6670 = vlaneseq
    %v6671 = vshrl.u32 %v6670, 7
    %v6672 = vsub.s32 7, %v6671
    %v6673 = vrot.slane %v6479, %v6672
    %6675 = vrot.lane.b32.xlu0 %v6673, 4
    %v6676 = vpop.permute.xlu0 %6675
    %v6678 = vmul.f32 %v6668, %v6676
    %v6679 = vmul.f32 %v6669, %v6676
    %6682 = vrot.lane.b32.xlu0 %v6678, 124
    %v6683 = vpop.permute.xlu0 %6682
    %6684 = vrot.lane.b32.xlu0 %v6679, 124
    %v6685 = vpop.permute.xlu0 %6684
    %6688 = vst.msk [vmem:[#allocation8 + $0x1c0] sm:$0xff] %vm158, %v6683
    %6689 = vst.msk [vmem:[#allocation8 + $0x1e0] sm:$0xff] %vm158, %v6685
    %v6690 = vld [vmem:[#allocation7 + $0x8] sm:$0xff]
    %v6691 = vld [vmem:[#allocation7 + $0x20] sm:$0xff]
    %v6692 = vlaneseq
    %v6693 = vshrl.u32 %v6692, 7
    %v6694 = vsub.s32 0, %v6693
    %v6695 = vrot.slane %v6480, %v6694
    %6697 = vrot.lane.b32.xlu0 %v6695, 5
    %v6698 = vpop.permute.xlu0 %6697
    %v6700 = vmul.f32 %v6690, %v6698
    %v6701 = vmul.f32 %v6691, %v6698
    %6704 = vrot.lane.b32.xlu0 %v6700, 123
    %v6705 = vpop.permute.xlu0 %6704
    %6706 = vrot.lane.b32.xlu0 %v6701, 123
    %v6707 = vpop.permute.xlu0 %6706
    %6710 = vst.msk [vmem:[#allocation8 + $0x200] sm:$0xff] %vm158, %v6705
    %6711 = vst.msk [vmem:[#allocation8 + $0x220] sm:$0xff] %vm158, %v6707
    %s6712 = scalar_lea.vmem [#allocation9], 160
    %v6713 = vld [vmem:[%s6712] sm:$0xff]
    %v6714 = vld [vmem:[%s6712 + $0x8] sm:$0xff]
    %v6715 = vld [vmem:[%s6712 + $0x10] sm:$0xff]
    %v6716 = vld [vmem:[%s6712 + $0x18] sm:$0xff]
    %v6717 = vld [vmem:[#allocation8] sm:$0xff]
    %v6718 = vld [vmem:[#allocation8 + $0x20] sm:$0xff]
    %v6719 = vld [vmem:[#allocation8 + $0x40] sm:$0xff]
    %v6720 = vld [vmem:[#allocation8 + $0x60] sm:$0xff]
    %v6721 = vld [vmem:[#allocation8 + $0x80] sm:$0xff]
    %v6722 = vld [vmem:[#allocation8 + $0xa0] sm:$0xff]
    %v6723 = vld [vmem:[#allocation8 + $0xc0] sm:$0xff]
    %v6724 = vld [vmem:[#allocation8 + $0xe0] sm:$0xff]
    %v6725 = vld [vmem:[#allocation8 + $0x100] sm:$0xff]
    %v6726 = vld [vmem:[#allocation8 + $0x120] sm:$0xff]
    %v6727 = vld [vmem:[#allocation8 + $0x140] sm:$0xff]
    %v6728 = vld [vmem:[#allocation8 + $0x160] sm:$0xff]
    %v6729 = vld [vmem:[#allocation8 + $0x180] sm:$0xff]
    %v6730 = vld [vmem:[#allocation8 + $0x1a0] sm:$0xff]
    %v6731 = vld [vmem:[#allocation8 + $0x1c0] sm:$0xff]
    %v6732 = vld [vmem:[#allocation8 + $0x1e0] sm:$0xff]
    %v6733 = vld [vmem:[#allocation8 + $0x200] sm:$0xff]
    %v6734 = vld [vmem:[#allocation8 + $0x220] sm:$0xff]
    %v6736 = vsel %vm385, %v6714, 0
    %v6739 = vsel %vm385, %v6716, 0
    %6741 = vmatprep.subr.mxu0 0.0
    %6742 = vmatpush1.msra.mxu0 %v6717
    %6743 = vmatprep.subr.mxu0 0.0
    %6744 = vmatpush1.msra.mxu0 %v6718
    %6745 = vmatprep.subr.mxu0 0.0
    %6746 = vmatpush1.msra.mxu0 %v6719
    %6747 = vmatprep.subr.mxu0 0.0
    %6748 = vmatpush1.msra.mxu0 %v6720
    %6749 = vmatprep.subr.mxu0 0.0
    %6750 = vmatpush1.msra.mxu0 %v6721
    %6751 = vmatprep.subr.mxu0 0.0
    %6752 = vmatpush1.msra.mxu0 %v6722
    %6753 = vmatprep.subr.mxu0 0.0
    %6754 = vmatpush1.msra.mxu0 %v6723
    %6755 = vmatprep.subr.mxu0 0.0
    %6756 = vmatpush1.msra.mxu0 %v6724
    %6757 = vmatprep.subr.mxu0 0.0
    %6758 = vmatpush1.msra.mxu0 %v6725
    %6759 = vmatprep.subr.mxu0 0.0
    %6760 = vmatpush1.msra.mxu0 %v6726
    %6761 = vmatprep.subr.mxu0 0.0
    %6762 = vmatpush1.msra.mxu0 %v6727
    %6763 = vmatprep.subr.mxu0 0.0
    %6764 = vmatpush1.msra.mxu0 %v6728
    %6765 = vmatprep.subr.mxu0 0.0
    %6766 = vmatpush1.msra.mxu0 %v6729
    %6767 = vmatprep.subr.mxu0 0.0
    %6768 = vmatpush1.msra.mxu0 %v6730
    %6769 = vmatprep.subr.mxu0 0.0
    %6770 = vmatpush1.msra.mxu0 %v6731
    %6771 = vmatprep.subr.mxu0 0.0
    %6772 = vmatpush1.msra.mxu0 %v6732
    %6773 = vmatprep.subr.mxu0 0.0
    %6774 = vmatpush1.msra.mxu0 %v6733
    %6775 = vmatprep.subr.mxu0 0.0
    %6776 = vmatpush1.msra.mxu0 %v6734
    %6777 = vmatprep.subr.mxu0 0.0
    %6778 = vmatpush1.msra.mxu0 0.0
    %6779 = vmatprep.subr.mxu0 0.0
    %6780 = vmatpush1.msra.mxu0 0.0
    %6781 = vmatprep.subr.mxu0 0.0
    %6782 = vmatpush1.msra.mxu0 0.0
    %6783 = vmatprep.subr.mxu0 0.0
    %6784 = vmatpush1.msra.mxu0 0.0
    %6785 = vmatprep.subr.mxu0 0.0
    %6786 = vmatpush1.msra.mxu0 0.0
    %6787 = vmatprep.subr.mxu0 0.0
    %6788 = vmatpush1.msra.mxu0 0.0
    %6789 = vmatprep.subr.mxu0 0.0
    %6790 = vmatpush1.msra.mxu0 0.0
    %6791 = vmatprep.subr.mxu0 0.0
    %6792 = vmatpush1.msra.mxu0 0.0
    %6793 = vmatprep.subr.mxu0 0.0
    %6794 = vmatpush1.msra.mxu0 0.0
    %6795 = vmatprep.subr.mxu0 0.0
    %6796 = vmatpush1.msra.mxu0 0.0
    %6797 = vmatprep.subr.mxu0 0.0
    %6798 = vmatpush1.msra.mxu0 0.0
    %6799 = vmatprep.subr.mxu0 0.0
    %6800 = vmatpush1.msra.mxu0 0.0
    %6801 = vmatprep.subr.mxu0 0.0
    %6802 = vmatpush1.msra.mxu0 0.0
    %6803 = vmatprep.subr.mxu0 0.0
    %6804 = vmatpush1.msra.mxu0 0.0
    %6805 = vmatprep.mubr.f32.mxu0 %v6736
    %6806 = vmatmul.mubr.f32.gmra.mrb[0].mxu0 %v6713
    %v6807 = vpop.f32.mrb[0].mxu0
    %v6808 = vadd.f32 0.0, %v6807
    %v6809 = vpop.f32.mrb[0].mxu0
    %6810 = vmatprep.mubr.f32.mxu0 %v6739
    %6811 = vmatmul.mubr.f32.gmra.mrb[0].mxu0 %v6715
    %v6812 = vpop.f32.mrb[0].mxu0
    %v6813 = vadd.f32 0.0, %v6812
    %v6814 = vpop.f32.mrb[0].mxu0
    %6815 = vdwg.mxu0
    %v6816 = vadd.f32 %v6270, %v6808
    %v6817 = vadd.f32 %v6271, %v6813
    %6818 = vst.msk [vmem:[#allocation4] sm:$0xff] %vm158, %v6816
    %6819 = vst.msk [vmem:[#allocation4 + $0x8] sm:$0xff] %vm158, %v6817
    %v6820 = vld [vmem:[#allocation4] sm:$0xff]
    %v6821 = vld [vmem:[#allocation4 + $0x8] sm:$0xff]
    %v6822 = vld [vmem:[#allocation11] sm:$0xff]
    %v6823 = vld [vmem:[#allocation11 + $0x8] sm:$0xff]
    %v6824 = vld [vmem:[#allocation13] sm:$0xff]
    %v6825 = vld [vmem:[#allocation13 + $0x8] sm:$0xff]
    %v6826 = vsel %vm158, %v6820, 0.0
    %6827 = vadd.xlane.f32.xlu0 %v6826
    %v6828 = vpop.xlane.xlu0 %6827
    %v6829 = vsel %vm158, %v6821, 0.0
    %6830 = vadd.xlane.f32.xlu0 %v6829
    %v6831 = vpop.xlane.xlu0 %6830
    %v6832 = vmul.f32 %v6820, %v6820
    %v6833 = vmul.f32 %v6821, %v6821
    %v6834 = vsel %vm158, %v6832, 0.0
    %6835 = vadd.xlane.f32.xlu0 %v6834
    %v6836 = vpop.xlane.xlu0 %6835
    %v6837 = vsel %vm158, %v6833, 0.0
    %6838 = vadd.xlane.f32.xlu0 %v6837
    %v6839 = vpop.xlane.xlu0 %6838
    %v6840 = vmul.f32 %v6828, 0.03125
    %v6841 = vmul.f32 %v6831, 0.03125
    %v6842 = vmul.f32 %v6836, 0.03125
    %v6843 = vmul.f32 %v6839, 0.03125
    %v6844 = vmul.f32 %v6840, %v6840
    %v6845 = vmul.f32 %v6841, %v6841
    %v6846 = vsub.f32 %v6842, %v6844
    %v6847 = vsub.f32 %v6843, %v6845
    %v6848 = vadd.f32 %v6846, 1e-05
    %v6849 = vadd.f32 %v6847, 1e-05
    %v6850 = vrsqrt.pop %v6848
    %v6851 = vrsqrt.pop %v6849
    %v6852 = vmul.f32 %v6822, %v6850
    %v6853 = vmul.f32 %v6823, %v6851
    %v6854 = vmul.f32 %v6840, %v6852
    %v6855 = vmul.f32 %v6841, %v6853
    %v6856 = vsub.f32 %v6824, %v6854
    %v6857 = vsub.f32 %v6825, %v6855
    %6859 = vset.pattern.permute.xlu0 12
    %6860 = vperm.xlu0 %6859, %v6852
    %v6861 = vpop.permute.xlu0 %6860
    %6864 = vset.pattern.permute.xlu0 12
    %6865 = vperm.xlu0 %6864, %v6853
    %v6866 = vpop.permute.xlu0 %6865
    %v6868 = vmul.f32 %v6820, %v6861
    %v6869 = vmul.f32 %v6821, %v6866
    %6871 = vset.pattern.permute.xlu0 12
    %6872 = vperm.xlu0 %6871, %v6856
    %v6873 = vpop.permute.xlu0 %6872
    %6876 = vset.pattern.permute.xlu0 12
    %6877 = vperm.xlu0 %6876, %v6857
    %v6878 = vpop.permute.xlu0 %6877
    %v6880 = vadd.f32 %v6868, %v6873
    %v6881 = vadd.f32 %v6869, %v6878
    %v6882 = vmax.f32 %v6880, 0.0
    %v6883 = vmax.f32 %v6881, 0.0
    %s6884 = scalar_lea.vmem %s2, 112
    %v6885 = vld [vmem:[%s6884] sm:$0xff]
    %v6886 = vld [vmem:[%s6884 + $0x8] sm:$0xff]
    %v6888 = vsel %vm385, %v6885, 0
    %v6891 = vsel %vm385, %v6886, 0
    %6893 = vmatprep.subr.mxu0 0.0
    %6894 = vmatpush1.msra.mxu0 %v6882
    %6895 = vmatprep.subr.mxu0 0.0
    %6896 = vmatpush1.msra.mxu0 %v6883
    %6897 = vmatprep.subr.mxu0 0.0
    %6898 = vmatpush1.msra.mxu0 0.0
    %6899 = vmatprep.subr.mxu0 0.0
    %6900 = vmatpush1.msra.mxu0 0.0
    %6901 = vmatprep.subr.mxu0 0.0
    %6902 = vmatpush1.msra.mxu0 0.0
    %6903 = vmatprep.subr.mxu0 0.0
    %6904 = vmatpush1.msra.mxu0 0.0
    %6905 = vmatprep.subr.mxu0 0.0
    %6906 = vmatpush1.msra.mxu0 0.0
    %6907 = vmatprep.subr.mxu0 0.0
    %6908 = vmatpush1.msra.mxu0 0.0
    %6909 = vmatprep.subr.mxu0 0.0
    %6910 = vmatpush1.msra.mxu0 0.0
    %6911 = vmatprep.subr.mxu0 0.0
    %6912 = vmatpush1.msra.mxu0 0.0
    %6913 = vmatprep.subr.mxu0 0.0
    %6914 = vmatpush1.msra.mxu0 0.0
    %6915 = vmatprep.subr.mxu0 0.0
    %6916 = vmatpush1.msra.mxu0 0.0
    %6917 = vmatprep.subr.mxu0 0.0
    %6918 = vmatpush1.msra.mxu0 0.0
    %6919 = vmatprep.subr.mxu0 0.0
    %6920 = vmatpush1.msra.mxu0 0.0
    %6921 = vmatprep.subr.mxu0 0.0
    %6922 = vmatpush1.msra.mxu0 0.0
    %6923 = vmatprep.subr.mxu0 0.0
    %6924 = vmatpush1.msra.mxu0 0.0
    %6925 = vmatprep.subr.mxu0 0.0
    %6926 = vmatpush1.msra.mxu0 0.0
    %6927 = vmatprep.subr.mxu0 0.0
    %6928 = vmatpush1.msra.mxu0 0.0
    %6929 = vmatprep.subr.mxu0 0.0
    %6930 = vmatpush1.msra.mxu0 0.0
    %6931 = vmatprep.subr.mxu0 0.0
    %6932 = vmatpush1.msra.mxu0 0.0
    %6933 = vmatprep.subr.mxu0 0.0
    %6934 = vmatpush1.msra.mxu0 0.0
    %6935 = vmatprep.subr.mxu0 0.0
    %6936 = vmatpush1.msra.mxu0 0.0
    %6937 = vmatprep.subr.mxu0 0.0
    %6938 = vmatpush1.msra.mxu0 0.0
    %6939 = vmatprep.subr.mxu0 0.0
    %6940 = vmatpush1.msra.mxu0 0.0
    %6941 = vmatprep.subr.mxu0 0.0
    %6942 = vmatpush1.msra.mxu0 0.0
    %6943 = vmatprep.subr.mxu0 0.0
    %6944 = vmatpush1.msra.mxu0 0.0
    %6945 = vmatprep.subr.mxu0 0.0
    %6946 = vmatpush1.msra.mxu0 0.0
    %6947 = vmatprep.subr.mxu0 0.0
    %6948 = vmatpush1.msra.mxu0 0.0
    %6949 = vmatprep.subr.mxu0 0.0
    %6950 = vmatpush1.msra.mxu0 0.0
    %6951 = vmatprep.subr.mxu0 0.0
    %6952 = vmatpush1.msra.mxu0 0.0
    %6953 = vmatprep.subr.mxu0 0.0
    %6954 = vmatpush1.msra.mxu0 0.0
    %6955 = vmatprep.subr.mxu0 0.0
    %6956 = vmatpush1.msra.mxu0 0.0
    %6957 = vmatprep.mubr.f32.mxu0 0.0
    %6958 = vmatmul.mubr.f32.gmra.mrb[0].mxu0 %v6888
    %v6959 = vpop.f32.mrb[0].mxu0
    %v6960 = vadd.f32 0.0, %v6959
    %v6961 = vpop.f32.mrb[0].mxu0
    %6962 = vmatprep.mubr.f32.mxu0 0.0
    %6963 = vmatmul.mubr.f32.gmra.mrb[0].mxu0 %v6891
    %v6964 = vpop.f32.mrb[0].mxu0
    %v6965 = vadd.f32 0.0, %v6964
    %v6966 = vpop.f32.mrb[0].mxu0
    %6967 = vdwg.mxu0
    %v6968 = vsel %vm158, %v6960, 0.0
    %6969 = vadd.xlane.f32.xlu0 %v6968
    %v6970 = vpop.xlane.xlu0 %6969
    %v6971 = vsel %vm158, %v6965, 0.0
    %6972 = vadd.xlane.f32.xlu0 %v6971
    %v6973 = vpop.xlane.xlu0 %6972
    %v6974 = vmul.f32 %v6960, %v6960
    %v6975 = vmul.f32 %v6965, %v6965
    %v6976 = vsel %vm158, %v6974, 0.0
    %6977 = vadd.xlane.f32.xlu0 %v6976
    %v6978 = vpop.xlane.xlu0 %6977
    %v6979 = vsel %vm158, %v6975, 0.0
    %6980 = vadd.xlane.f32.xlu0 %v6979
    %v6981 = vpop.xlane.xlu0 %6980
    %v6982 = vmul.f32 %v6970, 0.03125
    %v6983 = vmul.f32 %v6973, 0.03125
    %v6984 = vmul.f32 %v6978, 0.03125
    %v6985 = vmul.f32 %v6981, 0.03125
    %v6986 = vmul.f32 %v6982, %v6982
    %v6987 = vmul.f32 %v6983, %v6983
    %v6988 = vsub.f32 %v6984, %v6986
    %v6989 = vsub.f32 %v6985, %v6987
    %v6990 = vadd.f32 %v6988, 1e-05
    %v6991 = vadd.f32 %v6989, 1e-05
    %v6992 = vrsqrt.pop %v6990
    %v6993 = vrsqrt.pop %v6991
    %v6994 = vmul.f32 %v6822, %v6992
    %v6995 = vmul.f32 %v6823, %v6993
    %v6996 = vmul.f32 %v6982, %v6994
    %v6997 = vmul.f32 %v6983, %v6995
    %v6998 = vsub.f32 %v6824, %v6996
    %v6999 = vsub.f32 %v6825, %v6997
    %7001 = vset.pattern.permute.xlu0 13
    %7002 = vperm.xlu0 %7001, %v6994
    %v7003 = vpop.permute.xlu0 %7002
    %7006 = vset.pattern.permute.xlu0 13
    %7007 = vperm.xlu0 %7006, %v6995
    %v7008 = vpop.permute.xlu0 %7007
    %v7010 = vmul.f32 %v6960, %v7003
    %v7011 = vmul.f32 %v6965, %v7008
    %7013 = vset.pattern.permute.xlu0 13
    %7014 = vperm.xlu0 %7013, %v6998
    %v7015 = vpop.permute.xlu0 %7014
    %7018 = vset.pattern.permute.xlu0 13
    %7019 = vperm.xlu0 %7018, %v6999
    %v7020 = vpop.permute.xlu0 %7019
    %v7022 = vadd.f32 %v7010, %v7015
    %v7023 = vadd.f32 %v7011, %v7020
    %v7024 = vmax.f32 %v7022, 0.0
    %v7025 = vmax.f32 %v7023, 0.0
    %7026 = vst.msk [vmem:[#allocation7 + $0x8] sm:$0xff] %vm158, %v7024
    %7027 = vst.msk [vmem:[#allocation7 + $0x20] sm:$0xff] %vm158, %v7025
    %v7028 = vld [vmem:[%s6478] sm:$0xff]
    %v7029 = vld [vmem:[%s6478 + $0x20] sm:$0x1]
    %v7030 = vld [vmem:[#allocation7] sm:$0xff]
    %v7031 = vld [vmem:[#allocation7 + $0x8] sm:$0xff]
    %v7032 = vld [vmem:[#allocation7 + $0x18] sm:$0xff]
    %v7033 = vld [vmem:[#allocation7 + $0x20] sm:$0xff]
    %v7034 = vlaneseq
    %v7035 = vshrl.u32 %v7034, 7
    %v7036 = vsub.s32 0, %v7035
    %v7037 = vrot.slane %v7028, %v7036
    %7039 = vrot.lane.b32.xlu0 %v7037, 123
    %v7040 = vpop.permute.xlu0 %7039
    %v7042 = vmul.f32 %v7030, %v7040
    %v7043 = vmul.f32 %v7031, %v7040
    %v7044 = vmul.f32 %v7032, %v7040
    %v7045 = vmul.f32 %v7033, %v7040
    %7050 = vrot.lane.b32.xlu0 %v7042, 5
    %v7051 = vpop.permute.xlu0 %7050
    %7052 = vrot.lane.b32.xlu0 %v7043, 5
    %v7053 = vpop.permute.xlu0 %7052
    %7054 = vrot.lane.b32.xlu0 %v7044, 5
    %v7055 = vpop.permute.xlu0 %7054
    %7056 = vrot.lane.b32.xlu0 %v7045, 5
    %v7057 = vpop.permute.xlu0 %7056
    %v7058 = vsel %vm6509, %v7051, %v7053
    %v7059 = vsel %vm6509, %v7055, %v7057
    %7062 = vst.msk [vmem:[#allocation8] sm:$0xff] %vm158, %v7058
    %7063 = vst.msk [vmem:[#allocation8 + $0x20] sm:$0xff] %vm158, %v7059
    %v7064 = vld [vmem:[#allocation7] sm:$0xff]
    %v7065 = vld [vmem:[#allocation7 + $0x8] sm:$0xff]
    %v7066 = vld [vmem:[#allocation7 + $0x18] sm:$0xff]
    %v7067 = vld [vmem:[#allocation7 + $0x20] sm:$0xff]
    %v7068 = vlaneseq
    %v7069 = vshrl.u32 %v7068, 7
    %v7070 = vsub.s32 1, %v7069
    %v7071 = vrot.slane %v7028, %v7070
    %7073 = vrot.lane.b32.xlu0 %v7071, 124
    %v7074 = vpop.permute.xlu0 %7073
    %v7076 = vmul.f32 %v7064, %v7074
    %v7077 = vmul.f32 %v7065, %v7074
    %v7078 = vmul.f32 %v7066, %v7074
    %v7079 = vmul.f32 %v7067, %v7074
    %7084 = vrot.lane.b32.xlu0 %v7076, 4
    %v7085 = vpop.permute.xlu0 %7084
    %7086 = vrot.lane.b32.xlu0 %v7077, 4
    %v7087 = vpop.permute.xlu0 %7086
    %7088 = vrot.lane.b32.xlu0 %v7078, 4
    %v7089 = vpop.permute.xlu0 %7088
    %7090 = vrot.lane.b32.xlu0 %v7079, 4
    %v7091 = vpop.permute.xlu0 %7090
    %v7092 = vsel %vm6544, %v7085, %v7087
    %v7093 = vsel %vm6544, %v7089, %v7091
    %7096 = vst.msk [vmem:[#allocation8 + $0x40] sm:$0xff] %vm158, %v7092
    %7097 = vst.msk [vmem:[#allocation8 + $0x60] sm:$0xff] %vm158, %v7093
    %v7098 = vld [vmem:[#allocation7] sm:$0xff]
    %v7099 = vld [vmem:[#allocation7 + $0x8] sm:$0xff]
    %v7100 = vld [vmem:[#allocation7 + $0x18] sm:$0xff]
    %v7101 = vld [vmem:[#allocation7 + $0x20] sm:$0xff]
    %v7102 = vlaneseq
    %v7103 = vshrl.u32 %v7102, 7
    %v7104 = vsub.s32 2, %v7103
    %v7105 = vrot.slane %v7028, %v7104
    %7107 = vrot.lane.b32.xlu0 %v7105, 125
    %v7108 = vpop.permute.xlu0 %7107
    %v7110 = vmul.f32 %v7098, %v7108
    %v7111 = vmul.f32 %v7099, %v7108
    %v7112 = vmul.f32 %v7100, %v7108
    %v7113 = vmul.f32 %v7101, %v7108
    %7118 = vrot.lane.b32.xlu0 %v7110, 3
    %v7119 = vpop.permute.xlu0 %7118
    %7120 = vrot.lane.b32.xlu0 %v7111, 3
    %v7121 = vpop.permute.xlu0 %7120
    %7122 = vrot.lane.b32.xlu0 %v7112, 3
    %v7123 = vpop.permute.xlu0 %7122
    %7124 = vrot.lane.b32.xlu0 %v7113, 3
    %v7125 = vpop.permute.xlu0 %7124
    %v7126 = vsel %vm6579, %v7119, %v7121
    %v7127 = vsel %vm6579, %v7123, %v7125
    %7130 = vst.msk [vmem:[#allocation8 + $0x80] sm:$0xff] %vm158, %v7126
    %7131 = vst.msk [vmem:[#allocation8 + $0xa0] sm:$0xff] %vm158, %v7127
    %v7132 = vld [vmem:[#allocation7] sm:$0xff]
    %v7133 = vld [vmem:[#allocation7 + $0x8] sm:$0xff]
    %v7134 = vld [vmem:[#allocation7 + $0x18] sm:$0xff]
    %v7135 = vld [vmem:[#allocation7 + $0x20] sm:$0xff]
    %v7136 = vlaneseq
    %v7137 = vshrl.u32 %v7136, 7
    %v7138 = vsub.s32 3, %v7137
    %v7139 = vrot.slane %v7028, %v7138
    %7141 = vrot.lane.b32.xlu0 %v7139, 127
    %v7142 = vpop.permute.xlu0 %7141
    %v7144 = vmul.f32 %v7132, %v7142
    %v7145 = vmul.f32 %v7133, %v7142
    %v7146 = vmul.f32 %v7134, %v7142
    %v7147 = vmul.f32 %v7135, %v7142
    %7152 = vrot.lane.b32.xlu0 %v7144, 1
    %v7153 = vpop.permute.xlu0 %7152
    %7154 = vrot.lane.b32.xlu0 %v7145, 1
    %v7155 = vpop.permute.xlu0 %7154
    %7156 = vrot.lane.b32.xlu0 %v7146, 1
    %v7157 = vpop.permute.xlu0 %7156
    %7158 = vrot.lane.b32.xlu0 %v7147, 1
    %v7159 = vpop.permute.xlu0 %7158
    %v7160 = vsel %vm609, %v7153, %v7155
    %v7161 = vsel %vm609, %v7157, %v7159
    %7164 = vst.msk [vmem:[#allocation8 + $0xc0] sm:$0xff] %vm158, %v7160
    %7165 = vst.msk [vmem:[#allocation8 + $0xe0] sm:$0xff] %vm158, %v7161
    %v7166 = vld [vmem:[#allocation7 + $0x8] sm:$0xff]
    %v7167 = vld [vmem:[#allocation7 + $0x20] sm:$0xff]
    %7168 = vst.msk [vmem:[#allocation8 + $0x100] sm:$0xff] %vm158, %v7166
    %7169 = vst.msk [vmem:[#allocation8 + $0x120] sm:$0xff] %vm158, %v7167
    %v7170 = vld [vmem:[#allocation7 + $0x8] sm:$0xff]
    %v7171 = vld [vmem:[#allocation7 + $0x20] sm:$0xff]
    %v7172 = vlaneseq
    %v7173 = vshrl.u32 %v7172, 7
    %v7174 = vsub.s32 5, %v7173
    %v7175 = vrot.slane %v7028, %v7174
    %7177 = vrot.lane.b32.xlu0 %v7175, 1
    %v7178 = vpop.permute.xlu0 %7177
    %v7180 = vmul.f32 %v7170, %v7178
    %v7181 = vmul.f32 %v7171, %v7178
    %7184 = vrot.lane.b32.xlu0 %v7180, 127
    %v7185 = vpop.permute.xlu0 %7184
    %7186 = vrot.lane.b32.xlu0 %v7181, 127
    %v7187 = vpop.permute.xlu0 %7186
    %7190 = vst.msk [vmem:[#allocation8 + $0x140] sm:$0xff] %vm158, %v7185
    %7191 = vst.msk [vmem:[#allocation8 + $0x160] sm:$0xff] %vm158, %v7187
    %v7192 = vld [vmem:[#allocation7 + $0x8] sm:$0xff]
    %v7193 = vld [vmem:[#allocation7 + $0x20] sm:$0xff]
    %v7194 = vlaneseq
    %v7195 = vshrl.u32 %v7194, 7
    %v7196 = vsub.s32 6, %v7195
    %v7197 = vrot.slane %v7028, %v7196
    %7199 = vrot.lane.b32.xlu0 %v7197, 3
    %v7200 = vpop.permute.xlu0 %7199
    %v7202 = vmul.f32 %v7192, %v7200
    %v7203 = vmul.f32 %v7193, %v7200
    %7206 = vrot.lane.b32.xlu0 %v7202, 125
    %v7207 = vpop.permute.xlu0 %7206
    %7208 = vrot.lane.b32.xlu0 %v7203, 125
    %v7209 = vpop.permute.xlu0 %7208
    %7212 = vst.msk [vmem:[#allocation8 + $0x180] sm:$0xff] %vm158, %v7207
    %7213 = vst.msk [vmem:[#allocation8 + $0x1a0] sm:$0xff] %vm158, %v7209
    %v7214 = vld [vmem:[#allocation7 + $0x8] sm:$0xff]
    %v7215 = vld [vmem:[#allocation7 + $0x20] sm:$0xff]
    %v7216 = vlaneseq
    %v7217 = vshrl.u32 %v7216, 7
    %v7218 = vsub.s32 7, %v7217
    %v7219 = vrot.slane %v7028, %v7218
    %7221 = vrot.lane.b32.xlu0 %v7219, 4
    %v7222 = vpop.permute.xlu0 %7221
    %v7224 = vmul.f32 %v7214, %v7222
    %v7225 = vmul.f32 %v7215, %v7222
    %7228 = vrot.lane.b32.xlu0 %v7224, 124
    %v7229 = vpop.permute.xlu0 %7228
    %7230 = vrot.lane.b32.xlu0 %v7225, 124
    %v7231 = vpop.permute.xlu0 %7230
    %7234 = vst.msk [vmem:[#allocation8 + $0x1c0] sm:$0xff] %vm158, %v7229
    %7235 = vst.msk [vmem:[#allocation8 + $0x1e0] sm:$0xff] %vm158, %v7231
    %v7236 = vld [vmem:[#allocation7 + $0x8] sm:$0xff]
    %v7237 = vld [vmem:[#allocation7 + $0x20] sm:$0xff]
    %v7238 = vlaneseq
    %v7239 = vshrl.u32 %v7238, 7
    %v7240 = vsub.s32 0, %v7239
    %v7241 = vrot.slane %v7029, %v7240
    %7243 = vrot.lane.b32.xlu0 %v7241, 5
    %v7244 = vpop.permute.xlu0 %7243
    %v7246 = vmul.f32 %v7236, %v7244
    %v7247 = vmul.f32 %v7237, %v7244
    %7250 = vrot.lane.b32.xlu0 %v7246, 123
    %v7251 = vpop.permute.xlu0 %7250
    %7252 = vrot.lane.b32.xlu0 %v7247, 123
    %v7253 = vpop.permute.xlu0 %7252
    %7256 = vst.msk [vmem:[#allocation8 + $0x200] sm:$0xff] %vm158, %v7251
    %7257 = vst.msk [vmem:[#allocation8 + $0x220] sm:$0xff] %vm158, %v7253
    %s7258 = scalar_lea.vmem [#allocation9], 192
    %v7259 = vld [vmem:[%s7258] sm:$0xff]
    %v7260 = vld [vmem:[%s7258 + $0x8] sm:$0xff]
    %v7261 = vld [vmem:[%s7258 + $0x10] sm:$0xff]
    %v7262 = vld [vmem:[%s7258 + $0x18] sm:$0xff]
    %v7263 = vld [vmem:[#allocation8] sm:$0xff]
    %v7264 = vld [vmem:[#allocation8 + $0x20] sm:$0xff]
    %v7265 = vld [vmem:[#allocation8 + $0x40] sm:$0xff]
    %v7266 = vld [vmem:[#allocation8 + $0x60] sm:$0xff]
    %v7267 = vld [vmem:[#allocation8 + $0x80] sm:$0xff]
    %v7268 = vld [vmem:[#allocation8 + $0xa0] sm:$0xff]
    %v7269 = vld [vmem:[#allocation8 + $0xc0] sm:$0xff]
    %v7270 = vld [vmem:[#allocation8 + $0xe0] sm:$0xff]
    %v7271 = vld [vmem:[#allocation8 + $0x100] sm:$0xff]
    %v7272 = vld [vmem:[#allocation8 + $0x120] sm:$0xff]
    %v7273 = vld [vmem:[#allocation8 + $0x140] sm:$0xff]
    %v7274 = vld [vmem:[#allocation8 + $0x160] sm:$0xff]
    %v7275 = vld [vmem:[#allocation8 + $0x180] sm:$0xff]
    %v7276 = vld [vmem:[#allocation8 + $0x1a0] sm:$0xff]
    %v7277 = vld [vmem:[#allocation8 + $0x1c0] sm:$0xff]
    %v7278 = vld [vmem:[#allocation8 + $0x1e0] sm:$0xff]
    %v7279 = vld [vmem:[#allocation8 + $0x200] sm:$0xff]
    %v7280 = vld [vmem:[#allocation8 + $0x220] sm:$0xff]
    %v7282 = vsel %vm385, %v7260, 0
    %v7285 = vsel %vm385, %v7262, 0
    %7287 = vmatprep.subr.mxu0 0.0
    %7288 = vmatpush1.msra.mxu0 %v7263
    %7289 = vmatprep.subr.mxu0 0.0
    %7290 = vmatpush1.msra.mxu0 %v7264
    %7291 = vmatprep.subr.mxu0 0.0
    %7292 = vmatpush1.msra.mxu0 %v7265
    %7293 = vmatprep.subr.mxu0 0.0
    %7294 = vmatpush1.msra.mxu0 %v7266
    %7295 = vmatprep.subr.mxu0 0.0
    %7296 = vmatpush1.msra.mxu0 %v7267
    %7297 = vmatprep.subr.mxu0 0.0
    %7298 = vmatpush1.msra.mxu0 %v7268
    %7299 = vmatprep.subr.mxu0 0.0
    %7300 = vmatpush1.msra.mxu0 %v7269
    %7301 = vmatprep.subr.mxu0 0.0
    %7302 = vmatpush1.msra.mxu0 %v7270
    %7303 = vmatprep.subr.mxu0 0.0
    %7304 = vmatpush1.msra.mxu0 %v7271
    %7305 = vmatprep.subr.mxu0 0.0
    %7306 = vmatpush1.msra.mxu0 %v7272
    %7307 = vmatprep.subr.mxu0 0.0
    %7308 = vmatpush1.msra.mxu0 %v7273
    %7309 = vmatprep.subr.mxu0 0.0
    %7310 = vmatpush1.msra.mxu0 %v7274
    %7311 = vmatprep.subr.mxu0 0.0
    %7312 = vmatpush1.msra.mxu0 %v7275
    %7313 = vmatprep.subr.mxu0 0.0
    %7314 = vmatpush1.msra.mxu0 %v7276
    %7315 = vmatprep.subr.mxu0 0.0
    %7316 = vmatpush1.msra.mxu0 %v7277
    %7317 = vmatprep.subr.mxu0 0.0
    %7318 = vmatpush1.msra.mxu0 %v7278
    %7319 = vmatprep.subr.mxu0 0.0
    %7320 = vmatpush1.msra.mxu0 %v7279
    %7321 = vmatprep.subr.mxu0 0.0
    %7322 = vmatpush1.msra.mxu0 %v7280
    %7323 = vmatprep.subr.mxu0 0.0
    %7324 = vmatpush1.msra.mxu0 0.0
    %7325 = vmatprep.subr.mxu0 0.0
    %7326 = vmatpush1.msra.mxu0 0.0
    %7327 = vmatprep.subr.mxu0 0.0
    %7328 = vmatpush1.msra.mxu0 0.0
    %7329 = vmatprep.subr.mxu0 0.0
    %7330 = vmatpush1.msra.mxu0 0.0
    %7331 = vmatprep.subr.mxu0 0.0
    %7332 = vmatpush1.msra.mxu0 0.0
    %7333 = vmatprep.subr.mxu0 0.0
    %7334 = vmatpush1.msra.mxu0 0.0
    %7335 = vmatprep.subr.mxu0 0.0
    %7336 = vmatpush1.msra.mxu0 0.0
    %7337 = vmatprep.subr.mxu0 0.0
    %7338 = vmatpush1.msra.mxu0 0.0
    %7339 = vmatprep.subr.mxu0 0.0
    %7340 = vmatpush1.msra.mxu0 0.0
    %7341 = vmatprep.subr.mxu0 0.0
    %7342 = vmatpush1.msra.mxu0 0.0
    %7343 = vmatprep.subr.mxu0 0.0
    %7344 = vmatpush1.msra.mxu0 0.0
    %7345 = vmatprep.subr.mxu0 0.0
    %7346 = vmatpush1.msra.mxu0 0.0
    %7347 = vmatprep.subr.mxu0 0.0
    %7348 = vmatpush1.msra.mxu0 0.0
    %7349 = vmatprep.subr.mxu0 0.0
    %7350 = vmatpush1.msra.mxu0 0.0
    %7351 = vmatprep.mubr.f32.mxu0 %v7282
    %7352 = vmatmul.mubr.f32.gmra.mrb[0].mxu0 %v7259
    %v7353 = vpop.f32.mrb[0].mxu0
    %v7354 = vadd.f32 0.0, %v7353
    %v7355 = vpop.f32.mrb[0].mxu0
    %7356 = vmatprep.mubr.f32.mxu0 %v7285
    %7357 = vmatmul.mubr.f32.gmra.mrb[0].mxu0 %v7261
    %v7358 = vpop.f32.mrb[0].mxu0
    %v7359 = vadd.f32 0.0, %v7358
    %v7360 = vpop.f32.mrb[0].mxu0
    %7361 = vdwg.mxu0
    %v7362 = vadd.f32 %v6820, %v7354
    %v7363 = vadd.f32 %v6821, %v7359
    %7364 = vst.msk [vmem:[#allocation4] sm:$0xff] %vm158, %v7362
    %7365 = vst.msk [vmem:[#allocation4 + $0x8] sm:$0xff] %vm158, %v7363
    %v7366 = vld [vmem:[#allocation4] sm:$0xff]
    %v7367 = vld [vmem:[#allocation4 + $0x8] sm:$0xff]
    %v7368 = vld [vmem:[#allocation11] sm:$0xff]
    %v7369 = vld [vmem:[#allocation11 + $0x8] sm:$0xff]
    %v7370 = vld [vmem:[#allocation13] sm:$0xff]
    %v7371 = vld [vmem:[#allocation13 + $0x8] sm:$0xff]
    %v7372 = vsel %vm158, %v7366, 0.0
    %7373 = vadd.xlane.f32.xlu0 %v7372
    %v7374 = vpop.xlane.xlu0 %7373
    %v7375 = vsel %vm158, %v7367, 0.0
    %7376 = vadd.xlane.f32.xlu0 %v7375
    %v7377 = vpop.xlane.xlu0 %7376
    %v7378 = vmul.f32 %v7366, %v7366
    %v7379 = vmul.f32 %v7367, %v7367
    %v7380 = vsel %vm158, %v7378, 0.0
    %7381 = vadd.xlane.f32.xlu0 %v7380
    %v7382 = vpop.xlane.xlu0 %7381
    %v7383 = vsel %vm158, %v7379, 0.0
    %7384 = vadd.xlane.f32.xlu0 %v7383
    %v7385 = vpop.xlane.xlu0 %7384
    %v7386 = vmul.f32 %v7374, 0.03125
    %v7387 = vmul.f32 %v7377, 0.03125
    %v7388 = vmul.f32 %v7382, 0.03125
    %v7389 = vmul.f32 %v7385, 0.03125
    %v7390 = vmul.f32 %v7386, %v7386
    %v7391 = vmul.f32 %v7387, %v7387
    %v7392 = vsub.f32 %v7388, %v7390
    %v7393 = vsub.f32 %v7389, %v7391
    %v7394 = vadd.f32 %v7392, 1e-05
    %v7395 = vadd.f32 %v7393, 1e-05
    %v7396 = vrsqrt.pop %v7394
    %v7397 = vrsqrt.pop %v7395
    %v7398 = vmul.f32 %v7368, %v7396
    %v7399 = vmul.f32 %v7369, %v7397
    %v7400 = vmul.f32 %v7386, %v7398
    %v7401 = vmul.f32 %v7387, %v7399
    %v7402 = vsub.f32 %v7370, %v7400
    %v7403 = vsub.f32 %v7371, %v7401
    %7405 = vset.pattern.permute.xlu0 14
    %7406 = vperm.xlu0 %7405, %v7398
    %v7407 = vpop.permute.xlu0 %7406
    %7410 = vset.pattern.permute.xlu0 14
    %7411 = vperm.xlu0 %7410, %v7399
    %v7412 = vpop.permute.xlu0 %7411
    %v7414 = vmul.f32 %v7366, %v7407
    %v7415 = vmul.f32 %v7367, %v7412
    %7417 = vset.pattern.permute.xlu0 14
    %7418 = vperm.xlu0 %7417, %v7402
    %v7419 = vpop.permute.xlu0 %7418
    %7422 = vset.pattern.permute.xlu0 14
    %7423 = vperm.xlu0 %7422, %v7403
    %v7424 = vpop.permute.xlu0 %7423
    %v7426 = vadd.f32 %v7414, %v7419
    %v7427 = vadd.f32 %v7415, %v7424
    %v7428 = vmax.f32 %v7426, 0.0
    %v7429 = vmax.f32 %v7427, 0.0
    %v7430 = vld [vmem:[#allocation20] sm:$0xff]
    %v7431 = vld [vmem:[#allocation20 + $0x8] sm:$0xff]
    %v7432 = vld [vmem:[#allocation20 + $0x10] sm:$0xff]
    %v7433 = vld [vmem:[#allocation20 + $0x18] sm:$0xff]
    %v7435 = vsel %vm158, %v7428, 0
    %v7438 = vsel %vm158, %v7429, 0
    %7440 = vmatprep.subr.mxu0 0.0
    %7441 = vmatpush1.msra.mxu0 %v7430
    %7442 = vmatprep.subr.mxu0 0.0
    %7443 = vmatpush1.msra.mxu0 %v7431
    %7444 = vmatprep.subr.mxu0 0.0
    %7445 = vmatpush1.msra.mxu0 %v7432
    %7446 = vmatprep.subr.mxu0 0.0
    %7447 = vmatpush1.msra.mxu0 %v7433
    %7448 = vmatprep.subr.mxu0 0.0
    %7449 = vmatpush1.msra.mxu0 0.0
    %7450 = vmatprep.subr.mxu0 0.0
    %7451 = vmatpush1.msra.mxu0 0.0
    %7452 = vmatprep.subr.mxu0 0.0
    %7453 = vmatpush1.msra.mxu0 0.0
    %7454 = vmatprep.subr.mxu0 0.0
    %7455 = vmatpush1.msra.mxu0 0.0
    %7456 = vmatprep.subr.mxu0 0.0
    %7457 = vmatpush1.msra.mxu0 0.0
    %7458 = vmatprep.subr.mxu0 0.0
    %7459 = vmatpush1.msra.mxu0 0.0
    %7460 = vmatprep.subr.mxu0 0.0
    %7461 = vmatpush1.msra.mxu0 0.0
    %7462 = vmatprep.subr.mxu0 0.0
    %7463 = vmatpush1.msra.mxu0 0.0
    %7464 = vmatprep.subr.mxu0 0.0
    %7465 = vmatpush1.msra.mxu0 0.0
    %7466 = vmatprep.subr.mxu0 0.0
    %7467 = vmatpush1.msra.mxu0 0.0
    %7468 = vmatprep.subr.mxu0 0.0
    %7469 = vmatpush1.msra.mxu0 0.0
    %7470 = vmatprep.subr.mxu0 0.0
    %7471 = vmatpush1.msra.mxu0 0.0
    %7472 = vmatprep.subr.mxu0 0.0
    %7473 = vmatpush1.msra.mxu0 0.0
    %7474 = vmatprep.subr.mxu0 0.0
    %7475 = vmatpush1.msra.mxu0 0.0
    %7476 = vmatprep.subr.mxu0 0.0
    %7477 = vmatpush1.msra.mxu0 0.0
    %7478 = vmatprep.subr.mxu0 0.0
    %7479 = vmatpush1.msra.mxu0 0.0
    %7480 = vmatprep.subr.mxu0 0.0
    %7481 = vmatpush1.msra.mxu0 0.0
    %7482 = vmatprep.subr.mxu0 0.0
    %7483 = vmatpush1.msra.mxu0 0.0
    %7484 = vmatprep.subr.mxu0 0.0
    %7485 = vmatpush1.msra.mxu0 0.0
    %7486 = vmatprep.subr.mxu0 0.0
    %7487 = vmatpush1.msra.mxu0 0.0
    %7488 = vmatprep.subr.mxu0 0.0
    %7489 = vmatpush1.msra.mxu0 0.0
    %7490 = vmatprep.subr.mxu0 0.0
    %7491 = vmatpush1.msra.mxu0 0.0
    %7492 = vmatprep.subr.mxu0 0.0
    %7493 = vmatpush1.msra.mxu0 0.0
    %7494 = vmatprep.subr.mxu0 0.0
    %7495 = vmatpush1.msra.mxu0 0.0
    %7496 = vmatprep.subr.mxu0 0.0
    %7497 = vmatpush1.msra.mxu0 0.0
    %7498 = vmatprep.subr.mxu0 0.0
    %7499 = vmatpush1.msra.mxu0 0.0
    %7500 = vmatprep.subr.mxu0 0.0
    %7501 = vmatpush1.msra.mxu0 0.0
    %7502 = vmatprep.subr.mxu0 0.0
    %7503 = vmatpush1.msra.mxu0 0.0
    %7504 = vmatprep.mubr.f32.mxu0 0.0
    %7505 = vmatmul.mubr.f32.gmra.mrb[0].mxu0 %v7435
    %v7506 = vpop.f32.mrb[0].mxu0
    %v7507 = vadd.f32 0.0, %v7506
    %v7508 = vpop.f32.mrb[0].mxu0
    %7509 = vmatprep.mubr.f32.mxu0 0.0
    %7510 = vmatmul.mubr.f32.gmra.mrb[0].mxu0 %v7438
    %v7511 = vpop.f32.mrb[0].mxu0
    %v7512 = vadd.f32 0.0, %v7511
    %v7513 = vpop.f32.mrb[0].mxu0
    %7514 = vdwg.mxu0
    %v7515 = vld [vmem:[#allocation14] sm:$0xff]
    %v7516 = vld [vmem:[#allocation14 + $0x8] sm:$0x3]
    %v7517 = vld [vmem:[%s6] sm:$0xff]
    %v7518 = vld [vmem:[%s6 + $0x8] sm:$0x3]
    %7520 = vset.pattern.permute.xlu0 0
    %7521 = vperm.xlu0 %7520, %v7517
    %v7522 = vpop.permute.xlu0 %7521
    %7525 = vset.pattern.permute.xlu0 0
    %7526 = vperm.xlu0 %7525, %v7518
    %v7527 = vpop.permute.xlu0 %7526
    %v7530 = vsel %vm385, %v7515, 0
    %v7533 = vsel %vm385, %v7516, 0
    %7535 = vmatprep.subr.mxu0 0.0
    %7536 = vmatpush1.msra.mxu0 %v7507
    %7537 = vmatprep.subr.mxu0 0.0
    %7538 = vmatpush1.msra.mxu0 %v7512
    %7539 = vmatprep.subr.mxu0 0.0
    %7540 = vmatpush1.msra.mxu0 0.0
    %7541 = vmatprep.subr.mxu0 0.0
    %7542 = vmatpush1.msra.mxu0 0.0
    %7543 = vmatprep.subr.mxu0 0.0
    %7544 = vmatpush1.msra.mxu0 0.0
    %7545 = vmatprep.subr.mxu0 0.0
    %7546 = vmatpush1.msra.mxu0 0.0
    %7547 = vmatprep.subr.mxu0 0.0
    %7548 = vmatpush1.msra.mxu0 0.0
    %7549 = vmatprep.subr.mxu0 0.0
    %7550 = vmatpush1.msra.mxu0 0.0
    %7551 = vmatprep.subr.mxu0 0.0
    %7552 = vmatpush1.msra.mxu0 0.0
    %7553 = vmatprep.subr.mxu0 0.0
    %7554 = vmatpush1.msra.mxu0 0.0
    %7555 = vmatprep.subr.mxu0 0.0
    %7556 = vmatpush1.msra.mxu0 0.0
    %7557 = vmatprep.subr.mxu0 0.0
    %7558 = vmatpush1.msra.mxu0 0.0
    %7559 = vmatprep.subr.mxu0 0.0
    %7560 = vmatpush1.msra.mxu0 0.0
    %7561 = vmatprep.subr.mxu0 0.0
    %7562 = vmatpush1.msra.mxu0 0.0
    %7563 = vmatprep.subr.mxu0 0.0
    %7564 = vmatpush1.msra.mxu0 0.0
    %7565 = vmatprep.subr.mxu0 0.0
    %7566 = vmatpush1.msra.mxu0 0.0
    %7567 = vmatprep.subr.mxu0 0.0
    %7568 = vmatpush1.msra.mxu0 0.0
    %7569 = vmatprep.subr.mxu0 0.0
    %7570 = vmatpush1.msra.mxu0 0.0
    %7571 = vmatprep.subr.mxu0 0.0
    %7572 = vmatpush1.msra.mxu0 0.0
    %7573 = vmatprep.subr.mxu0 0.0
    %7574 = vmatpush1.msra.mxu0 0.0
    %7575 = vmatprep.subr.mxu0 0.0
    %7576 = vmatpush1.msra.mxu0 0.0
    %7577 = vmatprep.subr.mxu0 0.0
    %7578 = vmatpush1.msra.mxu0 0.0
    %7579 = vmatprep.subr.mxu0 0.0
    %7580 = vmatpush1.msra.mxu0 0.0
    %7581 = vmatprep.subr.mxu0 0.0
    %7582 = vmatpush1.msra.mxu0 0.0
    %7583 = vmatprep.subr.mxu0 0.0
    %7584 = vmatpush1.msra.mxu0 0.0
    %7585 = vmatprep.subr.mxu0 0.0
    %7586 = vmatpush1.msra.mxu0 0.0
    %7587 = vmatprep.subr.mxu0 0.0
    %7588 = vmatpush1.msra.mxu0 0.0
    %7589 = vmatprep.subr.mxu0 0.0
    %7590 = vmatpush1.msra.mxu0 0.0
    %7591 = vmatprep.subr.mxu0 0.0
    %7592 = vmatpush1.msra.mxu0 0.0
    %7593 = vmatprep.subr.mxu0 0.0
    %7594 = vmatpush1.msra.mxu0 0.0
    %7595 = vmatprep.subr.mxu0 0.0
    %7596 = vmatpush1.msra.mxu0 0.0
    %7597 = vmatprep.subr.mxu0 0.0
    %7598 = vmatpush1.msra.mxu0 0.0
    %7599 = vmatprep.mubr.f32.mxu0 0.0
    %7600 = vmatmul.mubr.f32.gmra.mrb[0].mxu0 %v7530
    %v7601 = vpop.f32.mrb[0].mxu0
    %v7602 = vadd.f32 %v7522, %v7601
    %v7603 = vpop.f32.mrb[0].mxu0
    %7604 = vmatprep.mubr.f32.mxu0 0.0
    %7605 = vmatmul.mubr.f32.gmra.mrb[0].mxu0 %v7533
    %v7606 = vpop.f32.mrb[0].mxu0
    %v7607 = vadd.f32 %v7527, %v7606
    %v7608 = vpop.f32.mrb[0].mxu0
    %7609 = vdwg.mxu0
    %vm7610 = vcmask 15360
    %7611 = vst.msk [vmem:[%s11] sm:$0xff] %vm7610, %v7602
    %vm7612 = vcmask 9216
    %7613 = vst.msk [vmem:[%s11 + $0x8] sm:$0x3] %vm7612, %v7607
    // Predicated region
    $region78: #{forward.1} parent=1 // pred_check
      _
    $region79: #{forward.1} parent=1 // pred_check_branch
      %7615 = sbr.rel (0) target = $region81
    $region80: #{forward.1} parent=1 // pred_region
      _
    $region81: #{forward.1} parent=1 // pred_fallthru
      _
    // Predicated region
    $region82: #{forward.1} parent=1 // pred_check
      _
    $region83: #{forward.1} parent=1 // pred_check_branch
      %7617 = sbr.rel (0) target = $region85
    $region84: #{forward.1} parent=1 // pred_region
      _
    $region85: #{forward.1} parent=1 // pred_fallthru
      _
    %7618 = vsyncpa [#allocation10], 1
    %7619 = vsyncpa [#allocation12], 1
    %7620 = vsyncpa [#allocation15], 1
    %7621 = vsyncpa [#allocation18], 1
    %7622 = vsyncpa [#allocation21], 1

</llo_original>
